<compile_context>
chip_gen: v5e
topology: v5e:2x2
jax: 0.10.0
libtpu: 0.0.40
codegen_flags: <defaults>
</compile_context>

<pallas_src>
import jax
import jax.numpy as jnp
from jax import lax
from jax.experimental import pallas as pl
from jax.experimental.pallas import tpu as pltpu

LN_EPS = 1e-12        # matches the in-file reference LayerNorm (not torch's 1e-5)
NEG_INF = -1e9
N_SCRATCH = 5         # q_scr, k_self, v_self, k_cross, v_cross


def _fori_unrolled(n, body, init):
    # Short fixed trip-count loop: LLO-visible, bounded live ranges
    # (vs. a static Python unroll which keeps every head's tiles live at once).
    try:
        return lax.fori_loop(0, n, body, init, unroll=True)
    except TypeError:  # very old jax without fori_loop(unroll=)
        return lax.fori_loop(0, n, body, init)


def make_decoder_layer_kernel(n_head, d_model, causal_future, compute_dtype,
                              approx_recip):
    d_head = d_model // n_head
    cdt = compute_dtype

    def mm(x, w):
        # MXU matmul: operands in compute dtype, f32 accumulation.
        return jnp.dot(x.astype(cdt), w, preferred_element_type=jnp.float32)

    def layernorm(x, g_ref, b_ref):
        # statistics kept in f32
        mu = jnp.mean(x, axis=-1, keepdims=True)
        var = jnp.mean(jnp.square(x - mu), axis=-1, keepdims=True)
        return (x - mu) * lax.rsqrt(var + LN_EPS) * g_ref[...] + b_ref[...]

    def kernel(*refs):
        scratch = refs[-N_SCRATCH:]
        out_ref = refs[-N_SCRATCH - 1]
        ins = refs[:-N_SCRATCH - 1]
        if causal_future:
            xenc_ref, xdec_ref, cbias_ref, *wrefs = ins
            fbias_ref = None
        else:
            xenc_ref, xdec_ref, fbias_ref, cbias_ref, *wrefs = ins
        (swq, sbq, swk, sbk, swv, sbv, swo, sbo, g1, be1,
         cwq, cbq, cwk, cbk, cwv, cbv, cwo, cbo, g2, be2,
         fw1, fb1, fw2, fb2, g3, be3) = wrefs
        q_scr, ks_scr, vs_scr, kc_scr, vc_scr = scratch

        tq = out_ref.shape[1]
        s_dec = xdec_ref.shape[1]

        # ---- once per batch: K/V projections for BOTH attentions go into
        #      persistent head-major VMEM scratch and are reused by every
        #      query tile of this batch (q axis is "arbitrary"). -------------
        def project_kv(x, w_ref, b_ref, dst_ref):
            y = mm(x, w_ref[...]) + b_ref[...]               # (S, D) f32, full width
            for h in range(n_head):                          # static slices, 1x/batch
                dst_ref[h] = y[:, h * d_head:(h + 1) * d_head].astype(cdt)

        @pl.when(pl.program_id(1) == 0)
        def _():
            xdec_full = xdec_ref[0]                          # (S_dec, D)
            xenc_full = xenc_ref[0]                          # (S_enc, D)
            project_kv(xdec_full, swk, sbk, ks_scr)          # self-attn K
            project_kv(xdec_full, swv, sbv, vs_scr)          # self-attn V
            project_kv(xenc_full, cwk, cbk, kc_scr)          # cross-attn K
            project_kv(xenc_full, cwv, cbv, vc_scr)          # cross-attn V

        # ---- this query tile ------------------------------------------------
        q_start = pl.multiple_of(pl.program_id(1) * tq, 8)
        xq = xdec_ref[0, pl.ds(q_start, tq), :]              # (tq, D) queries

        if causal_future:
            # causal additive bias generated in-kernel (no mask DMA)
            row = lax.broadcasted_iota(jnp.int32, (tq, s_dec), 0) + q_start
            col = lax.broadcasted_iota(jnp.int32, (tq, s_dec), 1)
            fbias = jnp.where(row >= col, 0.0, NEG_INF).astype(jnp.float32)
        else:
            fbias = fbias_ref[0].astype(jnp.float32)         # (tq, S_dec)
        cbias = cbias_ref[0].astype(jnp.float32)             # (tq, S_enc)

        def attention(x_q, bias, wq_ref, bq_ref, k_scr, v_scr, wo_ref, bo_ref):
            # full-width lane-dense Q projection; 1/sqrt(d_head) pre-folded.
            q = mm(x_q, wq_ref[...]) + bq_ref[...]           # (tq, D) f32
            for h in range(n_head):                          # head-major staging
                q_scr[h] = q[:, h * d_head:(h + 1) * d_head].astype(cdt)

            def head_body(h, acc):
                s = lax.dot_general(q_scr[h], k_scr[h],
                                    (((1,), (1,)), ((), ())),
                                    preferred_element_type=jnp.float32)  # (tq, Sk)
                s = s + bias
                s = s - jnp.max(s, axis=-1, keepdims=True)
                p = jnp.exp(s)
                l = jnp.sum(p, axis=-1, keepdims=True)
                pv = jnp.dot(p.astype(cdt), v_scr[h],
                             preferred_element_type=jnp.float32)         # (tq, dh)
                # normalise AFTER P@V: VALU work is (tq, d_head), not (tq, Sk)
                pv = pv * pl.reciprocal(l, approx=approx_recip)
                # accumulate straight through this head's W_o slab (no concat)
                return acc + jnp.dot(pv.astype(cdt), wo_ref[h],
                                     preferred_element_type=jnp.float32)

            acc = _fori_unrolled(n_head, head_body,
                                 jnp.zeros((x_q.shape[0], d_model), jnp.float32))
            return acc + bo_ref[...]

        # 1) masked multi-head self-attention + residual + LN1
        a1 = attention(xq, fbias, swq, sbq, ks_scr, vs_scr, swo, sbo)
        x1 = layernorm(a1 + xq, g1, be1)

        # 2) cross-attention (K/V from encoder, Q from decoder) + residual + LN2
        a2 = attention(x1, cbias, cwq, cbq, kc_scr, vc_scr, cwo, cbo)
        x2 = layernorm(a2 + x1, g2, be2)

        # 3) position-wise FFN (Linear -> ReLU -> Linear) + residual + LN3
        hdn = jnp.maximum(mm(x2, fw1[...]) + fb1[...], 0.0)
        f = mm(hdn, fw2[...]) + fb2[...]
        out_ref[0] = layernorm(f + x2, g3, be3).astype(out_ref.dtype)

    return kernel


def decoder_layer(xenc, xdec, future_mask, cross_mask, params, n_head, *,
                  causal_future=True, compute_dtype=jnp.bfloat16,
                  out_dtype=None, tq_tile=256, approx_recip=True,
                  vmem_limit_bytes=64 * 1024 * 1024):
    """Fused decoder layer. Dropout layers are identity (eval mode)."""
    B, S_enc, D = xenc.shape
    _, S_dec, _ = xdec.shape
    d_head = D // n_head
    out_dtype = xdec.dtype if out_dtype is None else out_dtype

    # ---- query tiling -------------------------------------------------------
    tq = S_dec if S_dec <= tq_tile else tq_tile
    if S_dec % tq != 0 or tq % 8 != 0:
        tq = S_dec                        # single tile if the requested tile is invalid
    n_q = S_dec // tq

    # ---- wrapper-side layout plumbing (plain XLA ops, done once) ------------
    (swq, sbq, swk, sbk, swv, sbv, swo, sbo, g1, be1,
     cwq, cbq, cwk, cbk, cwv, cbv, cwo, cbo, g2, be2,
     fw1, fb1, fw2, fb2, g3, be3) = params
    scale = 1.0 / float(d_head) ** 0.5
    cast = lambda w: w.astype(compute_dtype)
    # 1/sqrt(d_head) folded into W_q/b_q; W_o pre-split per head -> (H, dh, D).
    kparams = (cast(swq * scale), sbq * scale, cast(swk), sbk, cast(swv), sbv,
               cast(swo).reshape(n_head, d_head, D), sbo, g1, be1,
               cast(cwq * scale), cbq * scale, cast(cwk), cbk, cast(cwv), cbv,
               cast(cwo).reshape(n_head, d_head, D), cbo, g2, be2,
               cast(fw1), fb1, cast(fw2), fb2, g3, be3)

    # Masks -> additive bf16 biases (half the HBM bytes of f32; single add
    # in-kernel instead of cmp+select).
    cross_bias = jnp.where(cross_mask > 0, 0.0, NEG_INF).astype(jnp.bfloat16)

    tensor_inputs = [xenc, xdec]
    act_specs = [pl.BlockSpec((1, S_enc, D), lambda b, q: (b, 0, 0)),
                 pl.BlockSpec((1, S_dec, D), lambda b, q: (b, 0, 0))]
    if not causal_future:
        future_bias = jnp.where(future_mask > 0, 0.0, NEG_INF).astype(jnp.bfloat16)
        tensor_inputs.append(future_bias)
        act_specs.append(pl.BlockSpec((1, tq, S_dec), lambda b, q: (b, q, 0)))
    tensor_inputs.append(cross_bias)
    act_specs.append(pl.BlockSpec((1, tq, S_enc), lambda b, q: (b, q, 0)))

    kernel = make_decoder_layer_kernel(n_head, D, causal_future, compute_dtype,
                                       approx_recip)

    scratch_shapes = [
        pltpu.VMEM((n_head, tq, d_head), compute_dtype),      # per-tile Q (head-major)
        pltpu.VMEM((n_head, S_dec, d_head), compute_dtype),   # self-attn K (per batch)
        pltpu.VMEM((n_head, S_dec, d_head), compute_dtype),   # self-attn V (per batch)
        pltpu.VMEM((n_head, S_enc, d_head), compute_dtype),   # cross-attn K (per batch)
        pltpu.VMEM((n_head, S_enc, d_head), compute_dtype),   # cross-attn V (per batch)
    ]

    def call(weight_pipeline_mode):
        def weight_spec(arr):
            nd = arr.ndim
            if weight_pipeline_mode is None:
                return pl.BlockSpec(arr.shape, lambda b, q: (0,) * nd)
            return pl.BlockSpec(arr.shape, lambda b, q: (0,) * nd,
                                pipeline_mode=weight_pipeline_mode)

        in_specs = act_specs + [weight_spec(w) for w in kparams]
        return pl.pallas_call(
            kernel,
            out_shape=jax.ShapeDtypeStruct((B, S_dec, D), out_dtype),
            grid_spec=pltpu.PrefetchScalarGridSpec(
                num_scalar_prefetch=0,
                grid=(B, n_q),
                in_specs=in_specs,
                out_specs=pl.BlockSpec((1, tq, D), lambda b, q: (b, q, 0)),
                scratch_shapes=scratch_shapes),
            compiler_params=pltpu.CompilerParams(
                # batch megacore-shardable; query axis must stay "arbitrary"
                # so the per-batch K/V scratch is reused core-locally.
                dimension_semantics=("parallel", "arbitrary"),
                # v5e/v6e: well below 128 MiB physical VMEM.
                # TODO(synk): cap near ~48-56 MiB on v7x (64 MiB physical).
                vmem_limit_bytes=vmem_limit_bytes),
        )(*tensor_inputs, *kparams)

    try:
        # Weights never change block index -> single-buffer them (halves their
        # VMEM footprint).  Narrow, version-gated fallback only.
        return call(pl.Buffered(1))
    except (AttributeError, TypeError, ValueError, NotImplementedError,
            pltpu.LoweringException):
        # TODO(synk): pipeline_mode=pl.Buffered(1) unsupported on this jax
        # version; fall back to default (double-buffered) weight blocks.
        return call(None)


def init_params(key, d_model, ffn_hidden):
    keys = iter(jax.random.split(key, 16))

    def lin(din, dout):
        kw, kb = jax.random.split(next(keys))
        w = jax.random.normal(kw, (din, dout), jnp.float32) / float(din) ** 0.5
        b = jax.random.normal(kb, (1, dout), jnp.float32) * 0.02
        return w, b

    def ln():
        return jnp.ones((1, d_model), jnp.float32), jnp.zeros((1, d_model), jnp.float32)

    params = []
    for _ in range(4):                      # self-attn Wq/Wk/Wv/Wo
        params += list(lin(d_model, d_model))
    params += list(ln())                    # LN1
    for _ in range(4):                      # cross-attn Wq/Wk/Wv/Wo
        params += list(lin(d_model, d_model))
    params += list(ln())                    # LN2
    w1, b1 = lin(d_model, ffn_hidden)
    w2, b2 = lin(ffn_hidden, d_model)
    params += [w1, b1, w2, b2]              # FFN
    params += list(ln())                    # LN3
    return params


def ref_forward(xenc, xdec, fmask, cmask, params, n_head):
    (swq, sbq, swk, sbk, swv, sbv, swo, sbo, g1, be1,
     cwq, cbq, cwk, cbk, cwv, cbv, cwo, cbo, g2, be2,
     fw1, fb1, fw2, fb2, g3, be3) = params
    D = xdec.shape[-1]
    dh = D // n_head

    def ln(x, g, b):
        mu = jnp.mean(x, axis=-1, keepdims=True)
        var = jnp.mean(jnp.square(x - mu), axis=-1, keepdims=True)
        return (x - mu) * lax.rsqrt(var + LN_EPS) * g + b

    def mha(x_kv, x_q, mask, wq, bq, wk, bk, wv, bv, wo, bo):
        B, Sq, _ = x_q.shape
        q = x_q @ wq + bq
        k = x_kv @ wk + bk
        v = x_kv @ wv + bv

        def split(t):
            return t.reshape(t.shape[0], t.shape[1], n_head, dh).transpose(0, 2, 1, 3)

        qh, kh, vh = split(q), split(k), split(v)
        s = jnp.einsum('bhqd,bhkd->bhqk', qh, kh) / float(dh) ** 0.5
        s = jnp.where(mask[:, None] > 0, s, NEG_INF)
        p = jax.nn.softmax(s, axis=-1)
        o = jnp.einsum('bhqk,bhkd->bhqd', p, vh).transpose(0, 2, 1, 3).reshape(B, Sq, D)
        return o @ wo + bo

    a1 = mha(xdec, xdec, fmask, swq, sbq, swk, sbk, swv, sbv, swo, sbo)
    x1 = ln(a1 + xdec, g1, be1)
    a2 = mha(xenc, x1, cmask, cwq, cbq, cwk, cbk, cwv, cbv, cwo, cbo)
    x2 = ln(a2 + x1, g2, be2)
    f = jnp.maximum(x2 @ fw1 + fb1, 0.0) @ fw2 + fb2
    return ln(f + x2, g3, be3)


if __name__ == "__main__":
    # Small, lane-dense test shapes (D multiple of 128).
    B, S_ENC, S_DEC, D, N_HEAD, FFN = 2, 32, 32, 256, 4, 512

    key = jax.random.PRNGKey(0)
    k_enc, k_dec, k_par = jax.random.split(key, 3)
    xenc = jax.random.normal(k_enc, (B, S_ENC, D), jnp.float32)
    xdec = jax.random.normal(k_dec, (B, S_DEC, D), jnp.float32)
    future_mask = jnp.tile(jnp.tril(jnp.ones((S_DEC, S_DEC), jnp.float32))[None],
                           (B, 1, 1))
    cross_mask = jnp.ones((B, S_DEC, S_ENC), jnp.float32)

    params = init_params(k_par, D, FFN)
    ref = ref_forward(xenc, xdec, future_mask, cross_mask, params, N_HEAD)

    # 1) f32 MXU operands, causal bias generated in-kernel, 2 query tiles/batch.
    out = jax.block_until_ready(
        decoder_layer(xenc, xdec, future_mask, cross_mask, params, N_HEAD,
                      causal_future=True, compute_dtype=jnp.float32, tq_tile=16))
    # approx EUP reciprocal in the softmax is the dominant error term here.
    if not bool(jnp.allclose(out, ref, rtol=5e-3, atol=5e-3)):
        raise AssertionError("Pallas kernel (f32, in-kernel causal mask) mismatch")

    # 2) f32 compute, explicit (DMA'd bf16 bias) future-mask path.
    out2 = jax.block_until_ready(
        decoder_layer(xenc, xdec, future_mask, cross_mask, params, N_HEAD,
                      causal_future=False, compute_dtype=jnp.float32, tq_tile=16))
    if not bool(jnp.allclose(out2, ref, rtol=5e-3, atol=5e-3)):
        raise AssertionError("Pallas kernel (f32, explicit mask) mismatch")

    # 3) default bf16 MXU operands (f32 accumulation / softmax / LayerNorm stats).
    out3 = jax.block_until_ready(
        decoder_layer(xenc, xdec, future_mask, cross_mask, params, N_HEAD,
                      causal_future=True, tq_tile=16))
    if not bool(jnp.allclose(out3, ref, rtol=5e-2, atol=5e-2)):
        raise AssertionError("Pallas kernel (bf16 matmul operands) mismatch")

    print("KERNEL_OK")
</pallas_src>

<mosaic_0001>
module attributes {stable_mosaic.version = 11 : i64} {
  func.func @kernel(%arg0: i32, %arg1: i32, %arg2: memref<1x32x256xf32, #tpu.memory_space<vmem>>, %arg3: memref<1x32x256xf32, #tpu.memory_space<vmem>>, %arg4: memref<1x16x32xbf16, #tpu.memory_space<vmem>>, %arg5: memref<256x256xf32, #tpu.memory_space<vmem>>, %arg6: memref<1x256xf32, #tpu.memory_space<vmem>>, %arg7: memref<256x256xf32, #tpu.memory_space<vmem>>, %arg8: memref<1x256xf32, #tpu.memory_space<vmem>>, %arg9: memref<256x256xf32, #tpu.memory_space<vmem>>, %arg10: memref<1x256xf32, #tpu.memory_space<vmem>>, %arg11: memref<4x64x256xf32, #tpu.memory_space<vmem>>, %arg12: memref<1x256xf32, #tpu.memory_space<vmem>>, %arg13: memref<1x256xf32, #tpu.memory_space<vmem>>, %arg14: memref<1x256xf32, #tpu.memory_space<vmem>>, %arg15: memref<256x256xf32, #tpu.memory_space<vmem>>, %arg16: memref<1x256xf32, #tpu.memory_space<vmem>>, %arg17: memref<256x256xf32, #tpu.memory_space<vmem>>, %arg18: memref<1x256xf32, #tpu.memory_space<vmem>>, %arg19: memref<256x256xf32, #tpu.memory_space<vmem>>, %arg20: memref<1x256xf32, #tpu.memory_space<vmem>>, %arg21: memref<4x64x256xf32, #tpu.memory_space<vmem>>, %arg22: memref<1x256xf32, #tpu.memory_space<vmem>>, %arg23: memref<1x256xf32, #tpu.memory_space<vmem>>, %arg24: memref<1x256xf32, #tpu.memory_space<vmem>>, %arg25: memref<256x512xf32, #tpu.memory_space<vmem>>, %arg26: memref<1x512xf32, #tpu.memory_space<vmem>>, %arg27: memref<512x256xf32, #tpu.memory_space<vmem>>, %arg28: memref<1x256xf32, #tpu.memory_space<vmem>>, %arg29: memref<1x256xf32, #tpu.memory_space<vmem>>, %arg30: memref<1x256xf32, #tpu.memory_space<vmem>>, %arg31: memref<1x16x256xf32, #tpu.memory_space<vmem>>, %arg32: memref<4x16x64xf32, #tpu.memory_space<vmem>>, %arg33: memref<4x32x64xf32, #tpu.memory_space<vmem>>, %arg34: memref<4x32x64xf32, #tpu.memory_space<vmem>>, %arg35: memref<4x32x64xf32, #tpu.memory_space<vmem>>, %arg36: memref<4x32x64xf32, #tpu.memory_space<vmem>>) attributes {dimension_semantics = [#tpu.dimension_semantics<parallel>, #tpu.dimension_semantics<arbitrary>], iteration_bounds = array<i64: 2, 2>, scalar_prefetch = 0 : i64, scratch_operands = 5 : i64, tpu.core_type = #tpu.core_type<tc>, window_params = [{transform_indices = @transform_0, window_bounds = array<i64: 1, 32, 256>}, {transform_indices = @transform_1, window_bounds = array<i64: 1, 32, 256>}, {transform_indices = @transform_2, window_bounds = array<i64: 1, 16, 32>}, {pipeline_mode = #tpu.pipeline_mode<synchronous>, transform_indices = @transform_3, window_bounds = array<i64: 256, 256>}, {pipeline_mode = #tpu.pipeline_mode<synchronous>, transform_indices = @transform_4, window_bounds = array<i64: 1, 256>}, {pipeline_mode = #tpu.pipeline_mode<synchronous>, transform_indices = @transform_5, window_bounds = array<i64: 256, 256>}, {pipeline_mode = #tpu.pipeline_mode<synchronous>, transform_indices = @transform_6, window_bounds = array<i64: 1, 256>}, {pipeline_mode = #tpu.pipeline_mode<synchronous>, transform_indices = @transform_7, window_bounds = array<i64: 256, 256>}, {pipeline_mode = #tpu.pipeline_mode<synchronous>, transform_indices = @transform_8, window_bounds = array<i64: 1, 256>}, {pipeline_mode = #tpu.pipeline_mode<synchronous>, transform_indices = @transform_9, window_bounds = array<i64: 4, 64, 256>}, {pipeline_mode = #tpu.pipeline_mode<synchronous>, transform_indices = @transform_10, window_bounds = array<i64: 1, 256>}, {pipeline_mode = #tpu.pipeline_mode<synchronous>, transform_indices = @transform_11, window_bounds = array<i64: 1, 256>}, {pipeline_mode = #tpu.pipeline_mode<synchronous>, transform_indices = @transform_12, window_bounds = array<i64: 1, 256>}, {pipeline_mode = #tpu.pipeline_mode<synchronous>, transform_indices = @transform_13, window_bounds = array<i64: 256, 256>}, {pipeline_mode = #tpu.pipeline_mode<synchronous>, transform_indices = @transform_14, window_bounds = array<i64: 1, 256>}, {pipeline_mode = #tpu.pipeline_mode<synchronous>, transform_indices = @transform_15, window_bounds = array<i64: 256, 256>}, {pipeline_mode = #tpu.pipeline_mode<synchronous>, transform_indices = @transform_16, window_bounds = array<i64: 1, 256>}, {pipeline_mode = #tpu.pipeline_mode<synchronous>, transform_indices = @transform_17, window_bounds = array<i64: 256, 256>}, {pipeline_mode = #tpu.pipeline_mode<synchronous>, transform_indices = @transform_18, window_bounds = array<i64: 1, 256>}, {pipeline_mode = #tpu.pipeline_mode<synchronous>, transform_indices = @transform_19, window_bounds = array<i64: 4, 64, 256>}, {pipeline_mode = #tpu.pipeline_mode<synchronous>, transform_indices = @transform_20, window_bounds = array<i64: 1, 256>}, {pipeline_mode = #tpu.pipeline_mode<synchronous>, transform_indices = @transform_21, window_bounds = array<i64: 1, 256>}, {pipeline_mode = #tpu.pipeline_mode<synchronous>, transform_indices = @transform_22, window_bounds = array<i64: 1, 256>}, {pipeline_mode = #tpu.pipeline_mode<synchronous>, transform_indices = @transform_23, window_bounds = array<i64: 256, 512>}, {pipeline_mode = #tpu.pipeline_mode<synchronous>, transform_indices = @transform_24, window_bounds = array<i64: 1, 512>}, {pipeline_mode = #tpu.pipeline_mode<synchronous>, transform_indices = @transform_25, window_bounds = array<i64: 512, 256>}, {pipeline_mode = #tpu.pipeline_mode<synchronous>, transform_indices = @transform_26, window_bounds = array<i64: 1, 256>}, {pipeline_mode = #tpu.pipeline_mode<synchronous>, transform_indices = @transform_27, window_bounds = array<i64: 1, 256>}, {pipeline_mode = #tpu.pipeline_mode<synchronous>, transform_indices = @transform_28, window_bounds = array<i64: 1, 256>}, {transform_indices = @transform_29, window_bounds = array<i64: 1, 16, 256>}]} {
    %c0_i32 = arith.constant 0 : i32
    %0 = arith.cmpi eq, %arg1, %c0_i32 : i32
    %1 = arith.extui %0 : i1 to i32
    %c0_i32_0 = arith.constant 0 : i32
    %2 = arith.cmpi ne, %1, %c0_i32_0 : i32
    scf.if %2 {
      %c0_194 = arith.constant 0 : index
      %c0_195 = arith.constant 0 : index
      %c0_196 = arith.constant 0 : index
      %375 = vector.load %arg3[%c0_194, %c0_195, %c0_196] : memref<1x32x256xf32, #tpu.memory_space<vmem>>, vector<1x32x256xf32>
      %376 = vector.shape_cast %375 : vector<1x32x256xf32> to vector<32x256xf32>
      %c0_197 = arith.constant 0 : index
      %c0_198 = arith.constant 0 : index
      %c0_199 = arith.constant 0 : index
      %377 = vector.load %arg2[%c0_197, %c0_198, %c0_199] : memref<1x32x256xf32, #tpu.memory_space<vmem>>, vector<1x32x256xf32>
      %378 = vector.shape_cast %377 : vector<1x32x256xf32> to vector<32x256xf32>
      %c0_200 = arith.constant 0 : index
      %c0_201 = arith.constant 0 : index
      %379 = vector.load %arg7[%c0_200, %c0_201] : memref<256x256xf32, #tpu.memory_space<vmem>>, vector<256x256xf32>
      %cst_202 = arith.constant dense<0.000000e+00> : vector<32x256xf32>
      %380 = tpu.matmul %376, %379, %cst_202 {dimension_numbers = #tpu.dot_dimension_numbers<[1], [0], [0], [1], [0, 0, 1, 1], [], []>} : vector<32x256xf32>, vector<256x256xf32>, vector<32x256xf32> -> vector<32x256xf32>
      %c0_203 = arith.constant 0 : index
      %c0_204 = arith.constant 0 : index
      %381 = vector.load %arg8[%c0_203, %c0_204] : memref<1x256xf32, #tpu.memory_space<vmem>>, vector<1x256xf32>
      %382 = vector.broadcast %381 : vector<1x256xf32> to vector<32x256xf32>
      %383 = arith.addf %380, %382 : vector<32x256xf32>
      %384 = vector.extract_strided_slice %383 {offsets = [0, 0], sizes = [32, 64], strides = [1, 1]} : vector<32x256xf32> to vector<32x64xf32>
      %c0_205 = arith.constant 0 : index
      %c0_206 = arith.constant 0 : index
      %c0_207 = arith.constant 0 : index
      %385 = vector.load %arg33[%c0_205, %c0_206, %c0_207] : memref<4x32x64xf32, #tpu.memory_space<vmem>>, vector<1x32x64xf32>
      %386 = vector.shape_cast %385 : vector<1x32x64xf32> to vector<32x64xf32>
      %387 = vector.shape_cast %384 : vector<32x64xf32> to vector<1x32x64xf32>
      tpu.vector_store %arg33[%c0_205, %c0_206, %c0_207], %387 {strides = array<i32>} : memref<4x32x64xf32, #tpu.memory_space<vmem>>, vector<1x32x64xf32>,
      %388 = vector.extract_strided_slice %383 {offsets = [0, 64], sizes = [32, 64], strides = [1, 1]} : vector<32x256xf32> to vector<32x64xf32>
      %c1_208 = arith.constant 1 : index
      %c0_209 = arith.constant 0 : index
      %c0_210 = arith.constant 0 : index
      %389 = vector.load %arg33[%c1_208, %c0_209, %c0_210] : memref<4x32x64xf32, #tpu.memory_space<vmem>>, vector<1x32x64xf32>
      %390 = vector.shape_cast %389 : vector<1x32x64xf32> to vector<32x64xf32>
      %391 = vector.shape_cast %388 : vector<32x64xf32> to vector<1x32x64xf32>
      tpu.vector_store %arg33[%c1_208, %c0_209, %c0_210], %391 {strides = array<i32>} : memref<4x32x64xf32, #tpu.memory_space<vmem>>, vector<1x32x64xf32>,
      %392 = vector.extract_strided_slice %383 {offsets = [0, 128], sizes = [32, 64], strides = [1, 1]} : vector<32x256xf32> to vector<32x64xf32>
      %c2_211 = arith.constant 2 : index
      %c0_212 = arith.constant 0 : index
      %c0_213 = arith.constant 0 : index
      %393 = vector.load %arg33[%c2_211, %c0_212, %c0_213] : memref<4x32x64xf32, #tpu.memory_space<vmem>>, vector<1x32x64xf32>
      %394 = vector.shape_cast %393 : vector<1x32x64xf32> to vector<32x64xf32>
      %395 = vector.shape_cast %392 : vector<32x64xf32> to vector<1x32x64xf32>
      tpu.vector_store %arg33[%c2_211, %c0_212, %c0_213], %395 {strides = array<i32>} : memref<4x32x64xf32, #tpu.memory_space<vmem>>, vector<1x32x64xf32>,
      %396 = vector.extract_strided_slice %383 {offsets = [0, 192], sizes = [32, 64], strides = [1, 1]} : vector<32x256xf32> to vector<32x64xf32>
      %c3_214 = arith.constant 3 : index
      %c0_215 = arith.constant 0 : index
      %c0_216 = arith.constant 0 : index
      %397 = vector.load %arg33[%c3_214, %c0_215, %c0_216] : memref<4x32x64xf32, #tpu.memory_space<vmem>>, vector<1x32x64xf32>
      %398 = vector.shape_cast %397 : vector<1x32x64xf32> to vector<32x64xf32>
      %399 = vector.shape_cast %396 : vector<32x64xf32> to vector<1x32x64xf32>
      tpu.vector_store %arg33[%c3_214, %c0_215, %c0_216], %399 {strides = array<i32>} : memref<4x32x64xf32, #tpu.memory_space<vmem>>, vector<1x32x64xf32>,
      %c0_217 = arith.constant 0 : index
      %c0_218 = arith.constant 0 : index
      %400 = vector.load %arg9[%c0_217, %c0_218] : memref<256x256xf32, #tpu.memory_space<vmem>>, vector<256x256xf32>
      %cst_219 = arith.constant dense<0.000000e+00> : vector<32x256xf32>
      %401 = tpu.matmul %376, %400, %cst_219 {dimension_numbers = #tpu.dot_dimension_numbers<[1], [0], [0], [1], [0, 0, 1, 1], [], []>} : vector<32x256xf32>, vector<256x256xf32>, vector<32x256xf32> -> vector<32x256xf32>
      %c0_220 = arith.constant 0 : index
      %c0_221 = arith.constant 0 : index
      %402 = vector.load %arg10[%c0_220, %c0_221] : memref<1x256xf32, #tpu.memory_space<vmem>>, vector<1x256xf32>
      %403 = vector.broadcast %402 : vector<1x256xf32> to vector<32x256xf32>
      %404 = arith.addf %401, %403 : vector<32x256xf32>
      %405 = vector.extract_strided_slice %404 {offsets = [0, 0], sizes = [32, 64], strides = [1, 1]} : vector<32x256xf32> to vector<32x64xf32>
      %c0_222 = arith.constant 0 : index
      %c0_223 = arith.constant 0 : index
      %c0_224 = arith.constant 0 : index
      %406 = vector.load %arg34[%c0_222, %c0_223, %c0_224] : memref<4x32x64xf32, #tpu.memory_space<vmem>>, vector<1x32x64xf32>
      %407 = vector.shape_cast %406 : vector<1x32x64xf32> to vector<32x64xf32>
      %408 = vector.shape_cast %405 : vector<32x64xf32> to vector<1x32x64xf32>
      tpu.vector_store %arg34[%c0_222, %c0_223, %c0_224], %408 {strides = array<i32>} : memref<4x32x64xf32, #tpu.memory_space<vmem>>, vector<1x32x64xf32>,
      %409 = vector.extract_strided_slice %404 {offsets = [0, 64], sizes = [32, 64], strides = [1, 1]} : vector<32x256xf32> to vector<32x64xf32>
      %c1_225 = arith.constant 1 : index
      %c0_226 = arith.constant 0 : index
      %c0_227 = arith.constant 0 : index
      %410 = vector.load %arg34[%c1_225, %c0_226, %c0_227] : memref<4x32x64xf32, #tpu.memory_space<vmem>>, vector<1x32x64xf32>
      %411 = vector.shape_cast %410 : vector<1x32x64xf32> to vector<32x64xf32>
      %412 = vector.shape_cast %409 : vector<32x64xf32> to vector<1x32x64xf32>
      tpu.vector_store %arg34[%c1_225, %c0_226, %c0_227], %412 {strides = array<i32>} : memref<4x32x64xf32, #tpu.memory_space<vmem>>, vector<1x32x64xf32>,
      %413 = vector.extract_strided_slice %404 {offsets = [0, 128], sizes = [32, 64], strides = [1, 1]} : vector<32x256xf32> to vector<32x64xf32>
      %c2_228 = arith.constant 2 : index
      %c0_229 = arith.constant 0 : index
      %c0_230 = arith.constant 0 : index
      %414 = vector.load %arg34[%c2_228, %c0_229, %c0_230] : memref<4x32x64xf32, #tpu.memory_space<vmem>>, vector<1x32x64xf32>
      %415 = vector.shape_cast %414 : vector<1x32x64xf32> to vector<32x64xf32>
      %416 = vector.shape_cast %413 : vector<32x64xf32> to vector<1x32x64xf32>
      tpu.vector_store %arg34[%c2_228, %c0_229, %c0_230], %416 {strides = array<i32>} : memref<4x32x64xf32, #tpu.memory_space<vmem>>, vector<1x32x64xf32>,
      %417 = vector.extract_strided_slice %404 {offsets = [0, 192], sizes = [32, 64], strides = [1, 1]} : vector<32x256xf32> to vector<32x64xf32>
      %c3_231 = arith.constant 3 : index
      %c0_232 = arith.constant 0 : index
      %c0_233 = arith.constant 0 : index
      %418 = vector.load %arg34[%c3_231, %c0_232, %c0_233] : memref<4x32x64xf32, #tpu.memory_space<vmem>>, vector<1x32x64xf32>
      %419 = vector.shape_cast %418 : vector<1x32x64xf32> to vector<32x64xf32>
      %420 = vector.shape_cast %417 : vector<32x64xf32> to vector<1x32x64xf32>
      tpu.vector_store %arg34[%c3_231, %c0_232, %c0_233], %420 {strides = array<i32>} : memref<4x32x64xf32, #tpu.memory_space<vmem>>, vector<1x32x64xf32>,
      %c0_234 = arith.constant 0 : index
      %c0_235 = arith.constant 0 : index
      %421 = vector.load %arg17[%c0_234, %c0_235] : memref<256x256xf32, #tpu.memory_space<vmem>>, vector<256x256xf32>
      %cst_236 = arith.constant dense<0.000000e+00> : vector<32x256xf32>
      %422 = tpu.matmul %378, %421, %cst_236 {dimension_numbers = #tpu.dot_dimension_numbers<[1], [0], [0], [1], [0, 0, 1, 1], [], []>} : vector<32x256xf32>, vector<256x256xf32>, vector<32x256xf32> -> vector<32x256xf32>
      %c0_237 = arith.constant 0 : index
      %c0_238 = arith.constant 0 : index
      %423 = vector.load %arg18[%c0_237, %c0_238] : memref<1x256xf32, #tpu.memory_space<vmem>>, vector<1x256xf32>
      %424 = vector.broadcast %423 : vector<1x256xf32> to vector<32x256xf32>
      %425 = arith.addf %422, %424 : vector<32x256xf32>
      %426 = vector.extract_strided_slice %425 {offsets = [0, 0], sizes = [32, 64], strides = [1, 1]} : vector<32x256xf32> to vector<32x64xf32>
      %c0_239 = arith.constant 0 : index
      %c0_240 = arith.constant 0 : index
      %c0_241 = arith.constant 0 : index
      %427 = vector.load %arg35[%c0_239, %c0_240, %c0_241] : memref<4x32x64xf32, #tpu.memory_space<vmem>>, vector<1x32x64xf32>
      %428 = vector.shape_cast %427 : vector<1x32x64xf32> to vector<32x64xf32>
      %429 = vector.shape_cast %426 : vector<32x64xf32> to vector<1x32x64xf32>
      tpu.vector_store %arg35[%c0_239, %c0_240, %c0_241], %429 {strides = array<i32>} : memref<4x32x64xf32, #tpu.memory_space<vmem>>, vector<1x32x64xf32>,
      %430 = vector.extract_strided_slice %425 {offsets = [0, 64], sizes = [32, 64], strides = [1, 1]} : vector<32x256xf32> to vector<32x64xf32>
      %c1_242 = arith.constant 1 : index
      %c0_243 = arith.constant 0 : index
      %c0_244 = arith.constant 0 : index
      %431 = vector.load %arg35[%c1_242, %c0_243, %c0_244] : memref<4x32x64xf32, #tpu.memory_space<vmem>>, vector<1x32x64xf32>
      %432 = vector.shape_cast %431 : vector<1x32x64xf32> to vector<32x64xf32>
      %433 = vector.shape_cast %430 : vector<32x64xf32> to vector<1x32x64xf32>
      tpu.vector_store %arg35[%c1_242, %c0_243, %c0_244], %433 {strides = array<i32>} : memref<4x32x64xf32, #tpu.memory_space<vmem>>, vector<1x32x64xf32>,
      %434 = vector.extract_strided_slice %425 {offsets = [0, 128], sizes = [32, 64], strides = [1, 1]} : vector<32x256xf32> to vector<32x64xf32>
      %c2_245 = arith.constant 2 : index
      %c0_246 = arith.constant 0 : index
      %c0_247 = arith.constant 0 : index
      %435 = vector.load %arg35[%c2_245, %c0_246, %c0_247] : memref<4x32x64xf32, #tpu.memory_space<vmem>>, vector<1x32x64xf32>
      %436 = vector.shape_cast %435 : vector<1x32x64xf32> to vector<32x64xf32>
      %437 = vector.shape_cast %434 : vector<32x64xf32> to vector<1x32x64xf32>
      tpu.vector_store %arg35[%c2_245, %c0_246, %c0_247], %437 {strides = array<i32>} : memref<4x32x64xf32, #tpu.memory_space<vmem>>, vector<1x32x64xf32>,
      %438 = vector.extract_strided_slice %425 {offsets = [0, 192], sizes = [32, 64], strides = [1, 1]} : vector<32x256xf32> to vector<32x64xf32>
      %c3_248 = arith.constant 3 : index
      %c0_249 = arith.constant 0 : index
      %c0_250 = arith.constant 0 : index
      %439 = vector.load %arg35[%c3_248, %c0_249, %c0_250] : memref<4x32x64xf32, #tpu.memory_space<vmem>>, vector<1x32x64xf32>
      %440 = vector.shape_cast %439 : vector<1x32x64xf32> to vector<32x64xf32>
      %441 = vector.shape_cast %438 : vector<32x64xf32> to vector<1x32x64xf32>
      tpu.vector_store %arg35[%c3_248, %c0_249, %c0_250], %441 {strides = array<i32>} : memref<4x32x64xf32, #tpu.memory_space<vmem>>, vector<1x32x64xf32>,
      %c0_251 = arith.constant 0 : index
      %c0_252 = arith.constant 0 : index
      %442 = vector.load %arg19[%c0_251, %c0_252] : memref<256x256xf32, #tpu.memory_space<vmem>>, vector<256x256xf32>
      %cst_253 = arith.constant dense<0.000000e+00> : vector<32x256xf32>
      %443 = tpu.matmul %378, %442, %cst_253 {dimension_numbers = #tpu.dot_dimension_numbers<[1], [0], [0], [1], [0, 0, 1, 1], [], []>} : vector<32x256xf32>, vector<256x256xf32>, vector<32x256xf32> -> vector<32x256xf32>
      %c0_254 = arith.constant 0 : index
      %c0_255 = arith.constant 0 : index
      %444 = vector.load %arg20[%c0_254, %c0_255] : memref<1x256xf32, #tpu.memory_space<vmem>>, vector<1x256xf32>
      %445 = vector.broadcast %444 : vector<1x256xf32> to vector<32x256xf32>
      %446 = arith.addf %443, %445 : vector<32x256xf32>
      %447 = vector.extract_strided_slice %446 {offsets = [0, 0], sizes = [32, 64], strides = [1, 1]} : vector<32x256xf32> to vector<32x64xf32>
      %c0_256 = arith.constant 0 : index
      %c0_257 = arith.constant 0 : index
      %c0_258 = arith.constant 0 : index
      %448 = vector.load %arg36[%c0_256, %c0_257, %c0_258] : memref<4x32x64xf32, #tpu.memory_space<vmem>>, vector<1x32x64xf32>
      %449 = vector.shape_cast %448 : vector<1x32x64xf32> to vector<32x64xf32>
      %450 = vector.shape_cast %447 : vector<32x64xf32> to vector<1x32x64xf32>
      tpu.vector_store %arg36[%c0_256, %c0_257, %c0_258], %450 {strides = array<i32>} : memref<4x32x64xf32, #tpu.memory_space<vmem>>, vector<1x32x64xf32>,
      %451 = vector.extract_strided_slice %446 {offsets = [0, 64], sizes = [32, 64], strides = [1, 1]} : vector<32x256xf32> to vector<32x64xf32>
      %c1_259 = arith.constant 1 : index
      %c0_260 = arith.constant 0 : index
      %c0_261 = arith.constant 0 : index
      %452 = vector.load %arg36[%c1_259, %c0_260, %c0_261] : memref<4x32x64xf32, #tpu.memory_space<vmem>>, vector<1x32x64xf32>
      %453 = vector.shape_cast %452 : vector<1x32x64xf32> to vector<32x64xf32>
      %454 = vector.shape_cast %451 : vector<32x64xf32> to vector<1x32x64xf32>
      tpu.vector_store %arg36[%c1_259, %c0_260, %c0_261], %454 {strides = array<i32>} : memref<4x32x64xf32, #tpu.memory_space<vmem>>, vector<1x32x64xf32>,
      %455 = vector.extract_strided_slice %446 {offsets = [0, 128], sizes = [32, 64], strides = [1, 1]} : vector<32x256xf32> to vector<32x64xf32>
      %c2_262 = arith.constant 2 : index
      %c0_263 = arith.constant 0 : index
      %c0_264 = arith.constant 0 : index
      %456 = vector.load %arg36[%c2_262, %c0_263, %c0_264] : memref<4x32x64xf32, #tpu.memory_space<vmem>>, vector<1x32x64xf32>
      %457 = vector.shape_cast %456 : vector<1x32x64xf32> to vector<32x64xf32>
      %458 = vector.shape_cast %455 : vector<32x64xf32> to vector<1x32x64xf32>
      tpu.vector_store %arg36[%c2_262, %c0_263, %c0_264], %458 {strides = array<i32>} : memref<4x32x64xf32, #tpu.memory_space<vmem>>, vector<1x32x64xf32>,
      %459 = vector.extract_strided_slice %446 {offsets = [0, 192], sizes = [32, 64], strides = [1, 1]} : vector<32x256xf32> to vector<32x64xf32>
      %c3_265 = arith.constant 3 : index
      %c0_266 = arith.constant 0 : index
      %c0_267 = arith.constant 0 : index
      %460 = vector.load %arg36[%c3_265, %c0_266, %c0_267] : memref<4x32x64xf32, #tpu.memory_space<vmem>>, vector<1x32x64xf32>
      %461 = vector.shape_cast %460 : vector<1x32x64xf32> to vector<32x64xf32>
      %462 = vector.shape_cast %459 : vector<32x64xf32> to vector<1x32x64xf32>
      tpu.vector_store %arg36[%c3_265, %c0_266, %c0_267], %462 {strides = array<i32>} : memref<4x32x64xf32, #tpu.memory_space<vmem>>, vector<1x32x64xf32>,
    } else {
    }
    %c16_i32 = arith.constant 16 : i32
    %3 = arith.muli %arg1, %c16_i32 : i32
    %4 = tpu.assume_multiple %3, 8 : i32
    %c0 = arith.constant 0 : index
    %5 = arith.index_cast %4 : i32 to index
    %c0_1 = arith.constant 0 : index
    %6 = vector.load %arg3[%c0, %5, %c0_1] : memref<1x32x256xf32, #tpu.memory_space<vmem>>, vector<1x16x256xf32>
    %7 = vector.shape_cast %6 : vector<1x16x256xf32> to vector<16x256xf32>
    %8 = tpu.iota {dimensions = array<i32: 0>} : vector<16x32xi32>
    %9 = vector.broadcast %4 : i32 to vector<16x32xi32>
    %10 = arith.addi %8, %9 : vector<16x32xi32>
    %11 = tpu.iota {dimensions = array<i32: 1>} : vector<16x32xi32>
    %12 = arith.cmpi sge, %10, %11 : vector<16x32xi32>
    %cst = arith.constant 0.000000e+00 : f32
    %cst_2 = arith.constant -1.000000e+09 : f32
    %13 = vector.broadcast %cst : f32 to vector<16x32xf32>
    %14 = vector.broadcast %cst_2 : f32 to vector<16x32xf32>
    %15 = arith.select %12, %13, %14 : vector<16x32xi1>, vector<16x32xf32>
    %c0_3 = arith.constant 0 : index
    %c0_4 = arith.constant 0 : index
    %c0_5 = arith.constant 0 : index
    %16 = vector.load %arg4[%c0_3, %c0_4, %c0_5] : memref<1x16x32xbf16, #tpu.memory_space<vmem>>, vector<1x16x32xbf16>
    %17 = vector.shape_cast %16 : vector<1x16x32xbf16> to vector<16x32xbf16>
    %18 = arith.extf %17 : vector<16x32xbf16> to vector<16x32xf32>
    %c0_6 = arith.constant 0 : index
    %c0_7 = arith.constant 0 : index
    %19 = vector.load %arg5[%c0_6, %c0_7] : memref<256x256xf32, #tpu.memory_space<vmem>>, vector<256x256xf32>
    %cst_8 = arith.constant dense<0.000000e+00> : vector<16x256xf32>
    %20 = tpu.matmul %7, %19, %cst_8 {dimension_numbers = #tpu.dot_dimension_numbers<[1], [0], [0], [1], [0, 0, 1, 1], [], []>} : vector<16x256xf32>, vector<256x256xf32>, vector<16x256xf32> -> vector<16x256xf32>
    %c0_9 = arith.constant 0 : index
    %c0_10 = arith.constant 0 : index
    %21 = vector.load %arg6[%c0_9, %c0_10] : memref<1x256xf32, #tpu.memory_space<vmem>>, vector<1x256xf32>
    %22 = vector.broadcast %21 : vector<1x256xf32> to vector<16x256xf32>
    %23 = arith.addf %20, %22 : vector<16x256xf32>
    %24 = vector.extract_strided_slice %23 {offsets = [0, 0], sizes = [16, 64], strides = [1, 1]} : vector<16x256xf32> to vector<16x64xf32>
    %c0_11 = arith.constant 0 : index
    %c0_12 = arith.constant 0 : index
    %c0_13 = arith.constant 0 : index
    %25 = vector.load %arg32[%c0_11, %c0_12, %c0_13] : memref<4x16x64xf32, #tpu.memory_space<vmem>>, vector<1x16x64xf32>
    %26 = vector.shape_cast %25 : vector<1x16x64xf32> to vector<16x64xf32>
    %27 = vector.shape_cast %24 : vector<16x64xf32> to vector<1x16x64xf32>
    tpu.vector_store %arg32[%c0_11, %c0_12, %c0_13], %27 {strides = array<i32>} : memref<4x16x64xf32, #tpu.memory_space<vmem>>, vector<1x16x64xf32>,
    %28 = vector.extract_strided_slice %23 {offsets = [0, 64], sizes = [16, 64], strides = [1, 1]} : vector<16x256xf32> to vector<16x64xf32>
    %c1 = arith.constant 1 : index
    %c0_14 = arith.constant 0 : index
    %c0_15 = arith.constant 0 : index
    %29 = vector.load %arg32[%c1, %c0_14, %c0_15] : memref<4x16x64xf32, #tpu.memory_space<vmem>>, vector<1x16x64xf32>
    %30 = vector.shape_cast %29 : vector<1x16x64xf32> to vector<16x64xf32>
    %31 = vector.shape_cast %28 : vector<16x64xf32> to vector<1x16x64xf32>
    tpu.vector_store %arg32[%c1, %c0_14, %c0_15], %31 {strides = array<i32>} : memref<4x16x64xf32, #tpu.memory_space<vmem>>, vector<1x16x64xf32>,
    %32 = vector.extract_strided_slice %23 {offsets = [0, 128], sizes = [16, 64], strides = [1, 1]} : vector<16x256xf32> to vector<16x64xf32>
    %c2 = arith.constant 2 : index
    %c0_16 = arith.constant 0 : index
    %c0_17 = arith.constant 0 : index
    %33 = vector.load %arg32[%c2, %c0_16, %c0_17] : memref<4x16x64xf32, #tpu.memory_space<vmem>>, vector<1x16x64xf32>
    %34 = vector.shape_cast %33 : vector<1x16x64xf32> to vector<16x64xf32>
    %35 = vector.shape_cast %32 : vector<16x64xf32> to vector<1x16x64xf32>
    tpu.vector_store %arg32[%c2, %c0_16, %c0_17], %35 {strides = array<i32>} : memref<4x16x64xf32, #tpu.memory_space<vmem>>, vector<1x16x64xf32>,
    %36 = vector.extract_strided_slice %23 {offsets = [0, 192], sizes = [16, 64], strides = [1, 1]} : vector<16x256xf32> to vector<16x64xf32>
    %c3 = arith.constant 3 : index
    %c0_18 = arith.constant 0 : index
    %c0_19 = arith.constant 0 : index
    %37 = vector.load %arg32[%c3, %c0_18, %c0_19] : memref<4x16x64xf32, #tpu.memory_space<vmem>>, vector<1x16x64xf32>
    %38 = vector.shape_cast %37 : vector<1x16x64xf32> to vector<16x64xf32>
    %39 = vector.shape_cast %36 : vector<16x64xf32> to vector<1x16x64xf32>
    tpu.vector_store %arg32[%c3, %c0_18, %c0_19], %39 {strides = array<i32>} : memref<4x16x64xf32, #tpu.memory_space<vmem>>, vector<1x16x64xf32>,
    %cst_20 = arith.constant 0.000000e+00 : f32
    %40 = vector.broadcast %cst_20 : f32 to vector<16x256xf32>
    %c0_i32_21 = arith.constant 0 : i32
    %41 = arith.index_cast %c0_i32_21 : i32 to index
    %c0_22 = arith.constant 0 : index
    %c0_23 = arith.constant 0 : index
    %42 = vector.load %arg32[%41, %c0_22, %c0_23] : memref<4x16x64xf32, #tpu.memory_space<vmem>>, vector<1x16x64xf32>
    %43 = vector.shape_cast %42 : vector<1x16x64xf32> to vector<16x64xf32>
    %44 = arith.index_cast %c0_i32_21 : i32 to index
    %c0_24 = arith.constant 0 : index
    %c0_25 = arith.constant 0 : index
    %45 = vector.load %arg33[%44, %c0_24, %c0_25] : memref<4x32x64xf32, #tpu.memory_space<vmem>>, vector<1x32x64xf32>
    %46 = vector.shape_cast %45 : vector<1x32x64xf32> to vector<32x64xf32>
    %cst_26 = arith.constant dense<0.000000e+00> : vector<16x32xf32>
    %47 = tpu.matmul %43, %46, %cst_26 {dimension_numbers = #tpu.dot_dimension_numbers<[1], [1], [0], [0], [0, 0, 1, 0], [], []>} : vector<16x64xf32>, vector<32x64xf32>, vector<16x32xf32> -> vector<16x32xf32>
    %48 = arith.addf %47, %15 : vector<16x32xf32>
    %cst_27 = arith.constant dense<0xFF800000> : vector<16xf32>
    %49 = vector.multi_reduction <maximumf>, %48, %cst_27 [1] : vector<16x32xf32> to vector<16xf32>
    %50 = vector.shape_cast %49 : vector<16xf32> to vector<16x1xf32>
    %51 = vector.broadcast %50 : vector<16x1xf32> to vector<16x32xf32>
    %52 = arith.subf %48, %51 : vector<16x32xf32>
    %53 = math.exp %52 : vector<16x32xf32>
    %cst_28 = arith.constant dense<0.000000e+00> : vector<16xf32>
    %54 = vector.multi_reduction <add>, %53, %cst_28 [1] : vector<16x32xf32> to vector<16xf32>
    %55 = vector.shape_cast %54 : vector<16xf32> to vector<16x1xf32>
    %56 = arith.index_cast %c0_i32_21 : i32 to index
    %c0_29 = arith.constant 0 : index
    %c0_30 = arith.constant 0 : index
    %57 = vector.load %arg34[%56, %c0_29, %c0_30] : memref<4x32x64xf32, #tpu.memory_space<vmem>>, vector<1x32x64xf32>
    %58 = vector.shape_cast %57 : vector<1x32x64xf32> to vector<32x64xf32>
    %cst_31 = arith.constant dense<0.000000e+00> : vector<16x64xf32>
    %59 = tpu.matmul %53, %58, %cst_31 {dimension_numbers = #tpu.dot_dimension_numbers<[1], [0], [0], [1], [0, 0, 1, 1], [], []>} : vector<16x32xf32>, vector<32x64xf32>, vector<16x64xf32> -> vector<16x64xf32>
    %60 = tpu.reciprocal %55 {approx = true} : vector<16x1xf32> -> vector<16x1xf32>
    %61 = vector.broadcast %60 : vector<16x1xf32> to vector<16x64xf32>
    %62 = arith.mulf %59, %61 : vector<16x64xf32>
    %63 = arith.index_cast %c0_i32_21 : i32 to index
    %c0_32 = arith.constant 0 : index
    %c0_33 = arith.constant 0 : index
    %64 = vector.load %arg11[%63, %c0_32, %c0_33] : memref<4x64x256xf32, #tpu.memory_space<vmem>>, vector<1x64x256xf32>
    %65 = vector.shape_cast %64 : vector<1x64x256xf32> to vector<64x256xf32>
    %cst_34 = arith.constant dense<0.000000e+00> : vector<16x256xf32>
    %66 = tpu.matmul %62, %65, %cst_34 {dimension_numbers = #tpu.dot_dimension_numbers<[1], [0], [0], [1], [0, 0, 1, 1], [], []>} : vector<16x64xf32>, vector<64x256xf32>, vector<16x256xf32> -> vector<16x256xf32>
    %67 = arith.addf %40, %66 : vector<16x256xf32>
    %c1_i32 = arith.constant 1 : i32
    %68 = arith.index_cast %c1_i32 : i32 to index
    %c0_35 = arith.constant 0 : index
    %c0_36 = arith.constant 0 : index
    %69 = vector.load %arg32[%68, %c0_35, %c0_36] : memref<4x16x64xf32, #tpu.memory_space<vmem>>, vector<1x16x64xf32>
    %70 = vector.shape_cast %69 : vector<1x16x64xf32> to vector<16x64xf32>
    %71 = arith.index_cast %c1_i32 : i32 to index
    %c0_37 = arith.constant 0 : index
    %c0_38 = arith.constant 0 : index
    %72 = vector.load %arg33[%71, %c0_37, %c0_38] : memref<4x32x64xf32, #tpu.memory_space<vmem>>, vector<1x32x64xf32>
    %73 = vector.shape_cast %72 : vector<1x32x64xf32> to vector<32x64xf32>
    %cst_39 = arith.constant dense<0.000000e+00> : vector<16x32xf32>
    %74 = tpu.matmul %70, %73, %cst_39 {dimension_numbers = #tpu.dot_dimension_numbers<[1], [1], [0], [0], [0, 0, 1, 0], [], []>} : vector<16x64xf32>, vector<32x64xf32>, vector<16x32xf32> -> vector<16x32xf32>
    %75 = arith.addf %74, %15 : vector<16x32xf32>
    %cst_40 = arith.constant dense<0xFF800000> : vector<16xf32>
    %76 = vector.multi_reduction <maximumf>, %75, %cst_40 [1] : vector<16x32xf32> to vector<16xf32>
    %77 = vector.shape_cast %76 : vector<16xf32> to vector<16x1xf32>
    %78 = vector.broadcast %77 : vector<16x1xf32> to vector<16x32xf32>
    %79 = arith.subf %75, %78 : vector<16x32xf32>
    %80 = math.exp %79 : vector<16x32xf32>
    %cst_41 = arith.constant dense<0.000000e+00> : vector<16xf32>
    %81 = vector.multi_reduction <add>, %80, %cst_41 [1] : vector<16x32xf32> to vector<16xf32>
    %82 = vector.shape_cast %81 : vector<16xf32> to vector<16x1xf32>
    %83 = arith.index_cast %c1_i32 : i32 to index
    %c0_42 = arith.constant 0 : index
    %c0_43 = arith.constant 0 : index
    %84 = vector.load %arg34[%83, %c0_42, %c0_43] : memref<4x32x64xf32, #tpu.memory_space<vmem>>, vector<1x32x64xf32>
    %85 = vector.shape_cast %84 : vector<1x32x64xf32> to vector<32x64xf32>
    %cst_44 = arith.constant dense<0.000000e+00> : vector<16x64xf32>
    %86 = tpu.matmul %80, %85, %cst_44 {dimension_numbers = #tpu.dot_dimension_numbers<[1], [0], [0], [1], [0, 0, 1, 1], [], []>} : vector<16x32xf32>, vector<32x64xf32>, vector<16x64xf32> -> vector<16x64xf32>
    %87 = tpu.reciprocal %82 {approx = true} : vector<16x1xf32> -> vector<16x1xf32>
    %88 = vector.broadcast %87 : vector<16x1xf32> to vector<16x64xf32>
    %89 = arith.mulf %86, %88 : vector<16x64xf32>
    %90 = arith.index_cast %c1_i32 : i32 to index
    %c0_45 = arith.constant 0 : index
    %c0_46 = arith.constant 0 : index
    %91 = vector.load %arg11[%90, %c0_45, %c0_46] : memref<4x64x256xf32, #tpu.memory_space<vmem>>, vector<1x64x256xf32>
    %92 = vector.shape_cast %91 : vector<1x64x256xf32> to vector<64x256xf32>
    %cst_47 = arith.constant dense<0.000000e+00> : vector<16x256xf32>
    %93 = tpu.matmul %89, %92, %cst_47 {dimension_numbers = #tpu.dot_dimension_numbers<[1], [0], [0], [1], [0, 0, 1, 1], [], []>} : vector<16x64xf32>, vector<64x256xf32>, vector<16x256xf32> -> vector<16x256xf32>
    %94 = arith.addf %67, %93 : vector<16x256xf32>
    %c2_i32 = arith.constant 2 : i32
    %95 = arith.index_cast %c2_i32 : i32 to index
    %c0_48 = arith.constant 0 : index
    %c0_49 = arith.constant 0 : index
    %96 = vector.load %arg32[%95, %c0_48, %c0_49] : memref<4x16x64xf32, #tpu.memory_space<vmem>>, vector<1x16x64xf32>
    %97 = vector.shape_cast %96 : vector<1x16x64xf32> to vector<16x64xf32>
    %98 = arith.index_cast %c2_i32 : i32 to index
    %c0_50 = arith.constant 0 : index
    %c0_51 = arith.constant 0 : index
    %99 = vector.load %arg33[%98, %c0_50, %c0_51] : memref<4x32x64xf32, #tpu.memory_space<vmem>>, vector<1x32x64xf32>
    %100 = vector.shape_cast %99 : vector<1x32x64xf32> to vector<32x64xf32>
    %cst_52 = arith.constant dense<0.000000e+00> : vector<16x32xf32>
    %101 = tpu.matmul %97, %100, %cst_52 {dimension_numbers = #tpu.dot_dimension_numbers<[1], [1], [0], [0], [0, 0, 1, 0], [], []>} : vector<16x64xf32>, vector<32x64xf32>, vector<16x32xf32> -> vector<16x32xf32>
    %102 = arith.addf %101, %15 : vector<16x32xf32>
    %cst_53 = arith.constant dense<0xFF800000> : vector<16xf32>
    %103 = vector.multi_reduction <maximumf>, %102, %cst_53 [1] : vector<16x32xf32> to vector<16xf32>
    %104 = vector.shape_cast %103 : vector<16xf32> to vector<16x1xf32>
    %105 = vector.broadcast %104 : vector<16x1xf32> to vector<16x32xf32>
    %106 = arith.subf %102, %105 : vector<16x32xf32>
    %107 = math.exp %106 : vector<16x32xf32>
    %cst_54 = arith.constant dense<0.000000e+00> : vector<16xf32>
    %108 = vector.multi_reduction <add>, %107, %cst_54 [1] : vector<16x32xf32> to vector<16xf32>
    %109 = vector.shape_cast %108 : vector<16xf32> to vector<16x1xf32>
    %110 = arith.index_cast %c2_i32 : i32 to index
    %c0_55 = arith.constant 0 : index
    %c0_56 = arith.constant 0 : index
    %111 = vector.load %arg34[%110, %c0_55, %c0_56] : memref<4x32x64xf32, #tpu.memory_space<vmem>>, vector<1x32x64xf32>
    %112 = vector.shape_cast %111 : vector<1x32x64xf32> to vector<32x64xf32>
    %cst_57 = arith.constant dense<0.000000e+00> : vector<16x64xf32>
    %113 = tpu.matmul %107, %112, %cst_57 {dimension_numbers = #tpu.dot_dimension_numbers<[1], [0], [0], [1], [0, 0, 1, 1], [], []>} : vector<16x32xf32>, vector<32x64xf32>, vector<16x64xf32> -> vector<16x64xf32>
    %114 = tpu.reciprocal %109 {approx = true} : vector<16x1xf32> -> vector<16x1xf32>
    %115 = vector.broadcast %114 : vector<16x1xf32> to vector<16x64xf32>
    %116 = arith.mulf %113, %115 : vector<16x64xf32>
    %117 = arith.index_cast %c2_i32 : i32 to index
    %c0_58 = arith.constant 0 : index
    %c0_59 = arith.constant 0 : index
    %118 = vector.load %arg11[%117, %c0_58, %c0_59] : memref<4x64x256xf32, #tpu.memory_space<vmem>>, vector<1x64x256xf32>
    %119 = vector.shape_cast %118 : vector<1x64x256xf32> to vector<64x256xf32>
    %cst_60 = arith.constant dense<0.000000e+00> : vector<16x256xf32>
    %120 = tpu.matmul %116, %119, %cst_60 {dimension_numbers = #tpu.dot_dimension_numbers<[1], [0], [0], [1], [0, 0, 1, 1], [], []>} : vector<16x64xf32>, vector<64x256xf32>, vector<16x256xf32> -> vector<16x256xf32>
    %121 = arith.addf %94, %120 : vector<16x256xf32>
    %c3_i32 = arith.constant 3 : i32
    %122 = arith.index_cast %c3_i32 : i32 to index
    %c0_61 = arith.constant 0 : index
    %c0_62 = arith.constant 0 : index
    %123 = vector.load %arg32[%122, %c0_61, %c0_62] : memref<4x16x64xf32, #tpu.memory_space<vmem>>, vector<1x16x64xf32>
    %124 = vector.shape_cast %123 : vector<1x16x64xf32> to vector<16x64xf32>
    %125 = arith.index_cast %c3_i32 : i32 to index
    %c0_63 = arith.constant 0 : index
    %c0_64 = arith.constant 0 : index
    %126 = vector.load %arg33[%125, %c0_63, %c0_64] : memref<4x32x64xf32, #tpu.memory_space<vmem>>, vector<1x32x64xf32>
    %127 = vector.shape_cast %126 : vector<1x32x64xf32> to vector<32x64xf32>
    %cst_65 = arith.constant dense<0.000000e+00> : vector<16x32xf32>
    %128 = tpu.matmul %124, %127, %cst_65 {dimension_numbers = #tpu.dot_dimension_numbers<[1], [1], [0], [0], [0, 0, 1, 0], [], []>} : vector<16x64xf32>, vector<32x64xf32>, vector<16x32xf32> -> vector<16x32xf32>
    %129 = arith.addf %128, %15 : vector<16x32xf32>
    %cst_66 = arith.constant dense<0xFF800000> : vector<16xf32>
    %130 = vector.multi_reduction <maximumf>, %129, %cst_66 [1] : vector<16x32xf32> to vector<16xf32>
    %131 = vector.shape_cast %130 : vector<16xf32> to vector<16x1xf32>
    %132 = vector.broadcast %131 : vector<16x1xf32> to vector<16x32xf32>
    %133 = arith.subf %129, %132 : vector<16x32xf32>
    %134 = math.exp %133 : vector<16x32xf32>
    %cst_67 = arith.constant dense<0.000000e+00> : vector<16xf32>
    %135 = vector.multi_reduction <add>, %134, %cst_67 [1] : vector<16x32xf32> to vector<16xf32>
    %136 = vector.shape_cast %135 : vector<16xf32> to vector<16x1xf32>
    %137 = arith.index_cast %c3_i32 : i32 to index
    %c0_68 = arith.constant 0 : index
    %c0_69 = arith.constant 0 : index
    %138 = vector.load %arg34[%137, %c0_68, %c0_69] : memref<4x32x64xf32, #tpu.memory_space<vmem>>, vector<1x32x64xf32>
    %139 = vector.shape_cast %138 : vector<1x32x64xf32> to vector<32x64xf32>
    %cst_70 = arith.constant dense<0.000000e+00> : vector<16x64xf32>
    %140 = tpu.matmul %134, %139, %cst_70 {dimension_numbers = #tpu.dot_dimension_numbers<[1], [0], [0], [1], [0, 0, 1, 1], [], []>} : vector<16x32xf32>, vector<32x64xf32>, vector<16x64xf32> -> vector<16x64xf32>
    %141 = tpu.reciprocal %136 {approx = true} : vector<16x1xf32> -> vector<16x1xf32>
    %142 = vector.broadcast %141 : vector<16x1xf32> to vector<16x64xf32>
    %143 = arith.mulf %140, %142 : vector<16x64xf32>
    %144 = arith.index_cast %c3_i32 : i32 to index
    %c0_71 = arith.constant 0 : index
    %c0_72 = arith.constant 0 : index
    %145 = vector.load %arg11[%144, %c0_71, %c0_72] : memref<4x64x256xf32, #tpu.memory_space<vmem>>, vector<1x64x256xf32>
    %146 = vector.shape_cast %145 : vector<1x64x256xf32> to vector<64x256xf32>
    %cst_73 = arith.constant dense<0.000000e+00> : vector<16x256xf32>
    %147 = tpu.matmul %143, %146, %cst_73 {dimension_numbers = #tpu.dot_dimension_numbers<[1], [0], [0], [1], [0, 0, 1, 1], [], []>} : vector<16x64xf32>, vector<64x256xf32>, vector<16x256xf32> -> vector<16x256xf32>
    %148 = arith.addf %121, %147 : vector<16x256xf32>
    %c4_i32 = arith.constant 4 : i32
    %c0_74 = arith.constant 0 : index
    %c0_75 = arith.constant 0 : index
    %149 = vector.load %arg12[%c0_74, %c0_75] : memref<1x256xf32, #tpu.memory_space<vmem>>, vector<1x256xf32>
    %150 = vector.broadcast %149 : vector<1x256xf32> to vector<16x256xf32>
    %151 = arith.addf %148, %150 : vector<16x256xf32>
    %152 = arith.addf %151, %7 : vector<16x256xf32>
    %cst_76 = arith.constant dense<0.000000e+00> : vector<16xf32>
    %153 = vector.multi_reduction <add>, %152, %cst_76 [1] : vector<16x256xf32> to vector<16xf32>
    %154 = vector.shape_cast %153 : vector<16xf32> to vector<16x1xf32>
    %cst_77 = arith.constant 2.560000e+02 : f32
    %155 = vector.broadcast %cst_77 : f32 to vector<16x1xf32>
    %156 = arith.divf %154, %155 : vector<16x1xf32>
    %157 = vector.broadcast %156 : vector<16x1xf32> to vector<16x256xf32>
    %158 = arith.subf %152, %157 : vector<16x256xf32>
    %159 = arith.mulf %158, %158 : vector<16x256xf32>
    %cst_78 = arith.constant dense<0.000000e+00> : vector<16xf32>
    %160 = vector.multi_reduction <add>, %159, %cst_78 [1] : vector<16x256xf32> to vector<16xf32>
    %161 = vector.shape_cast %160 : vector<16xf32> to vector<16x1xf32>
    %cst_79 = arith.constant 2.560000e+02 : f32
    %162 = vector.broadcast %cst_79 : f32 to vector<16x1xf32>
    %163 = arith.divf %161, %162 : vector<16x1xf32>
    %164 = vector.broadcast %156 : vector<16x1xf32> to vector<16x256xf32>
    %165 = arith.subf %152, %164 : vector<16x256xf32>
    %cst_80 = arith.constant 9.99999996E-13 : f32
    %166 = vector.broadcast %cst_80 : f32 to vector<16x1xf32>
    %167 = arith.addf %163, %166 : vector<16x1xf32>
    %168 = math.rsqrt %167 : vector<16x1xf32>
    %169 = vector.broadcast %168 : vector<16x1xf32> to vector<16x256xf32>
    %170 = arith.mulf %165, %169 : vector<16x256xf32>
    %c0_81 = arith.constant 0 : index
    %c0_82 = arith.constant 0 : index
    %171 = vector.load %arg13[%c0_81, %c0_82] : memref<1x256xf32, #tpu.memory_space<vmem>>, vector<1x256xf32>
    %172 = vector.broadcast %171 : vector<1x256xf32> to vector<16x256xf32>
    %173 = arith.mulf %170, %172 : vector<16x256xf32>
    %c0_83 = arith.constant 0 : index
    %c0_84 = arith.constant 0 : index
    %174 = vector.load %arg14[%c0_83, %c0_84] : memref<1x256xf32, #tpu.memory_space<vmem>>, vector<1x256xf32>
    %175 = vector.broadcast %174 : vector<1x256xf32> to vector<16x256xf32>
    %176 = arith.addf %173, %175 : vector<16x256xf32>
    %c0_85 = arith.constant 0 : index
    %c0_86 = arith.constant 0 : index
    %177 = vector.load %arg15[%c0_85, %c0_86] : memref<256x256xf32, #tpu.memory_space<vmem>>, vector<256x256xf32>
    %cst_87 = arith.constant dense<0.000000e+00> : vector<16x256xf32>
    %178 = tpu.matmul %176, %177, %cst_87 {dimension_numbers = #tpu.dot_dimension_numbers<[1], [0], [0], [1], [0, 0, 1, 1], [], []>} : vector<16x256xf32>, vector<256x256xf32>, vector<16x256xf32> -> vector<16x256xf32>
    %c0_88 = arith.constant 0 : index
    %c0_89 = arith.constant 0 : index
    %179 = vector.load %arg16[%c0_88, %c0_89] : memref<1x256xf32, #tpu.memory_space<vmem>>, vector<1x256xf32>
    %180 = vector.broadcast %179 : vector<1x256xf32> to vector<16x256xf32>
    %181 = arith.addf %178, %180 : vector<16x256xf32>
    %182 = vector.extract_strided_slice %181 {offsets = [0, 0], sizes = [16, 64], strides = [1, 1]} : vector<16x256xf32> to vector<16x64xf32>
    %c0_90 = arith.constant 0 : index
    %c0_91 = arith.constant 0 : index
    %c0_92 = arith.constant 0 : index
    %183 = vector.load %arg32[%c0_90, %c0_91, %c0_92] : memref<4x16x64xf32, #tpu.memory_space<vmem>>, vector<1x16x64xf32>
    %184 = vector.shape_cast %183 : vector<1x16x64xf32> to vector<16x64xf32>
    %185 = vector.shape_cast %182 : vector<16x64xf32> to vector<1x16x64xf32>
    tpu.vector_store %arg32[%c0_90, %c0_91, %c0_92], %185 {strides = array<i32>} : memref<4x16x64xf32, #tpu.memory_space<vmem>>, vector<1x16x64xf32>,
    %186 = vector.extract_strided_slice %181 {offsets = [0, 64], sizes = [16, 64], strides = [1, 1]} : vector<16x256xf32> to vector<16x64xf32>
    %c1_93 = arith.constant 1 : index
    %c0_94 = arith.constant 0 : index
    %c0_95 = arith.constant 0 : index
    %187 = vector.load %arg32[%c1_93, %c0_94, %c0_95] : memref<4x16x64xf32, #tpu.memory_space<vmem>>, vector<1x16x64xf32>
    %188 = vector.shape_cast %187 : vector<1x16x64xf32> to vector<16x64xf32>
    %189 = vector.shape_cast %186 : vector<16x64xf32> to vector<1x16x64xf32>
    tpu.vector_store %arg32[%c1_93, %c0_94, %c0_95], %189 {strides = array<i32>} : memref<4x16x64xf32, #tpu.memory_space<vmem>>, vector<1x16x64xf32>,
    %190 = vector.extract_strided_slice %181 {offsets = [0, 128], sizes = [16, 64], strides = [1, 1]} : vector<16x256xf32> to vector<16x64xf32>
    %c2_96 = arith.constant 2 : index
    %c0_97 = arith.constant 0 : index
    %c0_98 = arith.constant 0 : index
    %191 = vector.load %arg32[%c2_96, %c0_97, %c0_98] : memref<4x16x64xf32, #tpu.memory_space<vmem>>, vector<1x16x64xf32>
    %192 = vector.shape_cast %191 : vector<1x16x64xf32> to vector<16x64xf32>
    %193 = vector.shape_cast %190 : vector<16x64xf32> to vector<1x16x64xf32>
    tpu.vector_store %arg32[%c2_96, %c0_97, %c0_98], %193 {strides = array<i32>} : memref<4x16x64xf32, #tpu.memory_space<vmem>>, vector<1x16x64xf32>,
    %194 = vector.extract_strided_slice %181 {offsets = [0, 192], sizes = [16, 64], strides = [1, 1]} : vector<16x256xf32> to vector<16x64xf32>
    %c3_99 = arith.constant 3 : index
    %c0_100 = arith.constant 0 : index
    %c0_101 = arith.constant 0 : index
    %195 = vector.load %arg32[%c3_99, %c0_100, %c0_101] : memref<4x16x64xf32, #tpu.memory_space<vmem>>, vector<1x16x64xf32>
    %196 = vector.shape_cast %195 : vector<1x16x64xf32> to vector<16x64xf32>
    %197 = vector.shape_cast %194 : vector<16x64xf32> to vector<1x16x64xf32>
    tpu.vector_store %arg32[%c3_99, %c0_100, %c0_101], %197 {strides = array<i32>} : memref<4x16x64xf32, #tpu.memory_space<vmem>>, vector<1x16x64xf32>,
    %cst_102 = arith.constant 0.000000e+00 : f32
    %198 = vector.broadcast %cst_102 : f32 to vector<16x256xf32>
    %c0_i32_103 = arith.constant 0 : i32
    %199 = arith.index_cast %c0_i32_103 : i32 to index
    %c0_104 = arith.constant 0 : index
    %c0_105 = arith.constant 0 : index
    %200 = vector.load %arg32[%199, %c0_104, %c0_105] : memref<4x16x64xf32, #tpu.memory_space<vmem>>, vector<1x16x64xf32>
    %201 = vector.shape_cast %200 : vector<1x16x64xf32> to vector<16x64xf32>
    %202 = arith.index_cast %c0_i32_103 : i32 to index
    %c0_106 = arith.constant 0 : index
    %c0_107 = arith.constant 0 : index
    %203 = vector.load %arg35[%202, %c0_106, %c0_107] : memref<4x32x64xf32, #tpu.memory_space<vmem>>, vector<1x32x64xf32>
    %204 = vector.shape_cast %203 : vector<1x32x64xf32> to vector<32x64xf32>
    %cst_108 = arith.constant dense<0.000000e+00> : vector<16x32xf32>
    %205 = tpu.matmul %201, %204, %cst_108 {dimension_numbers = #tpu.dot_dimension_numbers<[1], [1], [0], [0], [0, 0, 1, 0], [], []>} : vector<16x64xf32>, vector<32x64xf32>, vector<16x32xf32> -> vector<16x32xf32>
    %206 = arith.addf %205, %18 : vector<16x32xf32>
    %cst_109 = arith.constant dense<0xFF800000> : vector<16xf32>
    %207 = vector.multi_reduction <maximumf>, %206, %cst_109 [1] : vector<16x32xf32> to vector<16xf32>
    %208 = vector.shape_cast %207 : vector<16xf32> to vector<16x1xf32>
    %209 = vector.broadcast %208 : vector<16x1xf32> to vector<16x32xf32>
    %210 = arith.subf %206, %209 : vector<16x32xf32>
    %211 = math.exp %210 : vector<16x32xf32>
    %cst_110 = arith.constant dense<0.000000e+00> : vector<16xf32>
    %212 = vector.multi_reduction <add>, %211, %cst_110 [1] : vector<16x32xf32> to vector<16xf32>
    %213 = vector.shape_cast %212 : vector<16xf32> to vector<16x1xf32>
    %214 = arith.index_cast %c0_i32_103 : i32 to index
    %c0_111 = arith.constant 0 : index
    %c0_112 = arith.constant 0 : index
    %215 = vector.load %arg36[%214, %c0_111, %c0_112] : memref<4x32x64xf32, #tpu.memory_space<vmem>>, vector<1x32x64xf32>
    %216 = vector.shape_cast %215 : vector<1x32x64xf32> to vector<32x64xf32>
    %cst_113 = arith.constant dense<0.000000e+00> : vector<16x64xf32>
    %217 = tpu.matmul %211, %216, %cst_113 {dimension_numbers = #tpu.dot_dimension_numbers<[1], [0], [0], [1], [0, 0, 1, 1], [], []>} : vector<16x32xf32>, vector<32x64xf32>, vector<16x64xf32> -> vector<16x64xf32>
    %218 = tpu.reciprocal %213 {approx = true} : vector<16x1xf32> -> vector<16x1xf32>
    %219 = vector.broadcast %218 : vector<16x1xf32> to vector<16x64xf32>
    %220 = arith.mulf %217, %219 : vector<16x64xf32>
    %221 = arith.index_cast %c0_i32_103 : i32 to index
    %c0_114 = arith.constant 0 : index
    %c0_115 = arith.constant 0 : index
    %222 = vector.load %arg21[%221, %c0_114, %c0_115] : memref<4x64x256xf32, #tpu.memory_space<vmem>>, vector<1x64x256xf32>
    %223 = vector.shape_cast %222 : vector<1x64x256xf32> to vector<64x256xf32>
    %cst_116 = arith.constant dense<0.000000e+00> : vector<16x256xf32>
    %224 = tpu.matmul %220, %223, %cst_116 {dimension_numbers = #tpu.dot_dimension_numbers<[1], [0], [0], [1], [0, 0, 1, 1], [], []>} : vector<16x64xf32>, vector<64x256xf32>, vector<16x256xf32> -> vector<16x256xf32>
    %225 = arith.addf %198, %224 : vector<16x256xf32>
    %c1_i32_117 = arith.constant 1 : i32
    %226 = arith.index_cast %c1_i32_117 : i32 to index
    %c0_118 = arith.constant 0 : index
    %c0_119 = arith.constant 0 : index
    %227 = vector.load %arg32[%226, %c0_118, %c0_119] : memref<4x16x64xf32, #tpu.memory_space<vmem>>, vector<1x16x64xf32>
    %228 = vector.shape_cast %227 : vector<1x16x64xf32> to vector<16x64xf32>
    %229 = arith.index_cast %c1_i32_117 : i32 to index
    %c0_120 = arith.constant 0 : index
    %c0_121 = arith.constant 0 : index
    %230 = vector.load %arg35[%229, %c0_120, %c0_121] : memref<4x32x64xf32, #tpu.memory_space<vmem>>, vector<1x32x64xf32>
    %231 = vector.shape_cast %230 : vector<1x32x64xf32> to vector<32x64xf32>
    %cst_122 = arith.constant dense<0.000000e+00> : vector<16x32xf32>
    %232 = tpu.matmul %228, %231, %cst_122 {dimension_numbers = #tpu.dot_dimension_numbers<[1], [1], [0], [0], [0, 0, 1, 0], [], []>} : vector<16x64xf32>, vector<32x64xf32>, vector<16x32xf32> -> vector<16x32xf32>
    %233 = arith.addf %232, %18 : vector<16x32xf32>
    %cst_123 = arith.constant dense<0xFF800000> : vector<16xf32>
    %234 = vector.multi_reduction <maximumf>, %233, %cst_123 [1] : vector<16x32xf32> to vector<16xf32>
    %235 = vector.shape_cast %234 : vector<16xf32> to vector<16x1xf32>
    %236 = vector.broadcast %235 : vector<16x1xf32> to vector<16x32xf32>
    %237 = arith.subf %233, %236 : vector<16x32xf32>
    %238 = math.exp %237 : vector<16x32xf32>
    %cst_124 = arith.constant dense<0.000000e+00> : vector<16xf32>
    %239 = vector.multi_reduction <add>, %238, %cst_124 [1] : vector<16x32xf32> to vector<16xf32>
    %240 = vector.shape_cast %239 : vector<16xf32> to vector<16x1xf32>
    %241 = arith.index_cast %c1_i32_117 : i32 to index
    %c0_125 = arith.constant 0 : index
    %c0_126 = arith.constant 0 : index
    %242 = vector.load %arg36[%241, %c0_125, %c0_126] : memref<4x32x64xf32, #tpu.memory_space<vmem>>, vector<1x32x64xf32>
    %243 = vector.shape_cast %242 : vector<1x32x64xf32> to vector<32x64xf32>
    %cst_127 = arith.constant dense<0.000000e+00> : vector<16x64xf32>
    %244 = tpu.matmul %238, %243, %cst_127 {dimension_numbers = #tpu.dot_dimension_numbers<[1], [0], [0], [1], [0, 0, 1, 1], [], []>} : vector<16x32xf32>, vector<32x64xf32>, vector<16x64xf32> -> vector<16x64xf32>
    %245 = tpu.reciprocal %240 {approx = true} : vector<16x1xf32> -> vector<16x1xf32>
    %246 = vector.broadcast %245 : vector<16x1xf32> to vector<16x64xf32>
    %247 = arith.mulf %244, %246 : vector<16x64xf32>
    %248 = arith.index_cast %c1_i32_117 : i32 to index
    %c0_128 = arith.constant 0 : index
    %c0_129 = arith.constant 0 : index
    %249 = vector.load %arg21[%248, %c0_128, %c0_129] : memref<4x64x256xf32, #tpu.memory_space<vmem>>, vector<1x64x256xf32>
    %250 = vector.shape_cast %249 : vector<1x64x256xf32> to vector<64x256xf32>
    %cst_130 = arith.constant dense<0.000000e+00> : vector<16x256xf32>
    %251 = tpu.matmul %247, %250, %cst_130 {dimension_numbers = #tpu.dot_dimension_numbers<[1], [0], [0], [1], [0, 0, 1, 1], [], []>} : vector<16x64xf32>, vector<64x256xf32>, vector<16x256xf32> -> vector<16x256xf32>
    %252 = arith.addf %225, %251 : vector<16x256xf32>
    %c2_i32_131 = arith.constant 2 : i32
    %253 = arith.index_cast %c2_i32_131 : i32 to index
    %c0_132 = arith.constant 0 : index
    %c0_133 = arith.constant 0 : index
    %254 = vector.load %arg32[%253, %c0_132, %c0_133] : memref<4x16x64xf32, #tpu.memory_space<vmem>>, vector<1x16x64xf32>
    %255 = vector.shape_cast %254 : vector<1x16x64xf32> to vector<16x64xf32>
    %256 = arith.index_cast %c2_i32_131 : i32 to index
    %c0_134 = arith.constant 0 : index
    %c0_135 = arith.constant 0 : index
    %257 = vector.load %arg35[%256, %c0_134, %c0_135] : memref<4x32x64xf32, #tpu.memory_space<vmem>>, vector<1x32x64xf32>
    %258 = vector.shape_cast %257 : vector<1x32x64xf32> to vector<32x64xf32>
    %cst_136 = arith.constant dense<0.000000e+00> : vector<16x32xf32>
    %259 = tpu.matmul %255, %258, %cst_136 {dimension_numbers = #tpu.dot_dimension_numbers<[1], [1], [0], [0], [0, 0, 1, 0], [], []>} : vector<16x64xf32>, vector<32x64xf32>, vector<16x32xf32> -> vector<16x32xf32>
    %260 = arith.addf %259, %18 : vector<16x32xf32>
    %cst_137 = arith.constant dense<0xFF800000> : vector<16xf32>
    %261 = vector.multi_reduction <maximumf>, %260, %cst_137 [1] : vector<16x32xf32> to vector<16xf32>
    %262 = vector.shape_cast %261 : vector<16xf32> to vector<16x1xf32>
    %263 = vector.broadcast %262 : vector<16x1xf32> to vector<16x32xf32>
    %264 = arith.subf %260, %263 : vector<16x32xf32>
    %265 = math.exp %264 : vector<16x32xf32>
    %cst_138 = arith.constant dense<0.000000e+00> : vector<16xf32>
    %266 = vector.multi_reduction <add>, %265, %cst_138 [1] : vector<16x32xf32> to vector<16xf32>
    %267 = vector.shape_cast %266 : vector<16xf32> to vector<16x1xf32>
    %268 = arith.index_cast %c2_i32_131 : i32 to index
    %c0_139 = arith.constant 0 : index
    %c0_140 = arith.constant 0 : index
    %269 = vector.load %arg36[%268, %c0_139, %c0_140] : memref<4x32x64xf32, #tpu.memory_space<vmem>>, vector<1x32x64xf32>
    %270 = vector.shape_cast %269 : vector<1x32x64xf32> to vector<32x64xf32>
    %cst_141 = arith.constant dense<0.000000e+00> : vector<16x64xf32>
    %271 = tpu.matmul %265, %270, %cst_141 {dimension_numbers = #tpu.dot_dimension_numbers<[1], [0], [0], [1], [0, 0, 1, 1], [], []>} : vector<16x32xf32>, vector<32x64xf32>, vector<16x64xf32> -> vector<16x64xf32>
    %272 = tpu.reciprocal %267 {approx = true} : vector<16x1xf32> -> vector<16x1xf32>
    %273 = vector.broadcast %272 : vector<16x1xf32> to vector<16x64xf32>
    %274 = arith.mulf %271, %273 : vector<16x64xf32>
    %275 = arith.index_cast %c2_i32_131 : i32 to index
    %c0_142 = arith.constant 0 : index
    %c0_143 = arith.constant 0 : index
    %276 = vector.load %arg21[%275, %c0_142, %c0_143] : memref<4x64x256xf32, #tpu.memory_space<vmem>>, vector<1x64x256xf32>
    %277 = vector.shape_cast %276 : vector<1x64x256xf32> to vector<64x256xf32>
    %cst_144 = arith.constant dense<0.000000e+00> : vector<16x256xf32>
    %278 = tpu.matmul %274, %277, %cst_144 {dimension_numbers = #tpu.dot_dimension_numbers<[1], [0], [0], [1], [0, 0, 1, 1], [], []>} : vector<16x64xf32>, vector<64x256xf32>, vector<16x256xf32> -> vector<16x256xf32>
    %279 = arith.addf %252, %278 : vector<16x256xf32>
    %c3_i32_145 = arith.constant 3 : i32
    %280 = arith.index_cast %c3_i32_145 : i32 to index
    %c0_146 = arith.constant 0 : index
    %c0_147 = arith.constant 0 : index
    %281 = vector.load %arg32[%280, %c0_146, %c0_147] : memref<4x16x64xf32, #tpu.memory_space<vmem>>, vector<1x16x64xf32>
    %282 = vector.shape_cast %281 : vector<1x16x64xf32> to vector<16x64xf32>
    %283 = arith.index_cast %c3_i32_145 : i32 to index
    %c0_148 = arith.constant 0 : index
    %c0_149 = arith.constant 0 : index
    %284 = vector.load %arg35[%283, %c0_148, %c0_149] : memref<4x32x64xf32, #tpu.memory_space<vmem>>, vector<1x32x64xf32>
    %285 = vector.shape_cast %284 : vector<1x32x64xf32> to vector<32x64xf32>
    %cst_150 = arith.constant dense<0.000000e+00> : vector<16x32xf32>
    %286 = tpu.matmul %282, %285, %cst_150 {dimension_numbers = #tpu.dot_dimension_numbers<[1], [1], [0], [0], [0, 0, 1, 0], [], []>} : vector<16x64xf32>, vector<32x64xf32>, vector<16x32xf32> -> vector<16x32xf32>
    %287 = arith.addf %286, %18 : vector<16x32xf32>
    %cst_151 = arith.constant dense<0xFF800000> : vector<16xf32>
    %288 = vector.multi_reduction <maximumf>, %287, %cst_151 [1] : vector<16x32xf32> to vector<16xf32>
    %289 = vector.shape_cast %288 : vector<16xf32> to vector<16x1xf32>
    %290 = vector.broadcast %289 : vector<16x1xf32> to vector<16x32xf32>
    %291 = arith.subf %287, %290 : vector<16x32xf32>
    %292 = math.exp %291 : vector<16x32xf32>
    %cst_152 = arith.constant dense<0.000000e+00> : vector<16xf32>
    %293 = vector.multi_reduction <add>, %292, %cst_152 [1] : vector<16x32xf32> to vector<16xf32>
    %294 = vector.shape_cast %293 : vector<16xf32> to vector<16x1xf32>
    %295 = arith.index_cast %c3_i32_145 : i32 to index
    %c0_153 = arith.constant 0 : index
    %c0_154 = arith.constant 0 : index
    %296 = vector.load %arg36[%295, %c0_153, %c0_154] : memref<4x32x64xf32, #tpu.memory_space<vmem>>, vector<1x32x64xf32>
    %297 = vector.shape_cast %296 : vector<1x32x64xf32> to vector<32x64xf32>
    %cst_155 = arith.constant dense<0.000000e+00> : vector<16x64xf32>
    %298 = tpu.matmul %292, %297, %cst_155 {dimension_numbers = #tpu.dot_dimension_numbers<[1], [0], [0], [1], [0, 0, 1, 1], [], []>} : vector<16x32xf32>, vector<32x64xf32>, vector<16x64xf32> -> vector<16x64xf32>
    %299 = tpu.reciprocal %294 {approx = true} : vector<16x1xf32> -> vector<16x1xf32>
    %300 = vector.broadcast %299 : vector<16x1xf32> to vector<16x64xf32>
    %301 = arith.mulf %298, %300 : vector<16x64xf32>
    %302 = arith.index_cast %c3_i32_145 : i32 to index
    %c0_156 = arith.constant 0 : index
    %c0_157 = arith.constant 0 : index
    %303 = vector.load %arg21[%302, %c0_156, %c0_157] : memref<4x64x256xf32, #tpu.memory_space<vmem>>, vector<1x64x256xf32>
    %304 = vector.shape_cast %303 : vector<1x64x256xf32> to vector<64x256xf32>
    %cst_158 = arith.constant dense<0.000000e+00> : vector<16x256xf32>
    %305 = tpu.matmul %301, %304, %cst_158 {dimension_numbers = #tpu.dot_dimension_numbers<[1], [0], [0], [1], [0, 0, 1, 1], [], []>} : vector<16x64xf32>, vector<64x256xf32>, vector<16x256xf32> -> vector<16x256xf32>
    %306 = arith.addf %279, %305 : vector<16x256xf32>
    %c4_i32_159 = arith.constant 4 : i32
    %c0_160 = arith.constant 0 : index
    %c0_161 = arith.constant 0 : index
    %307 = vector.load %arg22[%c0_160, %c0_161] : memref<1x256xf32, #tpu.memory_space<vmem>>, vector<1x256xf32>
    %308 = vector.broadcast %307 : vector<1x256xf32> to vector<16x256xf32>
    %309 = arith.addf %306, %308 : vector<16x256xf32>
    %310 = arith.addf %309, %176 : vector<16x256xf32>
    %cst_162 = arith.constant dense<0.000000e+00> : vector<16xf32>
    %311 = vector.multi_reduction <add>, %310, %cst_162 [1] : vector<16x256xf32> to vector<16xf32>
    %312 = vector.shape_cast %311 : vector<16xf32> to vector<16x1xf32>
    %cst_163 = arith.constant 2.560000e+02 : f32
    %313 = vector.broadcast %cst_163 : f32 to vector<16x1xf32>
    %314 = arith.divf %312, %313 : vector<16x1xf32>
    %315 = vector.broadcast %314 : vector<16x1xf32> to vector<16x256xf32>
    %316 = arith.subf %310, %315 : vector<16x256xf32>
    %317 = arith.mulf %316, %316 : vector<16x256xf32>
    %cst_164 = arith.constant dense<0.000000e+00> : vector<16xf32>
    %318 = vector.multi_reduction <add>, %317, %cst_164 [1] : vector<16x256xf32> to vector<16xf32>
    %319 = vector.shape_cast %318 : vector<16xf32> to vector<16x1xf32>
    %cst_165 = arith.constant 2.560000e+02 : f32
    %320 = vector.broadcast %cst_165 : f32 to vector<16x1xf32>
    %321 = arith.divf %319, %320 : vector<16x1xf32>
    %322 = vector.broadcast %314 : vector<16x1xf32> to vector<16x256xf32>
    %323 = arith.subf %310, %322 : vector<16x256xf32>
    %cst_166 = arith.constant 9.99999996E-13 : f32
    %324 = vector.broadcast %cst_166 : f32 to vector<16x1xf32>
    %325 = arith.addf %321, %324 : vector<16x1xf32>
    %326 = math.rsqrt %325 : vector<16x1xf32>
    %327 = vector.broadcast %326 : vector<16x1xf32> to vector<16x256xf32>
    %328 = arith.mulf %323, %327 : vector<16x256xf32>
    %c0_167 = arith.constant 0 : index
    %c0_168 = arith.constant 0 : index
    %329 = vector.load %arg23[%c0_167, %c0_168] : memref<1x256xf32, #tpu.memory_space<vmem>>, vector<1x256xf32>
    %330 = vector.broadcast %329 : vector<1x256xf32> to vector<16x256xf32>
    %331 = arith.mulf %328, %330 : vector<16x256xf32>
    %c0_169 = arith.constant 0 : index
    %c0_170 = arith.constant 0 : index
    %332 = vector.load %arg24[%c0_169, %c0_170] : memref<1x256xf32, #tpu.memory_space<vmem>>, vector<1x256xf32>
    %333 = vector.broadcast %332 : vector<1x256xf32> to vector<16x256xf32>
    %334 = arith.addf %331, %333 : vector<16x256xf32>
    %c0_171 = arith.constant 0 : index
    %c0_172 = arith.constant 0 : index
    %335 = vector.load %arg25[%c0_171, %c0_172] : memref<256x512xf32, #tpu.memory_space<vmem>>, vector<256x512xf32>
    %cst_173 = arith.constant dense<0.000000e+00> : vector<16x512xf32>
    %336 = tpu.matmul %334, %335, %cst_173 {dimension_numbers = #tpu.dot_dimension_numbers<[1], [0], [0], [1], [0, 0, 1, 1], [], []>} : vector<16x256xf32>, vector<256x512xf32>, vector<16x512xf32> -> vector<16x512xf32>
    %c0_174 = arith.constant 0 : index
    %c0_175 = arith.constant 0 : index
    %337 = vector.load %arg26[%c0_174, %c0_175] : memref<1x512xf32, #tpu.memory_space<vmem>>, vector<1x512xf32>
    %338 = vector.broadcast %337 : vector<1x512xf32> to vector<16x512xf32>
    %339 = arith.addf %336, %338 : vector<16x512xf32>
    %cst_176 = arith.constant 0.000000e+00 : f32
    %340 = vector.broadcast %cst_176 : f32 to vector<16x512xf32>
    %341 = arith.maximumf %339, %340 : vector<16x512xf32>
    %c0_177 = arith.constant 0 : index
    %c0_178 = arith.constant 0 : index
    %342 = vector.load %arg27[%c0_177, %c0_178] : memref<512x256xf32, #tpu.memory_space<vmem>>, vector<512x256xf32>
    %cst_179 = arith.constant dense<0.000000e+00> : vector<16x256xf32>
    %343 = tpu.matmul %341, %342, %cst_179 {dimension_numbers = #tpu.dot_dimension_numbers<[1], [0], [0], [1], [0, 0, 1, 1], [], []>} : vector<16x512xf32>, vector<512x256xf32>, vector<16x256xf32> -> vector<16x256xf32>
    %c0_180 = arith.constant 0 : index
    %c0_181 = arith.constant 0 : index
    %344 = vector.load %arg28[%c0_180, %c0_181] : memref<1x256xf32, #tpu.memory_space<vmem>>, vector<1x256xf32>
    %345 = vector.broadcast %344 : vector<1x256xf32> to vector<16x256xf32>
    %346 = arith.addf %343, %345 : vector<16x256xf32>
    %347 = arith.addf %346, %334 : vector<16x256xf32>
    %cst_182 = arith.constant dense<0.000000e+00> : vector<16xf32>
    %348 = vector.multi_reduction <add>, %347, %cst_182 [1] : vector<16x256xf32> to vector<16xf32>
    %349 = vector.shape_cast %348 : vector<16xf32> to vector<16x1xf32>
    %cst_183 = arith.constant 2.560000e+02 : f32
    %350 = vector.broadcast %cst_183 : f32 to vector<16x1xf32>
    %351 = arith.divf %349, %350 : vector<16x1xf32>
    %352 = vector.broadcast %351 : vector<16x1xf32> to vector<16x256xf32>
    %353 = arith.subf %347, %352 : vector<16x256xf32>
    %354 = arith.mulf %353, %353 : vector<16x256xf32>
    %cst_184 = arith.constant dense<0.000000e+00> : vector<16xf32>
    %355 = vector.multi_reduction <add>, %354, %cst_184 [1] : vector<16x256xf32> to vector<16xf32>
    %356 = vector.shape_cast %355 : vector<16xf32> to vector<16x1xf32>
    %cst_185 = arith.constant 2.560000e+02 : f32
    %357 = vector.broadcast %cst_185 : f32 to vector<16x1xf32>
    %358 = arith.divf %356, %357 : vector<16x1xf32>
    %359 = vector.broadcast %351 : vector<16x1xf32> to vector<16x256xf32>
    %360 = arith.subf %347, %359 : vector<16x256xf32>
    %cst_186 = arith.constant 9.99999996E-13 : f32
    %361 = vector.broadcast %cst_186 : f32 to vector<16x1xf32>
    %362 = arith.addf %358, %361 : vector<16x1xf32>
    %363 = math.rsqrt %362 : vector<16x1xf32>
    %364 = vector.broadcast %363 : vector<16x1xf32> to vector<16x256xf32>
    %365 = arith.mulf %360, %364 : vector<16x256xf32>
    %c0_187 = arith.constant 0 : index
    %c0_188 = arith.constant 0 : index
    %366 = vector.load %arg29[%c0_187, %c0_188] : memref<1x256xf32, #tpu.memory_space<vmem>>, vector<1x256xf32>
    %367 = vector.broadcast %366 : vector<1x256xf32> to vector<16x256xf32>
    %368 = arith.mulf %365, %367 : vector<16x256xf32>
    %c0_189 = arith.constant 0 : index
    %c0_190 = arith.constant 0 : index
    %369 = vector.load %arg30[%c0_189, %c0_190] : memref<1x256xf32, #tpu.memory_space<vmem>>, vector<1x256xf32>
    %370 = vector.broadcast %369 : vector<1x256xf32> to vector<16x256xf32>
    %371 = arith.addf %368, %370 : vector<16x256xf32>
    %c0_191 = arith.constant 0 : index
    %c0_192 = arith.constant 0 : index
    %c0_193 = arith.constant 0 : index
    %372 = vector.load %arg31[%c0_191, %c0_192, %c0_193] : memref<1x16x256xf32, #tpu.memory_space<vmem>>, vector<1x16x256xf32>
    %373 = vector.shape_cast %372 : vector<1x16x256xf32> to vector<16x256xf32>
    %374 = vector.shape_cast %371 : vector<16x256xf32> to vector<1x16x256xf32>
    tpu.vector_store %arg31[%c0_191, %c0_192, %c0_193], %374 {strides = array<i32>} : memref<1x16x256xf32, #tpu.memory_space<vmem>>, vector<1x16x256xf32>,
    return
  }
  func.func @transform_0(%arg0: i32, %arg1: i32) -> (i32, i32, i32) {
    %c0_i32 = arith.constant 0 : i32
    %c0_i32_0 = arith.constant 0 : i32
    %c0_i32_1 = arith.constant 0 : i32
    return %arg0, %c0_i32, %c0_i32_0 : i32, i32, i32
  }
  func.func @transform_1(%arg0: i32, %arg1: i32) -> (i32, i32, i32) {
    %c0_i32 = arith.constant 0 : i32
    %c0_i32_0 = arith.constant 0 : i32
    %c0_i32_1 = arith.constant 0 : i32
    return %arg0, %c0_i32, %c0_i32_0 : i32, i32, i32
  }
  func.func @transform_2(%arg0: i32, %arg1: i32) -> (i32, i32, i32) {
    %c0_i32 = arith.constant 0 : i32
    %c0_i32_0 = arith.constant 0 : i32
    return %arg0, %arg1, %c0_i32 : i32, i32, i32
  }
  func.func @transform_3(%arg0: i32, %arg1: i32) -> (i32, i32) {
    %c0_i32 = arith.constant 0 : i32
    %c0_i32_0 = arith.constant 0 : i32
    %c0_i32_1 = arith.constant 0 : i32
    return %c0_i32, %c0_i32_0 : i32, i32
  }
  func.func @transform_4(%arg0: i32, %arg1: i32) -> (i32, i32) {
    %c0_i32 = arith.constant 0 : i32
    %c0_i32_0 = arith.constant 0 : i32
    %c0_i32_1 = arith.constant 0 : i32
    return %c0_i32, %c0_i32_0 : i32, i32
  }
  func.func @transform_5(%arg0: i32, %arg1: i32) -> (i32, i32) {
    %c0_i32 = arith.constant 0 : i32
    %c0_i32_0 = arith.constant 0 : i32
    %c0_i32_1 = arith.constant 0 : i32
    return %c0_i32, %c0_i32_0 : i32, i32
  }
  func.func @transform_6(%arg0: i32, %arg1: i32) -> (i32, i32) {
    %c0_i32 = arith.constant 0 : i32
    %c0_i32_0 = arith.constant 0 : i32
    %c0_i32_1 = arith.constant 0 : i32
    return %c0_i32, %c0_i32_0 : i32, i32
  }
  func.func @transform_7(%arg0: i32, %arg1: i32) -> (i32, i32) {
    %c0_i32 = arith.constant 0 : i32
    %c0_i32_0 = arith.constant 0 : i32
    %c0_i32_1 = arith.constant 0 : i32
    return %c0_i32, %c0_i32_0 : i32, i32
  }
  func.func @transform_8(%arg0: i32, %arg1: i32) -> (i32, i32) {
    %c0_i32 = arith.constant 0 : i32
    %c0_i32_0 = arith.constant 0 : i32
    %c0_i32_1 = arith.constant 0 : i32
    return %c0_i32, %c0_i32_0 : i32, i32
  }
  func.func @transform_9(%arg0: i32, %arg1: i32) -> (i32, i32, i32) {
    %c0_i32 = arith.constant 0 : i32
    %c0_i32_0 = arith.constant 0 : i32
    %c0_i32_1 = arith.constant 0 : i32
    %c0_i32_2 = arith.constant 0 : i32
    return %c0_i32, %c0_i32_0, %c0_i32_1 : i32, i32, i32
  }
  func.func @transform_10(%arg0: i32, %arg1: i32) -> (i32, i32) {
    %c0_i32 = arith.constant 0 : i32
    %c0_i32_0 = arith.constant 0 : i32
    %c0_i32_1 = arith.constant 0 : i32
    return %c0_i32, %c0_i32_0 : i32, i32
  }
  func.func @transform_11(%arg0: i32, %arg1: i32) -> (i32, i32) {
    %c0_i32 = arith.constant 0 : i32
    %c0_i32_0 = arith.constant 0 : i32
    %c0_i32_1 = arith.constant 0 : i32
    return %c0_i32, %c0_i32_0 : i32, i32
  }
  func.func @transform_12(%arg0: i32, %arg1: i32) -> (i32, i32) {
    %c0_i32 = arith.constant 0 : i32
    %c0_i32_0 = arith.constant 0 : i32
    %c0_i32_1 = arith.constant 0 : i32
    return %c0_i32, %c0_i32_0 : i32, i32
  }
  func.func @transform_13(%arg0: i32, %arg1: i32) -> (i32, i32) {
    %c0_i32 = arith.constant 0 : i32
    %c0_i32_0 = arith.constant 0 : i32
    %c0_i32_1 = arith.constant 0 : i32
    return %c0_i32, %c0_i32_0 : i32, i32
  }
  func.func @transform_14(%arg0: i32, %arg1: i32) -> (i32, i32) {
    %c0_i32 = arith.constant 0 : i32
    %c0_i32_0 = arith.constant 0 : i32
    %c0_i32_1 = arith.constant 0 : i32
    return %c0_i32, %c0_i32_0 : i32, i32
  }
  func.func @transform_15(%arg0: i32, %arg1: i32) -> (i32, i32) {
    %c0_i32 = arith.constant 0 : i32
    %c0_i32_0 = arith.constant 0 : i32
    %c0_i32_1 = arith.constant 0 : i32
    return %c0_i32, %c0_i32_0 : i32, i32
  }
  func.func @transform_16(%arg0: i32, %arg1: i32) -> (i32, i32) {
    %c0_i32 = arith.constant 0 : i32
    %c0_i32_0 = arith.constant 0 : i32
    %c0_i32_1 = arith.constant 0 : i32
    return %c0_i32, %c0_i32_0 : i32, i32
  }
  func.func @transform_17(%arg0: i32, %arg1: i32) -> (i32, i32) {
    %c0_i32 = arith.constant 0 : i32
    %c0_i32_0 = arith.constant 0 : i32
    %c0_i32_1 = arith.constant 0 : i32
    return %c0_i32, %c0_i32_0 : i32, i32
  }
  func.func @transform_18(%arg0: i32, %arg1: i32) -> (i32, i32) {
    %c0_i32 = arith.constant 0 : i32
    %c0_i32_0 = arith.constant 0 : i32
    %c0_i32_1 = arith.constant 0 : i32
    return %c0_i32, %c0_i32_0 : i32, i32
  }
  func.func @transform_19(%arg0: i32, %arg1: i32) -> (i32, i32, i32) {
    %c0_i32 = arith.constant 0 : i32
    %c0_i32_0 = arith.constant 0 : i32
    %c0_i32_1 = arith.constant 0 : i32
    %c0_i32_2 = arith.constant 0 : i32
    return %c0_i32, %c0_i32_0, %c0_i32_1 : i32, i32, i32
  }
  func.func @transform_20(%arg0: i32, %arg1: i32) -> (i32, i32) {
    %c0_i32 = arith.constant 0 : i32
    %c0_i32_0 = arith.constant 0 : i32
    %c0_i32_1 = arith.constant 0 : i32
    return %c0_i32, %c0_i32_0 : i32, i32
  }
  func.func @transform_21(%arg0: i32, %arg1: i32) -> (i32, i32) {
    %c0_i32 = arith.constant 0 : i32
    %c0_i32_0 = arith.constant 0 : i32
    %c0_i32_1 = arith.constant 0 : i32
    return %c0_i32, %c0_i32_0 : i32, i32
  }
  func.func @transform_22(%arg0: i32, %arg1: i32) -> (i32, i32) {
    %c0_i32 = arith.constant 0 : i32
    %c0_i32_0 = arith.constant 0 : i32
    %c0_i32_1 = arith.constant 0 : i32
    return %c0_i32, %c0_i32_0 : i32, i32
  }
  func.func @transform_23(%arg0: i32, %arg1: i32) -> (i32, i32) {
    %c0_i32 = arith.constant 0 : i32
    %c0_i32_0 = arith.constant 0 : i32
    %c0_i32_1 = arith.constant 0 : i32
    return %c0_i32, %c0_i32_0 : i32, i32
  }
  func.func @transform_24(%arg0: i32, %arg1: i32) -> (i32, i32) {
    %c0_i32 = arith.constant 0 : i32
    %c0_i32_0 = arith.constant 0 : i32
    %c0_i32_1 = arith.constant 0 : i32
    return %c0_i32, %c0_i32_0 : i32, i32
  }
  func.func @transform_25(%arg0: i32, %arg1: i32) -> (i32, i32) {
    %c0_i32 = arith.constant 0 : i32
    %c0_i32_0 = arith.constant 0 : i32
    %c0_i32_1 = arith.constant 0 : i32
    return %c0_i32, %c0_i32_0 : i32, i32
  }
  func.func @transform_26(%arg0: i32, %arg1: i32) -> (i32, i32) {
    %c0_i32 = arith.constant 0 : i32
    %c0_i32_0 = arith.constant 0 : i32
    %c0_i32_1 = arith.constant 0 : i32
    return %c0_i32, %c0_i32_0 : i32, i32
  }
  func.func @transform_27(%arg0: i32, %arg1: i32) -> (i32, i32) {
    %c0_i32 = arith.constant 0 : i32
    %c0_i32_0 = arith.constant 0 : i32
    %c0_i32_1 = arith.constant 0 : i32
    return %c0_i32, %c0_i32_0 : i32, i32
  }
  func.func @transform_28(%arg0: i32, %arg1: i32) -> (i32, i32) {
    %c0_i32 = arith.constant 0 : i32
    %c0_i32_0 = arith.constant 0 : i32
    %c0_i32_1 = arith.constant 0 : i32
    return %c0_i32, %c0_i32_0 : i32, i32
  }
  func.func @transform_29(%arg0: i32, %arg1: i32) -> (i32, i32, i32) {
    %c0_i32 = arith.constant 0 : i32
    %c0_i32_0 = arith.constant 0 : i32
    return %arg0, %arg1, %c0_i32 : i32, i32, i32
  }
}

</mosaic_0001>

<llo_original>
// kernel: tpu_custom_call.1
$region0: #{tpu_custom_call.1}
  #allocation0 [shape = 'u32[]', space=smem, size = 0x4, offset = 0x4, fixed_abs, tag = 'smem constant byte address 0x4 - core index']
  #allocation1 [shape = 'u32[72,128]{1,0:T(1,128)}', space=vmem, size = 0x9000, scoped, tag = 'internal scratch']
  #allocation2 [shape = 'f32[4,16,64]{2,1,0:T(8,128)}', space=vmem, size = 0x8000, scoped, tag = 'scratch operand']
  #allocation3 [shape = 'f32[4,32,64]{2,1,0:T(8,128)}', space=vmem, size = 0x10000, scoped, tag = 'scratch operand']
  #allocation4 [shape = 'f32[4,32,64]{2,1,0:T(8,128)}', space=vmem, size = 0x10000, scoped, tag = 'scratch operand']
  #allocation5 [shape = 'f32[4,32,64]{2,1,0:T(8,128)}', space=vmem, size = 0x10000, scoped, tag = 'scratch operand']
  #allocation6 [shape = 'f32[4,32,64]{2,1,0:T(8,128)}', space=vmem, size = 0x10000, scoped, tag = 'scratch operand']
  %s0 = inlined_call_operand.smem [shape: u32[30], index: -1, kind: input, shape index: {}]
  %s1 = sld [smem:[%s0]]
  %s2 = scalar_lea.smem %s0, 1
  %s3 = sld [smem:[%s2]]
  %s4 = scalar_lea.smem %s0, 2
  %s5 = sld [smem:[%s4]]
  %s6 = scalar_lea.smem %s0, 3
  %s7 = sld [smem:[%s6]]
  %s8 = scalar_lea.smem %s0, 4
  %s9 = sld [smem:[%s8]]
  %s10 = scalar_lea.smem %s0, 5
  %s11 = sld [smem:[%s10]]
  %s12 = scalar_lea.smem %s0, 6
  %s13 = sld [smem:[%s12]]
  %s14 = scalar_lea.smem %s0, 7
  %s15 = sld [smem:[%s14]]
  %s16 = scalar_lea.smem %s0, 8
  %s17 = sld [smem:[%s16]]
  %s18 = scalar_lea.smem %s0, 9
  %s19 = sld [smem:[%s18]]
  %s20 = scalar_lea.smem %s0, 10
  %s21 = sld [smem:[%s20]]
  %s22 = scalar_lea.smem %s0, 11
  %s23 = sld [smem:[%s22]]
  %s24 = scalar_lea.smem %s0, 12
  %s25 = sld [smem:[%s24]]
  %s26 = scalar_lea.smem %s0, 13
  %s27 = sld [smem:[%s26]]
  %s28 = scalar_lea.smem %s0, 14
  %s29 = sld [smem:[%s28]]
  %s30 = scalar_lea.smem %s0, 15
  %s31 = sld [smem:[%s30]]
  %s32 = scalar_lea.smem %s0, 16
  %s33 = sld [smem:[%s32]]
  %s34 = scalar_lea.smem %s0, 17
  %s35 = sld [smem:[%s34]]
  %s36 = scalar_lea.smem %s0, 18
  %s37 = sld [smem:[%s36]]
  %s38 = scalar_lea.smem %s0, 19
  %s39 = sld [smem:[%s38]]
  %s40 = scalar_lea.smem %s0, 20
  %s41 = sld [smem:[%s40]]
  %s42 = scalar_lea.smem %s0, 21
  %s43 = sld [smem:[%s42]]
  %s44 = scalar_lea.smem %s0, 22
  %s45 = sld [smem:[%s44]]
  %s46 = scalar_lea.smem %s0, 23
  %s47 = sld [smem:[%s46]]
  %s48 = scalar_lea.smem %s0, 24
  %s49 = sld [smem:[%s48]]
  %s50 = scalar_lea.smem %s0, 25
  %s51 = sld [smem:[%s50]]
  %s52 = scalar_lea.smem %s0, 26
  %s53 = sld [smem:[%s52]]
  %s54 = scalar_lea.smem %s0, 27
  %s55 = sld [smem:[%s54]]
  %s56 = scalar_lea.smem %s0, 28
  %s57 = sld [smem:[%s56]]
  %s58 = scalar_lea.smem %s0, 29
  %s59 = sld [smem:[%s58]]
  %s60 = sld [smem:[#allocation0]]
  $region221: #{tpu_custom_call.1} parent=0
    _
  %s62 = ssub.s32 1, %s60
  %s63 = scalar_select 0, %s62, %s60
  $region1: #{tpu_custom_call.1} parent=0
    #allocation7 [shape = 'u8[65536]{0}', space=vmem, size = 0x10000, scoped, tag = 'input window, operand 0']
    #allocation8 [shape = 's32[2]{0}', space=sflag, size = 0x8, scoped, tag = 'scoped memory for tpu_custom_call.1']
    #allocation9 [shape = 's32[2]{0}', space=sflag, size = 0x8, scoped, tag = 'scoped memory for tpu_custom_call.1']
    #allocation10 [shape = 'u8[65536]{0}', space=vmem, size = 0x10000, scoped, tag = 'input window, operand 1']
    #allocation11 [shape = 's32[2]{0}', space=sflag, size = 0x8, scoped, tag = 'scoped memory for tpu_custom_call.1']
    #allocation12 [shape = 'u8[8192]{0}', space=vmem, size = 0x2000, scoped, tag = 'input window, operand 2']
    #allocation13 [shape = 'u8[262144]{0}', space=vmem, size = 0x40000, scoped, tag = 'input window, operand 3, single buffered']
    #allocation14 [shape = 's32[1]{0}', space=sflag, size = 0x4, scoped, tag = 'scoped memory for tpu_custom_call.1']
    #allocation15 [shape = 'u8[262144]{0}', space=vmem, size = 0x40000, scoped, tag = 'input window, operand 5, single buffered']
    #allocation16 [shape = 'u8[1024]{0}', space=vmem, size = 0x400, scoped, tag = 'input window, operand 6, single buffered']
    #allocation17 [shape = 's32[1]{0}', space=sflag, size = 0x4, scoped, tag = 'scoped memory for tpu_custom_call.1']
    #allocation18 [shape = 'u8[262144]{0}', space=vmem, size = 0x40000, scoped, tag = 'input window, operand 7, single buffered']
    #allocation19 [shape = 'u8[1024]{0}', space=vmem, size = 0x400, scoped, tag = 'input window, operand 8, single buffered']
    #allocation20 [shape = 's32[1]{0}', space=sflag, size = 0x4, scoped, tag = 'scoped memory for tpu_custom_call.1']
    #allocation21 [shape = 'u8[262144]{0}', space=vmem, size = 0x40000, scoped, tag = 'input window, operand 9, single buffered']
    #allocation22 [shape = 'u8[1024]{0}', space=vmem, size = 0x400, scoped, tag = 'input window, operand 12, single buffered']
    #allocation23 [shape = 's32[1]{0}', space=sflag, size = 0x4, scoped, tag = 'scoped memory for tpu_custom_call.1']
    #allocation24 [shape = 'u8[262144]{0}', space=vmem, size = 0x40000, scoped, tag = 'input window, operand 13, single buffered']
    #allocation25 [shape = 'u8[262144]{0}', space=vmem, size = 0x40000, scoped, tag = 'input window, operand 15, single buffered']
    #allocation26 [shape = 's32[1]{0}', space=sflag, size = 0x4, scoped, tag = 'scoped memory for tpu_custom_call.1']
    #allocation27 [shape = 'u8[262144]{0}', space=vmem, size = 0x40000, scoped, tag = 'input window, operand 17, single buffered']
    #allocation28 [shape = 'u8[262144]{0}', space=vmem, size = 0x40000, scoped, tag = 'input window, operand 19, single buffered']
    #allocation29 [shape = 's32[1]{0}', space=sflag, size = 0x4, scoped, tag = 'scoped memory for tpu_custom_call.1']
    #allocation30 [shape = 'u8[1024]{0}', space=vmem, size = 0x400, scoped, tag = 'input window, operand 22, single buffered']
    #allocation31 [shape = 'u8[524288]{0}', space=vmem, size = 0x80000, scoped, tag = 'input window, operand 23, single buffered']
    #allocation32 [shape = 's32[1]{0}', space=sflag, size = 0x4, scoped, tag = 'scoped memory for tpu_custom_call.1']
    #allocation33 [shape = 'u8[524288]{0}', space=vmem, size = 0x80000, scoped, tag = 'input window, operand 25, single buffered']
    #allocation34 [shape = 'u8[32768]{0}', space=vmem, size = 0x8000, scoped, tag = 'output window, operand 0']
    %64 = vsyncpa [#allocation8], 0
    %s65 = scalar_lea.sflag [#allocation8], 1
    %66 = vsyncpa %s65, 0
    %67 = vsyncpa [#allocation11], 0
    %s68 = scalar_lea.sflag [#allocation11], 1
    %69 = vsyncpa %s68, 0
    %70 = vsyncpa [#allocation14], 0
    %71 = vsyncpa [#allocation17], 0
    %72 = vsyncpa [#allocation20], 0
    %73 = vsyncpa [#allocation23], 0
    %74 = vsyncpa [#allocation26], 0
    %75 = vsyncpa [#allocation29], 0
    %76 = vsyncpa [#allocation32], 0
    %77 = vsyncpa [#allocation9], 0
    %s78 = scalar_lea.sflag [#allocation9], 1
    %79 = vsyncpa %s78, 0
    loop: start=0, step=1, limit=6
    $region2: #{tpu_custom_call.1} parent=1 // loop_pre_header
      _
    $region3: #{tpu_custom_call.1} parent=1 // loop_header
      %s81 = sphi 0, %s85
      %p82 = scmp.ge.s32.totalorder %s81, 6
      %s88 = sphi 0, %s100
      %s89 = sphi 0, %s96
      %s90 = sphi 0, %s88
      %s91 = sphi 0, %s89
      %s92 = sphi 0, %s90
      %s93 = sphi 0, %s91
      %s103 = sphi 0, %s105
      %s106 = sphi 0, %s103
      %s107 = sphi 0, %s106
      %s123 = sphi 0, %s107
      %s129 = sphi 0, %s131
      %s132 = sphi 0, %s129
      %s133 = sphi 0, %s132
      %s149 = sphi 0, %s133
      %s157 = sphi 0, %s159
      %s160 = sphi 0, %s157
      %s161 = sphi 0, %s160
      %s177 = sphi 0, %s161
      %s181 = sphi 0, %s181
      %s183 = sphi 0, %s181
      %s184 = sphi 0, %s183
      %s198 = sphi 0, %s184
      %s202 = sphi 0, %s202
      %s204 = sphi 0, %s202
      %s205 = sphi 0, %s204
      %s219 = sphi 0, %s205
      %s223 = sphi 0, %s223
      %s225 = sphi 0, %s223
      %s226 = sphi 0, %s225
      %s240 = sphi 0, %s226
      %s244 = sphi 0, %s244
      %s246 = sphi 0, %s244
      %s247 = sphi 0, %s246
      %s261 = sphi 0, %s247
      %s265 = sphi 0, %s265
      %s267 = sphi 0, %s265
      %s268 = sphi 0, %s267
      %s282 = sphi 0, %s268
      %s286 = sphi 0, %s286
      %s288 = sphi 0, %s286
      %s289 = sphi 0, %s288
      %s303 = sphi 0, %s289
      %s307 = sphi 0, %s307
      %s309 = sphi 0, %s307
      %s310 = sphi 0, %s309
      %s324 = sphi 0, %s310
      %s328 = sphi 0, %s328
      %s330 = sphi 0, %s328
      %s331 = sphi 0, %s330
      %s345 = sphi 0, %s331
      %s349 = sphi 0, %s349
      %s351 = sphi 0, %s349
      %s352 = sphi 0, %s351
      %s366 = sphi 0, %s352
      %s370 = sphi 0, %s370
      %s372 = sphi 0, %s370
      %s373 = sphi 0, %s372
      %s387 = sphi 0, %s373
      %s391 = sphi 0, %s391
      %s393 = sphi 0, %s391
      %s394 = sphi 0, %s393
      %s408 = sphi 0, %s394
      %s412 = sphi 0, %s412
      %s414 = sphi 0, %s412
      %s415 = sphi 0, %s414
      %s429 = sphi 0, %s415
      %s433 = sphi 0, %s433
      %s435 = sphi 0, %s433
      %s436 = sphi 0, %s435
      %s450 = sphi 0, %s436
      %s454 = sphi 0, %s454
      %s456 = sphi 0, %s454
      %s457 = sphi 0, %s456
      %s471 = sphi 0, %s457
      %s475 = sphi 0, %s475
      %s477 = sphi 0, %s475
      %s478 = sphi 0, %s477
      %s492 = sphi 0, %s478
      %s496 = sphi 0, %s496
      %s498 = sphi 0, %s496
      %s499 = sphi 0, %s498
      %s513 = sphi 0, %s499
      %s517 = sphi 0, %s517
      %s519 = sphi 0, %s517
      %s520 = sphi 0, %s519
      %s534 = sphi 0, %s520
      %s538 = sphi 0, %s538
      %s540 = sphi 0, %s538
      %s541 = sphi 0, %s540
      %s555 = sphi 0, %s541
      %s559 = sphi 0, %s559
      %s561 = sphi 0, %s559
      %s562 = sphi 0, %s561
      %s576 = sphi 0, %s562
      %s580 = sphi 0, %s580
      %s582 = sphi 0, %s580
      %s583 = sphi 0, %s582
      %s597 = sphi 0, %s583
      %s601 = sphi 0, %s601
      %s603 = sphi 0, %s601
      %s604 = sphi 0, %s603
      %s618 = sphi 0, %s604
      %s622 = sphi 0, %s622
      %s624 = sphi 0, %s622
      %s625 = sphi 0, %s624
      %s639 = sphi 0, %s625
      %s643 = sphi 0, %s643
      %s645 = sphi 0, %s643
      %s646 = sphi 0, %s645
      %s660 = sphi 0, %s646
      %s664 = sphi 0, %s664
      %s666 = sphi 0, %s664
      %s667 = sphi 0, %s666
      %s681 = sphi 0, %s667
      %s685 = sphi 0, %s685
      %s687 = sphi 0, %s685
      %s688 = sphi 0, %s687
      %s702 = sphi 0, %s688
      %s706 = sphi 0, %s706
      %s708 = sphi 0, %s706
      %s709 = sphi 0, %s708
      %s723 = sphi 0, %s709
      %s731 = sphi 0, %s733
      %s734 = sphi 0, %s731
      %s735 = sphi 0, %s734
      %s751 = sphi 0, %s735
    $region4: #{tpu_custom_call.1} parent=1 // loop_header_branch
      %84 = sbr.rel (%p82) target = $region8
    $region5: #{tpu_custom_call.1} parent=1 // loop_body
      %s86 = ssub.s32 %s81, 1
      %s87 = ssub.s32 %s81, 2
      %s94 = sadd.s32 1, %s89
      %p95 = scmp.ge.s32.totalorder %s94, 2
      %s96 = scalar_select %p95, 0, %s94
      %s97 = sadd.s32 1, %s88
      %s98 = scalar_select %p95, %s97, %s88
      %p99 = scmp.ge.s32.totalorder %s98, 2
      %s100 = scalar_select %p99, 0, %s98
      %s101 = ssub.s32 %s88, %s100
      %p102 = scmp.eq.s32.totalorder %s101, 0
      %s104 = sadd.s32 %s103, 1
      %s105 = scalar_select %p102, %s103, %s104
      %p108 = pneg %p102
      %p109 = scmp.eq.s32.totalorder %s81, 3
      %p110 = por %p108, %p109
      %p111 = scmp.ne.s32.totalorder %s103, %s106
      %p112 = scmp.eq.s32.totalorder %s81, 0
      %p113 = por %p111, %p112
      %p114 = scmp.ne.s32.totalorder %s103, %s106
      %p115 = scmp.eq.s32.totalorder %s86, 3
      %p116 = por %p114, %p115
      %p117 = scmp.ne.s32.totalorder %s106, %s107
      %p118 = scmp.eq.s32.totalorder %s86, 0
      %p119 = por %p117, %p118
      %p120 = scmp.ne.s32.totalorder %s106, %s107
      %p121 = scmp.eq.s32.totalorder %s87, 3
      %p122 = por %p120, %p121
      %p124 = scmp.ne.s32.totalorder %s107, %s123
      %p125 = scmp.eq.s32.totalorder %s87, 0
      %p126 = por %p124, %p125
      %s127 = ssub.s32 %s88, %s100
      %p128 = scmp.eq.s32.totalorder %s127, 0
      %s130 = sadd.s32 %s129, 1
      %s131 = scalar_select %p128, %s129, %s130
      %p134 = pneg %p128
      %p135 = scmp.eq.s32.totalorder %s81, 3
      %p136 = por %p134, %p135
      %p137 = scmp.ne.s32.totalorder %s129, %s132
      %p138 = scmp.eq.s32.totalorder %s81, 0
      %p139 = por %p137, %p138
      %p140 = scmp.ne.s32.totalorder %s129, %s132
      %p141 = scmp.eq.s32.totalorder %s86, 3
      %p142 = por %p140, %p141
      %p143 = scmp.ne.s32.totalorder %s132, %s133
      %p144 = scmp.eq.s32.totalorder %s86, 0
      %p145 = por %p143, %p144
      %p146 = scmp.ne.s32.totalorder %s132, %s133
      %p147 = scmp.eq.s32.totalorder %s87, 3
      %p148 = por %p146, %p147
      %p150 = scmp.ne.s32.totalorder %s133, %s149
      %p151 = scmp.eq.s32.totalorder %s87, 0
      %p152 = por %p150, %p151
      %s153 = ssub.s32 %s88, %s100
      %s154 = ssub.s32 %s89, %s96
      %s155 = sor.u32 %s153, %s154
      %p156 = scmp.eq.s32.totalorder %s155, 0
      %s158 = sadd.s32 %s157, 1
      %s159 = scalar_select %p156, %s157, %s158
      %p162 = pneg %p156
      %p163 = scmp.eq.s32.totalorder %s81, 3
      %p164 = por %p162, %p163
      %p165 = scmp.ne.s32.totalorder %s157, %s160
      %p166 = scmp.eq.s32.totalorder %s81, 0
      %p167 = por %p165, %p166
      %p168 = scmp.ne.s32.totalorder %s157, %s160
      %p169 = scmp.eq.s32.totalorder %s86, 3
      %p170 = por %p168, %p169
      %p171 = scmp.ne.s32.totalorder %s160, %s161
      %p172 = scmp.eq.s32.totalorder %s86, 0
      %p173 = por %p171, %p172
      %p174 = scmp.ne.s32.totalorder %s160, %s161
      %p175 = scmp.eq.s32.totalorder %s87, 3
      %p176 = por %p174, %p175
      %p178 = scmp.ne.s32.totalorder %s161, %s177
      %p179 = scmp.eq.s32.totalorder %s87, 0
      %p180 = por %p178, %p179
      %s182 = sadd.s32 %s181, 1
      %p185 = scmp.eq.s32.totalorder %s81, 3
      %p186 = scmp.ne.s32.totalorder %s181, %s183
      %p187 = scmp.eq.s32.totalorder %s81, 0
      %p188 = por %p186, %p187
      %p189 = scmp.ne.s32.totalorder %s181, %s183
      %p190 = scmp.eq.s32.totalorder %s86, 3
      %p191 = por %p189, %p190
      %p192 = scmp.ne.s32.totalorder %s183, %s184
      %p193 = scmp.eq.s32.totalorder %s86, 0
      %p194 = por %p192, %p193
      %p195 = scmp.ne.s32.totalorder %s183, %s184
      %p196 = scmp.eq.s32.totalorder %s87, 3
      %p197 = por %p195, %p196
      %p199 = scmp.ne.s32.totalorder %s184, %s198
      %p200 = scmp.eq.s32.totalorder %s87, 0
      %p201 = por %p199, %p200
      %s203 = sadd.s32 %s202, 1
      %p206 = scmp.eq.s32.totalorder %s81, 3
      %p207 = scmp.ne.s32.totalorder %s202, %s204
      %p208 = scmp.eq.s32.totalorder %s81, 0
      %p209 = por %p207, %p208
      %p210 = scmp.ne.s32.totalorder %s202, %s204
      %p211 = scmp.eq.s32.totalorder %s86, 3
      %p212 = por %p210, %p211
      %p213 = scmp.ne.s32.totalorder %s204, %s205
      %p214 = scmp.eq.s32.totalorder %s86, 0
      %p215 = por %p213, %p214
      %p216 = scmp.ne.s32.totalorder %s204, %s205
      %p217 = scmp.eq.s32.totalorder %s87, 3
      %p218 = por %p216, %p217
      %p220 = scmp.ne.s32.totalorder %s205, %s219
      %p221 = scmp.eq.s32.totalorder %s87, 0
      %p222 = por %p220, %p221
      %s224 = sadd.s32 %s223, 1
      %p227 = scmp.eq.s32.totalorder %s81, 3
      %p228 = scmp.ne.s32.totalorder %s223, %s225
      %p229 = scmp.eq.s32.totalorder %s81, 0
      %p230 = por %p228, %p229
      %p231 = scmp.ne.s32.totalorder %s223, %s225
      %p232 = scmp.eq.s32.totalorder %s86, 3
      %p233 = por %p231, %p232
      %p234 = scmp.ne.s32.totalorder %s225, %s226
      %p235 = scmp.eq.s32.totalorder %s86, 0
      %p236 = por %p234, %p235
      %p237 = scmp.ne.s32.totalorder %s225, %s226
      %p238 = scmp.eq.s32.totalorder %s87, 3
      %p239 = por %p237, %p238
      %p241 = scmp.ne.s32.totalorder %s226, %s240
      %p242 = scmp.eq.s32.totalorder %s87, 0
      %p243 = por %p241, %p242
      %s245 = sadd.s32 %s244, 1
      %p248 = scmp.eq.s32.totalorder %s81, 3
      %p249 = scmp.ne.s32.totalorder %s244, %s246
      %p250 = scmp.eq.s32.totalorder %s81, 0
      %p251 = por %p249, %p250
      %p252 = scmp.ne.s32.totalorder %s244, %s246
      %p253 = scmp.eq.s32.totalorder %s86, 3
      %p254 = por %p252, %p253
      %p255 = scmp.ne.s32.totalorder %s246, %s247
      %p256 = scmp.eq.s32.totalorder %s86, 0
      %p257 = por %p255, %p256
      %p258 = scmp.ne.s32.totalorder %s246, %s247
      %p259 = scmp.eq.s32.totalorder %s87, 3
      %p260 = por %p258, %p259
      %p262 = scmp.ne.s32.totalorder %s247, %s261
      %p263 = scmp.eq.s32.totalorder %s87, 0
      %p264 = por %p262, %p263
      %s266 = sadd.s32 %s265, 1
      %p269 = scmp.eq.s32.totalorder %s81, 3
      %p270 = scmp.ne.s32.totalorder %s265, %s267
      %p271 = scmp.eq.s32.totalorder %s81, 0
      %p272 = por %p270, %p271
      %p273 = scmp.ne.s32.totalorder %s265, %s267
      %p274 = scmp.eq.s32.totalorder %s86, 3
      %p275 = por %p273, %p274
      %p276 = scmp.ne.s32.totalorder %s267, %s268
      %p277 = scmp.eq.s32.totalorder %s86, 0
      %p278 = por %p276, %p277
      %p279 = scmp.ne.s32.totalorder %s267, %s268
      %p280 = scmp.eq.s32.totalorder %s87, 3
      %p281 = por %p279, %p280
      %p283 = scmp.ne.s32.totalorder %s268, %s282
      %p284 = scmp.eq.s32.totalorder %s87, 0
      %p285 = por %p283, %p284
      %s287 = sadd.s32 %s286, 1
      %p290 = scmp.eq.s32.totalorder %s81, 3
      %p291 = scmp.ne.s32.totalorder %s286, %s288
      %p292 = scmp.eq.s32.totalorder %s81, 0
      %p293 = por %p291, %p292
      %p294 = scmp.ne.s32.totalorder %s286, %s288
      %p295 = scmp.eq.s32.totalorder %s86, 3
      %p296 = por %p294, %p295
      %p297 = scmp.ne.s32.totalorder %s288, %s289
      %p298 = scmp.eq.s32.totalorder %s86, 0
      %p299 = por %p297, %p298
      %p300 = scmp.ne.s32.totalorder %s288, %s289
      %p301 = scmp.eq.s32.totalorder %s87, 3
      %p302 = por %p300, %p301
      %p304 = scmp.ne.s32.totalorder %s289, %s303
      %p305 = scmp.eq.s32.totalorder %s87, 0
      %p306 = por %p304, %p305
      %s308 = sadd.s32 %s307, 1
      %p311 = scmp.eq.s32.totalorder %s81, 3
      %p312 = scmp.ne.s32.totalorder %s307, %s309
      %p313 = scmp.eq.s32.totalorder %s81, 0
      %p314 = por %p312, %p313
      %p315 = scmp.ne.s32.totalorder %s307, %s309
      %p316 = scmp.eq.s32.totalorder %s86, 3
      %p317 = por %p315, %p316
      %p318 = scmp.ne.s32.totalorder %s309, %s310
      %p319 = scmp.eq.s32.totalorder %s86, 0
      %p320 = por %p318, %p319
      %p321 = scmp.ne.s32.totalorder %s309, %s310
      %p322 = scmp.eq.s32.totalorder %s87, 3
      %p323 = por %p321, %p322
      %p325 = scmp.ne.s32.totalorder %s310, %s324
      %p326 = scmp.eq.s32.totalorder %s87, 0
      %p327 = por %p325, %p326
      %s329 = sadd.s32 %s328, 1
      %p332 = scmp.eq.s32.totalorder %s81, 3
      %p333 = scmp.ne.s32.totalorder %s328, %s330
      %p334 = scmp.eq.s32.totalorder %s81, 0
      %p335 = por %p333, %p334
      %p336 = scmp.ne.s32.totalorder %s328, %s330
      %p337 = scmp.eq.s32.totalorder %s86, 3
      %p338 = por %p336, %p337
      %p339 = scmp.ne.s32.totalorder %s330, %s331
      %p340 = scmp.eq.s32.totalorder %s86, 0
      %p341 = por %p339, %p340
      %p342 = scmp.ne.s32.totalorder %s330, %s331
      %p343 = scmp.eq.s32.totalorder %s87, 3
      %p344 = por %p342, %p343
      %p346 = scmp.ne.s32.totalorder %s331, %s345
      %p347 = scmp.eq.s32.totalorder %s87, 0
      %p348 = por %p346, %p347
      %s350 = sadd.s32 %s349, 1
      %p353 = scmp.eq.s32.totalorder %s81, 3
      %p354 = scmp.ne.s32.totalorder %s349, %s351
      %p355 = scmp.eq.s32.totalorder %s81, 0
      %p356 = por %p354, %p355
      %p357 = scmp.ne.s32.totalorder %s349, %s351
      %p358 = scmp.eq.s32.totalorder %s86, 3
      %p359 = por %p357, %p358
      %p360 = scmp.ne.s32.totalorder %s351, %s352
      %p361 = scmp.eq.s32.totalorder %s86, 0
      %p362 = por %p360, %p361
      %p363 = scmp.ne.s32.totalorder %s351, %s352
      %p364 = scmp.eq.s32.totalorder %s87, 3
      %p365 = por %p363, %p364
      %p367 = scmp.ne.s32.totalorder %s352, %s366
      %p368 = scmp.eq.s32.totalorder %s87, 0
      %p369 = por %p367, %p368
      %s371 = sadd.s32 %s370, 1
      %p374 = scmp.eq.s32.totalorder %s81, 3
      %p375 = scmp.ne.s32.totalorder %s370, %s372
      %p376 = scmp.eq.s32.totalorder %s81, 0
      %p377 = por %p375, %p376
      %p378 = scmp.ne.s32.totalorder %s370, %s372
      %p379 = scmp.eq.s32.totalorder %s86, 3
      %p380 = por %p378, %p379
      %p381 = scmp.ne.s32.totalorder %s372, %s373
      %p382 = scmp.eq.s32.totalorder %s86, 0
      %p383 = por %p381, %p382
      %p384 = scmp.ne.s32.totalorder %s372, %s373
      %p385 = scmp.eq.s32.totalorder %s87, 3
      %p386 = por %p384, %p385
      %p388 = scmp.ne.s32.totalorder %s373, %s387
      %p389 = scmp.eq.s32.totalorder %s87, 0
      %p390 = por %p388, %p389
      %s392 = sadd.s32 %s391, 1
      %p395 = scmp.eq.s32.totalorder %s81, 3
      %p396 = scmp.ne.s32.totalorder %s391, %s393
      %p397 = scmp.eq.s32.totalorder %s81, 0
      %p398 = por %p396, %p397
      %p399 = scmp.ne.s32.totalorder %s391, %s393
      %p400 = scmp.eq.s32.totalorder %s86, 3
      %p401 = por %p399, %p400
      %p402 = scmp.ne.s32.totalorder %s393, %s394
      %p403 = scmp.eq.s32.totalorder %s86, 0
      %p404 = por %p402, %p403
      %p405 = scmp.ne.s32.totalorder %s393, %s394
      %p406 = scmp.eq.s32.totalorder %s87, 3
      %p407 = por %p405, %p406
      %p409 = scmp.ne.s32.totalorder %s394, %s408
      %p410 = scmp.eq.s32.totalorder %s87, 0
      %p411 = por %p409, %p410
      %s413 = sadd.s32 %s412, 1
      %p416 = scmp.eq.s32.totalorder %s81, 3
      %p417 = scmp.ne.s32.totalorder %s412, %s414
      %p418 = scmp.eq.s32.totalorder %s81, 0
      %p419 = por %p417, %p418
      %p420 = scmp.ne.s32.totalorder %s412, %s414
      %p421 = scmp.eq.s32.totalorder %s86, 3
      %p422 = por %p420, %p421
      %p423 = scmp.ne.s32.totalorder %s414, %s415
      %p424 = scmp.eq.s32.totalorder %s86, 0
      %p425 = por %p423, %p424
      %p426 = scmp.ne.s32.totalorder %s414, %s415
      %p427 = scmp.eq.s32.totalorder %s87, 3
      %p428 = por %p426, %p427
      %p430 = scmp.ne.s32.totalorder %s415, %s429
      %p431 = scmp.eq.s32.totalorder %s87, 0
      %p432 = por %p430, %p431
      %s434 = sadd.s32 %s433, 1
      %p437 = scmp.eq.s32.totalorder %s81, 3
      %p438 = scmp.ne.s32.totalorder %s433, %s435
      %p439 = scmp.eq.s32.totalorder %s81, 0
      %p440 = por %p438, %p439
      %p441 = scmp.ne.s32.totalorder %s433, %s435
      %p442 = scmp.eq.s32.totalorder %s86, 3
      %p443 = por %p441, %p442
      %p444 = scmp.ne.s32.totalorder %s435, %s436
      %p445 = scmp.eq.s32.totalorder %s86, 0
      %p446 = por %p444, %p445
      %p447 = scmp.ne.s32.totalorder %s435, %s436
      %p448 = scmp.eq.s32.totalorder %s87, 3
      %p449 = por %p447, %p448
      %p451 = scmp.ne.s32.totalorder %s436, %s450
      %p452 = scmp.eq.s32.totalorder %s87, 0
      %p453 = por %p451, %p452
      %s455 = sadd.s32 %s454, 1
      %p458 = scmp.eq.s32.totalorder %s81, 3
      %p459 = scmp.ne.s32.totalorder %s454, %s456
      %p460 = scmp.eq.s32.totalorder %s81, 0
      %p461 = por %p459, %p460
      %p462 = scmp.ne.s32.totalorder %s454, %s456
      %p463 = scmp.eq.s32.totalorder %s86, 3
      %p464 = por %p462, %p463
      %p465 = scmp.ne.s32.totalorder %s456, %s457
      %p466 = scmp.eq.s32.totalorder %s86, 0
      %p467 = por %p465, %p466
      %p468 = scmp.ne.s32.totalorder %s456, %s457
      %p469 = scmp.eq.s32.totalorder %s87, 3
      %p470 = por %p468, %p469
      %p472 = scmp.ne.s32.totalorder %s457, %s471
      %p473 = scmp.eq.s32.totalorder %s87, 0
      %p474 = por %p472, %p473
      %s476 = sadd.s32 %s475, 1
      %p479 = scmp.eq.s32.totalorder %s81, 3
      %p480 = scmp.ne.s32.totalorder %s475, %s477
      %p481 = scmp.eq.s32.totalorder %s81, 0
      %p482 = por %p480, %p481
      %p483 = scmp.ne.s32.totalorder %s475, %s477
      %p484 = scmp.eq.s32.totalorder %s86, 3
      %p485 = por %p483, %p484
      %p486 = scmp.ne.s32.totalorder %s477, %s478
      %p487 = scmp.eq.s32.totalorder %s86, 0
      %p488 = por %p486, %p487
      %p489 = scmp.ne.s32.totalorder %s477, %s478
      %p490 = scmp.eq.s32.totalorder %s87, 3
      %p491 = por %p489, %p490
      %p493 = scmp.ne.s32.totalorder %s478, %s492
      %p494 = scmp.eq.s32.totalorder %s87, 0
      %p495 = por %p493, %p494
      %s497 = sadd.s32 %s496, 1
      %p500 = scmp.eq.s32.totalorder %s81, 3
      %p501 = scmp.ne.s32.totalorder %s496, %s498
      %p502 = scmp.eq.s32.totalorder %s81, 0
      %p503 = por %p501, %p502
      %p504 = scmp.ne.s32.totalorder %s496, %s498
      %p505 = scmp.eq.s32.totalorder %s86, 3
      %p506 = por %p504, %p505
      %p507 = scmp.ne.s32.totalorder %s498, %s499
      %p508 = scmp.eq.s32.totalorder %s86, 0
      %p509 = por %p507, %p508
      %p510 = scmp.ne.s32.totalorder %s498, %s499
      %p511 = scmp.eq.s32.totalorder %s87, 3
      %p512 = por %p510, %p511
      %p514 = scmp.ne.s32.totalorder %s499, %s513
      %p515 = scmp.eq.s32.totalorder %s87, 0
      %p516 = por %p514, %p515
      %s518 = sadd.s32 %s517, 1
      %p521 = scmp.eq.s32.totalorder %s81, 3
      %p522 = scmp.ne.s32.totalorder %s517, %s519
      %p523 = scmp.eq.s32.totalorder %s81, 0
      %p524 = por %p522, %p523
      %p525 = scmp.ne.s32.totalorder %s517, %s519
      %p526 = scmp.eq.s32.totalorder %s86, 3
      %p527 = por %p525, %p526
      %p528 = scmp.ne.s32.totalorder %s519, %s520
      %p529 = scmp.eq.s32.totalorder %s86, 0
      %p530 = por %p528, %p529
      %p531 = scmp.ne.s32.totalorder %s519, %s520
      %p532 = scmp.eq.s32.totalorder %s87, 3
      %p533 = por %p531, %p532
      %p535 = scmp.ne.s32.totalorder %s520, %s534
      %p536 = scmp.eq.s32.totalorder %s87, 0
      %p537 = por %p535, %p536
      %s539 = sadd.s32 %s538, 1
      %p542 = scmp.eq.s32.totalorder %s81, 3
      %p543 = scmp.ne.s32.totalorder %s538, %s540
      %p544 = scmp.eq.s32.totalorder %s81, 0
      %p545 = por %p543, %p544
      %p546 = scmp.ne.s32.totalorder %s538, %s540
      %p547 = scmp.eq.s32.totalorder %s86, 3
      %p548 = por %p546, %p547
      %p549 = scmp.ne.s32.totalorder %s540, %s541
      %p550 = scmp.eq.s32.totalorder %s86, 0
      %p551 = por %p549, %p550
      %p552 = scmp.ne.s32.totalorder %s540, %s541
      %p553 = scmp.eq.s32.totalorder %s87, 3
      %p554 = por %p552, %p553
      %p556 = scmp.ne.s32.totalorder %s541, %s555
      %p557 = scmp.eq.s32.totalorder %s87, 0
      %p558 = por %p556, %p557
      %s560 = sadd.s32 %s559, 1
      %p563 = scmp.eq.s32.totalorder %s81, 3
      %p564 = scmp.ne.s32.totalorder %s559, %s561
      %p565 = scmp.eq.s32.totalorder %s81, 0
      %p566 = por %p564, %p565
      %p567 = scmp.ne.s32.totalorder %s559, %s561
      %p568 = scmp.eq.s32.totalorder %s86, 3
      %p569 = por %p567, %p568
      %p570 = scmp.ne.s32.totalorder %s561, %s562
      %p571 = scmp.eq.s32.totalorder %s86, 0
      %p572 = por %p570, %p571
      %p573 = scmp.ne.s32.totalorder %s561, %s562
      %p574 = scmp.eq.s32.totalorder %s87, 3
      %p575 = por %p573, %p574
      %p577 = scmp.ne.s32.totalorder %s562, %s576
      %p578 = scmp.eq.s32.totalorder %s87, 0
      %p579 = por %p577, %p578
      %s581 = sadd.s32 %s580, 1
      %p584 = scmp.eq.s32.totalorder %s81, 3
      %p585 = scmp.ne.s32.totalorder %s580, %s582
      %p586 = scmp.eq.s32.totalorder %s81, 0
      %p587 = por %p585, %p586
      %p588 = scmp.ne.s32.totalorder %s580, %s582
      %p589 = scmp.eq.s32.totalorder %s86, 3
      %p590 = por %p588, %p589
      %p591 = scmp.ne.s32.totalorder %s582, %s583
      %p592 = scmp.eq.s32.totalorder %s86, 0
      %p593 = por %p591, %p592
      %p594 = scmp.ne.s32.totalorder %s582, %s583
      %p595 = scmp.eq.s32.totalorder %s87, 3
      %p596 = por %p594, %p595
      %p598 = scmp.ne.s32.totalorder %s583, %s597
      %p599 = scmp.eq.s32.totalorder %s87, 0
      %p600 = por %p598, %p599
      %s602 = sadd.s32 %s601, 1
      %p605 = scmp.eq.s32.totalorder %s81, 3
      %p606 = scmp.ne.s32.totalorder %s601, %s603
      %p607 = scmp.eq.s32.totalorder %s81, 0
      %p608 = por %p606, %p607
      %p609 = scmp.ne.s32.totalorder %s601, %s603
      %p610 = scmp.eq.s32.totalorder %s86, 3
      %p611 = por %p609, %p610
      %p612 = scmp.ne.s32.totalorder %s603, %s604
      %p613 = scmp.eq.s32.totalorder %s86, 0
      %p614 = por %p612, %p613
      %p615 = scmp.ne.s32.totalorder %s603, %s604
      %p616 = scmp.eq.s32.totalorder %s87, 3
      %p617 = por %p615, %p616
      %p619 = scmp.ne.s32.totalorder %s604, %s618
      %p620 = scmp.eq.s32.totalorder %s87, 0
      %p621 = por %p619, %p620
      %s623 = sadd.s32 %s622, 1
      %p626 = scmp.eq.s32.totalorder %s81, 3
      %p627 = scmp.ne.s32.totalorder %s622, %s624
      %p628 = scmp.eq.s32.totalorder %s81, 0
      %p629 = por %p627, %p628
      %p630 = scmp.ne.s32.totalorder %s622, %s624
      %p631 = scmp.eq.s32.totalorder %s86, 3
      %p632 = por %p630, %p631
      %p633 = scmp.ne.s32.totalorder %s624, %s625
      %p634 = scmp.eq.s32.totalorder %s86, 0
      %p635 = por %p633, %p634
      %p636 = scmp.ne.s32.totalorder %s624, %s625
      %p637 = scmp.eq.s32.totalorder %s87, 3
      %p638 = por %p636, %p637
      %p640 = scmp.ne.s32.totalorder %s625, %s639
      %p641 = scmp.eq.s32.totalorder %s87, 0
      %p642 = por %p640, %p641
      %s644 = sadd.s32 %s643, 1
      %p647 = scmp.eq.s32.totalorder %s81, 3
      %p648 = scmp.ne.s32.totalorder %s643, %s645
      %p649 = scmp.eq.s32.totalorder %s81, 0
      %p650 = por %p648, %p649
      %p651 = scmp.ne.s32.totalorder %s643, %s645
      %p652 = scmp.eq.s32.totalorder %s86, 3
      %p653 = por %p651, %p652
      %p654 = scmp.ne.s32.totalorder %s645, %s646
      %p655 = scmp.eq.s32.totalorder %s86, 0
      %p656 = por %p654, %p655
      %p657 = scmp.ne.s32.totalorder %s645, %s646
      %p658 = scmp.eq.s32.totalorder %s87, 3
      %p659 = por %p657, %p658
      %p661 = scmp.ne.s32.totalorder %s646, %s660
      %p662 = scmp.eq.s32.totalorder %s87, 0
      %p663 = por %p661, %p662
      %s665 = sadd.s32 %s664, 1
      %p668 = scmp.eq.s32.totalorder %s81, 3
      %p669 = scmp.ne.s32.totalorder %s664, %s666
      %p670 = scmp.eq.s32.totalorder %s81, 0
      %p671 = por %p669, %p670
      %p672 = scmp.ne.s32.totalorder %s664, %s666
      %p673 = scmp.eq.s32.totalorder %s86, 3
      %p674 = por %p672, %p673
      %p675 = scmp.ne.s32.totalorder %s666, %s667
      %p676 = scmp.eq.s32.totalorder %s86, 0
      %p677 = por %p675, %p676
      %p678 = scmp.ne.s32.totalorder %s666, %s667
      %p679 = scmp.eq.s32.totalorder %s87, 3
      %p680 = por %p678, %p679
      %p682 = scmp.ne.s32.totalorder %s667, %s681
      %p683 = scmp.eq.s32.totalorder %s87, 0
      %p684 = por %p682, %p683
      %s686 = sadd.s32 %s685, 1
      %p689 = scmp.eq.s32.totalorder %s81, 3
      %p690 = scmp.ne.s32.totalorder %s685, %s687
      %p691 = scmp.eq.s32.totalorder %s81, 0
      %p692 = por %p690, %p691
      %p693 = scmp.ne.s32.totalorder %s685, %s687
      %p694 = scmp.eq.s32.totalorder %s86, 3
      %p695 = por %p693, %p694
      %p696 = scmp.ne.s32.totalorder %s687, %s688
      %p697 = scmp.eq.s32.totalorder %s86, 0
      %p698 = por %p696, %p697
      %p699 = scmp.ne.s32.totalorder %s687, %s688
      %p700 = scmp.eq.s32.totalorder %s87, 3
      %p701 = por %p699, %p700
      %p703 = scmp.ne.s32.totalorder %s688, %s702
      %p704 = scmp.eq.s32.totalorder %s87, 0
      %p705 = por %p703, %p704
      %s707 = sadd.s32 %s706, 1
      %p710 = scmp.eq.s32.totalorder %s81, 3
      %p711 = scmp.ne.s32.totalorder %s706, %s708
      %p712 = scmp.eq.s32.totalorder %s81, 0
      %p713 = por %p711, %p712
      %p714 = scmp.ne.s32.totalorder %s706, %s708
      %p715 = scmp.eq.s32.totalorder %s86, 3
      %p716 = por %p714, %p715
      %p717 = scmp.ne.s32.totalorder %s708, %s709
      %p718 = scmp.eq.s32.totalorder %s86, 0
      %p719 = por %p717, %p718
      %p720 = scmp.ne.s32.totalorder %s708, %s709
      %p721 = scmp.eq.s32.totalorder %s87, 3
      %p722 = por %p720, %p721
      %p724 = scmp.ne.s32.totalorder %s709, %s723
      %p725 = scmp.eq.s32.totalorder %s87, 0
      %p726 = por %p724, %p725
      %s727 = ssub.s32 %s88, %s100
      %s728 = ssub.s32 %s89, %s96
      %s729 = sor.u32 %s727, %s728
      %p730 = scmp.eq.s32.totalorder %s729, 0
      %s732 = sadd.s32 %s731, 1
      %s733 = scalar_select %p730, %s731, %s732
      %p736 = pneg %p730
      %p737 = scmp.eq.s32.totalorder %s81, 3
      %p738 = por %p736, %p737
      %p739 = scmp.ne.s32.totalorder %s731, %s734
      %p740 = scmp.eq.s32.totalorder %s81, 0
      %p741 = por %p739, %p740
      %p742 = scmp.ne.s32.totalorder %s731, %s734
      %p743 = scmp.eq.s32.totalorder %s86, 3
      %p744 = por %p742, %p743
      %p745 = scmp.ne.s32.totalorder %s734, %s735
      %p746 = scmp.eq.s32.totalorder %s86, 0
      %p747 = por %p745, %p746
      %p748 = scmp.ne.s32.totalorder %s734, %s735
      %p749 = scmp.eq.s32.totalorder %s87, 3
      %p750 = por %p748, %p749
      %p752 = scmp.ne.s32.totalorder %s735, %s751
      %p753 = scmp.eq.s32.totalorder %s87, 0
      %p754 = por %p752, %p753
      %p755 = scmp.le.s32.totalorder 1, %s81
      %p756 = scmp.lt.s32.totalorder %s81, 5
      %p757 = pnand %p755, %p756
      %p758 = pneg %p757
      // Predicated region
      $region9: #{tpu_custom_call.1} parent=5 // pred_check
        _
      $region10: #{tpu_custom_call.1} parent=5 // pred_check_branch
        %760 = sbr.rel (%p757) target = $region12
      $region11: #{tpu_custom_call.1} parent=5 // pred_region
        %s761 = ssub.s32 %s81, 1
        // Predicated region
        $region13: #{tpu_custom_call.1} parent=11 // pred_check
          %p762 = pneg %p194
        $region14: #{tpu_custom_call.1} parent=11 // pred_check_branch
          %764 = sbr.rel (%p762) target = $region16
        $region15: #{tpu_custom_call.1} parent=11 // pred_region
          %766 = vsyncadd [#allocation14], 0
          %s767 = sshll.u32 %s7, 4
          %s768 = int_to_ptr.hbm [resolvable:$true] %s767
          %s769 = sshll.u32 [#allocation13], 4
          %s770 = int_to_ptr.vmem [resolvable:$true] %s769
          %775 = dma.hbm_to_vmem [thread:$0]  %s768, 8192, %s770, [#allocation14], 256, 256, 16
        $region16: #{tpu_custom_call.1} parent=11 // pred_fallthru
          _
        // Predicated region
        $region17: #{tpu_custom_call.1} parent=11 // pred_check
          %p776 = pneg %p215
        $region18: #{tpu_custom_call.1} parent=11 // pred_check_branch
          %778 = sbr.rel (%p776) target = $region20
        $region19: #{tpu_custom_call.1} parent=11 // pred_region
          _
        $region20: #{tpu_custom_call.1} parent=11 // pred_fallthru
          _
        // Predicated region
        $region21: #{tpu_custom_call.1} parent=11 // pred_check
          %p779 = pneg %p236
        $region22: #{tpu_custom_call.1} parent=11 // pred_check_branch
          %781 = sbr.rel (%p779) target = $region24
        $region23: #{tpu_custom_call.1} parent=11 // pred_region
          %783 = vsyncadd [#allocation14], 0
          %s784 = sshll.u32 %s11, 4
          %s785 = int_to_ptr.hbm [resolvable:$true] %s784
          %s786 = sshll.u32 [#allocation15], 4
          %s787 = int_to_ptr.vmem [resolvable:$true] %s786
          %792 = dma.hbm_to_vmem [thread:$0]  %s785, 8192, %s787, [#allocation14], 256, 256, 16
        $region24: #{tpu_custom_call.1} parent=11 // pred_fallthru
          _
        // Predicated region
        $region25: #{tpu_custom_call.1} parent=11 // pred_check
          %p793 = pneg %p257
        $region26: #{tpu_custom_call.1} parent=11 // pred_check_branch
          %795 = sbr.rel (%p793) target = $region28
        $region27: #{tpu_custom_call.1} parent=11 // pred_region
          %797 = vsyncadd [#allocation17], 0
          %s799 = sshll.u32 %s13, 4
          %s800 = int_to_ptr.hbm [resolvable:$true] %s799
          %s801 = sshll.u32 [#allocation16], 4
          %s802 = int_to_ptr.vmem [resolvable:$true] %s801
          %804 = dma.hbm_to_vmem [thread:$0]  %s800, 32, %s802, [#allocation17]
        $region28: #{tpu_custom_call.1} parent=11 // pred_fallthru
          _
        // Predicated region
        $region29: #{tpu_custom_call.1} parent=11 // pred_check
          %p805 = pneg %p278
        $region30: #{tpu_custom_call.1} parent=11 // pred_check_branch
          %807 = sbr.rel (%p805) target = $region32
        $region31: #{tpu_custom_call.1} parent=11 // pred_region
          %809 = vsyncadd [#allocation17], 0
          %s810 = sshll.u32 %s15, 4
          %s811 = int_to_ptr.hbm [resolvable:$true] %s810
          %s812 = sshll.u32 [#allocation18], 4
          %s813 = int_to_ptr.vmem [resolvable:$true] %s812
          %818 = dma.hbm_to_vmem [thread:$0]  %s811, 8192, %s813, [#allocation17], 256, 256, 16
        $region32: #{tpu_custom_call.1} parent=11 // pred_fallthru
          _
        // Predicated region
        $region33: #{tpu_custom_call.1} parent=11 // pred_check
          %p819 = pneg %p299
        $region34: #{tpu_custom_call.1} parent=11 // pred_check_branch
          %821 = sbr.rel (%p819) target = $region36
        $region35: #{tpu_custom_call.1} parent=11 // pred_region
          %823 = vsyncadd [#allocation20], 0
          %s825 = sshll.u32 %s17, 4
          %s826 = int_to_ptr.hbm [resolvable:$true] %s825
          %s827 = sshll.u32 [#allocation19], 4
          %s828 = int_to_ptr.vmem [resolvable:$true] %s827
          %830 = dma.hbm_to_vmem [thread:$0]  %s826, 32, %s828, [#allocation20]
        $region36: #{tpu_custom_call.1} parent=11 // pred_fallthru
          _
        // Predicated region
        $region37: #{tpu_custom_call.1} parent=11 // pred_check
          %p831 = pneg %p320
        $region38: #{tpu_custom_call.1} parent=11 // pred_check_branch
          %833 = sbr.rel (%p831) target = $region40
        $region39: #{tpu_custom_call.1} parent=11 // pred_region
          %835 = vsyncadd [#allocation20], 0
          %s836 = sshll.u32 %s19, 4
          %s837 = int_to_ptr.hbm [resolvable:$true] %s836
          %s838 = sshll.u32 [#allocation21], 4
          %s839 = int_to_ptr.vmem [resolvable:$true] %s838
          %844 = dma.hbm_to_vmem [thread:$0]  %s837, 8192, %s839, [#allocation20], 256, 256, 16
        $region40: #{tpu_custom_call.1} parent=11 // pred_fallthru
          _
        // Predicated region
        $region41: #{tpu_custom_call.1} parent=11 // pred_check
          %p845 = pneg %p341
        $region42: #{tpu_custom_call.1} parent=11 // pred_check_branch
          %847 = sbr.rel (%p845) target = $region44
        $region43: #{tpu_custom_call.1} parent=11 // pred_region
          _
        $region44: #{tpu_custom_call.1} parent=11 // pred_fallthru
          _
        // Predicated region
        $region45: #{tpu_custom_call.1} parent=11 // pred_check
          %p848 = pneg %p362
        $region46: #{tpu_custom_call.1} parent=11 // pred_check_branch
          %850 = sbr.rel (%p848) target = $region48
        $region47: #{tpu_custom_call.1} parent=11 // pred_region
          _
        $region48: #{tpu_custom_call.1} parent=11 // pred_fallthru
          _
        // Predicated region
        $region49: #{tpu_custom_call.1} parent=11 // pred_check
          %p851 = pneg %p383
        $region50: #{tpu_custom_call.1} parent=11 // pred_check_branch
          %853 = sbr.rel (%p851) target = $region52
        $region51: #{tpu_custom_call.1} parent=11 // pred_region
          %855 = vsyncadd [#allocation23], 0
          %s857 = sshll.u32 %s25, 4
          %s858 = int_to_ptr.hbm [resolvable:$true] %s857
          %s859 = sshll.u32 [#allocation22], 4
          %s860 = int_to_ptr.vmem [resolvable:$true] %s859
          %862 = dma.hbm_to_vmem [thread:$0]  %s858, 32, %s860, [#allocation23]
        $region52: #{tpu_custom_call.1} parent=11 // pred_fallthru
          _
        // Predicated region
        $region53: #{tpu_custom_call.1} parent=11 // pred_check
          %p863 = pneg %p404
        $region54: #{tpu_custom_call.1} parent=11 // pred_check_branch
          %865 = sbr.rel (%p863) target = $region56
        $region55: #{tpu_custom_call.1} parent=11 // pred_region
          %867 = vsyncadd [#allocation23], 0
          %s868 = sshll.u32 %s27, 4
          %s869 = int_to_ptr.hbm [resolvable:$true] %s868
          %s870 = sshll.u32 [#allocation24], 4
          %s871 = int_to_ptr.vmem [resolvable:$true] %s870
          %876 = dma.hbm_to_vmem [thread:$0]  %s869, 8192, %s871, [#allocation23], 256, 256, 16
        $region56: #{tpu_custom_call.1} parent=11 // pred_fallthru
          _
        // Predicated region
        $region57: #{tpu_custom_call.1} parent=11 // pred_check
          %p877 = pneg %p425
        $region58: #{tpu_custom_call.1} parent=11 // pred_check_branch
          %879 = sbr.rel (%p877) target = $region60
        $region59: #{tpu_custom_call.1} parent=11 // pred_region
          _
        $region60: #{tpu_custom_call.1} parent=11 // pred_fallthru
          _
        // Predicated region
        $region61: #{tpu_custom_call.1} parent=11 // pred_check
          %p880 = pneg %p446
        $region62: #{tpu_custom_call.1} parent=11 // pred_check_branch
          %882 = sbr.rel (%p880) target = $region64
        $region63: #{tpu_custom_call.1} parent=11 // pred_region
          %884 = vsyncadd [#allocation26], 0
          %s885 = sshll.u32 %s31, 4
          %s886 = int_to_ptr.hbm [resolvable:$true] %s885
          %s887 = sshll.u32 [#allocation25], 4
          %s888 = int_to_ptr.vmem [resolvable:$true] %s887
          %893 = dma.hbm_to_vmem [thread:$0]  %s886, 8192, %s888, [#allocation26], 256, 256, 16
        $region64: #{tpu_custom_call.1} parent=11 // pred_fallthru
          _
        // Predicated region
        $region65: #{tpu_custom_call.1} parent=11 // pred_check
          %p894 = pneg %p467
        $region66: #{tpu_custom_call.1} parent=11 // pred_check_branch
          %896 = sbr.rel (%p894) target = $region68
        $region67: #{tpu_custom_call.1} parent=11 // pred_region
          _
        $region68: #{tpu_custom_call.1} parent=11 // pred_fallthru
          _
        // Predicated region
        $region69: #{tpu_custom_call.1} parent=11 // pred_check
          %p897 = pneg %p488
        $region70: #{tpu_custom_call.1} parent=11 // pred_check_branch
          %899 = sbr.rel (%p897) target = $region72
        $region71: #{tpu_custom_call.1} parent=11 // pred_region
          %901 = vsyncadd [#allocation26], 0
          %s902 = sshll.u32 %s35, 4
          %s903 = int_to_ptr.hbm [resolvable:$true] %s902
          %s904 = sshll.u32 [#allocation27], 4
          %s905 = int_to_ptr.vmem [resolvable:$true] %s904
          %910 = dma.hbm_to_vmem [thread:$0]  %s903, 8192, %s905, [#allocation26], 256, 256, 16
        $region72: #{tpu_custom_call.1} parent=11 // pred_fallthru
          _
        // Predicated region
        $region73: #{tpu_custom_call.1} parent=11 // pred_check
          %p911 = pneg %p509
        $region74: #{tpu_custom_call.1} parent=11 // pred_check_branch
          %913 = sbr.rel (%p911) target = $region76
        $region75: #{tpu_custom_call.1} parent=11 // pred_region
          _
        $region76: #{tpu_custom_call.1} parent=11 // pred_fallthru
          _
        // Predicated region
        $region77: #{tpu_custom_call.1} parent=11 // pred_check
          %p914 = pneg %p530
        $region78: #{tpu_custom_call.1} parent=11 // pred_check_branch
          %916 = sbr.rel (%p914) target = $region80
        $region79: #{tpu_custom_call.1} parent=11 // pred_region
          %918 = vsyncadd [#allocation29], 0
          %s919 = sshll.u32 %s39, 4
          %s920 = int_to_ptr.hbm [resolvable:$true] %s919
          %s921 = sshll.u32 [#allocation28], 4
          %s922 = int_to_ptr.vmem [resolvable:$true] %s921
          %927 = dma.hbm_to_vmem [thread:$0]  %s920, 8192, %s922, [#allocation29], 256, 256, 16
        $region80: #{tpu_custom_call.1} parent=11 // pred_fallthru
          _
        // Predicated region
        $region81: #{tpu_custom_call.1} parent=11 // pred_check
          %p928 = pneg %p551
        $region82: #{tpu_custom_call.1} parent=11 // pred_check_branch
          %930 = sbr.rel (%p928) target = $region84
        $region83: #{tpu_custom_call.1} parent=11 // pred_region
          _
        $region84: #{tpu_custom_call.1} parent=11 // pred_fallthru
          _
        // Predicated region
        $region85: #{tpu_custom_call.1} parent=11 // pred_check
          %p931 = pneg %p572
        $region86: #{tpu_custom_call.1} parent=11 // pred_check_branch
          %933 = sbr.rel (%p931) target = $region88
        $region87: #{tpu_custom_call.1} parent=11 // pred_region
          _
        $region88: #{tpu_custom_call.1} parent=11 // pred_fallthru
          _
        // Predicated region
        $region89: #{tpu_custom_call.1} parent=11 // pred_check
          %p934 = pneg %p593
        $region90: #{tpu_custom_call.1} parent=11 // pred_check_branch
          %936 = sbr.rel (%p934) target = $region92
        $region91: #{tpu_custom_call.1} parent=11 // pred_region
          %938 = vsyncadd [#allocation29], 0
          %s940 = sshll.u32 %s45, 4
          %s941 = int_to_ptr.hbm [resolvable:$true] %s940
          %s942 = sshll.u32 [#allocation30], 4
          %s943 = int_to_ptr.vmem [resolvable:$true] %s942
          %945 = dma.hbm_to_vmem [thread:$0]  %s941, 32, %s943, [#allocation29]
        $region92: #{tpu_custom_call.1} parent=11 // pred_fallthru
          _
        // Predicated region
        $region93: #{tpu_custom_call.1} parent=11 // pred_check
          %p946 = pneg %p614
        $region94: #{tpu_custom_call.1} parent=11 // pred_check_branch
          %948 = sbr.rel (%p946) target = $region96
        $region95: #{tpu_custom_call.1} parent=11 // pred_region
          %950 = vsyncadd [#allocation32], 0
          %s951 = sshll.u32 %s47, 4
          %s952 = int_to_ptr.hbm [resolvable:$true] %s951
          %s953 = sshll.u32 [#allocation31], 4
          %s954 = int_to_ptr.vmem [resolvable:$true] %s953
          %959 = dma.hbm_to_vmem [thread:$0]  %s952, 16384, %s954, [#allocation32], 512, 512, 32
        $region96: #{tpu_custom_call.1} parent=11 // pred_fallthru
          _
        // Predicated region
        $region97: #{tpu_custom_call.1} parent=11 // pred_check
          %p960 = pneg %p635
        $region98: #{tpu_custom_call.1} parent=11 // pred_check_branch
          %962 = sbr.rel (%p960) target = $region100
        $region99: #{tpu_custom_call.1} parent=11 // pred_region
          _
        $region100: #{tpu_custom_call.1} parent=11 // pred_fallthru
          _
        // Predicated region
        $region101: #{tpu_custom_call.1} parent=11 // pred_check
          %p963 = pneg %p656
        $region102: #{tpu_custom_call.1} parent=11 // pred_check_branch
          %965 = sbr.rel (%p963) target = $region104
        $region103: #{tpu_custom_call.1} parent=11 // pred_region
          %967 = vsyncadd [#allocation32], 0
          %s968 = sshll.u32 %s51, 4
          %s969 = int_to_ptr.hbm [resolvable:$true] %s968
          %s970 = sshll.u32 [#allocation33], 4
          %s971 = int_to_ptr.vmem [resolvable:$true] %s970
          %976 = dma.hbm_to_vmem [thread:$0]  %s969, 16384, %s971, [#allocation32], 256, 256, 16
        $region104: #{tpu_custom_call.1} parent=11 // pred_fallthru
          _
        // Predicated region
        $region105: #{tpu_custom_call.1} parent=11 // pred_check
          %p977 = pneg %p677
        $region106: #{tpu_custom_call.1} parent=11 // pred_check_branch
          %979 = sbr.rel (%p977) target = $region108
        $region107: #{tpu_custom_call.1} parent=11 // pred_region
          _
        $region108: #{tpu_custom_call.1} parent=11 // pred_fallthru
          _
        // Predicated region
        $region109: #{tpu_custom_call.1} parent=11 // pred_check
          %p980 = pneg %p698
        $region110: #{tpu_custom_call.1} parent=11 // pred_check_branch
          %982 = sbr.rel (%p980) target = $region112
        $region111: #{tpu_custom_call.1} parent=11 // pred_region
          _
        $region112: #{tpu_custom_call.1} parent=11 // pred_fallthru
          _
        // Predicated region
        $region113: #{tpu_custom_call.1} parent=11 // pred_check
          %p983 = pneg %p719
        $region114: #{tpu_custom_call.1} parent=11 // pred_check_branch
          %985 = sbr.rel (%p983) target = $region116
        $region115: #{tpu_custom_call.1} parent=11 // pred_region
          _
        $region116: #{tpu_custom_call.1} parent=11 // pred_fallthru
          _
      $region12: #{tpu_custom_call.1} parent=5 // pred_fallthru
        _
      %p986 = scmp.lt.s32.totalorder %s81, 4
      // Predicated region
      $region117: #{tpu_custom_call.1} parent=5 // pred_check
        %p987 = pneg %p986
      $region118: #{tpu_custom_call.1} parent=5 // pred_check_branch
        %989 = sbr.rel (%p987) target = $region120
      $region119: #{tpu_custom_call.1} parent=5 // pred_region
        // Predicated region
        $region121: #{tpu_custom_call.1} parent=119 // pred_check
          %p990 = pneg %p113
        $region122: #{tpu_custom_call.1} parent=119 // pred_check_branch
          %992 = sbr.rel (%p990) target = $region124
        $region123: #{tpu_custom_call.1} parent=119 // pred_region
          %s993 = sand.u32 %s103, 1
          %s994 = scalar_lea.sflag [#allocation8], %s993
          %s995 = sand.u32 %s103, 1
          %s996 = smul.addr %s995, 64
          %s997 = scalar_lea.vmem [#allocation7], %s996
          %999 = vsyncadd %s994, 0
          %s1000 = smul.addr %s88, 8
          %s1001 = smul.addr %s1000, 8
          %s1002 = scalar_lea.hbm %s1, %s1001
          %s1003 = sshll.u32 %s1002, 4
          %s1004 = int_to_ptr.hbm [resolvable:$true] %s1003
          %s1005 = sshll.u32 %s997, 4
          %s1006 = int_to_ptr.vmem [resolvable:$true] %s1005
          %1011 = dma.hbm_to_vmem [thread:$0]  %s1004, 1024, %s1006, %s994, 256, 256, 16
        $region124: #{tpu_custom_call.1} parent=119 // pred_fallthru
          _
        // Predicated region
        $region125: #{tpu_custom_call.1} parent=119 // pred_check
          %p1012 = pneg %p139
        $region126: #{tpu_custom_call.1} parent=119 // pred_check_branch
          %1014 = sbr.rel (%p1012) target = $region128
        $region127: #{tpu_custom_call.1} parent=119 // pred_region
          %s1015 = sand.u32 %s81, 1
          %s1016 = scalar_lea.sflag [#allocation11], %s1015
          %s1017 = sand.u32 %s129, 1
          %s1018 = smul.addr %s1017, 64
          %s1019 = scalar_lea.vmem [#allocation10], %s1018
          %1021 = vsyncadd %s1016, 0
          %s1022 = smul.addr %s88, 8
          %s1023 = smul.addr %s1022, 8
          %s1024 = scalar_lea.hbm %s3, %s1023
          %s1025 = sshll.u32 %s1024, 4
          %s1026 = int_to_ptr.hbm [resolvable:$true] %s1025
          %s1027 = sshll.u32 %s1019, 4
          %s1028 = int_to_ptr.vmem [resolvable:$true] %s1027
          %1033 = dma.hbm_to_vmem [thread:$0]  %s1026, 1024, %s1028, %s1016, 256, 256, 16
        $region128: #{tpu_custom_call.1} parent=119 // pred_fallthru
          _
        // Predicated region
        $region129: #{tpu_custom_call.1} parent=119 // pred_check
          %p1034 = pneg %p167
        $region130: #{tpu_custom_call.1} parent=119 // pred_check_branch
          %1036 = sbr.rel (%p1034) target = $region132
        $region131: #{tpu_custom_call.1} parent=119 // pred_region
          %s1037 = sand.u32 %s81, 1
          %s1038 = scalar_lea.sflag [#allocation11], %s1037
          %s1039 = sand.u32 %s157, 1
          %s1040 = smul.addr %s1039, 8
          %s1041 = scalar_lea.vmem [#allocation12], %s1040
          %s1042 = smul.u32 2, %s89
          %1044 = vsyncadd %s1038, 0
          %s1045 = smul.addr %s88, 4
          %s1046 = sadd.s32 %s1042, %s1045
          %s1047 = smul.addr %s1046, 4
          %s1048 = scalar_lea.hbm %s5, %s1047
          %s1049 = sshll.u32 %s1048, 4
          %s1050 = int_to_ptr.hbm [resolvable:$true] %s1049
          %s1051 = sshll.u32 %s1041, 4
          %s1052 = int_to_ptr.vmem [resolvable:$true] %s1051
          %1057 = dma.hbm_to_vmem [thread:$0]  %s1050, 128, %s1052, %s1038, 64, 64, 4
        $region132: #{tpu_custom_call.1} parent=119 // pred_fallthru
          _
      $region120: #{tpu_custom_call.1} parent=5 // pred_fallthru
        _
      %p1058 = scmp.le.s32.totalorder 1, %s81
      %p1059 = scmp.lt.s32.totalorder %s81, 5
      %p1060 = pnand %p1058, %p1059
      %p1061 = pneg %p1060
      // Predicated region
      $region133: #{tpu_custom_call.1} parent=5 // pred_check
        _
      $region134: #{tpu_custom_call.1} parent=5 // pred_check_branch
        %1063 = sbr.rel (%p1060) target = $region136
      $region135: #{tpu_custom_call.1} parent=5 // pred_region
        %s1064 = ssub.s32 %s81, 1
        %s1065 = sand.u32 %s106, 1
        %s1066 = scalar_lea.sflag [#allocation8], %s1065
        %s1067 = sand.u32 %s106, 1
        %s1068 = smul.addr %s1067, 64
        %s1069 = scalar_lea.vmem [#allocation7], %s1068
        // Predicated region
        $region137: #{tpu_custom_call.1} parent=135 // pred_check
          %p1070 = pneg %p119
        $region138: #{tpu_custom_call.1} parent=135 // pred_check_branch
          %1072 = sbr.rel (%p1070) target = $region140
        $region139: #{tpu_custom_call.1} parent=135 // pred_region
          %1074 = dma.done %s1066, 1024
        $region140: #{tpu_custom_call.1} parent=135 // pred_fallthru
          _
        %s1075 = sand.u32 %s86, 1
        %s1076 = scalar_lea.sflag [#allocation11], %s1075
        %s1077 = sand.u32 %s132, 1
        %s1078 = smul.addr %s1077, 64
        %s1079 = scalar_lea.vmem [#allocation10], %s1078
        // Predicated region
        $region141: #{tpu_custom_call.1} parent=135 // pred_check
          %p1080 = pneg %p145
        $region142: #{tpu_custom_call.1} parent=135 // pred_check_branch
          %1082 = sbr.rel (%p1080) target = $region144
        $region143: #{tpu_custom_call.1} parent=135 // pred_region
          %1084 = dma.done %s1076, 1024
        $region144: #{tpu_custom_call.1} parent=135 // pred_fallthru
          _
        %s1085 = sand.u32 %s86, 1
        %s1086 = scalar_lea.sflag [#allocation11], %s1085
        %s1087 = sand.u32 %s160, 1
        %s1088 = smul.addr %s1087, 8
        %s1089 = scalar_lea.vmem [#allocation12], %s1088
        // Predicated region
        $region145: #{tpu_custom_call.1} parent=135 // pred_check
          %p1090 = pneg %p173
        $region146: #{tpu_custom_call.1} parent=135 // pred_check_branch
          %1092 = sbr.rel (%p1090) target = $region148
        $region147: #{tpu_custom_call.1} parent=135 // pred_region
          %1094 = dma.done %s1086, 128
        $region148: #{tpu_custom_call.1} parent=135 // pred_fallthru
          _
        // Predicated region
        $region149: #{tpu_custom_call.1} parent=135 // pred_check
          %p1095 = pneg %p194
        $region150: #{tpu_custom_call.1} parent=135 // pred_check_branch
          %1097 = sbr.rel (%p1095) target = $region152
        $region151: #{tpu_custom_call.1} parent=135 // pred_region
          %1099 = dma.done [#allocation14], 8192
        $region152: #{tpu_custom_call.1} parent=135 // pred_fallthru
          _
        // Predicated region
        $region153: #{tpu_custom_call.1} parent=135 // pred_check
          %p1100 = pneg %p236
        $region154: #{tpu_custom_call.1} parent=135 // pred_check_branch
          %1102 = sbr.rel (%p1100) target = $region156
        $region155: #{tpu_custom_call.1} parent=135 // pred_region
          %1104 = dma.done [#allocation14], 8192
        $region156: #{tpu_custom_call.1} parent=135 // pred_fallthru
          _
        // Predicated region
        $region157: #{tpu_custom_call.1} parent=135 // pred_check
          %p1105 = pneg %p257
        $region158: #{tpu_custom_call.1} parent=135 // pred_check_branch
          %1107 = sbr.rel (%p1105) target = $region160
        $region159: #{tpu_custom_call.1} parent=135 // pred_region
          %1109 = dma.done [#allocation17], 32
        $region160: #{tpu_custom_call.1} parent=135 // pred_fallthru
          _
        // Predicated region
        $region161: #{tpu_custom_call.1} parent=135 // pred_check
          %p1110 = pneg %p278
        $region162: #{tpu_custom_call.1} parent=135 // pred_check_branch
          %1112 = sbr.rel (%p1110) target = $region164
        $region163: #{tpu_custom_call.1} parent=135 // pred_region
          %1114 = dma.done [#allocation17], 8192
        $region164: #{tpu_custom_call.1} parent=135 // pred_fallthru
          _
        // Predicated region
        $region165: #{tpu_custom_call.1} parent=135 // pred_check
          %p1115 = pneg %p299
        $region166: #{tpu_custom_call.1} parent=135 // pred_check_branch
          %1117 = sbr.rel (%p1115) target = $region168
        $region167: #{tpu_custom_call.1} parent=135 // pred_region
          %1119 = dma.done [#allocation20], 32
        $region168: #{tpu_custom_call.1} parent=135 // pred_fallthru
          _
        // Predicated region
        $region169: #{tpu_custom_call.1} parent=135 // pred_check
          %p1120 = pneg %p320
        $region170: #{tpu_custom_call.1} parent=135 // pred_check_branch
          %1122 = sbr.rel (%p1120) target = $region172
        $region171: #{tpu_custom_call.1} parent=135 // pred_region
          %1124 = dma.done [#allocation20], 8192
        $region172: #{tpu_custom_call.1} parent=135 // pred_fallthru
          _
        // Predicated region
        $region173: #{tpu_custom_call.1} parent=135 // pred_check
          %p1125 = pneg %p383
        $region174: #{tpu_custom_call.1} parent=135 // pred_check_branch
          %1127 = sbr.rel (%p1125) target = $region176
        $region175: #{tpu_custom_call.1} parent=135 // pred_region
          %1129 = dma.done [#allocation23], 32
        $region176: #{tpu_custom_call.1} parent=135 // pred_fallthru
          _
        // Predicated region
        $region177: #{tpu_custom_call.1} parent=135 // pred_check
          %p1130 = pneg %p404
        $region178: #{tpu_custom_call.1} parent=135 // pred_check_branch
          %1132 = sbr.rel (%p1130) target = $region180
        $region179: #{tpu_custom_call.1} parent=135 // pred_region
          %1134 = dma.done [#allocation23], 8192
        $region180: #{tpu_custom_call.1} parent=135 // pred_fallthru
          _
        // Predicated region
        $region181: #{tpu_custom_call.1} parent=135 // pred_check
          %p1135 = pneg %p446
        $region182: #{tpu_custom_call.1} parent=135 // pred_check_branch
          %1137 = sbr.rel (%p1135) target = $region184
        $region183: #{tpu_custom_call.1} parent=135 // pred_region
          %1139 = dma.done [#allocation26], 8192
        $region184: #{tpu_custom_call.1} parent=135 // pred_fallthru
          _
        // Predicated region
        $region185: #{tpu_custom_call.1} parent=135 // pred_check
          %p1140 = pneg %p488
        $region186: #{tpu_custom_call.1} parent=135 // pred_check_branch
          %1142 = sbr.rel (%p1140) target = $region188
        $region187: #{tpu_custom_call.1} parent=135 // pred_region
          %1144 = dma.done [#allocation26], 8192
        $region188: #{tpu_custom_call.1} parent=135 // pred_fallthru
          _
        // Predicated region
        $region189: #{tpu_custom_call.1} parent=135 // pred_check
          %p1145 = pneg %p530
        $region190: #{tpu_custom_call.1} parent=135 // pred_check_branch
          %1147 = sbr.rel (%p1145) target = $region192
        $region191: #{tpu_custom_call.1} parent=135 // pred_region
          %1149 = dma.done [#allocation29], 8192
        $region192: #{tpu_custom_call.1} parent=135 // pred_fallthru
          _
        // Predicated region
        $region193: #{tpu_custom_call.1} parent=135 // pred_check
          %p1150 = pneg %p593
        $region194: #{tpu_custom_call.1} parent=135 // pred_check_branch
          %1152 = sbr.rel (%p1150) target = $region196
        $region195: #{tpu_custom_call.1} parent=135 // pred_region
          %1154 = dma.done [#allocation29], 32
        $region196: #{tpu_custom_call.1} parent=135 // pred_fallthru
          _
        // Predicated region
        $region197: #{tpu_custom_call.1} parent=135 // pred_check
          %p1155 = pneg %p614
        $region198: #{tpu_custom_call.1} parent=135 // pred_check_branch
          %1157 = sbr.rel (%p1155) target = $region200
        $region199: #{tpu_custom_call.1} parent=135 // pred_region
          %1159 = dma.done [#allocation32], 16384
        $region200: #{tpu_custom_call.1} parent=135 // pred_fallthru
          _
        // Predicated region
        $region201: #{tpu_custom_call.1} parent=135 // pred_check
          %p1160 = pneg %p656
        $region202: #{tpu_custom_call.1} parent=135 // pred_check_branch
          %1162 = sbr.rel (%p1160) target = $region204
        $region203: #{tpu_custom_call.1} parent=135 // pred_region
          %1164 = dma.done [#allocation32], 16384
        $region204: #{tpu_custom_call.1} parent=135 // pred_fallthru
          _
        %s1165 = sand.u32 %s106, 1
        %s1166 = scalar_lea.sflag [#allocation8], %s1165
        %s1167 = sand.u32 %s106, 1
        %s1168 = smul.addr %s1167, 64
        %s1169 = scalar_lea.vmem [#allocation7], %s1168
        %p1170 = pneg %p119
        %p1171 = pneg %p116
        %s1172 = sand.u32 %s86, 1
        %s1173 = scalar_lea.sflag [#allocation11], %s1172
        %s1174 = sand.u32 %s132, 1
        %s1175 = smul.addr %s1174, 64
        %s1176 = scalar_lea.vmem [#allocation10], %s1175
        %p1177 = pneg %p145
        %p1178 = pneg %p142
        %s1179 = sand.u32 %s86, 1
        %s1180 = scalar_lea.sflag [#allocation11], %s1179
        %s1181 = sand.u32 %s160, 1
        %s1182 = smul.addr %s1181, 8
        %s1183 = scalar_lea.vmem [#allocation12], %s1182
        %p1184 = pneg %p173
        %p1185 = pneg %p170
        %p1186 = pneg %p194
        %p1187 = pneg %p191
        %p1188 = pneg %p215
        %p1189 = pneg %p212
        %p1190 = pneg %p236
        %p1191 = pneg %p233
        %p1192 = pneg %p257
        %p1193 = pneg %p254
        %p1194 = pneg %p278
        %p1195 = pneg %p275
        %p1196 = pneg %p299
        %p1197 = pneg %p296
        %p1198 = pneg %p320
        %p1199 = pneg %p317
        %p1200 = pneg %p341
        %p1201 = pneg %p338
        %p1202 = pneg %p362
        %p1203 = pneg %p359
        %p1204 = pneg %p383
        %p1205 = pneg %p380
        %p1206 = pneg %p404
        %p1207 = pneg %p401
        %p1208 = pneg %p425
        %p1209 = pneg %p422
        %p1210 = pneg %p446
        %p1211 = pneg %p443
        %p1212 = pneg %p467
        %p1213 = pneg %p464
        %p1214 = pneg %p488
        %p1215 = pneg %p485
        %p1216 = pneg %p509
        %p1217 = pneg %p506
        %p1218 = pneg %p530
        %p1219 = pneg %p527
        %p1220 = pneg %p551
        %p1221 = pneg %p548
        %p1222 = pneg %p572
        %p1223 = pneg %p569
        %p1224 = pneg %p593
        %p1225 = pneg %p590
        %p1226 = pneg %p614
        %p1227 = pneg %p611
        %p1228 = pneg %p635
        %p1229 = pneg %p632
        %p1230 = pneg %p656
        %p1231 = pneg %p653
        %p1232 = pneg %p677
        %p1233 = pneg %p674
        %p1234 = pneg %p698
        %p1235 = pneg %p695
        %p1236 = pneg %p719
        %p1237 = pneg %p716
        %p1238 = pneg %p747
        %p1239 = pneg %p744
        %s1240 = sand.u32 %s734, 1
        %s1241 = scalar_lea.sflag [#allocation9], %s1240
        %s1242 = sand.u32 %s734, 1
        %s1243 = smul.addr %s1242, 32
        %s1244 = scalar_lea.vmem [#allocation34], %s1243
        %s1245 = smul.u32 2, %s91
        %s1246 = smul.u32 2, %s91
        %p1247 = scmp.eq.s32.totalorder %s91, 0
        // Predicated region
        $region205: #{tpu_custom_call.1} parent=135 // pred_check
          %p1248 = pneg %p1247
        $region206: #{tpu_custom_call.1} parent=135 // pred_check_branch
          %1250 = sbr.rel (%p1248) target = $region208
        $region207: #{tpu_custom_call.1} parent=135 // pred_region
          %v1251 = vld [vmem:[%s1079] sm:$0xff]
          %v1252 = vld [vmem:[%s1079 + $0x8] sm:$0xff]
          %v1253 = vld [vmem:[%s1079 + $0x10] sm:$0xff]
          %v1254 = vld [vmem:[%s1079 + $0x18] sm:$0xff]
          %v1255 = vld [vmem:[%s1079 + $0x20] sm:$0xff]
          %v1256 = vld [vmem:[%s1079 + $0x28] sm:$0xff]
          %v1257 = vld [vmem:[%s1079 + $0x30] sm:$0xff]
          %v1258 = vld [vmem:[%s1079 + $0x38] sm:$0xff]
          %v1259 = vld [vmem:[%s1069] sm:$0xff]
          %v1260 = vld [vmem:[%s1069 + $0x8] sm:$0xff]
          %v1261 = vld [vmem:[%s1069 + $0x10] sm:$0xff]
          %v1262 = vld [vmem:[%s1069 + $0x18] sm:$0xff]
          %v1263 = vld [vmem:[%s1069 + $0x20] sm:$0xff]
          %v1264 = vld [vmem:[%s1069 + $0x28] sm:$0xff]
          %v1265 = vld [vmem:[%s1069 + $0x30] sm:$0xff]
          %v1266 = vld [vmem:[%s1069 + $0x38] sm:$0xff]
          %v1267 = vld [vmem:[#allocation15] sm:$0xff]
          %v1268 = vld [vmem:[#allocation15 + $0x8] sm:$0xff]
          %v1269 = vld [vmem:[#allocation15 + $0x10] sm:$0xff]
          %v1270 = vld [vmem:[#allocation15 + $0x18] sm:$0xff]
          %v1271 = vld [vmem:[#allocation15 + $0x20] sm:$0xff]
          %v1272 = vld [vmem:[#allocation15 + $0x28] sm:$0xff]
          %v1273 = vld [vmem:[#allocation15 + $0x30] sm:$0xff]
          %v1274 = vld [vmem:[#allocation15 + $0x38] sm:$0xff]
          %v1275 = vld [vmem:[#allocation15 + $0x40] sm:$0xff]
          %v1276 = vld [vmem:[#allocation15 + $0x48] sm:$0xff]
          %v1277 = vld [vmem:[#allocation15 + $0x50] sm:$0xff]
          %v1278 = vld [vmem:[#allocation15 + $0x58] sm:$0xff]
          %v1279 = vld [vmem:[#allocation15 + $0x60] sm:$0xff]
          %v1280 = vld [vmem:[#allocation15 + $0x68] sm:$0xff]
          %v1281 = vld [vmem:[#allocation15 + $0x70] sm:$0xff]
          %v1282 = vld [vmem:[#allocation15 + $0x78] sm:$0xff]
          %v1283 = vld [vmem:[#allocation15 + $0x80] sm:$0xff]
          %v1284 = vld [vmem:[#allocation15 + $0x88] sm:$0xff]
          %v1285 = vld [vmem:[#allocation15 + $0x90] sm:$0xff]
          %v1286 = vld [vmem:[#allocation15 + $0x98] sm:$0xff]
          %v1287 = vld [vmem:[#allocation15 + $0xa0] sm:$0xff]
          %v1288 = vld [vmem:[#allocation15 + $0xa8] sm:$0xff]
          %v1289 = vld [vmem:[#allocation15 + $0xb0] sm:$0xff]
          %v1290 = vld [vmem:[#allocation15 + $0xb8] sm:$0xff]
          %v1291 = vld [vmem:[#allocation15 + $0xc0] sm:$0xff]
          %v1292 = vld [vmem:[#allocation15 + $0xc8] sm:$0xff]
          %v1293 = vld [vmem:[#allocation15 + $0xd0] sm:$0xff]
          %v1294 = vld [vmem:[#allocation15 + $0xd8] sm:$0xff]
          %v1295 = vld [vmem:[#allocation15 + $0xe0] sm:$0xff]
          %v1296 = vld [vmem:[#allocation15 + $0xe8] sm:$0xff]
          %v1297 = vld [vmem:[#allocation15 + $0xf0] sm:$0xff]
          %v1298 = vld [vmem:[#allocation15 + $0xf8] sm:$0xff]
          %v1299 = vld [vmem:[#allocation15 + $0x100] sm:$0xff]
          %v1300 = vld [vmem:[#allocation15 + $0x108] sm:$0xff]
          %v1301 = vld [vmem:[#allocation15 + $0x110] sm:$0xff]
          %v1302 = vld [vmem:[#allocation15 + $0x118] sm:$0xff]
          %v1303 = vld [vmem:[#allocation15 + $0x120] sm:$0xff]
          %v1304 = vld [vmem:[#allocation15 + $0x128] sm:$0xff]
          %v1305 = vld [vmem:[#allocation15 + $0x130] sm:$0xff]
          %v1306 = vld [vmem:[#allocation15 + $0x138] sm:$0xff]
          %v1307 = vld [vmem:[#allocation15 + $0x140] sm:$0xff]
          %v1308 = vld [vmem:[#allocation15 + $0x148] sm:$0xff]
          %v1309 = vld [vmem:[#allocation15 + $0x150] sm:$0xff]
          %v1310 = vld [vmem:[#allocation15 + $0x158] sm:$0xff]
          %v1311 = vld [vmem:[#allocation15 + $0x160] sm:$0xff]
          %v1312 = vld [vmem:[#allocation15 + $0x168] sm:$0xff]
          %v1313 = vld [vmem:[#allocation15 + $0x170] sm:$0xff]
          %v1314 = vld [vmem:[#allocation15 + $0x178] sm:$0xff]
          %v1315 = vld [vmem:[#allocation15 + $0x180] sm:$0xff]
          %v1316 = vld [vmem:[#allocation15 + $0x188] sm:$0xff]
          %v1317 = vld [vmem:[#allocation15 + $0x190] sm:$0xff]
          %v1318 = vld [vmem:[#allocation15 + $0x198] sm:$0xff]
          %v1319 = vld [vmem:[#allocation15 + $0x1a0] sm:$0xff]
          %v1320 = vld [vmem:[#allocation15 + $0x1a8] sm:$0xff]
          %v1321 = vld [vmem:[#allocation15 + $0x1b0] sm:$0xff]
          %v1322 = vld [vmem:[#allocation15 + $0x1b8] sm:$0xff]
          %v1323 = vld [vmem:[#allocation15 + $0x1c0] sm:$0xff]
          %v1324 = vld [vmem:[#allocation15 + $0x1c8] sm:$0xff]
          %v1325 = vld [vmem:[#allocation15 + $0x1d0] sm:$0xff]
          %v1326 = vld [vmem:[#allocation15 + $0x1d8] sm:$0xff]
          %v1327 = vld [vmem:[#allocation15 + $0x1e0] sm:$0xff]
          %v1328 = vld [vmem:[#allocation15 + $0x1e8] sm:$0xff]
          %v1329 = vld [vmem:[#allocation15 + $0x1f0] sm:$0xff]
          %v1330 = vld [vmem:[#allocation15 + $0x1f8] sm:$0xff]
          %v1331 = vld [vmem:[#allocation16] sm:$0x3]
          %v1333 = vperm.slane %v1331, 0
          %v1334 = vperm.slane %v1331, 1
          %1337 = vmatpush.msra.mxu0 %v1297
          %1338 = vmatpush.msra.mxu0 %v1295
          %1339 = vmatpush.msra.mxu0 %v1293
          %1340 = vmatpush.msra.mxu0 %v1291
          %1341 = vmatpush.msra.mxu0 %v1289
          %1342 = vmatpush.msra.mxu0 %v1287
          %1343 = vmatpush.msra.mxu0 %v1285
          %1344 = vmatpush.msra.mxu0 %v1283
          %1345 = vmatpush.msra.mxu0 %v1281
          %1346 = vmatpush.msra.mxu0 %v1279
          %1347 = vmatpush.msra.mxu0 %v1277
          %1348 = vmatpush.msra.mxu0 %v1275
          %1349 = vmatpush.msra.mxu0 %v1273
          %1350 = vmatpush.msra.mxu0 %v1271
          %1351 = vmatpush.msra.mxu0 %v1269
          %1352 = vmatpush.msra.mxu0 %v1267
          %1353 = vmatmul.f32.gmra.mxu0 %v1251
          %v1354 = vpop.f32.mrf.mxu0
          %v1355 = vadd.f32 %v1333, %v1354
          %1356 = vmatmul.f32.gmra.mxu0 %v1253
          %v1357 = vpop.f32.mrf.mxu0
          %v1358 = vadd.f32 %v1333, %v1357
          %1359 = vmatmul.f32.gmra.mxu0 %v1255
          %v1360 = vpop.f32.mrf.mxu0
          %v1361 = vadd.f32 %v1333, %v1360
          %1362 = vmatmul.f32.gmra.mxu0 %v1257
          %v1363 = vpop.f32.mrf.mxu0
          %v1364 = vadd.f32 %v1333, %v1363
          %1365 = vdwg.mxu0
          %1366 = vmatpush.msra.mxu0 %v1329
          %1367 = vmatpush.msra.mxu0 %v1327
          %1368 = vmatpush.msra.mxu0 %v1325
          %1369 = vmatpush.msra.mxu0 %v1323
          %1370 = vmatpush.msra.mxu0 %v1321
          %1371 = vmatpush.msra.mxu0 %v1319
          %1372 = vmatpush.msra.mxu0 %v1317
          %1373 = vmatpush.msra.mxu0 %v1315
          %1374 = vmatpush.msra.mxu0 %v1313
          %1375 = vmatpush.msra.mxu0 %v1311
          %1376 = vmatpush.msra.mxu0 %v1309
          %1377 = vmatpush.msra.mxu0 %v1307
          %1378 = vmatpush.msra.mxu0 %v1305
          %1379 = vmatpush.msra.mxu0 %v1303
          %1380 = vmatpush.msra.mxu0 %v1301
          %1381 = vmatpush.msra.mxu0 %v1299
          %1382 = vmatmul.f32.gmra.mxu0 %v1252
          %v1383 = vpop.f32.mrf.mxu0
          %v1384 = vadd.f32 %v1355, %v1383
          %1385 = vmatmul.f32.gmra.mxu0 %v1254
          %v1386 = vpop.f32.mrf.mxu0
          %v1387 = vadd.f32 %v1358, %v1386
          %1388 = vmatmul.f32.gmra.mxu0 %v1256
          %v1389 = vpop.f32.mrf.mxu0
          %v1390 = vadd.f32 %v1361, %v1389
          %1391 = vmatmul.f32.gmra.mxu0 %v1258
          %v1392 = vpop.f32.mrf.mxu0
          %v1393 = vadd.f32 %v1364, %v1392
          %1394 = vdwg.mxu0
          %1395 = vmatpush.msra.mxu0 %v1298
          %1396 = vmatpush.msra.mxu0 %v1296
          %1397 = vmatpush.msra.mxu0 %v1294
          %1398 = vmatpush.msra.mxu0 %v1292
          %1399 = vmatpush.msra.mxu0 %v1290
          %1400 = vmatpush.msra.mxu0 %v1288
          %1401 = vmatpush.msra.mxu0 %v1286
          %1402 = vmatpush.msra.mxu0 %v1284
          %1403 = vmatpush.msra.mxu0 %v1282
          %1404 = vmatpush.msra.mxu0 %v1280
          %1405 = vmatpush.msra.mxu0 %v1278
          %1406 = vmatpush.msra.mxu0 %v1276
          %1407 = vmatpush.msra.mxu0 %v1274
          %1408 = vmatpush.msra.mxu0 %v1272
          %1409 = vmatpush.msra.mxu0 %v1270
          %1410 = vmatpush.msra.mxu0 %v1268
          %1411 = vmatmul.f32.gmra.mxu0 %v1251
          %v1412 = vpop.f32.mrf.mxu0
          %v1413 = vadd.f32 %v1334, %v1412
          %1414 = vmatmul.f32.gmra.mxu0 %v1253
          %v1415 = vpop.f32.mrf.mxu0
          %v1416 = vadd.f32 %v1334, %v1415
          %1417 = vmatmul.f32.gmra.mxu0 %v1255
          %v1418 = vpop.f32.mrf.mxu0
          %v1419 = vadd.f32 %v1334, %v1418
          %1420 = vmatmul.f32.gmra.mxu0 %v1257
          %v1421 = vpop.f32.mrf.mxu0
          %v1422 = vadd.f32 %v1334, %v1421
          %1423 = vdwg.mxu0
          %1424 = vmatpush.msra.mxu0 %v1330
          %1425 = vmatpush.msra.mxu0 %v1328
          %1426 = vmatpush.msra.mxu0 %v1326
          %1427 = vmatpush.msra.mxu0 %v1324
          %1428 = vmatpush.msra.mxu0 %v1322
          %1429 = vmatpush.msra.mxu0 %v1320
          %1430 = vmatpush.msra.mxu0 %v1318
          %1431 = vmatpush.msra.mxu0 %v1316
          %1432 = vmatpush.msra.mxu0 %v1314
          %1433 = vmatpush.msra.mxu0 %v1312
          %1434 = vmatpush.msra.mxu0 %v1310
          %1435 = vmatpush.msra.mxu0 %v1308
          %1436 = vmatpush.msra.mxu0 %v1306
          %1437 = vmatpush.msra.mxu0 %v1304
          %1438 = vmatpush.msra.mxu0 %v1302
          %1439 = vmatpush.msra.mxu0 %v1300
          %1440 = vmatmul.f32.gmra.mxu0 %v1252
          %v1441 = vpop.f32.mrf.mxu0
          %v1442 = vadd.f32 %v1413, %v1441
          %1443 = vmatmul.f32.gmra.mxu0 %v1254
          %v1444 = vpop.f32.mrf.mxu0
          %v1445 = vadd.f32 %v1416, %v1444
          %1446 = vmatmul.f32.gmra.mxu0 %v1256
          %v1447 = vpop.f32.mrf.mxu0
          %v1448 = vadd.f32 %v1419, %v1447
          %1449 = vmatmul.f32.gmra.mxu0 %v1258
          %v1450 = vpop.f32.mrf.mxu0
          %v1451 = vadd.f32 %v1422, %v1450
          %1452 = vdwg.mxu0
          %vm1453 = vcmask 523264
          %1454 = vst.msk [vmem:[#allocation3] sm:$0xff] %vm1453, %v1384
          %1455 = vst.msk [vmem:[#allocation3 + $0x8] sm:$0xff] %vm1453, %v1387
          %1456 = vst.msk [vmem:[#allocation3 + $0x10] sm:$0xff] %vm1453, %v1390
          %1457 = vst.msk [vmem:[#allocation3 + $0x18] sm:$0xff] %vm1453, %v1393
          %1462 = vrot.lane.b32.xlu0 %v1384, 64
          %v1463 = vpop.permute.xlu0 %1462
          %1464 = vrot.lane.b32.xlu0 %v1387, 64
          %v1465 = vpop.permute.xlu0 %1464
          %1466 = vrot.lane.b32.xlu0 %v1390, 64
          %v1467 = vpop.permute.xlu0 %1466
          %1468 = vrot.lane.b32.xlu0 %v1393, 64
          %v1469 = vpop.permute.xlu0 %1468
          %s1474 = scalar_lea.vmem [#allocation3], 32
          %1475 = vst.msk [vmem:[%s1474] sm:$0xff] %vm1453, %v1463
          %1476 = vst.msk [vmem:[%s1474 + $0x8] sm:$0xff] %vm1453, %v1465
          %1477 = vst.msk [vmem:[%s1474 + $0x10] sm:$0xff] %vm1453, %v1467
          %1478 = vst.msk [vmem:[%s1474 + $0x18] sm:$0xff] %vm1453, %v1469
          %s1479 = scalar_lea.vmem [#allocation3], 64
          %1480 = vst.msk [vmem:[%s1479] sm:$0xff] %vm1453, %v1442
          %1481 = vst.msk [vmem:[%s1479 + $0x8] sm:$0xff] %vm1453, %v1445
          %1482 = vst.msk [vmem:[%s1479 + $0x10] sm:$0xff] %vm1453, %v1448
          %1483 = vst.msk [vmem:[%s1479 + $0x18] sm:$0xff] %vm1453, %v1451
          %1488 = vrot.lane.b32.xlu0 %v1442, 64
          %v1489 = vpop.permute.xlu0 %1488
          %1490 = vrot.lane.b32.xlu0 %v1445, 64
          %v1491 = vpop.permute.xlu0 %1490
          %1492 = vrot.lane.b32.xlu0 %v1448, 64
          %v1493 = vpop.permute.xlu0 %1492
          %1494 = vrot.lane.b32.xlu0 %v1451, 64
          %v1495 = vpop.permute.xlu0 %1494
          %s1500 = scalar_lea.vmem [#allocation3], 96
          %1501 = vst.msk [vmem:[%s1500] sm:$0xff] %vm1453, %v1489
          %1502 = vst.msk [vmem:[%s1500 + $0x8] sm:$0xff] %vm1453, %v1491
          %1503 = vst.msk [vmem:[%s1500 + $0x10] sm:$0xff] %vm1453, %v1493
          %1504 = vst.msk [vmem:[%s1500 + $0x18] sm:$0xff] %vm1453, %v1495
          %v1505 = vld [vmem:[#allocation18] sm:$0xff]
          %v1506 = vld [vmem:[#allocation18 + $0x8] sm:$0xff]
          %v1507 = vld [vmem:[#allocation18 + $0x10] sm:$0xff]
          %v1508 = vld [vmem:[#allocation18 + $0x18] sm:$0xff]
          %v1509 = vld [vmem:[#allocation18 + $0x20] sm:$0xff]
          %v1510 = vld [vmem:[#allocation18 + $0x28] sm:$0xff]
          %v1511 = vld [vmem:[#allocation18 + $0x30] sm:$0xff]
          %v1512 = vld [vmem:[#allocation18 + $0x38] sm:$0xff]
          %v1513 = vld [vmem:[#allocation18 + $0x40] sm:$0xff]
          %v1514 = vld [vmem:[#allocation18 + $0x48] sm:$0xff]
          %v1515 = vld [vmem:[#allocation18 + $0x50] sm:$0xff]
          %v1516 = vld [vmem:[#allocation18 + $0x58] sm:$0xff]
          %v1517 = vld [vmem:[#allocation18 + $0x60] sm:$0xff]
          %v1518 = vld [vmem:[#allocation18 + $0x68] sm:$0xff]
          %v1519 = vld [vmem:[#allocation18 + $0x70] sm:$0xff]
          %v1520 = vld [vmem:[#allocation18 + $0x78] sm:$0xff]
          %v1521 = vld [vmem:[#allocation18 + $0x80] sm:$0xff]
          %v1522 = vld [vmem:[#allocation18 + $0x88] sm:$0xff]
          %v1523 = vld [vmem:[#allocation18 + $0x90] sm:$0xff]
          %v1524 = vld [vmem:[#allocation18 + $0x98] sm:$0xff]
          %v1525 = vld [vmem:[#allocation18 + $0xa0] sm:$0xff]
          %v1526 = vld [vmem:[#allocation18 + $0xa8] sm:$0xff]
          %v1527 = vld [vmem:[#allocation18 + $0xb0] sm:$0xff]
          %v1528 = vld [vmem:[#allocation18 + $0xb8] sm:$0xff]
          %v1529 = vld [vmem:[#allocation18 + $0xc0] sm:$0xff]
          %v1530 = vld [vmem:[#allocation18 + $0xc8] sm:$0xff]
          %v1531 = vld [vmem:[#allocation18 + $0xd0] sm:$0xff]
          %v1532 = vld [vmem:[#allocation18 + $0xd8] sm:$0xff]
          %v1533 = vld [vmem:[#allocation18 + $0xe0] sm:$0xff]
          %v1534 = vld [vmem:[#allocation18 + $0xe8] sm:$0xff]
          %v1535 = vld [vmem:[#allocation18 + $0xf0] sm:$0xff]
          %v1536 = vld [vmem:[#allocation18 + $0xf8] sm:$0xff]
          %v1537 = vld [vmem:[#allocation18 + $0x100] sm:$0xff]
          %v1538 = vld [vmem:[#allocation18 + $0x108] sm:$0xff]
          %v1539 = vld [vmem:[#allocation18 + $0x110] sm:$0xff]
          %v1540 = vld [vmem:[#allocation18 + $0x118] sm:$0xff]
          %v1541 = vld [vmem:[#allocation18 + $0x120] sm:$0xff]
          %v1542 = vld [vmem:[#allocation18 + $0x128] sm:$0xff]
          %v1543 = vld [vmem:[#allocation18 + $0x130] sm:$0xff]
          %v1544 = vld [vmem:[#allocation18 + $0x138] sm:$0xff]
          %v1545 = vld [vmem:[#allocation18 + $0x140] sm:$0xff]
          %v1546 = vld [vmem:[#allocation18 + $0x148] sm:$0xff]
          %v1547 = vld [vmem:[#allocation18 + $0x150] sm:$0xff]
          %v1548 = vld [vmem:[#allocation18 + $0x158] sm:$0xff]
          %v1549 = vld [vmem:[#allocation18 + $0x160] sm:$0xff]
          %v1550 = vld [vmem:[#allocation18 + $0x168] sm:$0xff]
          %v1551 = vld [vmem:[#allocation18 + $0x170] sm:$0xff]
          %v1552 = vld [vmem:[#allocation18 + $0x178] sm:$0xff]
          %v1553 = vld [vmem:[#allocation18 + $0x180] sm:$0xff]
          %v1554 = vld [vmem:[#allocation18 + $0x188] sm:$0xff]
          %v1555 = vld [vmem:[#allocation18 + $0x190] sm:$0xff]
          %v1556 = vld [vmem:[#allocation18 + $0x198] sm:$0xff]
          %v1557 = vld [vmem:[#allocation18 + $0x1a0] sm:$0xff]
          %v1558 = vld [vmem:[#allocation18 + $0x1a8] sm:$0xff]
          %v1559 = vld [vmem:[#allocation18 + $0x1b0] sm:$0xff]
          %v1560 = vld [vmem:[#allocation18 + $0x1b8] sm:$0xff]
          %v1561 = vld [vmem:[#allocation18 + $0x1c0] sm:$0xff]
          %v1562 = vld [vmem:[#allocation18 + $0x1c8] sm:$0xff]
          %v1563 = vld [vmem:[#allocation18 + $0x1d0] sm:$0xff]
          %v1564 = vld [vmem:[#allocation18 + $0x1d8] sm:$0xff]
          %v1565 = vld [vmem:[#allocation18 + $0x1e0] sm:$0xff]
          %v1566 = vld [vmem:[#allocation18 + $0x1e8] sm:$0xff]
          %v1567 = vld [vmem:[#allocation18 + $0x1f0] sm:$0xff]
          %v1568 = vld [vmem:[#allocation18 + $0x1f8] sm:$0xff]
          %v1569 = vld [vmem:[#allocation19] sm:$0x3]
          %v1571 = vperm.slane %v1569, 0
          %v1572 = vperm.slane %v1569, 1
          %1575 = vmatpush.msra.mxu0 %v1535
          %1576 = vmatpush.msra.mxu0 %v1533
          %1577 = vmatpush.msra.mxu0 %v1531
          %1578 = vmatpush.msra.mxu0 %v1529
          %1579 = vmatpush.msra.mxu0 %v1527
          %1580 = vmatpush.msra.mxu0 %v1525
          %1581 = vmatpush.msra.mxu0 %v1523
          %1582 = vmatpush.msra.mxu0 %v1521
          %1583 = vmatpush.msra.mxu0 %v1519
          %1584 = vmatpush.msra.mxu0 %v1517
          %1585 = vmatpush.msra.mxu0 %v1515
          %1586 = vmatpush.msra.mxu0 %v1513
          %1587 = vmatpush.msra.mxu0 %v1511
          %1588 = vmatpush.msra.mxu0 %v1509
          %1589 = vmatpush.msra.mxu0 %v1507
          %1590 = vmatpush.msra.mxu0 %v1505
          %1591 = vmatmul.f32.gmra.mxu0 %v1251
          %v1592 = vpop.f32.mrf.mxu0
          %v1593 = vadd.f32 %v1571, %v1592
          %1594 = vmatmul.f32.gmra.mxu0 %v1253
          %v1595 = vpop.f32.mrf.mxu0
          %v1596 = vadd.f32 %v1571, %v1595
          %1597 = vmatmul.f32.gmra.mxu0 %v1255
          %v1598 = vpop.f32.mrf.mxu0
          %v1599 = vadd.f32 %v1571, %v1598
          %1600 = vmatmul.f32.gmra.mxu0 %v1257
          %v1601 = vpop.f32.mrf.mxu0
          %v1602 = vadd.f32 %v1571, %v1601
          %1603 = vdwg.mxu0
          %1604 = vmatpush.msra.mxu0 %v1567
          %1605 = vmatpush.msra.mxu0 %v1565
          %1606 = vmatpush.msra.mxu0 %v1563
          %1607 = vmatpush.msra.mxu0 %v1561
          %1608 = vmatpush.msra.mxu0 %v1559
          %1609 = vmatpush.msra.mxu0 %v1557
          %1610 = vmatpush.msra.mxu0 %v1555
          %1611 = vmatpush.msra.mxu0 %v1553
          %1612 = vmatpush.msra.mxu0 %v1551
          %1613 = vmatpush.msra.mxu0 %v1549
          %1614 = vmatpush.msra.mxu0 %v1547
          %1615 = vmatpush.msra.mxu0 %v1545
          %1616 = vmatpush.msra.mxu0 %v1543
          %1617 = vmatpush.msra.mxu0 %v1541
          %1618 = vmatpush.msra.mxu0 %v1539
          %1619 = vmatpush.msra.mxu0 %v1537
          %1620 = vmatmul.f32.gmra.mxu0 %v1252
          %v1621 = vpop.f32.mrf.mxu0
          %v1622 = vadd.f32 %v1593, %v1621
          %1623 = vmatmul.f32.gmra.mxu0 %v1254
          %v1624 = vpop.f32.mrf.mxu0
          %v1625 = vadd.f32 %v1596, %v1624
          %1626 = vmatmul.f32.gmra.mxu0 %v1256
          %v1627 = vpop.f32.mrf.mxu0
          %v1628 = vadd.f32 %v1599, %v1627
          %1629 = vmatmul.f32.gmra.mxu0 %v1258
          %v1630 = vpop.f32.mrf.mxu0
          %v1631 = vadd.f32 %v1602, %v1630
          %1632 = vdwg.mxu0
          %1633 = vmatpush.msra.mxu0 %v1536
          %1634 = vmatpush.msra.mxu0 %v1534
          %1635 = vmatpush.msra.mxu0 %v1532
          %1636 = vmatpush.msra.mxu0 %v1530
          %1637 = vmatpush.msra.mxu0 %v1528
          %1638 = vmatpush.msra.mxu0 %v1526
          %1639 = vmatpush.msra.mxu0 %v1524
          %1640 = vmatpush.msra.mxu0 %v1522
          %1641 = vmatpush.msra.mxu0 %v1520
          %1642 = vmatpush.msra.mxu0 %v1518
          %1643 = vmatpush.msra.mxu0 %v1516
          %1644 = vmatpush.msra.mxu0 %v1514
          %1645 = vmatpush.msra.mxu0 %v1512
          %1646 = vmatpush.msra.mxu0 %v1510
          %1647 = vmatpush.msra.mxu0 %v1508
          %1648 = vmatpush.msra.mxu0 %v1506
          %1649 = vmatmul.f32.gmra.mxu0 %v1251
          %v1650 = vpop.f32.mrf.mxu0
          %v1651 = vadd.f32 %v1572, %v1650
          %1652 = vmatmul.f32.gmra.mxu0 %v1253
          %v1653 = vpop.f32.mrf.mxu0
          %v1654 = vadd.f32 %v1572, %v1653
          %1655 = vmatmul.f32.gmra.mxu0 %v1255
          %v1656 = vpop.f32.mrf.mxu0
          %v1657 = vadd.f32 %v1572, %v1656
          %1658 = vmatmul.f32.gmra.mxu0 %v1257
          %v1659 = vpop.f32.mrf.mxu0
          %v1660 = vadd.f32 %v1572, %v1659
          %1661 = vdwg.mxu0
          %1662 = vmatpush.msra.mxu0 %v1568
          %1663 = vmatpush.msra.mxu0 %v1566
          %1664 = vmatpush.msra.mxu0 %v1564
          %1665 = vmatpush.msra.mxu0 %v1562
          %1666 = vmatpush.msra.mxu0 %v1560
          %1667 = vmatpush.msra.mxu0 %v1558
          %1668 = vmatpush.msra.mxu0 %v1556
          %1669 = vmatpush.msra.mxu0 %v1554
          %1670 = vmatpush.msra.mxu0 %v1552
          %1671 = vmatpush.msra.mxu0 %v1550
          %1672 = vmatpush.msra.mxu0 %v1548
          %1673 = vmatpush.msra.mxu0 %v1546
          %1674 = vmatpush.msra.mxu0 %v1544
          %1675 = vmatpush.msra.mxu0 %v1542
          %1676 = vmatpush.msra.mxu0 %v1540
          %1677 = vmatpush.msra.mxu0 %v1538
          %1678 = vmatmul.f32.gmra.mxu0 %v1252
          %v1679 = vpop.f32.mrf.mxu0
          %v1680 = vadd.f32 %v1651, %v1679
          %1681 = vmatmul.f32.gmra.mxu0 %v1254
          %v1682 = vpop.f32.mrf.mxu0
          %v1683 = vadd.f32 %v1654, %v1682
          %1684 = vmatmul.f32.gmra.mxu0 %v1256
          %v1685 = vpop.f32.mrf.mxu0
          %v1686 = vadd.f32 %v1657, %v1685
          %1687 = vmatmul.f32.gmra.mxu0 %v1258
          %v1688 = vpop.f32.mrf.mxu0
          %v1689 = vadd.f32 %v1660, %v1688
          %1690 = vdwg.mxu0
          %1691 = vst.msk [vmem:[#allocation4] sm:$0xff] %vm1453, %v1622
          %1692 = vst.msk [vmem:[#allocation4 + $0x8] sm:$0xff] %vm1453, %v1625
          %1693 = vst.msk [vmem:[#allocation4 + $0x10] sm:$0xff] %vm1453, %v1628
          %1694 = vst.msk [vmem:[#allocation4 + $0x18] sm:$0xff] %vm1453, %v1631
          %1699 = vrot.lane.b32.xlu0 %v1622, 64
          %v1700 = vpop.permute.xlu0 %1699
          %1701 = vrot.lane.b32.xlu0 %v1625, 64
          %v1702 = vpop.permute.xlu0 %1701
          %1703 = vrot.lane.b32.xlu0 %v1628, 64
          %v1704 = vpop.permute.xlu0 %1703
          %1705 = vrot.lane.b32.xlu0 %v1631, 64
          %v1706 = vpop.permute.xlu0 %1705
          %s1711 = scalar_lea.vmem [#allocation4], 32
          %1712 = vst.msk [vmem:[%s1711] sm:$0xff] %vm1453, %v1700
          %1713 = vst.msk [vmem:[%s1711 + $0x8] sm:$0xff] %vm1453, %v1702
          %1714 = vst.msk [vmem:[%s1711 + $0x10] sm:$0xff] %vm1453, %v1704
          %1715 = vst.msk [vmem:[%s1711 + $0x18] sm:$0xff] %vm1453, %v1706
          %s1716 = scalar_lea.vmem [#allocation4], 64
          %1717 = vst.msk [vmem:[%s1716] sm:$0xff] %vm1453, %v1680
          %1718 = vst.msk [vmem:[%s1716 + $0x8] sm:$0xff] %vm1453, %v1683
          %1719 = vst.msk [vmem:[%s1716 + $0x10] sm:$0xff] %vm1453, %v1686
          %1720 = vst.msk [vmem:[%s1716 + $0x18] sm:$0xff] %vm1453, %v1689
          %1725 = vrot.lane.b32.xlu0 %v1680, 64
          %v1726 = vpop.permute.xlu0 %1725
          %1727 = vrot.lane.b32.xlu0 %v1683, 64
          %v1728 = vpop.permute.xlu0 %1727
          %1729 = vrot.lane.b32.xlu0 %v1686, 64
          %v1730 = vpop.permute.xlu0 %1729
          %1731 = vrot.lane.b32.xlu0 %v1689, 64
          %v1732 = vpop.permute.xlu0 %1731
          %s1737 = scalar_lea.vmem [#allocation4], 96
          %1738 = vst.msk [vmem:[%s1737] sm:$0xff] %vm1453, %v1726
          %1739 = vst.msk [vmem:[%s1737 + $0x8] sm:$0xff] %vm1453, %v1728
          %1740 = vst.msk [vmem:[%s1737 + $0x10] sm:$0xff] %vm1453, %v1730
          %1741 = vst.msk [vmem:[%s1737 + $0x18] sm:$0xff] %vm1453, %v1732
          %v1742 = vld [vmem:[#allocation25] sm:$0xff]
          %v1743 = vld [vmem:[#allocation25 + $0x8] sm:$0xff]
          %v1744 = vld [vmem:[#allocation25 + $0x10] sm:$0xff]
          %v1745 = vld [vmem:[#allocation25 + $0x18] sm:$0xff]
          %v1746 = vld [vmem:[#allocation25 + $0x20] sm:$0xff]
          %v1747 = vld [vmem:[#allocation25 + $0x28] sm:$0xff]
          %v1748 = vld [vmem:[#allocation25 + $0x30] sm:$0xff]
          %v1749 = vld [vmem:[#allocation25 + $0x38] sm:$0xff]
          %v1750 = vld [vmem:[#allocation25 + $0x40] sm:$0xff]
          %v1751 = vld [vmem:[#allocation25 + $0x48] sm:$0xff]
          %v1752 = vld [vmem:[#allocation25 + $0x50] sm:$0xff]
          %v1753 = vld [vmem:[#allocation25 + $0x58] sm:$0xff]
          %v1754 = vld [vmem:[#allocation25 + $0x60] sm:$0xff]
          %v1755 = vld [vmem:[#allocation25 + $0x68] sm:$0xff]
          %v1756 = vld [vmem:[#allocation25 + $0x70] sm:$0xff]
          %v1757 = vld [vmem:[#allocation25 + $0x78] sm:$0xff]
          %v1758 = vld [vmem:[#allocation25 + $0x80] sm:$0xff]
          %v1759 = vld [vmem:[#allocation25 + $0x88] sm:$0xff]
          %v1760 = vld [vmem:[#allocation25 + $0x90] sm:$0xff]
          %v1761 = vld [vmem:[#allocation25 + $0x98] sm:$0xff]
          %v1762 = vld [vmem:[#allocation25 + $0xa0] sm:$0xff]
          %v1763 = vld [vmem:[#allocation25 + $0xa8] sm:$0xff]
          %v1764 = vld [vmem:[#allocation25 + $0xb0] sm:$0xff]
          %v1765 = vld [vmem:[#allocation25 + $0xb8] sm:$0xff]
          %v1766 = vld [vmem:[#allocation25 + $0xc0] sm:$0xff]
          %v1767 = vld [vmem:[#allocation25 + $0xc8] sm:$0xff]
          %v1768 = vld [vmem:[#allocation25 + $0xd0] sm:$0xff]
          %v1769 = vld [vmem:[#allocation25 + $0xd8] sm:$0xff]
          %v1770 = vld [vmem:[#allocation25 + $0xe0] sm:$0xff]
          %v1771 = vld [vmem:[#allocation25 + $0xe8] sm:$0xff]
          %v1772 = vld [vmem:[#allocation25 + $0xf0] sm:$0xff]
          %v1773 = vld [vmem:[#allocation25 + $0xf8] sm:$0xff]
          %v1774 = vld [vmem:[#allocation25 + $0x100] sm:$0xff]
          %v1775 = vld [vmem:[#allocation25 + $0x108] sm:$0xff]
          %v1776 = vld [vmem:[#allocation25 + $0x110] sm:$0xff]
          %v1777 = vld [vmem:[#allocation25 + $0x118] sm:$0xff]
          %v1778 = vld [vmem:[#allocation25 + $0x120] sm:$0xff]
          %v1779 = vld [vmem:[#allocation25 + $0x128] sm:$0xff]
          %v1780 = vld [vmem:[#allocation25 + $0x130] sm:$0xff]
          %v1781 = vld [vmem:[#allocation25 + $0x138] sm:$0xff]
          %v1782 = vld [vmem:[#allocation25 + $0x140] sm:$0xff]
          %v1783 = vld [vmem:[#allocation25 + $0x148] sm:$0xff]
          %v1784 = vld [vmem:[#allocation25 + $0x150] sm:$0xff]
          %v1785 = vld [vmem:[#allocation25 + $0x158] sm:$0xff]
          %v1786 = vld [vmem:[#allocation25 + $0x160] sm:$0xff]
          %v1787 = vld [vmem:[#allocation25 + $0x168] sm:$0xff]
          %v1788 = vld [vmem:[#allocation25 + $0x170] sm:$0xff]
          %v1789 = vld [vmem:[#allocation25 + $0x178] sm:$0xff]
          %v1790 = vld [vmem:[#allocation25 + $0x180] sm:$0xff]
          %v1791 = vld [vmem:[#allocation25 + $0x188] sm:$0xff]
          %v1792 = vld [vmem:[#allocation25 + $0x190] sm:$0xff]
          %v1793 = vld [vmem:[#allocation25 + $0x198] sm:$0xff]
          %v1794 = vld [vmem:[#allocation25 + $0x1a0] sm:$0xff]
          %v1795 = vld [vmem:[#allocation25 + $0x1a8] sm:$0xff]
          %v1796 = vld [vmem:[#allocation25 + $0x1b0] sm:$0xff]
          %v1797 = vld [vmem:[#allocation25 + $0x1b8] sm:$0xff]
          %v1798 = vld [vmem:[#allocation25 + $0x1c0] sm:$0xff]
          %v1799 = vld [vmem:[#allocation25 + $0x1c8] sm:$0xff]
          %v1800 = vld [vmem:[#allocation25 + $0x1d0] sm:$0xff]
          %v1801 = vld [vmem:[#allocation25 + $0x1d8] sm:$0xff]
          %v1802 = vld [vmem:[#allocation25 + $0x1e0] sm:$0xff]
          %v1803 = vld [vmem:[#allocation25 + $0x1e8] sm:$0xff]
          %v1804 = vld [vmem:[#allocation25 + $0x1f0] sm:$0xff]
          %v1805 = vld [vmem:[#allocation25 + $0x1f8] sm:$0xff]
          %v1806 = vld [vmem:[%s33] sm:$0x3]
          %v1808 = vperm.slane %v1806, 0
          %v1809 = vperm.slane %v1806, 1
          %1812 = vmatpush.msra.mxu0 %v1772
          %1813 = vmatpush.msra.mxu0 %v1770
          %1814 = vmatpush.msra.mxu0 %v1768
          %1815 = vmatpush.msra.mxu0 %v1766
          %1816 = vmatpush.msra.mxu0 %v1764
          %1817 = vmatpush.msra.mxu0 %v1762
          %1818 = vmatpush.msra.mxu0 %v1760
          %1819 = vmatpush.msra.mxu0 %v1758
          %1820 = vmatpush.msra.mxu0 %v1756
          %1821 = vmatpush.msra.mxu0 %v1754
          %1822 = vmatpush.msra.mxu0 %v1752
          %1823 = vmatpush.msra.mxu0 %v1750
          %1824 = vmatpush.msra.mxu0 %v1748
          %1825 = vmatpush.msra.mxu0 %v1746
          %1826 = vmatpush.msra.mxu0 %v1744
          %1827 = vmatpush.msra.mxu0 %v1742
          %1828 = vmatmul.f32.gmra.mxu0 %v1259
          %v1829 = vpop.f32.mrf.mxu0
          %v1830 = vadd.f32 %v1808, %v1829
          %1831 = vmatmul.f32.gmra.mxu0 %v1261
          %v1832 = vpop.f32.mrf.mxu0
          %v1833 = vadd.f32 %v1808, %v1832
          %1834 = vmatmul.f32.gmra.mxu0 %v1263
          %v1835 = vpop.f32.mrf.mxu0
          %v1836 = vadd.f32 %v1808, %v1835
          %1837 = vmatmul.f32.gmra.mxu0 %v1265
          %v1838 = vpop.f32.mrf.mxu0
          %v1839 = vadd.f32 %v1808, %v1838
          %1840 = vdwg.mxu0
          %1841 = vmatpush.msra.mxu0 %v1804
          %1842 = vmatpush.msra.mxu0 %v1802
          %1843 = vmatpush.msra.mxu0 %v1800
          %1844 = vmatpush.msra.mxu0 %v1798
          %1845 = vmatpush.msra.mxu0 %v1796
          %1846 = vmatpush.msra.mxu0 %v1794
          %1847 = vmatpush.msra.mxu0 %v1792
          %1848 = vmatpush.msra.mxu0 %v1790
          %1849 = vmatpush.msra.mxu0 %v1788
          %1850 = vmatpush.msra.mxu0 %v1786
          %1851 = vmatpush.msra.mxu0 %v1784
          %1852 = vmatpush.msra.mxu0 %v1782
          %1853 = vmatpush.msra.mxu0 %v1780
          %1854 = vmatpush.msra.mxu0 %v1778
          %1855 = vmatpush.msra.mxu0 %v1776
          %1856 = vmatpush.msra.mxu0 %v1774
          %1857 = vmatmul.f32.gmra.mxu0 %v1260
          %v1858 = vpop.f32.mrf.mxu0
          %v1859 = vadd.f32 %v1830, %v1858
          %1860 = vmatmul.f32.gmra.mxu0 %v1262
          %v1861 = vpop.f32.mrf.mxu0
          %v1862 = vadd.f32 %v1833, %v1861
          %1863 = vmatmul.f32.gmra.mxu0 %v1264
          %v1864 = vpop.f32.mrf.mxu0
          %v1865 = vadd.f32 %v1836, %v1864
          %1866 = vmatmul.f32.gmra.mxu0 %v1266
          %v1867 = vpop.f32.mrf.mxu0
          %v1868 = vadd.f32 %v1839, %v1867
          %1869 = vdwg.mxu0
          %1870 = vmatpush.msra.mxu0 %v1773
          %1871 = vmatpush.msra.mxu0 %v1771
          %1872 = vmatpush.msra.mxu0 %v1769
          %1873 = vmatpush.msra.mxu0 %v1767
          %1874 = vmatpush.msra.mxu0 %v1765
          %1875 = vmatpush.msra.mxu0 %v1763
          %1876 = vmatpush.msra.mxu0 %v1761
          %1877 = vmatpush.msra.mxu0 %v1759
          %1878 = vmatpush.msra.mxu0 %v1757
          %1879 = vmatpush.msra.mxu0 %v1755
          %1880 = vmatpush.msra.mxu0 %v1753
          %1881 = vmatpush.msra.mxu0 %v1751
          %1882 = vmatpush.msra.mxu0 %v1749
          %1883 = vmatpush.msra.mxu0 %v1747
          %1884 = vmatpush.msra.mxu0 %v1745
          %1885 = vmatpush.msra.mxu0 %v1743
          %1886 = vmatmul.f32.gmra.mxu0 %v1259
          %v1887 = vpop.f32.mrf.mxu0
          %v1888 = vadd.f32 %v1809, %v1887
          %1889 = vmatmul.f32.gmra.mxu0 %v1261
          %v1890 = vpop.f32.mrf.mxu0
          %v1891 = vadd.f32 %v1809, %v1890
          %1892 = vmatmul.f32.gmra.mxu0 %v1263
          %v1893 = vpop.f32.mrf.mxu0
          %v1894 = vadd.f32 %v1809, %v1893
          %1895 = vmatmul.f32.gmra.mxu0 %v1265
          %v1896 = vpop.f32.mrf.mxu0
          %v1897 = vadd.f32 %v1809, %v1896
          %1898 = vdwg.mxu0
          %1899 = vmatpush.msra.mxu0 %v1805
          %1900 = vmatpush.msra.mxu0 %v1803
          %1901 = vmatpush.msra.mxu0 %v1801
          %1902 = vmatpush.msra.mxu0 %v1799
          %1903 = vmatpush.msra.mxu0 %v1797
          %1904 = vmatpush.msra.mxu0 %v1795
          %1905 = vmatpush.msra.mxu0 %v1793
          %1906 = vmatpush.msra.mxu0 %v1791
          %1907 = vmatpush.msra.mxu0 %v1789
          %1908 = vmatpush.msra.mxu0 %v1787
          %1909 = vmatpush.msra.mxu0 %v1785
          %1910 = vmatpush.msra.mxu0 %v1783
          %1911 = vmatpush.msra.mxu0 %v1781
          %1912 = vmatpush.msra.mxu0 %v1779
          %1913 = vmatpush.msra.mxu0 %v1777
          %1914 = vmatpush.msra.mxu0 %v1775
          %1915 = vmatmul.f32.gmra.mxu0 %v1260
          %v1916 = vpop.f32.mrf.mxu0
          %v1917 = vadd.f32 %v1888, %v1916
          %1918 = vmatmul.f32.gmra.mxu0 %v1262
          %v1919 = vpop.f32.mrf.mxu0
          %v1920 = vadd.f32 %v1891, %v1919
          %1921 = vmatmul.f32.gmra.mxu0 %v1264
          %v1922 = vpop.f32.mrf.mxu0
          %v1923 = vadd.f32 %v1894, %v1922
          %1924 = vmatmul.f32.gmra.mxu0 %v1266
          %v1925 = vpop.f32.mrf.mxu0
          %v1926 = vadd.f32 %v1897, %v1925
          %1927 = vdwg.mxu0
          %1928 = vst.msk [vmem:[#allocation5] sm:$0xff] %vm1453, %v1859
          %1929 = vst.msk [vmem:[#allocation5 + $0x8] sm:$0xff] %vm1453, %v1862
          %1930 = vst.msk [vmem:[#allocation5 + $0x10] sm:$0xff] %vm1453, %v1865
          %1931 = vst.msk [vmem:[#allocation5 + $0x18] sm:$0xff] %vm1453, %v1868
          %1936 = vrot.lane.b32.xlu0 %v1859, 64
          %v1937 = vpop.permute.xlu0 %1936
          %1938 = vrot.lane.b32.xlu0 %v1862, 64
          %v1939 = vpop.permute.xlu0 %1938
          %1940 = vrot.lane.b32.xlu0 %v1865, 64
          %v1941 = vpop.permute.xlu0 %1940
          %1942 = vrot.lane.b32.xlu0 %v1868, 64
          %v1943 = vpop.permute.xlu0 %1942
          %s1948 = scalar_lea.vmem [#allocation5], 32
          %1949 = vst.msk [vmem:[%s1948] sm:$0xff] %vm1453, %v1937
          %1950 = vst.msk [vmem:[%s1948 + $0x8] sm:$0xff] %vm1453, %v1939
          %1951 = vst.msk [vmem:[%s1948 + $0x10] sm:$0xff] %vm1453, %v1941
          %1952 = vst.msk [vmem:[%s1948 + $0x18] sm:$0xff] %vm1453, %v1943
          %s1953 = scalar_lea.vmem [#allocation5], 64
          %1954 = vst.msk [vmem:[%s1953] sm:$0xff] %vm1453, %v1917
          %1955 = vst.msk [vmem:[%s1953 + $0x8] sm:$0xff] %vm1453, %v1920
          %1956 = vst.msk [vmem:[%s1953 + $0x10] sm:$0xff] %vm1453, %v1923
          %1957 = vst.msk [vmem:[%s1953 + $0x18] sm:$0xff] %vm1453, %v1926
          %1962 = vrot.lane.b32.xlu0 %v1917, 64
          %v1963 = vpop.permute.xlu0 %1962
          %1964 = vrot.lane.b32.xlu0 %v1920, 64
          %v1965 = vpop.permute.xlu0 %1964
          %1966 = vrot.lane.b32.xlu0 %v1923, 64
          %v1967 = vpop.permute.xlu0 %1966
          %1968 = vrot.lane.b32.xlu0 %v1926, 64
          %v1969 = vpop.permute.xlu0 %1968
          %s1974 = scalar_lea.vmem [#allocation5], 96
          %1975 = vst.msk [vmem:[%s1974] sm:$0xff] %vm1453, %v1963
          %1976 = vst.msk [vmem:[%s1974 + $0x8] sm:$0xff] %vm1453, %v1965
          %1977 = vst.msk [vmem:[%s1974 + $0x10] sm:$0xff] %vm1453, %v1967
          %1978 = vst.msk [vmem:[%s1974 + $0x18] sm:$0xff] %vm1453, %v1969
          %v1979 = vld [vmem:[#allocation27] sm:$0xff]
          %v1980 = vld [vmem:[#allocation27 + $0x8] sm:$0xff]
          %v1981 = vld [vmem:[#allocation27 + $0x10] sm:$0xff]
          %v1982 = vld [vmem:[#allocation27 + $0x18] sm:$0xff]
          %v1983 = vld [vmem:[#allocation27 + $0x20] sm:$0xff]
          %v1984 = vld [vmem:[#allocation27 + $0x28] sm:$0xff]
          %v1985 = vld [vmem:[#allocation27 + $0x30] sm:$0xff]
          %v1986 = vld [vmem:[#allocation27 + $0x38] sm:$0xff]
          %v1987 = vld [vmem:[#allocation27 + $0x40] sm:$0xff]
          %v1988 = vld [vmem:[#allocation27 + $0x48] sm:$0xff]
          %v1989 = vld [vmem:[#allocation27 + $0x50] sm:$0xff]
          %v1990 = vld [vmem:[#allocation27 + $0x58] sm:$0xff]
          %v1991 = vld [vmem:[#allocation27 + $0x60] sm:$0xff]
          %v1992 = vld [vmem:[#allocation27 + $0x68] sm:$0xff]
          %v1993 = vld [vmem:[#allocation27 + $0x70] sm:$0xff]
          %v1994 = vld [vmem:[#allocation27 + $0x78] sm:$0xff]
          %v1995 = vld [vmem:[#allocation27 + $0x80] sm:$0xff]
          %v1996 = vld [vmem:[#allocation27 + $0x88] sm:$0xff]
          %v1997 = vld [vmem:[#allocation27 + $0x90] sm:$0xff]
          %v1998 = vld [vmem:[#allocation27 + $0x98] sm:$0xff]
          %v1999 = vld [vmem:[#allocation27 + $0xa0] sm:$0xff]
          %v2000 = vld [vmem:[#allocation27 + $0xa8] sm:$0xff]
          %v2001 = vld [vmem:[#allocation27 + $0xb0] sm:$0xff]
          %v2002 = vld [vmem:[#allocation27 + $0xb8] sm:$0xff]
          %v2003 = vld [vmem:[#allocation27 + $0xc0] sm:$0xff]
          %v2004 = vld [vmem:[#allocation27 + $0xc8] sm:$0xff]
          %v2005 = vld [vmem:[#allocation27 + $0xd0] sm:$0xff]
          %v2006 = vld [vmem:[#allocation27 + $0xd8] sm:$0xff]
          %v2007 = vld [vmem:[#allocation27 + $0xe0] sm:$0xff]
          %v2008 = vld [vmem:[#allocation27 + $0xe8] sm:$0xff]
          %v2009 = vld [vmem:[#allocation27 + $0xf0] sm:$0xff]
          %v2010 = vld [vmem:[#allocation27 + $0xf8] sm:$0xff]
          %v2011 = vld [vmem:[#allocation27 + $0x100] sm:$0xff]
          %v2012 = vld [vmem:[#allocation27 + $0x108] sm:$0xff]
          %v2013 = vld [vmem:[#allocation27 + $0x110] sm:$0xff]
          %v2014 = vld [vmem:[#allocation27 + $0x118] sm:$0xff]
          %v2015 = vld [vmem:[#allocation27 + $0x120] sm:$0xff]
          %v2016 = vld [vmem:[#allocation27 + $0x128] sm:$0xff]
          %v2017 = vld [vmem:[#allocation27 + $0x130] sm:$0xff]
          %v2018 = vld [vmem:[#allocation27 + $0x138] sm:$0xff]
          %v2019 = vld [vmem:[#allocation27 + $0x140] sm:$0xff]
          %v2020 = vld [vmem:[#allocation27 + $0x148] sm:$0xff]
          %v2021 = vld [vmem:[#allocation27 + $0x150] sm:$0xff]
          %v2022 = vld [vmem:[#allocation27 + $0x158] sm:$0xff]
          %v2023 = vld [vmem:[#allocation27 + $0x160] sm:$0xff]
          %v2024 = vld [vmem:[#allocation27 + $0x168] sm:$0xff]
          %v2025 = vld [vmem:[#allocation27 + $0x170] sm:$0xff]
          %v2026 = vld [vmem:[#allocation27 + $0x178] sm:$0xff]
          %v2027 = vld [vmem:[#allocation27 + $0x180] sm:$0xff]
          %v2028 = vld [vmem:[#allocation27 + $0x188] sm:$0xff]
          %v2029 = vld [vmem:[#allocation27 + $0x190] sm:$0xff]
          %v2030 = vld [vmem:[#allocation27 + $0x198] sm:$0xff]
          %v2031 = vld [vmem:[#allocation27 + $0x1a0] sm:$0xff]
          %v2032 = vld [vmem:[#allocation27 + $0x1a8] sm:$0xff]
          %v2033 = vld [vmem:[#allocation27 + $0x1b0] sm:$0xff]
          %v2034 = vld [vmem:[#allocation27 + $0x1b8] sm:$0xff]
          %v2035 = vld [vmem:[#allocation27 + $0x1c0] sm:$0xff]
          %v2036 = vld [vmem:[#allocation27 + $0x1c8] sm:$0xff]
          %v2037 = vld [vmem:[#allocation27 + $0x1d0] sm:$0xff]
          %v2038 = vld [vmem:[#allocation27 + $0x1d8] sm:$0xff]
          %v2039 = vld [vmem:[#allocation27 + $0x1e0] sm:$0xff]
          %v2040 = vld [vmem:[#allocation27 + $0x1e8] sm:$0xff]
          %v2041 = vld [vmem:[#allocation27 + $0x1f0] sm:$0xff]
          %v2042 = vld [vmem:[#allocation27 + $0x1f8] sm:$0xff]
          %v2043 = vld [vmem:[%s37] sm:$0x3]
          %v2045 = vperm.slane %v2043, 0
          %v2046 = vperm.slane %v2043, 1
          %2049 = vmatpush.msra.mxu0 %v2009
          %2050 = vmatpush.msra.mxu0 %v2007
          %2051 = vmatpush.msra.mxu0 %v2005
          %2052 = vmatpush.msra.mxu0 %v2003
          %2053 = vmatpush.msra.mxu0 %v2001
          %2054 = vmatpush.msra.mxu0 %v1999
          %2055 = vmatpush.msra.mxu0 %v1997
          %2056 = vmatpush.msra.mxu0 %v1995
          %2057 = vmatpush.msra.mxu0 %v1993
          %2058 = vmatpush.msra.mxu0 %v1991
          %2059 = vmatpush.msra.mxu0 %v1989
          %2060 = vmatpush.msra.mxu0 %v1987
          %2061 = vmatpush.msra.mxu0 %v1985
          %2062 = vmatpush.msra.mxu0 %v1983
          %2063 = vmatpush.msra.mxu0 %v1981
          %2064 = vmatpush.msra.mxu0 %v1979
          %2065 = vmatmul.f32.gmra.mxu0 %v1259
          %v2066 = vpop.f32.mrf.mxu0
          %v2067 = vadd.f32 %v2045, %v2066
          %2068 = vmatmul.f32.gmra.mxu0 %v1261
          %v2069 = vpop.f32.mrf.mxu0
          %v2070 = vadd.f32 %v2045, %v2069
          %2071 = vmatmul.f32.gmra.mxu0 %v1263
          %v2072 = vpop.f32.mrf.mxu0
          %v2073 = vadd.f32 %v2045, %v2072
          %2074 = vmatmul.f32.gmra.mxu0 %v1265
          %v2075 = vpop.f32.mrf.mxu0
          %v2076 = vadd.f32 %v2045, %v2075
          %2077 = vdwg.mxu0
          %2078 = vmatpush.msra.mxu0 %v2041
          %2079 = vmatpush.msra.mxu0 %v2039
          %2080 = vmatpush.msra.mxu0 %v2037
          %2081 = vmatpush.msra.mxu0 %v2035
          %2082 = vmatpush.msra.mxu0 %v2033
          %2083 = vmatpush.msra.mxu0 %v2031
          %2084 = vmatpush.msra.mxu0 %v2029
          %2085 = vmatpush.msra.mxu0 %v2027
          %2086 = vmatpush.msra.mxu0 %v2025
          %2087 = vmatpush.msra.mxu0 %v2023
          %2088 = vmatpush.msra.mxu0 %v2021
          %2089 = vmatpush.msra.mxu0 %v2019
          %2090 = vmatpush.msra.mxu0 %v2017
          %2091 = vmatpush.msra.mxu0 %v2015
          %2092 = vmatpush.msra.mxu0 %v2013
          %2093 = vmatpush.msra.mxu0 %v2011
          %2094 = vmatmul.f32.gmra.mxu0 %v1260
          %v2095 = vpop.f32.mrf.mxu0
          %v2096 = vadd.f32 %v2067, %v2095
          %2097 = vmatmul.f32.gmra.mxu0 %v1262
          %v2098 = vpop.f32.mrf.mxu0
          %v2099 = vadd.f32 %v2070, %v2098
          %2100 = vmatmul.f32.gmra.mxu0 %v1264
          %v2101 = vpop.f32.mrf.mxu0
          %v2102 = vadd.f32 %v2073, %v2101
          %2103 = vmatmul.f32.gmra.mxu0 %v1266
          %v2104 = vpop.f32.mrf.mxu0
          %v2105 = vadd.f32 %v2076, %v2104
          %2106 = vdwg.mxu0
          %2107 = vmatpush.msra.mxu0 %v2010
          %2108 = vmatpush.msra.mxu0 %v2008
          %2109 = vmatpush.msra.mxu0 %v2006
          %2110 = vmatpush.msra.mxu0 %v2004
          %2111 = vmatpush.msra.mxu0 %v2002
          %2112 = vmatpush.msra.mxu0 %v2000
          %2113 = vmatpush.msra.mxu0 %v1998
          %2114 = vmatpush.msra.mxu0 %v1996
          %2115 = vmatpush.msra.mxu0 %v1994
          %2116 = vmatpush.msra.mxu0 %v1992
          %2117 = vmatpush.msra.mxu0 %v1990
          %2118 = vmatpush.msra.mxu0 %v1988
          %2119 = vmatpush.msra.mxu0 %v1986
          %2120 = vmatpush.msra.mxu0 %v1984
          %2121 = vmatpush.msra.mxu0 %v1982
          %2122 = vmatpush.msra.mxu0 %v1980
          %2123 = vmatmul.f32.gmra.mxu0 %v1259
          %v2124 = vpop.f32.mrf.mxu0
          %v2125 = vadd.f32 %v2046, %v2124
          %2126 = vmatmul.f32.gmra.mxu0 %v1261
          %v2127 = vpop.f32.mrf.mxu0
          %v2128 = vadd.f32 %v2046, %v2127
          %2129 = vmatmul.f32.gmra.mxu0 %v1263
          %v2130 = vpop.f32.mrf.mxu0
          %v2131 = vadd.f32 %v2046, %v2130
          %2132 = vmatmul.f32.gmra.mxu0 %v1265
          %v2133 = vpop.f32.mrf.mxu0
          %v2134 = vadd.f32 %v2046, %v2133
          %2135 = vdwg.mxu0
          %2136 = vmatpush.msra.mxu0 %v2042
          %2137 = vmatpush.msra.mxu0 %v2040
          %2138 = vmatpush.msra.mxu0 %v2038
          %2139 = vmatpush.msra.mxu0 %v2036
          %2140 = vmatpush.msra.mxu0 %v2034
          %2141 = vmatpush.msra.mxu0 %v2032
          %2142 = vmatpush.msra.mxu0 %v2030
          %2143 = vmatpush.msra.mxu0 %v2028
          %2144 = vmatpush.msra.mxu0 %v2026
          %2145 = vmatpush.msra.mxu0 %v2024
          %2146 = vmatpush.msra.mxu0 %v2022
          %2147 = vmatpush.msra.mxu0 %v2020
          %2148 = vmatpush.msra.mxu0 %v2018
          %2149 = vmatpush.msra.mxu0 %v2016
          %2150 = vmatpush.msra.mxu0 %v2014
          %2151 = vmatpush.msra.mxu0 %v2012
          %2152 = vmatmul.f32.gmra.mxu0 %v1260
          %v2153 = vpop.f32.mrf.mxu0
          %v2154 = vadd.f32 %v2125, %v2153
          %2155 = vmatmul.f32.gmra.mxu0 %v1262
          %v2156 = vpop.f32.mrf.mxu0
          %v2157 = vadd.f32 %v2128, %v2156
          %2158 = vmatmul.f32.gmra.mxu0 %v1264
          %v2159 = vpop.f32.mrf.mxu0
          %v2160 = vadd.f32 %v2131, %v2159
          %2161 = vmatmul.f32.gmra.mxu0 %v1266
          %v2162 = vpop.f32.mrf.mxu0
          %v2163 = vadd.f32 %v2134, %v2162
          %2164 = vdwg.mxu0
          %2165 = vst.msk [vmem:[#allocation6] sm:$0xff] %vm1453, %v2096
          %2166 = vst.msk [vmem:[#allocation6 + $0x8] sm:$0xff] %vm1453, %v2099
          %2167 = vst.msk [vmem:[#allocation6 + $0x10] sm:$0xff] %vm1453, %v2102
          %2168 = vst.msk [vmem:[#allocation6 + $0x18] sm:$0xff] %vm1453, %v2105
          %2173 = vrot.lane.b32.xlu0 %v2096, 64
          %v2174 = vpop.permute.xlu0 %2173
          %2175 = vrot.lane.b32.xlu0 %v2099, 64
          %v2176 = vpop.permute.xlu0 %2175
          %2177 = vrot.lane.b32.xlu0 %v2102, 64
          %v2178 = vpop.permute.xlu0 %2177
          %2179 = vrot.lane.b32.xlu0 %v2105, 64
          %v2180 = vpop.permute.xlu0 %2179
          %s2185 = scalar_lea.vmem [#allocation6], 32
          %2186 = vst.msk [vmem:[%s2185] sm:$0xff] %vm1453, %v2174
          %2187 = vst.msk [vmem:[%s2185 + $0x8] sm:$0xff] %vm1453, %v2176
          %2188 = vst.msk [vmem:[%s2185 + $0x10] sm:$0xff] %vm1453, %v2178
          %2189 = vst.msk [vmem:[%s2185 + $0x18] sm:$0xff] %vm1453, %v2180
          %s2190 = scalar_lea.vmem [#allocation6], 64
          %2191 = vst.msk [vmem:[%s2190] sm:$0xff] %vm1453, %v2154
          %2192 = vst.msk [vmem:[%s2190 + $0x8] sm:$0xff] %vm1453, %v2157
          %2193 = vst.msk [vmem:[%s2190 + $0x10] sm:$0xff] %vm1453, %v2160
          %2194 = vst.msk [vmem:[%s2190 + $0x18] sm:$0xff] %vm1453, %v2163
          %2199 = vrot.lane.b32.xlu0 %v2154, 64
          %v2200 = vpop.permute.xlu0 %2199
          %2201 = vrot.lane.b32.xlu0 %v2157, 64
          %v2202 = vpop.permute.xlu0 %2201
          %2203 = vrot.lane.b32.xlu0 %v2160, 64
          %v2204 = vpop.permute.xlu0 %2203
          %2205 = vrot.lane.b32.xlu0 %v2163, 64
          %v2206 = vpop.permute.xlu0 %2205
          %s2211 = scalar_lea.vmem [#allocation6], 96
          %2212 = vst.msk [vmem:[%s2211] sm:$0xff] %vm1453, %v2200
          %2213 = vst.msk [vmem:[%s2211 + $0x8] sm:$0xff] %vm1453, %v2202
          %2214 = vst.msk [vmem:[%s2211 + $0x10] sm:$0xff] %vm1453, %v2204
          %2215 = vst.msk [vmem:[%s2211 + $0x18] sm:$0xff] %vm1453, %v2206
        $region208: #{tpu_custom_call.1} parent=135 // pred_fallthru
          _
        %s2216 = smul.u32 %s91, 16
        %s2217 = sshra.s32 %s2216, 3
        %s2218 = sand.u32 %s2216, 7
        %s2219 = smul.u32 %s2217, 2
        %s2220 = smul.addr %s2219, 8
        %s2221 = scalar_lea.vmem %s1079, %s2220 [#allocation10]
        %v2222 = vld [vmem:[%s2221] sm:$0xff]
        %v2223 = vld [vmem:[%s2221 + $0x8] sm:$0xff]
        %v2224 = vld [vmem:[%s2221 + $0x10] sm:$0xff]
        %v2225 = vld [vmem:[%s2221 + $0x18] sm:$0xff]
        %v2226 = vlaneseq
        %v2227 = vshrl.u32 %v2226, 7
        %v2228 = vadd.s32 %v2227, 8
        %v2229 = vstv %s2216
        %v2230 = vadd.s32 %v2227, %v2229
        %v2231 = vadd.s32 %v2228, %v2229
        %v2232 = vlaneseq
        %v2233 = vand.u32 %v2232, 127
        %vm2234 = vcmp.ge.s32.totalorder %v2230, %v2233
        %vm2235 = vcmp.ge.s32.totalorder %v2231, %v2233
        %v2236 = vsel %vm2234, 0.0, -1e+09
        %v2237 = vsel %vm2235, 0.0, -1e+09
        %v2238 = vld [vmem:[%s1089] sm:$0xf]
        %v2239 = vld [vmem:[%s1089 + $0x4] sm:$0xf]
        %v2240 = vunpack.c.l.bf16 %v2238
        %v2241 = vunpack.c.l.bf16 %v2239
        %v2242 = vld [vmem:[#allocation13] sm:$0xff]
        %v2243 = vld [vmem:[#allocation13 + $0x8] sm:$0xff]
        %v2244 = vld [vmem:[#allocation13 + $0x10] sm:$0xff]
        %v2245 = vld [vmem:[#allocation13 + $0x18] sm:$0xff]
        %v2246 = vld [vmem:[#allocation13 + $0x20] sm:$0xff]
        %v2247 = vld [vmem:[#allocation13 + $0x28] sm:$0xff]
        %v2248 = vld [vmem:[#allocation13 + $0x30] sm:$0xff]
        %v2249 = vld [vmem:[#allocation13 + $0x38] sm:$0xff]
        %v2250 = vld [vmem:[#allocation13 + $0x40] sm:$0xff]
        %v2251 = vld [vmem:[#allocation13 + $0x48] sm:$0xff]
        %v2252 = vld [vmem:[#allocation13 + $0x50] sm:$0xff]
        %v2253 = vld [vmem:[#allocation13 + $0x58] sm:$0xff]
        %v2254 = vld [vmem:[#allocation13 + $0x60] sm:$0xff]
        %v2255 = vld [vmem:[#allocation13 + $0x68] sm:$0xff]
        %v2256 = vld [vmem:[#allocation13 + $0x70] sm:$0xff]
        %v2257 = vld [vmem:[#allocation13 + $0x78] sm:$0xff]
        %v2258 = vld [vmem:[#allocation13 + $0x80] sm:$0xff]
        %v2259 = vld [vmem:[#allocation13 + $0x88] sm:$0xff]
        %v2260 = vld [vmem:[#allocation13 + $0x90] sm:$0xff]
        %v2261 = vld [vmem:[#allocation13 + $0x98] sm:$0xff]
        %v2262 = vld [vmem:[#allocation13 + $0xa0] sm:$0xff]
        %v2263 = vld [vmem:[#allocation13 + $0xa8] sm:$0xff]
        %v2264 = vld [vmem:[#allocation13 + $0xb0] sm:$0xff]
        %v2265 = vld [vmem:[#allocation13 + $0xb8] sm:$0xff]
        %v2266 = vld [vmem:[#allocation13 + $0xc0] sm:$0xff]
        %v2267 = vld [vmem:[#allocation13 + $0xc8] sm:$0xff]
        %v2268 = vld [vmem:[#allocation13 + $0xd0] sm:$0xff]
        %v2269 = vld [vmem:[#allocation13 + $0xd8] sm:$0xff]
        %v2270 = vld [vmem:[#allocation13 + $0xe0] sm:$0xff]
        %v2271 = vld [vmem:[#allocation13 + $0xe8] sm:$0xff]
        %v2272 = vld [vmem:[#allocation13 + $0xf0] sm:$0xff]
        %v2273 = vld [vmem:[#allocation13 + $0xf8] sm:$0xff]
        %v2274 = vld [vmem:[#allocation13 + $0x100] sm:$0xff]
        %v2275 = vld [vmem:[#allocation13 + $0x108] sm:$0xff]
        %v2276 = vld [vmem:[#allocation13 + $0x110] sm:$0xff]
        %v2277 = vld [vmem:[#allocation13 + $0x118] sm:$0xff]
        %v2278 = vld [vmem:[#allocation13 + $0x120] sm:$0xff]
        %v2279 = vld [vmem:[#allocation13 + $0x128] sm:$0xff]
        %v2280 = vld [vmem:[#allocation13 + $0x130] sm:$0xff]
        %v2281 = vld [vmem:[#allocation13 + $0x138] sm:$0xff]
        %v2282 = vld [vmem:[#allocation13 + $0x140] sm:$0xff]
        %v2283 = vld [vmem:[#allocation13 + $0x148] sm:$0xff]
        %v2284 = vld [vmem:[#allocation13 + $0x150] sm:$0xff]
        %v2285 = vld [vmem:[#allocation13 + $0x158] sm:$0xff]
        %v2286 = vld [vmem:[#allocation13 + $0x160] sm:$0xff]
        %v2287 = vld [vmem:[#allocation13 + $0x168] sm:$0xff]
        %v2288 = vld [vmem:[#allocation13 + $0x170] sm:$0xff]
        %v2289 = vld [vmem:[#allocation13 + $0x178] sm:$0xff]
        %v2290 = vld [vmem:[#allocation13 + $0x180] sm:$0xff]
        %v2291 = vld [vmem:[#allocation13 + $0x188] sm:$0xff]
        %v2292 = vld [vmem:[#allocation13 + $0x190] sm:$0xff]
        %v2293 = vld [vmem:[#allocation13 + $0x198] sm:$0xff]
        %v2294 = vld [vmem:[#allocation13 + $0x1a0] sm:$0xff]
        %v2295 = vld [vmem:[#allocation13 + $0x1a8] sm:$0xff]
        %v2296 = vld [vmem:[#allocation13 + $0x1b0] sm:$0xff]
        %v2297 = vld [vmem:[#allocation13 + $0x1b8] sm:$0xff]
        %v2298 = vld [vmem:[#allocation13 + $0x1c0] sm:$0xff]
        %v2299 = vld [vmem:[#allocation13 + $0x1c8] sm:$0xff]
        %v2300 = vld [vmem:[#allocation13 + $0x1d0] sm:$0xff]
        %v2301 = vld [vmem:[#allocation13 + $0x1d8] sm:$0xff]
        %v2302 = vld [vmem:[#allocation13 + $0x1e0] sm:$0xff]
        %v2303 = vld [vmem:[#allocation13 + $0x1e8] sm:$0xff]
        %v2304 = vld [vmem:[#allocation13 + $0x1f0] sm:$0xff]
        %v2305 = vld [vmem:[#allocation13 + $0x1f8] sm:$0xff]
        %v2306 = vld [vmem:[%s9] sm:$0x3]
        %v2308 = vperm.slane %v2306, 0
        %v2309 = vperm.slane %v2306, 1
        %2312 = vmatpush.msra.mxu0 %v2272
        %2313 = vmatpush.msra.mxu0 %v2270
        %2314 = vmatpush.msra.mxu0 %v2268
        %2315 = vmatpush.msra.mxu0 %v2266
        %2316 = vmatpush.msra.mxu0 %v2264
        %2317 = vmatpush.msra.mxu0 %v2262
        %2318 = vmatpush.msra.mxu0 %v2260
        %2319 = vmatpush.msra.mxu0 %v2258
        %2320 = vmatpush.msra.mxu0 %v2256
        %2321 = vmatpush.msra.mxu0 %v2254
        %2322 = vmatpush.msra.mxu0 %v2252
        %2323 = vmatpush.msra.mxu0 %v2250
        %2324 = vmatpush.msra.mxu0 %v2248
        %2325 = vmatpush.msra.mxu0 %v2246
        %2326 = vmatpush.msra.mxu0 %v2244
        %2327 = vmatpush.msra.mxu0 %v2242
        %2328 = vmatmul.f32.gmra.mxu0 %v2222
        %v2329 = vpop.f32.mrf.mxu0
        %v2330 = vadd.f32 %v2308, %v2329
        %2331 = vmatmul.f32.gmra.mxu0 %v2224
        %v2332 = vpop.f32.mrf.mxu0
        %v2333 = vadd.f32 %v2308, %v2332
        %2334 = vdwg.mxu0
        %2335 = vmatpush.msra.mxu0 %v2304
        %2336 = vmatpush.msra.mxu0 %v2302
        %2337 = vmatpush.msra.mxu0 %v2300
        %2338 = vmatpush.msra.mxu0 %v2298
        %2339 = vmatpush.msra.mxu0 %v2296
        %2340 = vmatpush.msra.mxu0 %v2294
        %2341 = vmatpush.msra.mxu0 %v2292
        %2342 = vmatpush.msra.mxu0 %v2290
        %2343 = vmatpush.msra.mxu0 %v2288
        %2344 = vmatpush.msra.mxu0 %v2286
        %2345 = vmatpush.msra.mxu0 %v2284
        %2346 = vmatpush.msra.mxu0 %v2282
        %2347 = vmatpush.msra.mxu0 %v2280
        %2348 = vmatpush.msra.mxu0 %v2278
        %2349 = vmatpush.msra.mxu0 %v2276
        %2350 = vmatpush.msra.mxu0 %v2274
        %2351 = vmatmul.f32.gmra.mxu0 %v2223
        %v2352 = vpop.f32.mrf.mxu0
        %v2353 = vadd.f32 %v2330, %v2352
        %2354 = vmatmul.f32.gmra.mxu0 %v2225
        %v2355 = vpop.f32.mrf.mxu0
        %v2356 = vadd.f32 %v2333, %v2355
        %2357 = vdwg.mxu0
        %2358 = vmatpush.msra.mxu0 %v2273
        %2359 = vmatpush.msra.mxu0 %v2271
        %2360 = vmatpush.msra.mxu0 %v2269
        %2361 = vmatpush.msra.mxu0 %v2267
        %2362 = vmatpush.msra.mxu0 %v2265
        %2363 = vmatpush.msra.mxu0 %v2263
        %2364 = vmatpush.msra.mxu0 %v2261
        %2365 = vmatpush.msra.mxu0 %v2259
        %2366 = vmatpush.msra.mxu0 %v2257
        %2367 = vmatpush.msra.mxu0 %v2255
        %2368 = vmatpush.msra.mxu0 %v2253
        %2369 = vmatpush.msra.mxu0 %v2251
        %2370 = vmatpush.msra.mxu0 %v2249
        %2371 = vmatpush.msra.mxu0 %v2247
        %2372 = vmatpush.msra.mxu0 %v2245
        %2373 = vmatpush.msra.mxu0 %v2243
        %2374 = vmatmul.f32.gmra.mxu0 %v2222
        %v2375 = vpop.f32.mrf.mxu0
        %v2376 = vadd.f32 %v2309, %v2375
        %2377 = vmatmul.f32.gmra.mxu0 %v2224
        %v2378 = vpop.f32.mrf.mxu0
        %v2379 = vadd.f32 %v2309, %v2378
        %2380 = vdwg.mxu0
        %2381 = vmatpush.msra.mxu0 %v2305
        %2382 = vmatpush.msra.mxu0 %v2303
        %2383 = vmatpush.msra.mxu0 %v2301
        %2384 = vmatpush.msra.mxu0 %v2299
        %2385 = vmatpush.msra.mxu0 %v2297
        %2386 = vmatpush.msra.mxu0 %v2295
        %2387 = vmatpush.msra.mxu0 %v2293
        %2388 = vmatpush.msra.mxu0 %v2291
        %2389 = vmatpush.msra.mxu0 %v2289
        %2390 = vmatpush.msra.mxu0 %v2287
        %2391 = vmatpush.msra.mxu0 %v2285
        %2392 = vmatpush.msra.mxu0 %v2283
        %2393 = vmatpush.msra.mxu0 %v2281
        %2394 = vmatpush.msra.mxu0 %v2279
        %2395 = vmatpush.msra.mxu0 %v2277
        %2396 = vmatpush.msra.mxu0 %v2275
        %2397 = vmatmul.f32.gmra.mxu0 %v2223
        %v2398 = vpop.f32.mrf.mxu0
        %v2399 = vadd.f32 %v2376, %v2398
        %2400 = vmatmul.f32.gmra.mxu0 %v2225
        %v2401 = vpop.f32.mrf.mxu0
        %v2402 = vadd.f32 %v2379, %v2401
        %2403 = vdwg.mxu0
        %vm2404 = vcmask 523264
        %2405 = vst.msk [vmem:[#allocation2] sm:$0xff] %vm2404, %v2353
        %2406 = vst.msk [vmem:[#allocation2 + $0x8] sm:$0xff] %vm2404, %v2356
        %2409 = vrot.lane.b32.xlu0 %v2353, 64
        %v2410 = vpop.permute.xlu0 %2409
        %2411 = vrot.lane.b32.xlu0 %v2356, 64
        %v2412 = vpop.permute.xlu0 %2411
        %s2415 = scalar_lea.vmem [#allocation2], 16
        %2416 = vst.msk [vmem:[%s2415] sm:$0xff] %vm2404, %v2410
        %2417 = vst.msk [vmem:[%s2415 + $0x8] sm:$0xff] %vm2404, %v2412
        %s2418 = scalar_lea.vmem [#allocation2], 32
        %2419 = vst.msk [vmem:[%s2418] sm:$0xff] %vm2404, %v2399
        %2420 = vst.msk [vmem:[%s2418 + $0x8] sm:$0xff] %vm2404, %v2402
        %2423 = vrot.lane.b32.xlu0 %v2399, 64
        %v2424 = vpop.permute.xlu0 %2423
        %2425 = vrot.lane.b32.xlu0 %v2402, 64
        %v2426 = vpop.permute.xlu0 %2425
        %s2429 = scalar_lea.vmem [#allocation2], 48
        %2430 = vst.msk [vmem:[%s2429] sm:$0xff] %vm2404, %v2424
        %2431 = vst.msk [vmem:[%s2429 + $0x8] sm:$0xff] %vm2404, %v2426
        %v2432 = vld [vmem:[#allocation2] sm:$0xff]
        %v2433 = vld [vmem:[#allocation2 + $0x8] sm:$0xff]
        %v2434 = vld [vmem:[#allocation3] sm:$0xff]
        %v2435 = vld [vmem:[#allocation3 + $0x8] sm:$0xff]
        %v2436 = vld [vmem:[#allocation3 + $0x10] sm:$0xff]
        %v2437 = vld [vmem:[#allocation3 + $0x18] sm:$0xff]
        %v2439 = vsel %vm2404, %v2432, 0
        %v2442 = vsel %vm2404, %v2433, 0
        %v2445 = vsel %vm2404, %v2434, 0
        %v2448 = vsel %vm2404, %v2435, 0
        %v2451 = vsel %vm2404, %v2436, 0
        %v2454 = vsel %vm2404, %v2437, 0
        %2456 = vmatpush.xpose.msra.mxu0 0.0
        %2457 = vmatpush.xpose.msra.mxu0 0.0
        %2458 = vmatpush.xpose.msra.mxu0 0.0
        %2459 = vmatpush.xpose.msra.mxu0 0.0
        %2460 = vmatpush.xpose.msra.mxu0 0.0
        %2461 = vmatpush.xpose.msra.mxu0 0.0
        %2462 = vmatpush.xpose.msra.mxu0 0.0
        %2463 = vmatpush.xpose.msra.mxu0 0.0
        %2464 = vmatpush.xpose.msra.mxu0 0.0
        %2465 = vmatpush.xpose.msra.mxu0 0.0
        %2466 = vmatpush.xpose.msra.mxu0 0.0
        %2467 = vmatpush.xpose.msra.mxu0 0.0
        %2468 = vmatpush.xpose.msra.mxu0 %v2454
        %2469 = vmatpush.xpose.msra.mxu0 %v2451
        %2470 = vmatpush.xpose.msra.mxu0 %v2448
        %2471 = vmatpush.xpose.msra.mxu0 %v2445
        %2472 = vmatmul.f32.gmra.mxu0 %v2439
        %v2473 = vpop.f32.mrf.mxu0
        %v2474 = vadd.f32 %v2236, %v2473
        %2475 = vmatmul.f32.gmra.mxu0 %v2442
        %v2476 = vpop.f32.mrf.mxu0
        %v2477 = vadd.f32 %v2237, %v2476
        %2478 = vdwg.mxu0
        %vm2479 = vcmask 261120
        %v2480 = vsel %vm2479, %v2474, -inf
        %2481 = vmax.xlane.f32.xlu0 %v2480
        %v2482 = vpop.xlane.xlu0 %2481
        %v2483 = vsel %vm2479, %v2477, -inf
        %2484 = vmax.xlane.f32.xlu0 %v2483
        %v2485 = vpop.xlane.xlu0 %2484
        %v2486 = vsub.f32 %v2474, %v2482
        %v2487 = vsub.f32 %v2477, %v2485
        %v2488 = vmul.f32 %v2486, 1.442695
        %v2489 = vpow.pop %v2488
        %v2490 = vmul.f32 %v2487, 1.442695
        %v2491 = vpow.pop %v2490
        %v2492 = vsel %vm2479, %v2489, 0.0
        %2493 = vadd.xlane.f32.xlu0 %v2492
        %v2494 = vpop.xlane.xlu0 %2493
        %v2495 = vsel %vm2479, %v2491, 0.0
        %2496 = vadd.xlane.f32.xlu0 %v2495
        %v2497 = vpop.xlane.xlu0 %2496
        %v2498 = vld [vmem:[#allocation4] sm:$0xff]
        %v2499 = vld [vmem:[#allocation4 + $0x8] sm:$0xff]
        %v2500 = vld [vmem:[#allocation4 + $0x10] sm:$0xff]
        %v2501 = vld [vmem:[#allocation4 + $0x18] sm:$0xff]
        %v2503 = vsel %vm2479, %v2489, 0
        %v2506 = vsel %vm2479, %v2491, 0
        %2508 = vmatpush.msra.mxu0 0.0
        %2509 = vmatpush.msra.mxu0 0.0
        %2510 = vmatpush.msra.mxu0 0.0
        %2511 = vmatpush.msra.mxu0 0.0
        %2512 = vmatpush.msra.mxu0 0.0
        %2513 = vmatpush.msra.mxu0 0.0
        %2514 = vmatpush.msra.mxu0 0.0
        %2515 = vmatpush.msra.mxu0 0.0
        %2516 = vmatpush.msra.mxu0 0.0
        %2517 = vmatpush.msra.mxu0 0.0
        %2518 = vmatpush.msra.mxu0 0.0
        %2519 = vmatpush.msra.mxu0 0.0
        %2520 = vmatpush.msra.mxu0 %v2501
        %2521 = vmatpush.msra.mxu0 %v2500
        %2522 = vmatpush.msra.mxu0 %v2499
        %2523 = vmatpush.msra.mxu0 %v2498
        %2524 = vmatmul.f32.gmra.mxu0 %v2503
        %v2525 = vpop.f32.mrf.mxu0
        %v2526 = vadd.f32 0.0, %v2525
        %2527 = vmatmul.f32.gmra.mxu0 %v2506
        %v2528 = vpop.f32.mrf.mxu0
        %v2529 = vadd.f32 0.0, %v2528
        %2530 = vdwg.mxu0
        %v2531 = vrcp.pop %v2494
        %v2532 = vrcp.pop %v2497
        %v2533 = vmul.f32 %v2526, %v2531
        %v2534 = vmul.f32 %v2529, %v2532
        %v2535 = vld [vmem:[#allocation21] sm:$0xff]
        %v2536 = vld [vmem:[#allocation21 + $0x8] sm:$0xff]
        %v2537 = vld [vmem:[#allocation21 + $0x10] sm:$0xff]
        %v2538 = vld [vmem:[#allocation21 + $0x18] sm:$0xff]
        %v2539 = vld [vmem:[#allocation21 + $0x20] sm:$0xff]
        %v2540 = vld [vmem:[#allocation21 + $0x28] sm:$0xff]
        %v2541 = vld [vmem:[#allocation21 + $0x30] sm:$0xff]
        %v2542 = vld [vmem:[#allocation21 + $0x38] sm:$0xff]
        %v2543 = vld [vmem:[#allocation21 + $0x40] sm:$0xff]
        %v2544 = vld [vmem:[#allocation21 + $0x48] sm:$0xff]
        %v2545 = vld [vmem:[#allocation21 + $0x50] sm:$0xff]
        %v2546 = vld [vmem:[#allocation21 + $0x58] sm:$0xff]
        %v2547 = vld [vmem:[#allocation21 + $0x60] sm:$0xff]
        %v2548 = vld [vmem:[#allocation21 + $0x68] sm:$0xff]
        %v2549 = vld [vmem:[#allocation21 + $0x70] sm:$0xff]
        %v2550 = vld [vmem:[#allocation21 + $0x78] sm:$0xff]
        %v2551 = vld [vmem:[%s2415] sm:$0xff]
        %v2552 = vld [vmem:[%s2415 + $0x8] sm:$0xff]
        %s2553 = scalar_lea.vmem [#allocation3], 32
        %v2554 = vld [vmem:[%s2553] sm:$0xff]
        %v2555 = vld [vmem:[%s2553 + $0x8] sm:$0xff]
        %v2556 = vld [vmem:[%s2553 + $0x10] sm:$0xff]
        %v2557 = vld [vmem:[%s2553 + $0x18] sm:$0xff]
        %v2559 = vsel %vm2404, %v2551, 0
        %v2562 = vsel %vm2404, %v2552, 0
        %v2565 = vsel %vm2404, %v2554, 0
        %v2568 = vsel %vm2404, %v2555, 0
        %v2571 = vsel %vm2404, %v2556, 0
        %v2574 = vsel %vm2404, %v2557, 0
        %2576 = vmatpush.xpose.msra.mxu0 0.0
        %2577 = vmatpush.xpose.msra.mxu0 0.0
        %2578 = vmatpush.xpose.msra.mxu0 0.0
        %2579 = vmatpush.xpose.msra.mxu0 0.0
        %2580 = vmatpush.xpose.msra.mxu0 0.0
        %2581 = vmatpush.xpose.msra.mxu0 0.0
        %2582 = vmatpush.xpose.msra.mxu0 0.0
        %2583 = vmatpush.xpose.msra.mxu0 0.0
        %2584 = vmatpush.xpose.msra.mxu0 0.0
        %2585 = vmatpush.xpose.msra.mxu0 0.0
        %2586 = vmatpush.xpose.msra.mxu0 0.0
        %2587 = vmatpush.xpose.msra.mxu0 0.0
        %2588 = vmatpush.xpose.msra.mxu0 %v2574
        %2589 = vmatpush.xpose.msra.mxu0 %v2571
        %2590 = vmatpush.xpose.msra.mxu0 %v2568
        %2591 = vmatpush.xpose.msra.mxu0 %v2565
        %2592 = vmatmul.f32.gmra.mxu0 %v2559
        %v2593 = vpop.f32.mrf.mxu0
        %v2594 = vadd.f32 %v2236, %v2593
        %2595 = vmatmul.f32.gmra.mxu0 %v2562
        %v2596 = vpop.f32.mrf.mxu0
        %v2597 = vadd.f32 %v2237, %v2596
        %2598 = vdwg.mxu0
        %v2599 = vsel %vm2479, %v2594, -inf
        %2600 = vmax.xlane.f32.xlu0 %v2599
        %v2601 = vpop.xlane.xlu0 %2600
        %v2602 = vsel %vm2479, %v2597, -inf
        %2603 = vmax.xlane.f32.xlu0 %v2602
        %v2604 = vpop.xlane.xlu0 %2603
        %v2605 = vsub.f32 %v2594, %v2601
        %v2606 = vsub.f32 %v2597, %v2604
        %v2607 = vmul.f32 %v2605, 1.442695
        %v2608 = vpow.pop %v2607
        %v2609 = vmul.f32 %v2606, 1.442695
        %v2610 = vpow.pop %v2609
        %v2611 = vsel %vm2479, %v2608, 0.0
        %2612 = vadd.xlane.f32.xlu0 %v2611
        %v2613 = vpop.xlane.xlu0 %2612
        %v2614 = vsel %vm2479, %v2610, 0.0
        %2615 = vadd.xlane.f32.xlu0 %v2614
        %v2616 = vpop.xlane.xlu0 %2615
        %s2617 = scalar_lea.vmem [#allocation4], 32
        %v2618 = vld [vmem:[%s2617] sm:$0xff]
        %v2619 = vld [vmem:[%s2617 + $0x8] sm:$0xff]
        %v2620 = vld [vmem:[%s2617 + $0x10] sm:$0xff]
        %v2621 = vld [vmem:[%s2617 + $0x18] sm:$0xff]
        %v2623 = vsel %vm2479, %v2608, 0
        %v2626 = vsel %vm2479, %v2610, 0
        %2628 = vmatpush.msra.mxu0 0.0
        %2629 = vmatpush.msra.mxu0 0.0
        %2630 = vmatpush.msra.mxu0 0.0
        %2631 = vmatpush.msra.mxu0 0.0
        %2632 = vmatpush.msra.mxu0 0.0
        %2633 = vmatpush.msra.mxu0 0.0
        %2634 = vmatpush.msra.mxu0 0.0
        %2635 = vmatpush.msra.mxu0 0.0
        %2636 = vmatpush.msra.mxu0 0.0
        %2637 = vmatpush.msra.mxu0 0.0
        %2638 = vmatpush.msra.mxu0 0.0
        %2639 = vmatpush.msra.mxu0 0.0
        %2640 = vmatpush.msra.mxu0 %v2621
        %2641 = vmatpush.msra.mxu0 %v2620
        %2642 = vmatpush.msra.mxu0 %v2619
        %2643 = vmatpush.msra.mxu0 %v2618
        %2644 = vmatmul.f32.gmra.mxu0 %v2623
        %v2645 = vpop.f32.mrf.mxu0
        %v2646 = vadd.f32 0.0, %v2645
        %2647 = vmatmul.f32.gmra.mxu0 %v2626
        %v2648 = vpop.f32.mrf.mxu0
        %v2649 = vadd.f32 0.0, %v2648
        %2650 = vdwg.mxu0
        %v2651 = vrcp.pop %v2613
        %v2652 = vrcp.pop %v2616
        %v2653 = vmul.f32 %v2646, %v2651
        %v2654 = vmul.f32 %v2649, %v2652
        %s2655 = scalar_lea.vmem [#allocation21], 128
        %v2656 = vld [vmem:[%s2655] sm:$0xff]
        %v2657 = vld [vmem:[%s2655 + $0x8] sm:$0xff]
        %v2658 = vld [vmem:[%s2655 + $0x10] sm:$0xff]
        %v2659 = vld [vmem:[%s2655 + $0x18] sm:$0xff]
        %v2660 = vld [vmem:[%s2655 + $0x20] sm:$0xff]
        %v2661 = vld [vmem:[%s2655 + $0x28] sm:$0xff]
        %v2662 = vld [vmem:[%s2655 + $0x30] sm:$0xff]
        %v2663 = vld [vmem:[%s2655 + $0x38] sm:$0xff]
        %v2664 = vld [vmem:[%s2655 + $0x40] sm:$0xff]
        %v2665 = vld [vmem:[%s2655 + $0x48] sm:$0xff]
        %v2666 = vld [vmem:[%s2655 + $0x50] sm:$0xff]
        %v2667 = vld [vmem:[%s2655 + $0x58] sm:$0xff]
        %v2668 = vld [vmem:[%s2655 + $0x60] sm:$0xff]
        %v2669 = vld [vmem:[%s2655 + $0x68] sm:$0xff]
        %v2670 = vld [vmem:[%s2655 + $0x70] sm:$0xff]
        %v2671 = vld [vmem:[%s2655 + $0x78] sm:$0xff]
        %v2673 = vsel %vm2404, %v2653, 0
        %v2676 = vsel %vm2404, %v2654, 0
        %2678 = vmatpush.msra.mxu0 0.0
        %2679 = vmatpush.msra.mxu0 0.0
        %2680 = vmatpush.msra.mxu0 0.0
        %2681 = vmatpush.msra.mxu0 0.0
        %2682 = vmatpush.msra.mxu0 0.0
        %2683 = vmatpush.msra.mxu0 0.0
        %2684 = vmatpush.msra.mxu0 0.0
        %2685 = vmatpush.msra.mxu0 0.0
        %2686 = vmatpush.msra.mxu0 %v2670
        %2687 = vmatpush.msra.mxu0 %v2668
        %2688 = vmatpush.msra.mxu0 %v2666
        %2689 = vmatpush.msra.mxu0 %v2664
        %2690 = vmatpush.msra.mxu0 %v2662
        %2691 = vmatpush.msra.mxu0 %v2660
        %2692 = vmatpush.msra.mxu0 %v2658
        %2693 = vmatpush.msra.mxu0 %v2656
        %2694 = vmatmul.f32.gmra.mxu0 %v2673
        %v2695 = vpop.f32.mrf.mxu0
        %v2696 = vadd.f32 0.0, %v2695
        %2697 = vmatmul.f32.gmra.mxu0 %v2676
        %v2698 = vpop.f32.mrf.mxu0
        %v2699 = vadd.f32 0.0, %v2698
        %2700 = vdwg.mxu0
        %2701 = vmatpush.msra.mxu0 0.0
        %2702 = vmatpush.msra.mxu0 0.0
        %2703 = vmatpush.msra.mxu0 0.0
        %2704 = vmatpush.msra.mxu0 0.0
        %2705 = vmatpush.msra.mxu0 0.0
        %2706 = vmatpush.msra.mxu0 0.0
        %2707 = vmatpush.msra.mxu0 0.0
        %2708 = vmatpush.msra.mxu0 0.0
        %2709 = vmatpush.msra.mxu0 %v2671
        %2710 = vmatpush.msra.mxu0 %v2669
        %2711 = vmatpush.msra.mxu0 %v2667
        %2712 = vmatpush.msra.mxu0 %v2665
        %2713 = vmatpush.msra.mxu0 %v2663
        %2714 = vmatpush.msra.mxu0 %v2661
        %2715 = vmatpush.msra.mxu0 %v2659
        %2716 = vmatpush.msra.mxu0 %v2657
        %2717 = vmatmul.f32.gmra.mxu0 %v2673
        %v2718 = vpop.f32.mrf.mxu0
        %v2719 = vadd.f32 0.0, %v2718
        %2720 = vmatmul.f32.gmra.mxu0 %v2676
        %v2721 = vpop.f32.mrf.mxu0
        %v2722 = vadd.f32 0.0, %v2721
        %2723 = vdwg.mxu0
        %v2725 = vsel %vm2404, %v2533, 0
        %v2728 = vsel %vm2404, %v2534, 0
        %2730 = vmatpush.msra.mxu0 0.0
        %2731 = vmatpush.msra.mxu0 0.0
        %2732 = vmatpush.msra.mxu0 0.0
        %2733 = vmatpush.msra.mxu0 0.0
        %2734 = vmatpush.msra.mxu0 0.0
        %2735 = vmatpush.msra.mxu0 0.0
        %2736 = vmatpush.msra.mxu0 0.0
        %2737 = vmatpush.msra.mxu0 0.0
        %2738 = vmatpush.msra.mxu0 %v2549
        %2739 = vmatpush.msra.mxu0 %v2547
        %2740 = vmatpush.msra.mxu0 %v2545
        %2741 = vmatpush.msra.mxu0 %v2543
        %2742 = vmatpush.msra.mxu0 %v2541
        %2743 = vmatpush.msra.mxu0 %v2539
        %2744 = vmatpush.msra.mxu0 %v2537
        %2745 = vmatpush.msra.mxu0 %v2535
        %2746 = vmatmul.f32.gmra.mxu0 %v2725
        %v2747 = vpop.f32.mrf.mxu0
        %v2748 = vadd.f32 %v2696, %v2747
        %2749 = vmatmul.f32.gmra.mxu0 %v2728
        %v2750 = vpop.f32.mrf.mxu0
        %v2751 = vadd.f32 %v2699, %v2750
        %2752 = vdwg.mxu0
        %2753 = vmatpush.msra.mxu0 0.0
        %2754 = vmatpush.msra.mxu0 0.0
        %2755 = vmatpush.msra.mxu0 0.0
        %2756 = vmatpush.msra.mxu0 0.0
        %2757 = vmatpush.msra.mxu0 0.0
        %2758 = vmatpush.msra.mxu0 0.0
        %2759 = vmatpush.msra.mxu0 0.0
        %2760 = vmatpush.msra.mxu0 0.0
        %2761 = vmatpush.msra.mxu0 %v2550
        %2762 = vmatpush.msra.mxu0 %v2548
        %2763 = vmatpush.msra.mxu0 %v2546
        %2764 = vmatpush.msra.mxu0 %v2544
        %2765 = vmatpush.msra.mxu0 %v2542
        %2766 = vmatpush.msra.mxu0 %v2540
        %2767 = vmatpush.msra.mxu0 %v2538
        %2768 = vmatpush.msra.mxu0 %v2536
        %2769 = vmatmul.f32.gmra.mxu0 %v2725
        %v2770 = vpop.f32.mrf.mxu0
        %v2771 = vadd.f32 %v2719, %v2770
        %2772 = vmatmul.f32.gmra.mxu0 %v2728
        %v2773 = vpop.f32.mrf.mxu0
        %v2774 = vadd.f32 %v2722, %v2773
        %2775 = vdwg.mxu0
        %v2776 = vld [vmem:[%s2418] sm:$0xff]
        %v2777 = vld [vmem:[%s2418 + $0x8] sm:$0xff]
        %s2778 = scalar_lea.vmem [#allocation3], 64
        %v2779 = vld [vmem:[%s2778] sm:$0xff]
        %v2780 = vld [vmem:[%s2778 + $0x8] sm:$0xff]
        %v2781 = vld [vmem:[%s2778 + $0x10] sm:$0xff]
        %v2782 = vld [vmem:[%s2778 + $0x18] sm:$0xff]
        %v2784 = vsel %vm2404, %v2776, 0
        %v2787 = vsel %vm2404, %v2777, 0
        %v2790 = vsel %vm2404, %v2779, 0
        %v2793 = vsel %vm2404, %v2780, 0
        %v2796 = vsel %vm2404, %v2781, 0
        %v2799 = vsel %vm2404, %v2782, 0
        %2801 = vmatpush.xpose.msra.mxu0 0.0
        %2802 = vmatpush.xpose.msra.mxu0 0.0
        %2803 = vmatpush.xpose.msra.mxu0 0.0
        %2804 = vmatpush.xpose.msra.mxu0 0.0
        %2805 = vmatpush.xpose.msra.mxu0 0.0
        %2806 = vmatpush.xpose.msra.mxu0 0.0
        %2807 = vmatpush.xpose.msra.mxu0 0.0
        %2808 = vmatpush.xpose.msra.mxu0 0.0
        %2809 = vmatpush.xpose.msra.mxu0 0.0
        %2810 = vmatpush.xpose.msra.mxu0 0.0
        %2811 = vmatpush.xpose.msra.mxu0 0.0
        %2812 = vmatpush.xpose.msra.mxu0 0.0
        %2813 = vmatpush.xpose.msra.mxu0 %v2799
        %2814 = vmatpush.xpose.msra.mxu0 %v2796
        %2815 = vmatpush.xpose.msra.mxu0 %v2793
        %2816 = vmatpush.xpose.msra.mxu0 %v2790
        %2817 = vmatmul.f32.gmra.mxu0 %v2784
        %v2818 = vpop.f32.mrf.mxu0
        %v2819 = vadd.f32 %v2236, %v2818
        %2820 = vmatmul.f32.gmra.mxu0 %v2787
        %v2821 = vpop.f32.mrf.mxu0
        %v2822 = vadd.f32 %v2237, %v2821
        %2823 = vdwg.mxu0
        %v2824 = vsel %vm2479, %v2819, -inf
        %2825 = vmax.xlane.f32.xlu0 %v2824
        %v2826 = vpop.xlane.xlu0 %2825
        %v2827 = vsel %vm2479, %v2822, -inf
        %2828 = vmax.xlane.f32.xlu0 %v2827
        %v2829 = vpop.xlane.xlu0 %2828
        %v2830 = vsub.f32 %v2819, %v2826
        %v2831 = vsub.f32 %v2822, %v2829
        %v2832 = vmul.f32 %v2830, 1.442695
        %v2833 = vpow.pop %v2832
        %v2834 = vmul.f32 %v2831, 1.442695
        %v2835 = vpow.pop %v2834
        %v2836 = vsel %vm2479, %v2833, 0.0
        %2837 = vadd.xlane.f32.xlu0 %v2836
        %v2838 = vpop.xlane.xlu0 %2837
        %v2839 = vsel %vm2479, %v2835, 0.0
        %2840 = vadd.xlane.f32.xlu0 %v2839
        %v2841 = vpop.xlane.xlu0 %2840
        %s2842 = scalar_lea.vmem [#allocation4], 64
        %v2843 = vld [vmem:[%s2842] sm:$0xff]
        %v2844 = vld [vmem:[%s2842 + $0x8] sm:$0xff]
        %v2845 = vld [vmem:[%s2842 + $0x10] sm:$0xff]
        %v2846 = vld [vmem:[%s2842 + $0x18] sm:$0xff]
        %v2848 = vsel %vm2479, %v2833, 0
        %v2851 = vsel %vm2479, %v2835, 0
        %2853 = vmatpush.msra.mxu0 0.0
        %2854 = vmatpush.msra.mxu0 0.0
        %2855 = vmatpush.msra.mxu0 0.0
        %2856 = vmatpush.msra.mxu0 0.0
        %2857 = vmatpush.msra.mxu0 0.0
        %2858 = vmatpush.msra.mxu0 0.0
        %2859 = vmatpush.msra.mxu0 0.0
        %2860 = vmatpush.msra.mxu0 0.0
        %2861 = vmatpush.msra.mxu0 0.0
        %2862 = vmatpush.msra.mxu0 0.0
        %2863 = vmatpush.msra.mxu0 0.0
        %2864 = vmatpush.msra.mxu0 0.0
        %2865 = vmatpush.msra.mxu0 %v2846
        %2866 = vmatpush.msra.mxu0 %v2845
        %2867 = vmatpush.msra.mxu0 %v2844
        %2868 = vmatpush.msra.mxu0 %v2843
        %2869 = vmatmul.f32.gmra.mxu0 %v2848
        %v2870 = vpop.f32.mrf.mxu0
        %v2871 = vadd.f32 0.0, %v2870
        %2872 = vmatmul.f32.gmra.mxu0 %v2851
        %v2873 = vpop.f32.mrf.mxu0
        %v2874 = vadd.f32 0.0, %v2873
        %2875 = vdwg.mxu0
        %v2876 = vrcp.pop %v2838
        %v2877 = vrcp.pop %v2841
        %v2878 = vmul.f32 %v2871, %v2876
        %v2879 = vmul.f32 %v2874, %v2877
        %s2880 = scalar_lea.vmem [#allocation21], 256
        %v2881 = vld [vmem:[%s2880] sm:$0xff]
        %v2882 = vld [vmem:[%s2880 + $0x8] sm:$0xff]
        %v2883 = vld [vmem:[%s2880 + $0x10] sm:$0xff]
        %v2884 = vld [vmem:[%s2880 + $0x18] sm:$0xff]
        %v2885 = vld [vmem:[%s2880 + $0x20] sm:$0xff]
        %v2886 = vld [vmem:[%s2880 + $0x28] sm:$0xff]
        %v2887 = vld [vmem:[%s2880 + $0x30] sm:$0xff]
        %v2888 = vld [vmem:[%s2880 + $0x38] sm:$0xff]
        %v2889 = vld [vmem:[%s2880 + $0x40] sm:$0xff]
        %v2890 = vld [vmem:[%s2880 + $0x48] sm:$0xff]
        %v2891 = vld [vmem:[%s2880 + $0x50] sm:$0xff]
        %v2892 = vld [vmem:[%s2880 + $0x58] sm:$0xff]
        %v2893 = vld [vmem:[%s2880 + $0x60] sm:$0xff]
        %v2894 = vld [vmem:[%s2880 + $0x68] sm:$0xff]
        %v2895 = vld [vmem:[%s2880 + $0x70] sm:$0xff]
        %v2896 = vld [vmem:[%s2880 + $0x78] sm:$0xff]
        %v2898 = vsel %vm2404, %v2878, 0
        %v2901 = vsel %vm2404, %v2879, 0
        %2903 = vmatpush.msra.mxu0 0.0
        %2904 = vmatpush.msra.mxu0 0.0
        %2905 = vmatpush.msra.mxu0 0.0
        %2906 = vmatpush.msra.mxu0 0.0
        %2907 = vmatpush.msra.mxu0 0.0
        %2908 = vmatpush.msra.mxu0 0.0
        %2909 = vmatpush.msra.mxu0 0.0
        %2910 = vmatpush.msra.mxu0 0.0
        %2911 = vmatpush.msra.mxu0 %v2895
        %2912 = vmatpush.msra.mxu0 %v2893
        %2913 = vmatpush.msra.mxu0 %v2891
        %2914 = vmatpush.msra.mxu0 %v2889
        %2915 = vmatpush.msra.mxu0 %v2887
        %2916 = vmatpush.msra.mxu0 %v2885
        %2917 = vmatpush.msra.mxu0 %v2883
        %2918 = vmatpush.msra.mxu0 %v2881
        %2919 = vmatmul.f32.gmra.mxu0 %v2898
        %v2920 = vpop.f32.mrf.mxu0
        %v2921 = vadd.f32 0.0, %v2920
        %2922 = vmatmul.f32.gmra.mxu0 %v2901
        %v2923 = vpop.f32.mrf.mxu0
        %v2924 = vadd.f32 0.0, %v2923
        %2925 = vdwg.mxu0
        %2926 = vmatpush.msra.mxu0 0.0
        %2927 = vmatpush.msra.mxu0 0.0
        %2928 = vmatpush.msra.mxu0 0.0
        %2929 = vmatpush.msra.mxu0 0.0
        %2930 = vmatpush.msra.mxu0 0.0
        %2931 = vmatpush.msra.mxu0 0.0
        %2932 = vmatpush.msra.mxu0 0.0
        %2933 = vmatpush.msra.mxu0 0.0
        %2934 = vmatpush.msra.mxu0 %v2896
        %2935 = vmatpush.msra.mxu0 %v2894
        %2936 = vmatpush.msra.mxu0 %v2892
        %2937 = vmatpush.msra.mxu0 %v2890
        %2938 = vmatpush.msra.mxu0 %v2888
        %2939 = vmatpush.msra.mxu0 %v2886
        %2940 = vmatpush.msra.mxu0 %v2884
        %2941 = vmatpush.msra.mxu0 %v2882
        %2942 = vmatmul.f32.gmra.mxu0 %v2898
        %v2943 = vpop.f32.mrf.mxu0
        %v2944 = vadd.f32 0.0, %v2943
        %2945 = vmatmul.f32.gmra.mxu0 %v2901
        %v2946 = vpop.f32.mrf.mxu0
        %v2947 = vadd.f32 0.0, %v2946
        %2948 = vdwg.mxu0
        %v2949 = vadd.f32 %v2748, %v2921
        %v2950 = vadd.f32 %v2771, %v2944
        %v2951 = vadd.f32 %v2751, %v2924
        %v2952 = vadd.f32 %v2774, %v2947
        %v2953 = vld [vmem:[%s2429] sm:$0xff]
        %v2954 = vld [vmem:[%s2429 + $0x8] sm:$0xff]
        %s2955 = scalar_lea.vmem [#allocation3], 96
        %v2956 = vld [vmem:[%s2955] sm:$0xff]
        %v2957 = vld [vmem:[%s2955 + $0x8] sm:$0xff]
        %v2958 = vld [vmem:[%s2955 + $0x10] sm:$0xff]
        %v2959 = vld [vmem:[%s2955 + $0x18] sm:$0xff]
        %v2961 = vsel %vm2404, %v2953, 0
        %v2964 = vsel %vm2404, %v2954, 0
        %v2967 = vsel %vm2404, %v2956, 0
        %v2970 = vsel %vm2404, %v2957, 0
        %v2973 = vsel %vm2404, %v2958, 0
        %v2976 = vsel %vm2404, %v2959, 0
        %2978 = vmatpush.xpose.msra.mxu0 0.0
        %2979 = vmatpush.xpose.msra.mxu0 0.0
        %2980 = vmatpush.xpose.msra.mxu0 0.0
        %2981 = vmatpush.xpose.msra.mxu0 0.0
        %2982 = vmatpush.xpose.msra.mxu0 0.0
        %2983 = vmatpush.xpose.msra.mxu0 0.0
        %2984 = vmatpush.xpose.msra.mxu0 0.0
        %2985 = vmatpush.xpose.msra.mxu0 0.0
        %2986 = vmatpush.xpose.msra.mxu0 0.0
        %2987 = vmatpush.xpose.msra.mxu0 0.0
        %2988 = vmatpush.xpose.msra.mxu0 0.0
        %2989 = vmatpush.xpose.msra.mxu0 0.0
        %2990 = vmatpush.xpose.msra.mxu0 %v2976
        %2991 = vmatpush.xpose.msra.mxu0 %v2973
        %2992 = vmatpush.xpose.msra.mxu0 %v2970
        %2993 = vmatpush.xpose.msra.mxu0 %v2967
        %2994 = vmatmul.f32.gmra.mxu0 %v2961
        %v2995 = vpop.f32.mrf.mxu0
        %v2996 = vadd.f32 %v2236, %v2995
        %2997 = vmatmul.f32.gmra.mxu0 %v2964
        %v2998 = vpop.f32.mrf.mxu0
        %v2999 = vadd.f32 %v2237, %v2998
        %3000 = vdwg.mxu0
        %v3001 = vsel %vm2479, %v2996, -inf
        %3002 = vmax.xlane.f32.xlu0 %v3001
        %v3003 = vpop.xlane.xlu0 %3002
        %v3004 = vsel %vm2479, %v2999, -inf
        %3005 = vmax.xlane.f32.xlu0 %v3004
        %v3006 = vpop.xlane.xlu0 %3005
        %v3007 = vsub.f32 %v2996, %v3003
        %v3008 = vsub.f32 %v2999, %v3006
        %v3009 = vmul.f32 %v3007, 1.442695
        %v3010 = vpow.pop %v3009
        %v3011 = vmul.f32 %v3008, 1.442695
        %v3012 = vpow.pop %v3011
        %v3013 = vsel %vm2479, %v3010, 0.0
        %3014 = vadd.xlane.f32.xlu0 %v3013
        %v3015 = vpop.xlane.xlu0 %3014
        %v3016 = vsel %vm2479, %v3012, 0.0
        %3017 = vadd.xlane.f32.xlu0 %v3016
        %v3018 = vpop.xlane.xlu0 %3017
        %s3019 = scalar_lea.vmem [#allocation4], 96
        %v3020 = vld [vmem:[%s3019] sm:$0xff]
        %v3021 = vld [vmem:[%s3019 + $0x8] sm:$0xff]
        %v3022 = vld [vmem:[%s3019 + $0x10] sm:$0xff]
        %v3023 = vld [vmem:[%s3019 + $0x18] sm:$0xff]
        %v3025 = vsel %vm2479, %v3010, 0
        %v3028 = vsel %vm2479, %v3012, 0
        %3030 = vmatpush.msra.mxu0 0.0
        %3031 = vmatpush.msra.mxu0 0.0
        %3032 = vmatpush.msra.mxu0 0.0
        %3033 = vmatpush.msra.mxu0 0.0
        %3034 = vmatpush.msra.mxu0 0.0
        %3035 = vmatpush.msra.mxu0 0.0
        %3036 = vmatpush.msra.mxu0 0.0
        %3037 = vmatpush.msra.mxu0 0.0
        %3038 = vmatpush.msra.mxu0 0.0
        %3039 = vmatpush.msra.mxu0 0.0
        %3040 = vmatpush.msra.mxu0 0.0
        %3041 = vmatpush.msra.mxu0 0.0
        %3042 = vmatpush.msra.mxu0 %v3023
        %3043 = vmatpush.msra.mxu0 %v3022
        %3044 = vmatpush.msra.mxu0 %v3021
        %3045 = vmatpush.msra.mxu0 %v3020
        %3046 = vmatmul.f32.gmra.mxu0 %v3025
        %v3047 = vpop.f32.mrf.mxu0
        %v3048 = vadd.f32 0.0, %v3047
        %3049 = vmatmul.f32.gmra.mxu0 %v3028
        %v3050 = vpop.f32.mrf.mxu0
        %v3051 = vadd.f32 0.0, %v3050
        %3052 = vdwg.mxu0
        %v3053 = vrcp.pop %v3015
        %v3054 = vrcp.pop %v3018
        %v3055 = vmul.f32 %v3048, %v3053
        %v3056 = vmul.f32 %v3051, %v3054
        %s3057 = scalar_lea.vmem [#allocation21], 384
        %v3058 = vld [vmem:[%s3057] sm:$0xff]
        %v3059 = vld [vmem:[%s3057 + $0x8] sm:$0xff]
        %v3060 = vld [vmem:[%s3057 + $0x10] sm:$0xff]
        %v3061 = vld [vmem:[%s3057 + $0x18] sm:$0xff]
        %v3062 = vld [vmem:[%s3057 + $0x20] sm:$0xff]
        %v3063 = vld [vmem:[%s3057 + $0x28] sm:$0xff]
        %v3064 = vld [vmem:[%s3057 + $0x30] sm:$0xff]
        %v3065 = vld [vmem:[%s3057 + $0x38] sm:$0xff]
        %v3066 = vld [vmem:[%s3057 + $0x40] sm:$0xff]
        %v3067 = vld [vmem:[%s3057 + $0x48] sm:$0xff]
        %v3068 = vld [vmem:[%s3057 + $0x50] sm:$0xff]
        %v3069 = vld [vmem:[%s3057 + $0x58] sm:$0xff]
        %v3070 = vld [vmem:[%s3057 + $0x60] sm:$0xff]
        %v3071 = vld [vmem:[%s3057 + $0x68] sm:$0xff]
        %v3072 = vld [vmem:[%s3057 + $0x70] sm:$0xff]
        %v3073 = vld [vmem:[%s3057 + $0x78] sm:$0xff]
        %v3075 = vsel %vm2404, %v3055, 0
        %v3078 = vsel %vm2404, %v3056, 0
        %3080 = vmatpush.msra.mxu0 0.0
        %3081 = vmatpush.msra.mxu0 0.0
        %3082 = vmatpush.msra.mxu0 0.0
        %3083 = vmatpush.msra.mxu0 0.0
        %3084 = vmatpush.msra.mxu0 0.0
        %3085 = vmatpush.msra.mxu0 0.0
        %3086 = vmatpush.msra.mxu0 0.0
        %3087 = vmatpush.msra.mxu0 0.0
        %3088 = vmatpush.msra.mxu0 %v3072
        %3089 = vmatpush.msra.mxu0 %v3070
        %3090 = vmatpush.msra.mxu0 %v3068
        %3091 = vmatpush.msra.mxu0 %v3066
        %3092 = vmatpush.msra.mxu0 %v3064
        %3093 = vmatpush.msra.mxu0 %v3062
        %3094 = vmatpush.msra.mxu0 %v3060
        %3095 = vmatpush.msra.mxu0 %v3058
        %3096 = vmatmul.f32.gmra.mxu0 %v3075
        %v3097 = vpop.f32.mrf.mxu0
        %v3098 = vadd.f32 0.0, %v3097
        %3099 = vmatmul.f32.gmra.mxu0 %v3078
        %v3100 = vpop.f32.mrf.mxu0
        %v3101 = vadd.f32 0.0, %v3100
        %3102 = vdwg.mxu0
        %3103 = vmatpush.msra.mxu0 0.0
        %3104 = vmatpush.msra.mxu0 0.0
        %3105 = vmatpush.msra.mxu0 0.0
        %3106 = vmatpush.msra.mxu0 0.0
        %3107 = vmatpush.msra.mxu0 0.0
        %3108 = vmatpush.msra.mxu0 0.0
        %3109 = vmatpush.msra.mxu0 0.0
        %3110 = vmatpush.msra.mxu0 0.0
        %3111 = vmatpush.msra.mxu0 %v3073
        %3112 = vmatpush.msra.mxu0 %v3071
        %3113 = vmatpush.msra.mxu0 %v3069
        %3114 = vmatpush.msra.mxu0 %v3067
        %3115 = vmatpush.msra.mxu0 %v3065
        %3116 = vmatpush.msra.mxu0 %v3063
        %3117 = vmatpush.msra.mxu0 %v3061
        %3118 = vmatpush.msra.mxu0 %v3059
        %3119 = vmatmul.f32.gmra.mxu0 %v3075
        %v3120 = vpop.f32.mrf.mxu0
        %v3121 = vadd.f32 0.0, %v3120
        %3122 = vmatmul.f32.gmra.mxu0 %v3078
        %v3123 = vpop.f32.mrf.mxu0
        %v3124 = vadd.f32 0.0, %v3123
        %3125 = vdwg.mxu0
        %v3126 = vadd.f32 %v2949, %v3098
        %v3127 = vadd.f32 %v2950, %v3121
        %v3128 = vadd.f32 %v2951, %v3101
        %v3129 = vadd.f32 %v2952, %v3124
        %v3130 = vld [vmem:[%s21] sm:$0x3]
        %v3132 = vperm.slane %v3130, 0
        %v3133 = vperm.slane %v3130, 1
        %v3136 = vadd.f32 %v3126, %v3132
        %v3137 = vadd.f32 %v3127, %v3133
        %v3138 = vadd.f32 %v3128, %v3132
        %v3139 = vadd.f32 %v3129, %v3133
        %v3140 = vadd.f32 %v3136, %v2222
        %v3141 = vadd.f32 %v3137, %v2223
        %v3142 = vadd.f32 %v3138, %v2224
        %v3143 = vadd.f32 %v3139, %v2225
        %v3144 = vadd.f32 %v3140, %v3141
        %3145 = vadd.xlane.f32.xlu0 %v3144
        %v3146 = vpop.xlane.xlu0 %3145
        %v3147 = vadd.f32 %v3142, %v3143
        %3148 = vadd.xlane.f32.xlu0 %v3147
        %v3149 = vpop.xlane.xlu0 %3148
        %v3150 = vrcp.pop 256.0
        %v3151 = vmul.f32 256.0, %v3150
        %v3152 = vsub.f32 1.0, %v3151
        %v3153 = vmul.f32 %v3150, %v3152
        %v3154 = vadd.f32 %v3150, %v3153
        %vm3155 = vweird.f32 %v3150
        %v3156 = vsel %vm3155, %v3150, %v3154
        %v3157 = vmul.f32 %v3146, %v3156
        %v3158 = vmul.f32 %v3149, %v3156
        %v3159 = vsub.f32 %v3140, %v3157
        %v3160 = vsub.f32 %v3141, %v3157
        %v3161 = vsub.f32 %v3142, %v3158
        %v3162 = vsub.f32 %v3143, %v3158
        %v3163 = vmul.f32 %v3159, %v3159
        %v3164 = vmul.f32 %v3160, %v3160
        %v3165 = vmul.f32 %v3161, %v3161
        %v3166 = vmul.f32 %v3162, %v3162
        %v3167 = vadd.f32 %v3163, %v3164
        %3168 = vadd.xlane.f32.xlu0 %v3167
        %v3169 = vpop.xlane.xlu0 %3168
        %v3170 = vadd.f32 %v3165, %v3166
        %3171 = vadd.xlane.f32.xlu0 %v3170
        %v3172 = vpop.xlane.xlu0 %3171
        %v3173 = vmul.f32 %v3169, %v3156
        %v3174 = vmul.f32 %v3172, %v3156
        %v3175 = vadd.f32 %v3173, 1e-12
        %v3176 = vadd.f32 %v3174, 1e-12
        %v3177 = vrsqrt.pop %v3175
        %v3178 = vmul.f32 %v3177, %v3175
        %v3179 = vmul.f32 %v3178, %v3177
        %v3180 = vmul.f32 0.5, %v3179
        %v3181 = vsub.f32 1.5, %v3180
        %v3182 = vmul.f32 %v3177, %v3181
        %vm3183 = vweird.f32 %v3175
        %vm3184 = vweird.f32 %v3177
        %vm3185 = vmor %vm3183, %vm3184
        %v3186 = vsel %vm3185, %v3177, %v3182
        %v3187 = vrsqrt.pop %v3176
        %v3188 = vmul.f32 %v3187, %v3176
        %v3189 = vmul.f32 %v3188, %v3187
        %v3190 = vmul.f32 0.5, %v3189
        %v3191 = vsub.f32 1.5, %v3190
        %v3192 = vmul.f32 %v3187, %v3191
        %vm3193 = vweird.f32 %v3176
        %vm3194 = vweird.f32 %v3187
        %vm3195 = vmor %vm3193, %vm3194
        %v3196 = vsel %vm3195, %v3187, %v3192
        %v3197 = vmul.f32 %v3159, %v3186
        %v3198 = vmul.f32 %v3160, %v3186
        %v3199 = vmul.f32 %v3161, %v3196
        %v3200 = vmul.f32 %v3162, %v3196
        %v3201 = vld [vmem:[%s23] sm:$0x3]
        %v3203 = vperm.slane %v3201, 0
        %v3204 = vperm.slane %v3201, 1
        %v3207 = vmul.f32 %v3197, %v3203
        %v3208 = vmul.f32 %v3198, %v3204
        %v3209 = vmul.f32 %v3199, %v3203
        %v3210 = vmul.f32 %v3200, %v3204
        %v3211 = vld [vmem:[#allocation22] sm:$0x3]
        %v3213 = vperm.slane %v3211, 0
        %v3214 = vperm.slane %v3211, 1
        %v3217 = vadd.f32 %v3207, %v3213
        %v3218 = vadd.f32 %v3208, %v3214
        %v3219 = vadd.f32 %v3209, %v3213
        %v3220 = vadd.f32 %v3210, %v3214
        %v3221 = vld [vmem:[#allocation24] sm:$0xff]
        %v3222 = vld [vmem:[#allocation24 + $0x8] sm:$0xff]
        %v3223 = vld [vmem:[#allocation24 + $0x10] sm:$0xff]
        %v3224 = vld [vmem:[#allocation24 + $0x18] sm:$0xff]
        %v3225 = vld [vmem:[#allocation24 + $0x20] sm:$0xff]
        %v3226 = vld [vmem:[#allocation24 + $0x28] sm:$0xff]
        %v3227 = vld [vmem:[#allocation24 + $0x30] sm:$0xff]
        %v3228 = vld [vmem:[#allocation24 + $0x38] sm:$0xff]
        %v3229 = vld [vmem:[#allocation24 + $0x40] sm:$0xff]
        %v3230 = vld [vmem:[#allocation24 + $0x48] sm:$0xff]
        %v3231 = vld [vmem:[#allocation24 + $0x50] sm:$0xff]
        %v3232 = vld [vmem:[#allocation24 + $0x58] sm:$0xff]
        %v3233 = vld [vmem:[#allocation24 + $0x60] sm:$0xff]
        %v3234 = vld [vmem:[#allocation24 + $0x68] sm:$0xff]
        %v3235 = vld [vmem:[#allocation24 + $0x70] sm:$0xff]
        %v3236 = vld [vmem:[#allocation24 + $0x78] sm:$0xff]
        %v3237 = vld [vmem:[#allocation24 + $0x80] sm:$0xff]
        %v3238 = vld [vmem:[#allocation24 + $0x88] sm:$0xff]
        %v3239 = vld [vmem:[#allocation24 + $0x90] sm:$0xff]
        %v3240 = vld [vmem:[#allocation24 + $0x98] sm:$0xff]
        %v3241 = vld [vmem:[#allocation24 + $0xa0] sm:$0xff]
        %v3242 = vld [vmem:[#allocation24 + $0xa8] sm:$0xff]
        %v3243 = vld [vmem:[#allocation24 + $0xb0] sm:$0xff]
        %v3244 = vld [vmem:[#allocation24 + $0xb8] sm:$0xff]
        %v3245 = vld [vmem:[#allocation24 + $0xc0] sm:$0xff]
        %v3246 = vld [vmem:[#allocation24 + $0xc8] sm:$0xff]
        %v3247 = vld [vmem:[#allocation24 + $0xd0] sm:$0xff]
        %v3248 = vld [vmem:[#allocation24 + $0xd8] sm:$0xff]
        %v3249 = vld [vmem:[#allocation24 + $0xe0] sm:$0xff]
        %v3250 = vld [vmem:[#allocation24 + $0xe8] sm:$0xff]
        %v3251 = vld [vmem:[#allocation24 + $0xf0] sm:$0xff]
        %v3252 = vld [vmem:[#allocation24 + $0xf8] sm:$0xff]
        %v3253 = vld [vmem:[#allocation24 + $0x100] sm:$0xff]
        %v3254 = vld [vmem:[#allocation24 + $0x108] sm:$0xff]
        %v3255 = vld [vmem:[#allocation24 + $0x110] sm:$0xff]
        %v3256 = vld [vmem:[#allocation24 + $0x118] sm:$0xff]
        %v3257 = vld [vmem:[#allocation24 + $0x120] sm:$0xff]
        %v3258 = vld [vmem:[#allocation24 + $0x128] sm:$0xff]
        %v3259 = vld [vmem:[#allocation24 + $0x130] sm:$0xff]
        %v3260 = vld [vmem:[#allocation24 + $0x138] sm:$0xff]
        %v3261 = vld [vmem:[#allocation24 + $0x140] sm:$0xff]
        %v3262 = vld [vmem:[#allocation24 + $0x148] sm:$0xff]
        %v3263 = vld [vmem:[#allocation24 + $0x150] sm:$0xff]
        %v3264 = vld [vmem:[#allocation24 + $0x158] sm:$0xff]
        %v3265 = vld [vmem:[#allocation24 + $0x160] sm:$0xff]
        %v3266 = vld [vmem:[#allocation24 + $0x168] sm:$0xff]
        %v3267 = vld [vmem:[#allocation24 + $0x170] sm:$0xff]
        %v3268 = vld [vmem:[#allocation24 + $0x178] sm:$0xff]
        %v3269 = vld [vmem:[#allocation24 + $0x180] sm:$0xff]
        %v3270 = vld [vmem:[#allocation24 + $0x188] sm:$0xff]
        %v3271 = vld [vmem:[#allocation24 + $0x190] sm:$0xff]
        %v3272 = vld [vmem:[#allocation24 + $0x198] sm:$0xff]
        %v3273 = vld [vmem:[#allocation24 + $0x1a0] sm:$0xff]
        %v3274 = vld [vmem:[#allocation24 + $0x1a8] sm:$0xff]
        %v3275 = vld [vmem:[#allocation24 + $0x1b0] sm:$0xff]
        %v3276 = vld [vmem:[#allocation24 + $0x1b8] sm:$0xff]
        %v3277 = vld [vmem:[#allocation24 + $0x1c0] sm:$0xff]
        %v3278 = vld [vmem:[#allocation24 + $0x1c8] sm:$0xff]
        %v3279 = vld [vmem:[#allocation24 + $0x1d0] sm:$0xff]
        %v3280 = vld [vmem:[#allocation24 + $0x1d8] sm:$0xff]
        %v3281 = vld [vmem:[#allocation24 + $0x1e0] sm:$0xff]
        %v3282 = vld [vmem:[#allocation24 + $0x1e8] sm:$0xff]
        %v3283 = vld [vmem:[#allocation24 + $0x1f0] sm:$0xff]
        %v3284 = vld [vmem:[#allocation24 + $0x1f8] sm:$0xff]
        %v3285 = vld [vmem:[%s29] sm:$0x3]
        %v3287 = vperm.slane %v3285, 0
        %v3288 = vperm.slane %v3285, 1
        %3291 = vmatpush.msra.mxu0 %v3251
        %3292 = vmatpush.msra.mxu0 %v3249
        %3293 = vmatpush.msra.mxu0 %v3247
        %3294 = vmatpush.msra.mxu0 %v3245
        %3295 = vmatpush.msra.mxu0 %v3243
        %3296 = vmatpush.msra.mxu0 %v3241
        %3297 = vmatpush.msra.mxu0 %v3239
        %3298 = vmatpush.msra.mxu0 %v3237
        %3299 = vmatpush.msra.mxu0 %v3235
        %3300 = vmatpush.msra.mxu0 %v3233
        %3301 = vmatpush.msra.mxu0 %v3231
        %3302 = vmatpush.msra.mxu0 %v3229
        %3303 = vmatpush.msra.mxu0 %v3227
        %3304 = vmatpush.msra.mxu0 %v3225
        %3305 = vmatpush.msra.mxu0 %v3223
        %3306 = vmatpush.msra.mxu0 %v3221
        %3307 = vmatmul.f32.gmra.mxu0 %v3217
        %v3308 = vpop.f32.mrf.mxu0
        %v3309 = vadd.f32 %v3287, %v3308
        %3310 = vmatmul.f32.gmra.mxu0 %v3219
        %v3311 = vpop.f32.mrf.mxu0
        %v3312 = vadd.f32 %v3287, %v3311
        %3313 = vdwg.mxu0
        %3314 = vmatpush.msra.mxu0 %v3283
        %3315 = vmatpush.msra.mxu0 %v3281
        %3316 = vmatpush.msra.mxu0 %v3279
        %3317 = vmatpush.msra.mxu0 %v3277
        %3318 = vmatpush.msra.mxu0 %v3275
        %3319 = vmatpush.msra.mxu0 %v3273
        %3320 = vmatpush.msra.mxu0 %v3271
        %3321 = vmatpush.msra.mxu0 %v3269
        %3322 = vmatpush.msra.mxu0 %v3267
        %3323 = vmatpush.msra.mxu0 %v3265
        %3324 = vmatpush.msra.mxu0 %v3263
        %3325 = vmatpush.msra.mxu0 %v3261
        %3326 = vmatpush.msra.mxu0 %v3259
        %3327 = vmatpush.msra.mxu0 %v3257
        %3328 = vmatpush.msra.mxu0 %v3255
        %3329 = vmatpush.msra.mxu0 %v3253
        %3330 = vmatmul.f32.gmra.mxu0 %v3218
        %v3331 = vpop.f32.mrf.mxu0
        %v3332 = vadd.f32 %v3309, %v3331
        %3333 = vmatmul.f32.gmra.mxu0 %v3220
        %v3334 = vpop.f32.mrf.mxu0
        %v3335 = vadd.f32 %v3312, %v3334
        %3336 = vdwg.mxu0
        %3337 = vmatpush.msra.mxu0 %v3252
        %3338 = vmatpush.msra.mxu0 %v3250
        %3339 = vmatpush.msra.mxu0 %v3248
        %3340 = vmatpush.msra.mxu0 %v3246
        %3341 = vmatpush.msra.mxu0 %v3244
        %3342 = vmatpush.msra.mxu0 %v3242
        %3343 = vmatpush.msra.mxu0 %v3240
        %3344 = vmatpush.msra.mxu0 %v3238
        %3345 = vmatpush.msra.mxu0 %v3236
        %3346 = vmatpush.msra.mxu0 %v3234
        %3347 = vmatpush.msra.mxu0 %v3232
        %3348 = vmatpush.msra.mxu0 %v3230
        %3349 = vmatpush.msra.mxu0 %v3228
        %3350 = vmatpush.msra.mxu0 %v3226
        %3351 = vmatpush.msra.mxu0 %v3224
        %3352 = vmatpush.msra.mxu0 %v3222
        %3353 = vmatmul.f32.gmra.mxu0 %v3217
        %v3354 = vpop.f32.mrf.mxu0
        %v3355 = vadd.f32 %v3288, %v3354
        %3356 = vmatmul.f32.gmra.mxu0 %v3219
        %v3357 = vpop.f32.mrf.mxu0
        %v3358 = vadd.f32 %v3288, %v3357
        %3359 = vdwg.mxu0
        %3360 = vmatpush.msra.mxu0 %v3284
        %3361 = vmatpush.msra.mxu0 %v3282
        %3362 = vmatpush.msra.mxu0 %v3280
        %3363 = vmatpush.msra.mxu0 %v3278
        %3364 = vmatpush.msra.mxu0 %v3276
        %3365 = vmatpush.msra.mxu0 %v3274
        %3366 = vmatpush.msra.mxu0 %v3272
        %3367 = vmatpush.msra.mxu0 %v3270
        %3368 = vmatpush.msra.mxu0 %v3268
        %3369 = vmatpush.msra.mxu0 %v3266
        %3370 = vmatpush.msra.mxu0 %v3264
        %3371 = vmatpush.msra.mxu0 %v3262
        %3372 = vmatpush.msra.mxu0 %v3260
        %3373 = vmatpush.msra.mxu0 %v3258
        %3374 = vmatpush.msra.mxu0 %v3256
        %3375 = vmatpush.msra.mxu0 %v3254
        %3376 = vmatmul.f32.gmra.mxu0 %v3218
        %v3377 = vpop.f32.mrf.mxu0
        %v3378 = vadd.f32 %v3355, %v3377
        %3379 = vmatmul.f32.gmra.mxu0 %v3220
        %v3380 = vpop.f32.mrf.mxu0
        %v3381 = vadd.f32 %v3358, %v3380
        %3382 = vdwg.mxu0
        %3383 = vst.msk [vmem:[#allocation2] sm:$0xff] %vm2404, %v3332
        %3384 = vst.msk [vmem:[#allocation2 + $0x8] sm:$0xff] %vm2404, %v3335
        %3387 = vrot.lane.b32.xlu0 %v3332, 64
        %v3388 = vpop.permute.xlu0 %3387
        %3389 = vrot.lane.b32.xlu0 %v3335, 64
        %v3390 = vpop.permute.xlu0 %3389
        %3393 = vst.msk [vmem:[%s2415] sm:$0xff] %vm2404, %v3388
        %3394 = vst.msk [vmem:[%s2415 + $0x8] sm:$0xff] %vm2404, %v3390
        %3395 = vst.msk [vmem:[%s2418] sm:$0xff] %vm2404, %v3378
        %3396 = vst.msk [vmem:[%s2418 + $0x8] sm:$0xff] %vm2404, %v3381
        %3399 = vrot.lane.b32.xlu0 %v3378, 64
        %v3400 = vpop.permute.xlu0 %3399
        %3401 = vrot.lane.b32.xlu0 %v3381, 64
        %v3402 = vpop.permute.xlu0 %3401
        %3405 = vst.msk [vmem:[%s2429] sm:$0xff] %vm2404, %v3400
        %3406 = vst.msk [vmem:[%s2429 + $0x8] sm:$0xff] %vm2404, %v3402
        %v3407 = vld [vmem:[#allocation2] sm:$0xff]
        %v3408 = vld [vmem:[#allocation2 + $0x8] sm:$0xff]
        %v3409 = vld [vmem:[#allocation5] sm:$0xff]
        %v3410 = vld [vmem:[#allocation5 + $0x8] sm:$0xff]
        %v3411 = vld [vmem:[#allocation5 + $0x10] sm:$0xff]
        %v3412 = vld [vmem:[#allocation5 + $0x18] sm:$0xff]
        %v3414 = vsel %vm2404, %v3407, 0
        %v3417 = vsel %vm2404, %v3408, 0
        %v3420 = vsel %vm2404, %v3409, 0
        %v3423 = vsel %vm2404, %v3410, 0
        %v3426 = vsel %vm2404, %v3411, 0
        %v3429 = vsel %vm2404, %v3412, 0
        %3431 = vmatpush.xpose.msra.mxu0 0.0
        %3432 = vmatpush.xpose.msra.mxu0 0.0
        %3433 = vmatpush.xpose.msra.mxu0 0.0
        %3434 = vmatpush.xpose.msra.mxu0 0.0
        %3435 = vmatpush.xpose.msra.mxu0 0.0
        %3436 = vmatpush.xpose.msra.mxu0 0.0
        %3437 = vmatpush.xpose.msra.mxu0 0.0
        %3438 = vmatpush.xpose.msra.mxu0 0.0
        %3439 = vmatpush.xpose.msra.mxu0 0.0
        %3440 = vmatpush.xpose.msra.mxu0 0.0
        %3441 = vmatpush.xpose.msra.mxu0 0.0
        %3442 = vmatpush.xpose.msra.mxu0 0.0
        %3443 = vmatpush.xpose.msra.mxu0 %v3429
        %3444 = vmatpush.xpose.msra.mxu0 %v3426
        %3445 = vmatpush.xpose.msra.mxu0 %v3423
        %3446 = vmatpush.xpose.msra.mxu0 %v3420
        %3447 = vmatmul.f32.gmra.mxu0 %v3414
        %v3448 = vpop.f32.mrf.mxu0
        %v3449 = vadd.f32 %v2240, %v3448
        %3450 = vmatmul.f32.gmra.mxu0 %v3417
        %v3451 = vpop.f32.mrf.mxu0
        %v3452 = vadd.f32 %v2241, %v3451
        %3453 = vdwg.mxu0
        %v3454 = vsel %vm2479, %v3449, -inf
        %3455 = vmax.xlane.f32.xlu0 %v3454
        %v3456 = vpop.xlane.xlu0 %3455
        %v3457 = vsel %vm2479, %v3452, -inf
        %3458 = vmax.xlane.f32.xlu0 %v3457
        %v3459 = vpop.xlane.xlu0 %3458
        %v3460 = vsub.f32 %v3449, %v3456
        %v3461 = vsub.f32 %v3452, %v3459
        %v3462 = vmul.f32 %v3460, 1.442695
        %v3463 = vpow.pop %v3462
        %v3464 = vmul.f32 %v3461, 1.442695
        %v3465 = vpow.pop %v3464
        %v3466 = vsel %vm2479, %v3463, 0.0
        %3467 = vadd.xlane.f32.xlu0 %v3466
        %v3468 = vpop.xlane.xlu0 %3467
        %v3469 = vsel %vm2479, %v3465, 0.0
        %3470 = vadd.xlane.f32.xlu0 %v3469
        %v3471 = vpop.xlane.xlu0 %3470
        %v3472 = vld [vmem:[#allocation6] sm:$0xff]
        %v3473 = vld [vmem:[#allocation6 + $0x8] sm:$0xff]
        %v3474 = vld [vmem:[#allocation6 + $0x10] sm:$0xff]
        %v3475 = vld [vmem:[#allocation6 + $0x18] sm:$0xff]
        %v3477 = vsel %vm2479, %v3463, 0
        %v3480 = vsel %vm2479, %v3465, 0
        %3482 = vmatpush.msra.mxu0 0.0
        %3483 = vmatpush.msra.mxu0 0.0
        %3484 = vmatpush.msra.mxu0 0.0
        %3485 = vmatpush.msra.mxu0 0.0
        %3486 = vmatpush.msra.mxu0 0.0
        %3487 = vmatpush.msra.mxu0 0.0
        %3488 = vmatpush.msra.mxu0 0.0
        %3489 = vmatpush.msra.mxu0 0.0
        %3490 = vmatpush.msra.mxu0 0.0
        %3491 = vmatpush.msra.mxu0 0.0
        %3492 = vmatpush.msra.mxu0 0.0
        %3493 = vmatpush.msra.mxu0 0.0
        %3494 = vmatpush.msra.mxu0 %v3475
        %3495 = vmatpush.msra.mxu0 %v3474
        %3496 = vmatpush.msra.mxu0 %v3473
        %3497 = vmatpush.msra.mxu0 %v3472
        %3498 = vmatmul.f32.gmra.mxu0 %v3477
        %v3499 = vpop.f32.mrf.mxu0
        %v3500 = vadd.f32 0.0, %v3499
        %3501 = vmatmul.f32.gmra.mxu0 %v3480
        %v3502 = vpop.f32.mrf.mxu0
        %v3503 = vadd.f32 0.0, %v3502
        %3504 = vdwg.mxu0
        %v3505 = vrcp.pop %v3468
        %v3506 = vrcp.pop %v3471
        %v3507 = vmul.f32 %v3500, %v3505
        %v3508 = vmul.f32 %v3503, %v3506
        %v3509 = vld [vmem:[#allocation28] sm:$0xff]
        %v3510 = vld [vmem:[#allocation28 + $0x8] sm:$0xff]
        %v3511 = vld [vmem:[#allocation28 + $0x10] sm:$0xff]
        %v3512 = vld [vmem:[#allocation28 + $0x18] sm:$0xff]
        %v3513 = vld [vmem:[#allocation28 + $0x20] sm:$0xff]
        %v3514 = vld [vmem:[#allocation28 + $0x28] sm:$0xff]
        %v3515 = vld [vmem:[#allocation28 + $0x30] sm:$0xff]
        %v3516 = vld [vmem:[#allocation28 + $0x38] sm:$0xff]
        %v3517 = vld [vmem:[#allocation28 + $0x40] sm:$0xff]
        %v3518 = vld [vmem:[#allocation28 + $0x48] sm:$0xff]
        %v3519 = vld [vmem:[#allocation28 + $0x50] sm:$0xff]
        %v3520 = vld [vmem:[#allocation28 + $0x58] sm:$0xff]
        %v3521 = vld [vmem:[#allocation28 + $0x60] sm:$0xff]
        %v3522 = vld [vmem:[#allocation28 + $0x68] sm:$0xff]
        %v3523 = vld [vmem:[#allocation28 + $0x70] sm:$0xff]
        %v3524 = vld [vmem:[#allocation28 + $0x78] sm:$0xff]
        %v3525 = vld [vmem:[%s2415] sm:$0xff]
        %v3526 = vld [vmem:[%s2415 + $0x8] sm:$0xff]
        %s3527 = scalar_lea.vmem [#allocation5], 32
        %v3528 = vld [vmem:[%s3527] sm:$0xff]
        %v3529 = vld [vmem:[%s3527 + $0x8] sm:$0xff]
        %v3530 = vld [vmem:[%s3527 + $0x10] sm:$0xff]
        %v3531 = vld [vmem:[%s3527 + $0x18] sm:$0xff]
        %v3533 = vsel %vm2404, %v3525, 0
        %v3536 = vsel %vm2404, %v3526, 0
        %v3539 = vsel %vm2404, %v3528, 0
        %v3542 = vsel %vm2404, %v3529, 0
        %v3545 = vsel %vm2404, %v3530, 0
        %v3548 = vsel %vm2404, %v3531, 0
        %3550 = vmatpush.xpose.msra.mxu0 0.0
        %3551 = vmatpush.xpose.msra.mxu0 0.0
        %3552 = vmatpush.xpose.msra.mxu0 0.0
        %3553 = vmatpush.xpose.msra.mxu0 0.0
        %3554 = vmatpush.xpose.msra.mxu0 0.0
        %3555 = vmatpush.xpose.msra.mxu0 0.0
        %3556 = vmatpush.xpose.msra.mxu0 0.0
        %3557 = vmatpush.xpose.msra.mxu0 0.0
        %3558 = vmatpush.xpose.msra.mxu0 0.0
        %3559 = vmatpush.xpose.msra.mxu0 0.0
        %3560 = vmatpush.xpose.msra.mxu0 0.0
        %3561 = vmatpush.xpose.msra.mxu0 0.0
        %3562 = vmatpush.xpose.msra.mxu0 %v3548
        %3563 = vmatpush.xpose.msra.mxu0 %v3545
        %3564 = vmatpush.xpose.msra.mxu0 %v3542
        %3565 = vmatpush.xpose.msra.mxu0 %v3539
        %3566 = vmatmul.f32.gmra.mxu0 %v3533
        %v3567 = vpop.f32.mrf.mxu0
        %v3568 = vadd.f32 %v2240, %v3567
        %3569 = vmatmul.f32.gmra.mxu0 %v3536
        %v3570 = vpop.f32.mrf.mxu0
        %v3571 = vadd.f32 %v2241, %v3570
        %3572 = vdwg.mxu0
        %v3573 = vsel %vm2479, %v3568, -inf
        %3574 = vmax.xlane.f32.xlu0 %v3573
        %v3575 = vpop.xlane.xlu0 %3574
        %v3576 = vsel %vm2479, %v3571, -inf
        %3577 = vmax.xlane.f32.xlu0 %v3576
        %v3578 = vpop.xlane.xlu0 %3577
        %v3579 = vsub.f32 %v3568, %v3575
        %v3580 = vsub.f32 %v3571, %v3578
        %v3581 = vmul.f32 %v3579, 1.442695
        %v3582 = vpow.pop %v3581
        %v3583 = vmul.f32 %v3580, 1.442695
        %v3584 = vpow.pop %v3583
        %v3585 = vsel %vm2479, %v3582, 0.0
        %3586 = vadd.xlane.f32.xlu0 %v3585
        %v3587 = vpop.xlane.xlu0 %3586
        %v3588 = vsel %vm2479, %v3584, 0.0
        %3589 = vadd.xlane.f32.xlu0 %v3588
        %v3590 = vpop.xlane.xlu0 %3589
        %s3591 = scalar_lea.vmem [#allocation6], 32
        %v3592 = vld [vmem:[%s3591] sm:$0xff]
        %v3593 = vld [vmem:[%s3591 + $0x8] sm:$0xff]
        %v3594 = vld [vmem:[%s3591 + $0x10] sm:$0xff]
        %v3595 = vld [vmem:[%s3591 + $0x18] sm:$0xff]
        %v3597 = vsel %vm2479, %v3582, 0
        %v3600 = vsel %vm2479, %v3584, 0
        %3602 = vmatpush.msra.mxu0 0.0
        %3603 = vmatpush.msra.mxu0 0.0
        %3604 = vmatpush.msra.mxu0 0.0
        %3605 = vmatpush.msra.mxu0 0.0
        %3606 = vmatpush.msra.mxu0 0.0
        %3607 = vmatpush.msra.mxu0 0.0
        %3608 = vmatpush.msra.mxu0 0.0
        %3609 = vmatpush.msra.mxu0 0.0
        %3610 = vmatpush.msra.mxu0 0.0
        %3611 = vmatpush.msra.mxu0 0.0
        %3612 = vmatpush.msra.mxu0 0.0
        %3613 = vmatpush.msra.mxu0 0.0
        %3614 = vmatpush.msra.mxu0 %v3595
        %3615 = vmatpush.msra.mxu0 %v3594
        %3616 = vmatpush.msra.mxu0 %v3593
        %3617 = vmatpush.msra.mxu0 %v3592
        %3618 = vmatmul.f32.gmra.mxu0 %v3597
        %v3619 = vpop.f32.mrf.mxu0
        %v3620 = vadd.f32 0.0, %v3619
        %3621 = vmatmul.f32.gmra.mxu0 %v3600
        %v3622 = vpop.f32.mrf.mxu0
        %v3623 = vadd.f32 0.0, %v3622
        %3624 = vdwg.mxu0
        %v3625 = vrcp.pop %v3587
        %v3626 = vrcp.pop %v3590
        %v3627 = vmul.f32 %v3620, %v3625
        %v3628 = vmul.f32 %v3623, %v3626
        %s3629 = scalar_lea.vmem [#allocation28], 128
        %v3630 = vld [vmem:[%s3629] sm:$0xff]
        %v3631 = vld [vmem:[%s3629 + $0x8] sm:$0xff]
        %v3632 = vld [vmem:[%s3629 + $0x10] sm:$0xff]
        %v3633 = vld [vmem:[%s3629 + $0x18] sm:$0xff]
        %v3634 = vld [vmem:[%s3629 + $0x20] sm:$0xff]
        %v3635 = vld [vmem:[%s3629 + $0x28] sm:$0xff]
        %v3636 = vld [vmem:[%s3629 + $0x30] sm:$0xff]
        %v3637 = vld [vmem:[%s3629 + $0x38] sm:$0xff]
        %v3638 = vld [vmem:[%s3629 + $0x40] sm:$0xff]
        %v3639 = vld [vmem:[%s3629 + $0x48] sm:$0xff]
        %v3640 = vld [vmem:[%s3629 + $0x50] sm:$0xff]
        %v3641 = vld [vmem:[%s3629 + $0x58] sm:$0xff]
        %v3642 = vld [vmem:[%s3629 + $0x60] sm:$0xff]
        %v3643 = vld [vmem:[%s3629 + $0x68] sm:$0xff]
        %v3644 = vld [vmem:[%s3629 + $0x70] sm:$0xff]
        %v3645 = vld [vmem:[%s3629 + $0x78] sm:$0xff]
        %v3647 = vsel %vm2404, %v3627, 0
        %v3650 = vsel %vm2404, %v3628, 0
        %3652 = vmatpush.msra.mxu0 0.0
        %3653 = vmatpush.msra.mxu0 0.0
        %3654 = vmatpush.msra.mxu0 0.0
        %3655 = vmatpush.msra.mxu0 0.0
        %3656 = vmatpush.msra.mxu0 0.0
        %3657 = vmatpush.msra.mxu0 0.0
        %3658 = vmatpush.msra.mxu0 0.0
        %3659 = vmatpush.msra.mxu0 0.0
        %3660 = vmatpush.msra.mxu0 %v3644
        %3661 = vmatpush.msra.mxu0 %v3642
        %3662 = vmatpush.msra.mxu0 %v3640
        %3663 = vmatpush.msra.mxu0 %v3638
        %3664 = vmatpush.msra.mxu0 %v3636
        %3665 = vmatpush.msra.mxu0 %v3634
        %3666 = vmatpush.msra.mxu0 %v3632
        %3667 = vmatpush.msra.mxu0 %v3630
        %3668 = vmatmul.f32.gmra.mxu0 %v3647
        %v3669 = vpop.f32.mrf.mxu0
        %v3670 = vadd.f32 0.0, %v3669
        %3671 = vmatmul.f32.gmra.mxu0 %v3650
        %v3672 = vpop.f32.mrf.mxu0
        %v3673 = vadd.f32 0.0, %v3672
        %3674 = vdwg.mxu0
        %3675 = vmatpush.msra.mxu0 0.0
        %3676 = vmatpush.msra.mxu0 0.0
        %3677 = vmatpush.msra.mxu0 0.0
        %3678 = vmatpush.msra.mxu0 0.0
        %3679 = vmatpush.msra.mxu0 0.0
        %3680 = vmatpush.msra.mxu0 0.0
        %3681 = vmatpush.msra.mxu0 0.0
        %3682 = vmatpush.msra.mxu0 0.0
        %3683 = vmatpush.msra.mxu0 %v3645
        %3684 = vmatpush.msra.mxu0 %v3643
        %3685 = vmatpush.msra.mxu0 %v3641
        %3686 = vmatpush.msra.mxu0 %v3639
        %3687 = vmatpush.msra.mxu0 %v3637
        %3688 = vmatpush.msra.mxu0 %v3635
        %3689 = vmatpush.msra.mxu0 %v3633
        %3690 = vmatpush.msra.mxu0 %v3631
        %3691 = vmatmul.f32.gmra.mxu0 %v3647
        %v3692 = vpop.f32.mrf.mxu0
        %v3693 = vadd.f32 0.0, %v3692
        %3694 = vmatmul.f32.gmra.mxu0 %v3650
        %v3695 = vpop.f32.mrf.mxu0
        %v3696 = vadd.f32 0.0, %v3695
        %3697 = vdwg.mxu0
        %v3699 = vsel %vm2404, %v3507, 0
        %v3702 = vsel %vm2404, %v3508, 0
        %3704 = vmatpush.msra.mxu0 0.0
        %3705 = vmatpush.msra.mxu0 0.0
        %3706 = vmatpush.msra.mxu0 0.0
        %3707 = vmatpush.msra.mxu0 0.0
        %3708 = vmatpush.msra.mxu0 0.0
        %3709 = vmatpush.msra.mxu0 0.0
        %3710 = vmatpush.msra.mxu0 0.0
        %3711 = vmatpush.msra.mxu0 0.0
        %3712 = vmatpush.msra.mxu0 %v3523
        %3713 = vmatpush.msra.mxu0 %v3521
        %3714 = vmatpush.msra.mxu0 %v3519
        %3715 = vmatpush.msra.mxu0 %v3517
        %3716 = vmatpush.msra.mxu0 %v3515
        %3717 = vmatpush.msra.mxu0 %v3513
        %3718 = vmatpush.msra.mxu0 %v3511
        %3719 = vmatpush.msra.mxu0 %v3509
        %3720 = vmatmul.f32.gmra.mxu0 %v3699
        %v3721 = vpop.f32.mrf.mxu0
        %v3722 = vadd.f32 %v3670, %v3721
        %3723 = vmatmul.f32.gmra.mxu0 %v3702
        %v3724 = vpop.f32.mrf.mxu0
        %v3725 = vadd.f32 %v3673, %v3724
        %3726 = vdwg.mxu0
        %3727 = vmatpush.msra.mxu0 0.0
        %3728 = vmatpush.msra.mxu0 0.0
        %3729 = vmatpush.msra.mxu0 0.0
        %3730 = vmatpush.msra.mxu0 0.0
        %3731 = vmatpush.msra.mxu0 0.0
        %3732 = vmatpush.msra.mxu0 0.0
        %3733 = vmatpush.msra.mxu0 0.0
        %3734 = vmatpush.msra.mxu0 0.0
        %3735 = vmatpush.msra.mxu0 %v3524
        %3736 = vmatpush.msra.mxu0 %v3522
        %3737 = vmatpush.msra.mxu0 %v3520
        %3738 = vmatpush.msra.mxu0 %v3518
        %3739 = vmatpush.msra.mxu0 %v3516
        %3740 = vmatpush.msra.mxu0 %v3514
        %3741 = vmatpush.msra.mxu0 %v3512
        %3742 = vmatpush.msra.mxu0 %v3510
        %3743 = vmatmul.f32.gmra.mxu0 %v3699
        %v3744 = vpop.f32.mrf.mxu0
        %v3745 = vadd.f32 %v3693, %v3744
        %3746 = vmatmul.f32.gmra.mxu0 %v3702
        %v3747 = vpop.f32.mrf.mxu0
        %v3748 = vadd.f32 %v3696, %v3747
        %3749 = vdwg.mxu0
        %v3750 = vld [vmem:[%s2418] sm:$0xff]
        %v3751 = vld [vmem:[%s2418 + $0x8] sm:$0xff]
        %s3752 = scalar_lea.vmem [#allocation5], 64
        %v3753 = vld [vmem:[%s3752] sm:$0xff]
        %v3754 = vld [vmem:[%s3752 + $0x8] sm:$0xff]
        %v3755 = vld [vmem:[%s3752 + $0x10] sm:$0xff]
        %v3756 = vld [vmem:[%s3752 + $0x18] sm:$0xff]
        %v3758 = vsel %vm2404, %v3750, 0
        %v3761 = vsel %vm2404, %v3751, 0
        %v3764 = vsel %vm2404, %v3753, 0
        %v3767 = vsel %vm2404, %v3754, 0
        %v3770 = vsel %vm2404, %v3755, 0
        %v3773 = vsel %vm2404, %v3756, 0
        %3775 = vmatpush.xpose.msra.mxu0 0.0
        %3776 = vmatpush.xpose.msra.mxu0 0.0
        %3777 = vmatpush.xpose.msra.mxu0 0.0
        %3778 = vmatpush.xpose.msra.mxu0 0.0
        %3779 = vmatpush.xpose.msra.mxu0 0.0
        %3780 = vmatpush.xpose.msra.mxu0 0.0
        %3781 = vmatpush.xpose.msra.mxu0 0.0
        %3782 = vmatpush.xpose.msra.mxu0 0.0
        %3783 = vmatpush.xpose.msra.mxu0 0.0
        %3784 = vmatpush.xpose.msra.mxu0 0.0
        %3785 = vmatpush.xpose.msra.mxu0 0.0
        %3786 = vmatpush.xpose.msra.mxu0 0.0
        %3787 = vmatpush.xpose.msra.mxu0 %v3773
        %3788 = vmatpush.xpose.msra.mxu0 %v3770
        %3789 = vmatpush.xpose.msra.mxu0 %v3767
        %3790 = vmatpush.xpose.msra.mxu0 %v3764
        %3791 = vmatmul.f32.gmra.mxu0 %v3758
        %v3792 = vpop.f32.mrf.mxu0
        %v3793 = vadd.f32 %v2240, %v3792
        %3794 = vmatmul.f32.gmra.mxu0 %v3761
        %v3795 = vpop.f32.mrf.mxu0
        %v3796 = vadd.f32 %v2241, %v3795
        %3797 = vdwg.mxu0
        %v3798 = vsel %vm2479, %v3793, -inf
        %3799 = vmax.xlane.f32.xlu0 %v3798
        %v3800 = vpop.xlane.xlu0 %3799
        %v3801 = vsel %vm2479, %v3796, -inf
        %3802 = vmax.xlane.f32.xlu0 %v3801
        %v3803 = vpop.xlane.xlu0 %3802
        %v3804 = vsub.f32 %v3793, %v3800
        %v3805 = vsub.f32 %v3796, %v3803
        %v3806 = vmul.f32 %v3804, 1.442695
        %v3807 = vpow.pop %v3806
        %v3808 = vmul.f32 %v3805, 1.442695
        %v3809 = vpow.pop %v3808
        %v3810 = vsel %vm2479, %v3807, 0.0
        %3811 = vadd.xlane.f32.xlu0 %v3810
        %v3812 = vpop.xlane.xlu0 %3811
        %v3813 = vsel %vm2479, %v3809, 0.0
        %3814 = vadd.xlane.f32.xlu0 %v3813
        %v3815 = vpop.xlane.xlu0 %3814
        %s3816 = scalar_lea.vmem [#allocation6], 64
        %v3817 = vld [vmem:[%s3816] sm:$0xff]
        %v3818 = vld [vmem:[%s3816 + $0x8] sm:$0xff]
        %v3819 = vld [vmem:[%s3816 + $0x10] sm:$0xff]
        %v3820 = vld [vmem:[%s3816 + $0x18] sm:$0xff]
        %v3822 = vsel %vm2479, %v3807, 0
        %v3825 = vsel %vm2479, %v3809, 0
        %3827 = vmatpush.msra.mxu0 0.0
        %3828 = vmatpush.msra.mxu0 0.0
        %3829 = vmatpush.msra.mxu0 0.0
        %3830 = vmatpush.msra.mxu0 0.0
        %3831 = vmatpush.msra.mxu0 0.0
        %3832 = vmatpush.msra.mxu0 0.0
        %3833 = vmatpush.msra.mxu0 0.0
        %3834 = vmatpush.msra.mxu0 0.0
        %3835 = vmatpush.msra.mxu0 0.0
        %3836 = vmatpush.msra.mxu0 0.0
        %3837 = vmatpush.msra.mxu0 0.0
        %3838 = vmatpush.msra.mxu0 0.0
        %3839 = vmatpush.msra.mxu0 %v3820
        %3840 = vmatpush.msra.mxu0 %v3819
        %3841 = vmatpush.msra.mxu0 %v3818
        %3842 = vmatpush.msra.mxu0 %v3817
        %3843 = vmatmul.f32.gmra.mxu0 %v3822
        %v3844 = vpop.f32.mrf.mxu0
        %v3845 = vadd.f32 0.0, %v3844
        %3846 = vmatmul.f32.gmra.mxu0 %v3825
        %v3847 = vpop.f32.mrf.mxu0
        %v3848 = vadd.f32 0.0, %v3847
        %3849 = vdwg.mxu0
        %v3850 = vrcp.pop %v3812
        %v3851 = vrcp.pop %v3815
        %v3852 = vmul.f32 %v3845, %v3850
        %v3853 = vmul.f32 %v3848, %v3851
        %s3854 = scalar_lea.vmem [#allocation28], 256
        %v3855 = vld [vmem:[%s3854] sm:$0xff]
        %v3856 = vld [vmem:[%s3854 + $0x8] sm:$0xff]
        %v3857 = vld [vmem:[%s3854 + $0x10] sm:$0xff]
        %v3858 = vld [vmem:[%s3854 + $0x18] sm:$0xff]
        %v3859 = vld [vmem:[%s3854 + $0x20] sm:$0xff]
        %v3860 = vld [vmem:[%s3854 + $0x28] sm:$0xff]
        %v3861 = vld [vmem:[%s3854 + $0x30] sm:$0xff]
        %v3862 = vld [vmem:[%s3854 + $0x38] sm:$0xff]
        %v3863 = vld [vmem:[%s3854 + $0x40] sm:$0xff]
        %v3864 = vld [vmem:[%s3854 + $0x48] sm:$0xff]
        %v3865 = vld [vmem:[%s3854 + $0x50] sm:$0xff]
        %v3866 = vld [vmem:[%s3854 + $0x58] sm:$0xff]
        %v3867 = vld [vmem:[%s3854 + $0x60] sm:$0xff]
        %v3868 = vld [vmem:[%s3854 + $0x68] sm:$0xff]
        %v3869 = vld [vmem:[%s3854 + $0x70] sm:$0xff]
        %v3870 = vld [vmem:[%s3854 + $0x78] sm:$0xff]
        %v3872 = vsel %vm2404, %v3852, 0
        %v3875 = vsel %vm2404, %v3853, 0
        %3877 = vmatpush.msra.mxu0 0.0
        %3878 = vmatpush.msra.mxu0 0.0
        %3879 = vmatpush.msra.mxu0 0.0
        %3880 = vmatpush.msra.mxu0 0.0
        %3881 = vmatpush.msra.mxu0 0.0
        %3882 = vmatpush.msra.mxu0 0.0
        %3883 = vmatpush.msra.mxu0 0.0
        %3884 = vmatpush.msra.mxu0 0.0
        %3885 = vmatpush.msra.mxu0 %v3869
        %3886 = vmatpush.msra.mxu0 %v3867
        %3887 = vmatpush.msra.mxu0 %v3865
        %3888 = vmatpush.msra.mxu0 %v3863
        %3889 = vmatpush.msra.mxu0 %v3861
        %3890 = vmatpush.msra.mxu0 %v3859
        %3891 = vmatpush.msra.mxu0 %v3857
        %3892 = vmatpush.msra.mxu0 %v3855
        %3893 = vmatmul.f32.gmra.mxu0 %v3872
        %v3894 = vpop.f32.mrf.mxu0
        %v3895 = vadd.f32 0.0, %v3894
        %3896 = vmatmul.f32.gmra.mxu0 %v3875
        %v3897 = vpop.f32.mrf.mxu0
        %v3898 = vadd.f32 0.0, %v3897
        %3899 = vdwg.mxu0
        %3900 = vmatpush.msra.mxu0 0.0
        %3901 = vmatpush.msra.mxu0 0.0
        %3902 = vmatpush.msra.mxu0 0.0
        %3903 = vmatpush.msra.mxu0 0.0
        %3904 = vmatpush.msra.mxu0 0.0
        %3905 = vmatpush.msra.mxu0 0.0
        %3906 = vmatpush.msra.mxu0 0.0
        %3907 = vmatpush.msra.mxu0 0.0
        %3908 = vmatpush.msra.mxu0 %v3870
        %3909 = vmatpush.msra.mxu0 %v3868
        %3910 = vmatpush.msra.mxu0 %v3866
        %3911 = vmatpush.msra.mxu0 %v3864
        %3912 = vmatpush.msra.mxu0 %v3862
        %3913 = vmatpush.msra.mxu0 %v3860
        %3914 = vmatpush.msra.mxu0 %v3858
        %3915 = vmatpush.msra.mxu0 %v3856
        %3916 = vmatmul.f32.gmra.mxu0 %v3872
        %v3917 = vpop.f32.mrf.mxu0
        %v3918 = vadd.f32 0.0, %v3917
        %3919 = vmatmul.f32.gmra.mxu0 %v3875
        %v3920 = vpop.f32.mrf.mxu0
        %v3921 = vadd.f32 0.0, %v3920
        %3922 = vdwg.mxu0
        %v3923 = vadd.f32 %v3722, %v3895
        %v3924 = vadd.f32 %v3745, %v3918
        %v3925 = vadd.f32 %v3725, %v3898
        %v3926 = vadd.f32 %v3748, %v3921
        %v3927 = vld [vmem:[%s2429] sm:$0xff]
        %v3928 = vld [vmem:[%s2429 + $0x8] sm:$0xff]
        %s3929 = scalar_lea.vmem [#allocation5], 96
        %v3930 = vld [vmem:[%s3929] sm:$0xff]
        %v3931 = vld [vmem:[%s3929 + $0x8] sm:$0xff]
        %v3932 = vld [vmem:[%s3929 + $0x10] sm:$0xff]
        %v3933 = vld [vmem:[%s3929 + $0x18] sm:$0xff]
        %v3935 = vsel %vm2404, %v3927, 0
        %v3938 = vsel %vm2404, %v3928, 0
        %v3941 = vsel %vm2404, %v3930, 0
        %v3944 = vsel %vm2404, %v3931, 0
        %v3947 = vsel %vm2404, %v3932, 0
        %v3950 = vsel %vm2404, %v3933, 0
        %3952 = vmatpush.xpose.msra.mxu0 0.0
        %3953 = vmatpush.xpose.msra.mxu0 0.0
        %3954 = vmatpush.xpose.msra.mxu0 0.0
        %3955 = vmatpush.xpose.msra.mxu0 0.0
        %3956 = vmatpush.xpose.msra.mxu0 0.0
        %3957 = vmatpush.xpose.msra.mxu0 0.0
        %3958 = vmatpush.xpose.msra.mxu0 0.0
        %3959 = vmatpush.xpose.msra.mxu0 0.0
        %3960 = vmatpush.xpose.msra.mxu0 0.0
        %3961 = vmatpush.xpose.msra.mxu0 0.0
        %3962 = vmatpush.xpose.msra.mxu0 0.0
        %3963 = vmatpush.xpose.msra.mxu0 0.0
        %3964 = vmatpush.xpose.msra.mxu0 %v3950
        %3965 = vmatpush.xpose.msra.mxu0 %v3947
        %3966 = vmatpush.xpose.msra.mxu0 %v3944
        %3967 = vmatpush.xpose.msra.mxu0 %v3941
        %3968 = vmatmul.f32.gmra.mxu0 %v3935
        %v3969 = vpop.f32.mrf.mxu0
        %v3970 = vadd.f32 %v2240, %v3969
        %3971 = vmatmul.f32.gmra.mxu0 %v3938
        %v3972 = vpop.f32.mrf.mxu0
        %v3973 = vadd.f32 %v2241, %v3972
        %3974 = vdwg.mxu0
        %v3975 = vsel %vm2479, %v3970, -inf
        %3976 = vmax.xlane.f32.xlu0 %v3975
        %v3977 = vpop.xlane.xlu0 %3976
        %v3978 = vsel %vm2479, %v3973, -inf
        %3979 = vmax.xlane.f32.xlu0 %v3978
        %v3980 = vpop.xlane.xlu0 %3979
        %v3981 = vsub.f32 %v3970, %v3977
        %v3982 = vsub.f32 %v3973, %v3980
        %v3983 = vmul.f32 %v3981, 1.442695
        %v3984 = vpow.pop %v3983
        %v3985 = vmul.f32 %v3982, 1.442695
        %v3986 = vpow.pop %v3985
        %v3987 = vsel %vm2479, %v3984, 0.0
        %3988 = vadd.xlane.f32.xlu0 %v3987
        %v3989 = vpop.xlane.xlu0 %3988
        %v3990 = vsel %vm2479, %v3986, 0.0
        %3991 = vadd.xlane.f32.xlu0 %v3990
        %v3992 = vpop.xlane.xlu0 %3991
        %s3993 = scalar_lea.vmem [#allocation6], 96
        %v3994 = vld [vmem:[%s3993] sm:$0xff]
        %v3995 = vld [vmem:[%s3993 + $0x8] sm:$0xff]
        %v3996 = vld [vmem:[%s3993 + $0x10] sm:$0xff]
        %v3997 = vld [vmem:[%s3993 + $0x18] sm:$0xff]
        %v3999 = vsel %vm2479, %v3984, 0
        %v4002 = vsel %vm2479, %v3986, 0
        %4004 = vmatpush.msra.mxu0 0.0
        %4005 = vmatpush.msra.mxu0 0.0
        %4006 = vmatpush.msra.mxu0 0.0
        %4007 = vmatpush.msra.mxu0 0.0
        %4008 = vmatpush.msra.mxu0 0.0
        %4009 = vmatpush.msra.mxu0 0.0
        %4010 = vmatpush.msra.mxu0 0.0
        %4011 = vmatpush.msra.mxu0 0.0
        %4012 = vmatpush.msra.mxu0 0.0
        %4013 = vmatpush.msra.mxu0 0.0
        %4014 = vmatpush.msra.mxu0 0.0
        %4015 = vmatpush.msra.mxu0 0.0
        %4016 = vmatpush.msra.mxu0 %v3997
        %4017 = vmatpush.msra.mxu0 %v3996
        %4018 = vmatpush.msra.mxu0 %v3995
        %4019 = vmatpush.msra.mxu0 %v3994
        %4020 = vmatmul.f32.gmra.mxu0 %v3999
        %v4021 = vpop.f32.mrf.mxu0
        %v4022 = vadd.f32 0.0, %v4021
        %4023 = vmatmul.f32.gmra.mxu0 %v4002
        %v4024 = vpop.f32.mrf.mxu0
        %v4025 = vadd.f32 0.0, %v4024
        %4026 = vdwg.mxu0
        %v4027 = vrcp.pop %v3989
        %v4028 = vrcp.pop %v3992
        %v4029 = vmul.f32 %v4022, %v4027
        %v4030 = vmul.f32 %v4025, %v4028
        %s4031 = scalar_lea.vmem [#allocation28], 384
        %v4032 = vld [vmem:[%s4031] sm:$0xff]
        %v4033 = vld [vmem:[%s4031 + $0x8] sm:$0xff]
        %v4034 = vld [vmem:[%s4031 + $0x10] sm:$0xff]
        %v4035 = vld [vmem:[%s4031 + $0x18] sm:$0xff]
        %v4036 = vld [vmem:[%s4031 + $0x20] sm:$0xff]
        %v4037 = vld [vmem:[%s4031 + $0x28] sm:$0xff]
        %v4038 = vld [vmem:[%s4031 + $0x30] sm:$0xff]
        %v4039 = vld [vmem:[%s4031 + $0x38] sm:$0xff]
        %v4040 = vld [vmem:[%s4031 + $0x40] sm:$0xff]
        %v4041 = vld [vmem:[%s4031 + $0x48] sm:$0xff]
        %v4042 = vld [vmem:[%s4031 + $0x50] sm:$0xff]
        %v4043 = vld [vmem:[%s4031 + $0x58] sm:$0xff]
        %v4044 = vld [vmem:[%s4031 + $0x60] sm:$0xff]
        %v4045 = vld [vmem:[%s4031 + $0x68] sm:$0xff]
        %v4046 = vld [vmem:[%s4031 + $0x70] sm:$0xff]
        %v4047 = vld [vmem:[%s4031 + $0x78] sm:$0xff]
        %v4049 = vsel %vm2404, %v4029, 0
        %v4052 = vsel %vm2404, %v4030, 0
        %4054 = vmatpush.msra.mxu0 0.0
        %4055 = vmatpush.msra.mxu0 0.0
        %4056 = vmatpush.msra.mxu0 0.0
        %4057 = vmatpush.msra.mxu0 0.0
        %4058 = vmatpush.msra.mxu0 0.0
        %4059 = vmatpush.msra.mxu0 0.0
        %4060 = vmatpush.msra.mxu0 0.0
        %4061 = vmatpush.msra.mxu0 0.0
        %4062 = vmatpush.msra.mxu0 %v4046
        %4063 = vmatpush.msra.mxu0 %v4044
        %4064 = vmatpush.msra.mxu0 %v4042
        %4065 = vmatpush.msra.mxu0 %v4040
        %4066 = vmatpush.msra.mxu0 %v4038
        %4067 = vmatpush.msra.mxu0 %v4036
        %4068 = vmatpush.msra.mxu0 %v4034
        %4069 = vmatpush.msra.mxu0 %v4032
        %4070 = vmatmul.f32.gmra.mxu0 %v4049
        %v4071 = vpop.f32.mrf.mxu0
        %v4072 = vadd.f32 0.0, %v4071
        %4073 = vmatmul.f32.gmra.mxu0 %v4052
        %v4074 = vpop.f32.mrf.mxu0
        %v4075 = vadd.f32 0.0, %v4074
        %4076 = vdwg.mxu0
        %4077 = vmatpush.msra.mxu0 0.0
        %4078 = vmatpush.msra.mxu0 0.0
        %4079 = vmatpush.msra.mxu0 0.0
        %4080 = vmatpush.msra.mxu0 0.0
        %4081 = vmatpush.msra.mxu0 0.0
        %4082 = vmatpush.msra.mxu0 0.0
        %4083 = vmatpush.msra.mxu0 0.0
        %4084 = vmatpush.msra.mxu0 0.0
        %4085 = vmatpush.msra.mxu0 %v4047
        %4086 = vmatpush.msra.mxu0 %v4045
        %4087 = vmatpush.msra.mxu0 %v4043
        %4088 = vmatpush.msra.mxu0 %v4041
        %4089 = vmatpush.msra.mxu0 %v4039
        %4090 = vmatpush.msra.mxu0 %v4037
        %4091 = vmatpush.msra.mxu0 %v4035
        %4092 = vmatpush.msra.mxu0 %v4033
        %4093 = vmatmul.f32.gmra.mxu0 %v4049
        %v4094 = vpop.f32.mrf.mxu0
        %v4095 = vadd.f32 0.0, %v4094
        %4096 = vmatmul.f32.gmra.mxu0 %v4052
        %v4097 = vpop.f32.mrf.mxu0
        %v4098 = vadd.f32 0.0, %v4097
        %4099 = vdwg.mxu0
        %v4100 = vadd.f32 %v3923, %v4072
        %v4101 = vadd.f32 %v3924, %v4095
        %v4102 = vadd.f32 %v3925, %v4075
        %v4103 = vadd.f32 %v3926, %v4098
        %v4104 = vld [vmem:[%s41] sm:$0x3]
        %v4106 = vperm.slane %v4104, 0
        %v4107 = vperm.slane %v4104, 1
        %v4110 = vadd.f32 %v4100, %v4106
        %v4111 = vadd.f32 %v4101, %v4107
        %v4112 = vadd.f32 %v4102, %v4106
        %v4113 = vadd.f32 %v4103, %v4107
        %v4114 = vadd.f32 %v4110, %v3217
        %v4115 = vadd.f32 %v4111, %v3218
        %v4116 = vadd.f32 %v4112, %v3219
        %v4117 = vadd.f32 %v4113, %v3220
        %v4118 = vadd.f32 %v4114, %v4115
        %4119 = vadd.xlane.f32.xlu0 %v4118
        %v4120 = vpop.xlane.xlu0 %4119
        %v4121 = vadd.f32 %v4116, %v4117
        %4122 = vadd.xlane.f32.xlu0 %v4121
        %v4123 = vpop.xlane.xlu0 %4122
        %v4124 = vmul.f32 %v4120, %v3156
        %v4125 = vmul.f32 %v4123, %v3156
        %v4126 = vsub.f32 %v4114, %v4124
        %v4127 = vsub.f32 %v4115, %v4124
        %v4128 = vsub.f32 %v4116, %v4125
        %v4129 = vsub.f32 %v4117, %v4125
        %v4130 = vmul.f32 %v4126, %v4126
        %v4131 = vmul.f32 %v4127, %v4127
        %v4132 = vmul.f32 %v4128, %v4128
        %v4133 = vmul.f32 %v4129, %v4129
        %v4134 = vadd.f32 %v4130, %v4131
        %4135 = vadd.xlane.f32.xlu0 %v4134
        %v4136 = vpop.xlane.xlu0 %4135
        %v4137 = vadd.f32 %v4132, %v4133
        %4138 = vadd.xlane.f32.xlu0 %v4137
        %v4139 = vpop.xlane.xlu0 %4138
        %v4140 = vmul.f32 %v4136, %v3156
        %v4141 = vmul.f32 %v4139, %v3156
        %v4142 = vadd.f32 %v4140, 1e-12
        %v4143 = vadd.f32 %v4141, 1e-12
        %v4144 = vrsqrt.pop %v4142
        %v4145 = vmul.f32 %v4144, %v4142
        %v4146 = vmul.f32 %v4145, %v4144
        %v4147 = vmul.f32 0.5, %v4146
        %v4148 = vsub.f32 1.5, %v4147
        %v4149 = vmul.f32 %v4144, %v4148
        %vm4150 = vweird.f32 %v4142
        %vm4151 = vweird.f32 %v4144
        %vm4152 = vmor %vm4150, %vm4151
        %v4153 = vsel %vm4152, %v4144, %v4149
        %v4154 = vrsqrt.pop %v4143
        %v4155 = vmul.f32 %v4154, %v4143
        %v4156 = vmul.f32 %v4155, %v4154
        %v4157 = vmul.f32 0.5, %v4156
        %v4158 = vsub.f32 1.5, %v4157
        %v4159 = vmul.f32 %v4154, %v4158
        %vm4160 = vweird.f32 %v4143
        %vm4161 = vweird.f32 %v4154
        %vm4162 = vmor %vm4160, %vm4161
        %v4163 = vsel %vm4162, %v4154, %v4159
        %v4164 = vmul.f32 %v4126, %v4153
        %v4165 = vmul.f32 %v4127, %v4153
        %v4166 = vmul.f32 %v4128, %v4163
        %v4167 = vmul.f32 %v4129, %v4163
        %v4168 = vld [vmem:[%s43] sm:$0x3]
        %v4170 = vperm.slane %v4168, 0
        %v4171 = vperm.slane %v4168, 1
        %v4174 = vmul.f32 %v4164, %v4170
        %v4175 = vmul.f32 %v4165, %v4171
        %v4176 = vmul.f32 %v4166, %v4170
        %v4177 = vmul.f32 %v4167, %v4171
        %v4178 = vld [vmem:[#allocation30] sm:$0x3]
        %v4180 = vperm.slane %v4178, 0
        %v4181 = vperm.slane %v4178, 1
        %v4184 = vadd.f32 %v4174, %v4180
        %v4185 = vadd.f32 %v4175, %v4181
        %v4186 = vadd.f32 %v4176, %v4180
        %v4187 = vadd.f32 %v4177, %v4181
        %v4188 = vld [vmem:[#allocation31] sm:$0xff]
        %v4189 = vld [vmem:[#allocation31 + $0x8] sm:$0xff]
        %v4190 = vld [vmem:[#allocation31 + $0x10] sm:$0xff]
        %v4191 = vld [vmem:[#allocation31 + $0x18] sm:$0xff]
        %v4192 = vld [vmem:[#allocation31 + $0x20] sm:$0xff]
        %v4193 = vld [vmem:[#allocation31 + $0x28] sm:$0xff]
        %v4194 = vld [vmem:[#allocation31 + $0x30] sm:$0xff]
        %v4195 = vld [vmem:[#allocation31 + $0x38] sm:$0xff]
        %v4196 = vld [vmem:[#allocation31 + $0x40] sm:$0xff]
        %v4197 = vld [vmem:[#allocation31 + $0x48] sm:$0xff]
        %v4198 = vld [vmem:[#allocation31 + $0x50] sm:$0xff]
        %v4199 = vld [vmem:[#allocation31 + $0x58] sm:$0xff]
        %v4200 = vld [vmem:[#allocation31 + $0x60] sm:$0xff]
        %v4201 = vld [vmem:[#allocation31 + $0x68] sm:$0xff]
        %v4202 = vld [vmem:[#allocation31 + $0x70] sm:$0xff]
        %v4203 = vld [vmem:[#allocation31 + $0x78] sm:$0xff]
        %v4204 = vld [vmem:[#allocation31 + $0x80] sm:$0xff]
        %v4205 = vld [vmem:[#allocation31 + $0x88] sm:$0xff]
        %v4206 = vld [vmem:[#allocation31 + $0x90] sm:$0xff]
        %v4207 = vld [vmem:[#allocation31 + $0x98] sm:$0xff]
        %v4208 = vld [vmem:[#allocation31 + $0xa0] sm:$0xff]
        %v4209 = vld [vmem:[#allocation31 + $0xa8] sm:$0xff]
        %v4210 = vld [vmem:[#allocation31 + $0xb0] sm:$0xff]
        %v4211 = vld [vmem:[#allocation31 + $0xb8] sm:$0xff]
        %v4212 = vld [vmem:[#allocation31 + $0xc0] sm:$0xff]
        %v4213 = vld [vmem:[#allocation31 + $0xc8] sm:$0xff]
        %v4214 = vld [vmem:[#allocation31 + $0xd0] sm:$0xff]
        %v4215 = vld [vmem:[#allocation31 + $0xd8] sm:$0xff]
        %v4216 = vld [vmem:[#allocation31 + $0xe0] sm:$0xff]
        %v4217 = vld [vmem:[#allocation31 + $0xe8] sm:$0xff]
        %v4218 = vld [vmem:[#allocation31 + $0xf0] sm:$0xff]
        %v4219 = vld [vmem:[#allocation31 + $0xf8] sm:$0xff]
        %v4220 = vld [vmem:[#allocation31 + $0x100] sm:$0xff]
        %v4221 = vld [vmem:[#allocation31 + $0x108] sm:$0xff]
        %v4222 = vld [vmem:[#allocation31 + $0x110] sm:$0xff]
        %v4223 = vld [vmem:[#allocation31 + $0x118] sm:$0xff]
        %v4224 = vld [vmem:[#allocation31 + $0x120] sm:$0xff]
        %v4225 = vld [vmem:[#allocation31 + $0x128] sm:$0xff]
        %v4226 = vld [vmem:[#allocation31 + $0x130] sm:$0xff]
        %v4227 = vld [vmem:[#allocation31 + $0x138] sm:$0xff]
        %v4228 = vld [vmem:[#allocation31 + $0x140] sm:$0xff]
        %v4229 = vld [vmem:[#allocation31 + $0x148] sm:$0xff]
        %v4230 = vld [vmem:[#allocation31 + $0x150] sm:$0xff]
        %v4231 = vld [vmem:[#allocation31 + $0x158] sm:$0xff]
        %v4232 = vld [vmem:[#allocation31 + $0x160] sm:$0xff]
        %v4233 = vld [vmem:[#allocation31 + $0x168] sm:$0xff]
        %v4234 = vld [vmem:[#allocation31 + $0x170] sm:$0xff]
        %v4235 = vld [vmem:[#allocation31 + $0x178] sm:$0xff]
        %v4236 = vld [vmem:[#allocation31 + $0x180] sm:$0xff]
        %v4237 = vld [vmem:[#allocation31 + $0x188] sm:$0xff]
        %v4238 = vld [vmem:[#allocation31 + $0x190] sm:$0xff]
        %v4239 = vld [vmem:[#allocation31 + $0x198] sm:$0xff]
        %v4240 = vld [vmem:[#allocation31 + $0x1a0] sm:$0xff]
        %v4241 = vld [vmem:[#allocation31 + $0x1a8] sm:$0xff]
        %v4242 = vld [vmem:[#allocation31 + $0x1b0] sm:$0xff]
        %v4243 = vld [vmem:[#allocation31 + $0x1b8] sm:$0xff]
        %v4244 = vld [vmem:[#allocation31 + $0x1c0] sm:$0xff]
        %v4245 = vld [vmem:[#allocation31 + $0x1c8] sm:$0xff]
        %v4246 = vld [vmem:[#allocation31 + $0x1d0] sm:$0xff]
        %v4247 = vld [vmem:[#allocation31 + $0x1d8] sm:$0xff]
        %v4248 = vld [vmem:[#allocation31 + $0x1e0] sm:$0xff]
        %v4249 = vld [vmem:[#allocation31 + $0x1e8] sm:$0xff]
        %v4250 = vld [vmem:[#allocation31 + $0x1f0] sm:$0xff]
        %v4251 = vld [vmem:[#allocation31 + $0x1f8] sm:$0xff]
        %v4252 = vld [vmem:[#allocation31 + $0x200] sm:$0xff]
        %v4253 = vld [vmem:[#allocation31 + $0x208] sm:$0xff]
        %v4254 = vld [vmem:[#allocation31 + $0x210] sm:$0xff]
        %v4255 = vld [vmem:[#allocation31 + $0x218] sm:$0xff]
        %v4256 = vld [vmem:[#allocation31 + $0x220] sm:$0xff]
        %v4257 = vld [vmem:[#allocation31 + $0x228] sm:$0xff]
        %v4258 = vld [vmem:[#allocation31 + $0x230] sm:$0xff]
        %v4259 = vld [vmem:[#allocation31 + $0x238] sm:$0xff]
        %v4260 = vld [vmem:[#allocation31 + $0x240] sm:$0xff]
        %v4261 = vld [vmem:[#allocation31 + $0x248] sm:$0xff]
        %v4262 = vld [vmem:[#allocation31 + $0x250] sm:$0xff]
        %v4263 = vld [vmem:[#allocation31 + $0x258] sm:$0xff]
        %v4264 = vld [vmem:[#allocation31 + $0x260] sm:$0xff]
        %v4265 = vld [vmem:[#allocation31 + $0x268] sm:$0xff]
        %v4266 = vld [vmem:[#allocation31 + $0x270] sm:$0xff]
        %v4267 = vld [vmem:[#allocation31 + $0x278] sm:$0xff]
        %v4268 = vld [vmem:[#allocation31 + $0x280] sm:$0xff]
        %v4269 = vld [vmem:[#allocation31 + $0x288] sm:$0xff]
        %v4270 = vld [vmem:[#allocation31 + $0x290] sm:$0xff]
        %v4271 = vld [vmem:[#allocation31 + $0x298] sm:$0xff]
        %v4272 = vld [vmem:[#allocation31 + $0x2a0] sm:$0xff]
        %v4273 = vld [vmem:[#allocation31 + $0x2a8] sm:$0xff]
        %v4274 = vld [vmem:[#allocation31 + $0x2b0] sm:$0xff]
        %v4275 = vld [vmem:[#allocation31 + $0x2b8] sm:$0xff]
        %v4276 = vld [vmem:[#allocation31 + $0x2c0] sm:$0xff]
        %v4277 = vld [vmem:[#allocation31 + $0x2c8] sm:$0xff]
        %v4278 = vld [vmem:[#allocation31 + $0x2d0] sm:$0xff]
        %v4279 = vld [vmem:[#allocation31 + $0x2d8] sm:$0xff]
        %v4280 = vld [vmem:[#allocation31 + $0x2e0] sm:$0xff]
        %v4281 = vld [vmem:[#allocation31 + $0x2e8] sm:$0xff]
        %v4282 = vld [vmem:[#allocation31 + $0x2f0] sm:$0xff]
        %v4283 = vld [vmem:[#allocation31 + $0x2f8] sm:$0xff]
        %v4284 = vld [vmem:[#allocation31 + $0x300] sm:$0xff]
        %v4285 = vld [vmem:[#allocation31 + $0x308] sm:$0xff]
        %v4286 = vld [vmem:[#allocation31 + $0x310] sm:$0xff]
        %v4287 = vld [vmem:[#allocation31 + $0x318] sm:$0xff]
        %v4288 = vld [vmem:[#allocation31 + $0x320] sm:$0xff]
        %v4289 = vld [vmem:[#allocation31 + $0x328] sm:$0xff]
        %v4290 = vld [vmem:[#allocation31 + $0x330] sm:$0xff]
        %v4291 = vld [vmem:[#allocation31 + $0x338] sm:$0xff]
        %v4292 = vld [vmem:[#allocation31 + $0x340] sm:$0xff]
        %v4293 = vld [vmem:[#allocation31 + $0x348] sm:$0xff]
        %v4294 = vld [vmem:[#allocation31 + $0x350] sm:$0xff]
        %v4295 = vld [vmem:[#allocation31 + $0x358] sm:$0xff]
        %v4296 = vld [vmem:[#allocation31 + $0x360] sm:$0xff]
        %v4297 = vld [vmem:[#allocation31 + $0x368] sm:$0xff]
        %v4298 = vld [vmem:[#allocation31 + $0x370] sm:$0xff]
        %v4299 = vld [vmem:[#allocation31 + $0x378] sm:$0xff]
        %v4300 = vld [vmem:[#allocation31 + $0x380] sm:$0xff]
        %v4301 = vld [vmem:[#allocation31 + $0x388] sm:$0xff]
        %v4302 = vld [vmem:[#allocation31 + $0x390] sm:$0xff]
        %v4303 = vld [vmem:[#allocation31 + $0x398] sm:$0xff]
        %v4304 = vld [vmem:[#allocation31 + $0x3a0] sm:$0xff]
        %v4305 = vld [vmem:[#allocation31 + $0x3a8] sm:$0xff]
        %v4306 = vld [vmem:[#allocation31 + $0x3b0] sm:$0xff]
        %v4307 = vld [vmem:[#allocation31 + $0x3b8] sm:$0xff]
        %v4308 = vld [vmem:[#allocation31 + $0x3c0] sm:$0xff]
        %v4309 = vld [vmem:[#allocation31 + $0x3c8] sm:$0xff]
        %v4310 = vld [vmem:[#allocation31 + $0x3d0] sm:$0xff]
        %v4311 = vld [vmem:[#allocation31 + $0x3d8] sm:$0xff]
        %v4312 = vld [vmem:[#allocation31 + $0x3e0] sm:$0xff]
        %v4313 = vld [vmem:[#allocation31 + $0x3e8] sm:$0xff]
        %v4314 = vld [vmem:[#allocation31 + $0x3f0] sm:$0xff]
        %v4315 = vld [vmem:[#allocation31 + $0x3f8] sm:$0xff]
        %v4316 = vld [vmem:[%s49] sm:$0xf]
        %v4318 = vperm.slane %v4316, 0
        %v4319 = vperm.slane %v4316, 1
        %v4320 = vperm.slane %v4316, 2
        %v4321 = vperm.slane %v4316, 3
        %4326 = vmatpush.msra.mxu0 %v4248
        %4327 = vmatpush.msra.mxu0 %v4244
        %4328 = vmatpush.msra.mxu0 %v4240
        %4329 = vmatpush.msra.mxu0 %v4236
        %4330 = vmatpush.msra.mxu0 %v4232
        %4331 = vmatpush.msra.mxu0 %v4228
        %4332 = vmatpush.msra.mxu0 %v4224
        %4333 = vmatpush.msra.mxu0 %v4220
        %4334 = vmatpush.msra.mxu0 %v4216
        %4335 = vmatpush.msra.mxu0 %v4212
        %4336 = vmatpush.msra.mxu0 %v4208
        %4337 = vmatpush.msra.mxu0 %v4204
        %4338 = vmatpush.msra.mxu0 %v4200
        %4339 = vmatpush.msra.mxu0 %v4196
        %4340 = vmatpush.msra.mxu0 %v4192
        %4341 = vmatpush.msra.mxu0 %v4188
        %4342 = vmatmul.f32.gmra.mxu0 %v4184
        %v4343 = vpop.f32.mrf.mxu0
        %v4344 = vadd.f32 %v4318, %v4343
        %4345 = vmatmul.f32.gmra.mxu0 %v4186
        %v4346 = vpop.f32.mrf.mxu0
        %v4347 = vadd.f32 %v4318, %v4346
        %4348 = vdwg.mxu0
        %4349 = vmatpush.msra.mxu0 %v4312
        %4350 = vmatpush.msra.mxu0 %v4308
        %4351 = vmatpush.msra.mxu0 %v4304
        %4352 = vmatpush.msra.mxu0 %v4300
        %4353 = vmatpush.msra.mxu0 %v4296
        %4354 = vmatpush.msra.mxu0 %v4292
        %4355 = vmatpush.msra.mxu0 %v4288
        %4356 = vmatpush.msra.mxu0 %v4284
        %4357 = vmatpush.msra.mxu0 %v4280
        %4358 = vmatpush.msra.mxu0 %v4276
        %4359 = vmatpush.msra.mxu0 %v4272
        %4360 = vmatpush.msra.mxu0 %v4268
        %4361 = vmatpush.msra.mxu0 %v4264
        %4362 = vmatpush.msra.mxu0 %v4260
        %4363 = vmatpush.msra.mxu0 %v4256
        %4364 = vmatpush.msra.mxu0 %v4252
        %4365 = vmatmul.f32.gmra.mxu0 %v4185
        %v4366 = vpop.f32.mrf.mxu0
        %v4367 = vadd.f32 %v4344, %v4366
        %4368 = vmatmul.f32.gmra.mxu0 %v4187
        %v4369 = vpop.f32.mrf.mxu0
        %v4370 = vadd.f32 %v4347, %v4369
        %4371 = vdwg.mxu0
        %4372 = vmatpush.msra.mxu0 %v4249
        %4373 = vmatpush.msra.mxu0 %v4245
        %4374 = vmatpush.msra.mxu0 %v4241
        %4375 = vmatpush.msra.mxu0 %v4237
        %4376 = vmatpush.msra.mxu0 %v4233
        %4377 = vmatpush.msra.mxu0 %v4229
        %4378 = vmatpush.msra.mxu0 %v4225
        %4379 = vmatpush.msra.mxu0 %v4221
        %4380 = vmatpush.msra.mxu0 %v4217
        %4381 = vmatpush.msra.mxu0 %v4213
        %4382 = vmatpush.msra.mxu0 %v4209
        %4383 = vmatpush.msra.mxu0 %v4205
        %4384 = vmatpush.msra.mxu0 %v4201
        %4385 = vmatpush.msra.mxu0 %v4197
        %4386 = vmatpush.msra.mxu0 %v4193
        %4387 = vmatpush.msra.mxu0 %v4189
        %4388 = vmatmul.f32.gmra.mxu0 %v4184
        %v4389 = vpop.f32.mrf.mxu0
        %v4390 = vadd.f32 %v4319, %v4389
        %4391 = vmatmul.f32.gmra.mxu0 %v4186
        %v4392 = vpop.f32.mrf.mxu0
        %v4393 = vadd.f32 %v4319, %v4392
        %4394 = vdwg.mxu0
        %4395 = vmatpush.msra.mxu0 %v4313
        %4396 = vmatpush.msra.mxu0 %v4309
        %4397 = vmatpush.msra.mxu0 %v4305
        %4398 = vmatpush.msra.mxu0 %v4301
        %4399 = vmatpush.msra.mxu0 %v4297
        %4400 = vmatpush.msra.mxu0 %v4293
        %4401 = vmatpush.msra.mxu0 %v4289
        %4402 = vmatpush.msra.mxu0 %v4285
        %4403 = vmatpush.msra.mxu0 %v4281
        %4404 = vmatpush.msra.mxu0 %v4277
        %4405 = vmatpush.msra.mxu0 %v4273
        %4406 = vmatpush.msra.mxu0 %v4269
        %4407 = vmatpush.msra.mxu0 %v4265
        %4408 = vmatpush.msra.mxu0 %v4261
        %4409 = vmatpush.msra.mxu0 %v4257
        %4410 = vmatpush.msra.mxu0 %v4253
        %4411 = vmatmul.f32.gmra.mxu0 %v4185
        %v4412 = vpop.f32.mrf.mxu0
        %v4413 = vadd.f32 %v4390, %v4412
        %4414 = vmatmul.f32.gmra.mxu0 %v4187
        %v4415 = vpop.f32.mrf.mxu0
        %v4416 = vadd.f32 %v4393, %v4415
        %4417 = vdwg.mxu0
        %4418 = vmatpush.msra.mxu0 %v4250
        %4419 = vmatpush.msra.mxu0 %v4246
        %4420 = vmatpush.msra.mxu0 %v4242
        %4421 = vmatpush.msra.mxu0 %v4238
        %4422 = vmatpush.msra.mxu0 %v4234
        %4423 = vmatpush.msra.mxu0 %v4230
        %4424 = vmatpush.msra.mxu0 %v4226
        %4425 = vmatpush.msra.mxu0 %v4222
        %4426 = vmatpush.msra.mxu0 %v4218
        %4427 = vmatpush.msra.mxu0 %v4214
        %4428 = vmatpush.msra.mxu0 %v4210
        %4429 = vmatpush.msra.mxu0 %v4206
        %4430 = vmatpush.msra.mxu0 %v4202
        %4431 = vmatpush.msra.mxu0 %v4198
        %4432 = vmatpush.msra.mxu0 %v4194
        %4433 = vmatpush.msra.mxu0 %v4190
        %4434 = vmatmul.f32.gmra.mxu0 %v4184
        %v4435 = vpop.f32.mrf.mxu0
        %v4436 = vadd.f32 %v4320, %v4435
        %4437 = vmatmul.f32.gmra.mxu0 %v4186
        %v4438 = vpop.f32.mrf.mxu0
        %v4439 = vadd.f32 %v4320, %v4438
        %4440 = vdwg.mxu0
        %4441 = vmatpush.msra.mxu0 %v4314
        %4442 = vmatpush.msra.mxu0 %v4310
        %4443 = vmatpush.msra.mxu0 %v4306
        %4444 = vmatpush.msra.mxu0 %v4302
        %4445 = vmatpush.msra.mxu0 %v4298
        %4446 = vmatpush.msra.mxu0 %v4294
        %4447 = vmatpush.msra.mxu0 %v4290
        %4448 = vmatpush.msra.mxu0 %v4286
        %4449 = vmatpush.msra.mxu0 %v4282
        %4450 = vmatpush.msra.mxu0 %v4278
        %4451 = vmatpush.msra.mxu0 %v4274
        %4452 = vmatpush.msra.mxu0 %v4270
        %4453 = vmatpush.msra.mxu0 %v4266
        %4454 = vmatpush.msra.mxu0 %v4262
        %4455 = vmatpush.msra.mxu0 %v4258
        %4456 = vmatpush.msra.mxu0 %v4254
        %4457 = vmatmul.f32.gmra.mxu0 %v4185
        %v4458 = vpop.f32.mrf.mxu0
        %v4459 = vadd.f32 %v4436, %v4458
        %4460 = vmatmul.f32.gmra.mxu0 %v4187
        %v4461 = vpop.f32.mrf.mxu0
        %v4462 = vadd.f32 %v4439, %v4461
        %4463 = vdwg.mxu0
        %4464 = vmatpush.msra.mxu0 %v4251
        %4465 = vmatpush.msra.mxu0 %v4247
        %4466 = vmatpush.msra.mxu0 %v4243
        %4467 = vmatpush.msra.mxu0 %v4239
        %4468 = vmatpush.msra.mxu0 %v4235
        %4469 = vmatpush.msra.mxu0 %v4231
        %4470 = vmatpush.msra.mxu0 %v4227
        %4471 = vmatpush.msra.mxu0 %v4223
        %4472 = vmatpush.msra.mxu0 %v4219
        %4473 = vmatpush.msra.mxu0 %v4215
        %4474 = vmatpush.msra.mxu0 %v4211
        %4475 = vmatpush.msra.mxu0 %v4207
        %4476 = vmatpush.msra.mxu0 %v4203
        %4477 = vmatpush.msra.mxu0 %v4199
        %4478 = vmatpush.msra.mxu0 %v4195
        %4479 = vmatpush.msra.mxu0 %v4191
        %4480 = vmatmul.f32.gmra.mxu0 %v4184
        %v4481 = vpop.f32.mrf.mxu0
        %v4482 = vadd.f32 %v4321, %v4481
        %4483 = vmatmul.f32.gmra.mxu0 %v4186
        %v4484 = vpop.f32.mrf.mxu0
        %v4485 = vadd.f32 %v4321, %v4484
        %4486 = vdwg.mxu0
        %4487 = vmatpush.msra.mxu0 %v4315
        %4488 = vmatpush.msra.mxu0 %v4311
        %4489 = vmatpush.msra.mxu0 %v4307
        %4490 = vmatpush.msra.mxu0 %v4303
        %4491 = vmatpush.msra.mxu0 %v4299
        %4492 = vmatpush.msra.mxu0 %v4295
        %4493 = vmatpush.msra.mxu0 %v4291
        %4494 = vmatpush.msra.mxu0 %v4287
        %4495 = vmatpush.msra.mxu0 %v4283
        %4496 = vmatpush.msra.mxu0 %v4279
        %4497 = vmatpush.msra.mxu0 %v4275
        %4498 = vmatpush.msra.mxu0 %v4271
        %4499 = vmatpush.msra.mxu0 %v4267
        %4500 = vmatpush.msra.mxu0 %v4263
        %4501 = vmatpush.msra.mxu0 %v4259
        %4502 = vmatpush.msra.mxu0 %v4255
        %4503 = vmatmul.f32.gmra.mxu0 %v4185
        %v4504 = vpop.f32.mrf.mxu0
        %v4505 = vadd.f32 %v4482, %v4504
        %4506 = vmatmul.f32.gmra.mxu0 %v4187
        %v4507 = vpop.f32.mrf.mxu0
        %v4508 = vadd.f32 %v4485, %v4507
        %4509 = vdwg.mxu0
        %v4510 = vmax.f32 %v4367, 0.0
        %v4511 = vmax.f32 %v4413, 0.0
        %v4512 = vmax.f32 %v4459, 0.0
        %v4513 = vmax.f32 %v4505, 0.0
        %v4514 = vmax.f32 %v4370, 0.0
        %v4515 = vmax.f32 %v4416, 0.0
        %v4516 = vmax.f32 %v4462, 0.0
        %v4517 = vmax.f32 %v4508, 0.0
        %v4518 = vld [vmem:[#allocation33] sm:$0xff]
        %v4519 = vld [vmem:[#allocation33 + $0x8] sm:$0xff]
        %v4520 = vld [vmem:[#allocation33 + $0x10] sm:$0xff]
        %v4521 = vld [vmem:[#allocation33 + $0x18] sm:$0xff]
        %v4522 = vld [vmem:[#allocation33 + $0x20] sm:$0xff]
        %v4523 = vld [vmem:[#allocation33 + $0x28] sm:$0xff]
        %v4524 = vld [vmem:[#allocation33 + $0x30] sm:$0xff]
        %v4525 = vld [vmem:[#allocation33 + $0x38] sm:$0xff]
        %v4526 = vld [vmem:[#allocation33 + $0x40] sm:$0xff]
        %v4527 = vld [vmem:[#allocation33 + $0x48] sm:$0xff]
        %v4528 = vld [vmem:[#allocation33 + $0x50] sm:$0xff]
        %v4529 = vld [vmem:[#allocation33 + $0x58] sm:$0xff]
        %v4530 = vld [vmem:[#allocation33 + $0x60] sm:$0xff]
        %v4531 = vld [vmem:[#allocation33 + $0x68] sm:$0xff]
        %v4532 = vld [vmem:[#allocation33 + $0x70] sm:$0xff]
        %v4533 = vld [vmem:[#allocation33 + $0x78] sm:$0xff]
        %v4534 = vld [vmem:[#allocation33 + $0x80] sm:$0xff]
        %v4535 = vld [vmem:[#allocation33 + $0x88] sm:$0xff]
        %v4536 = vld [vmem:[#allocation33 + $0x90] sm:$0xff]
        %v4537 = vld [vmem:[#allocation33 + $0x98] sm:$0xff]
        %v4538 = vld [vmem:[#allocation33 + $0xa0] sm:$0xff]
        %v4539 = vld [vmem:[#allocation33 + $0xa8] sm:$0xff]
        %v4540 = vld [vmem:[#allocation33 + $0xb0] sm:$0xff]
        %v4541 = vld [vmem:[#allocation33 + $0xb8] sm:$0xff]
        %v4542 = vld [vmem:[#allocation33 + $0xc0] sm:$0xff]
        %v4543 = vld [vmem:[#allocation33 + $0xc8] sm:$0xff]
        %v4544 = vld [vmem:[#allocation33 + $0xd0] sm:$0xff]
        %v4545 = vld [vmem:[#allocation33 + $0xd8] sm:$0xff]
        %v4546 = vld [vmem:[#allocation33 + $0xe0] sm:$0xff]
        %v4547 = vld [vmem:[#allocation33 + $0xe8] sm:$0xff]
        %v4548 = vld [vmem:[#allocation33 + $0xf0] sm:$0xff]
        %v4549 = vld [vmem:[#allocation33 + $0xf8] sm:$0xff]
        %v4550 = vld [vmem:[#allocation33 + $0x100] sm:$0xff]
        %v4551 = vld [vmem:[#allocation33 + $0x108] sm:$0xff]
        %v4552 = vld [vmem:[#allocation33 + $0x110] sm:$0xff]
        %v4553 = vld [vmem:[#allocation33 + $0x118] sm:$0xff]
        %v4554 = vld [vmem:[#allocation33 + $0x120] sm:$0xff]
        %v4555 = vld [vmem:[#allocation33 + $0x128] sm:$0xff]
        %v4556 = vld [vmem:[#allocation33 + $0x130] sm:$0xff]
        %v4557 = vld [vmem:[#allocation33 + $0x138] sm:$0xff]
        %v4558 = vld [vmem:[#allocation33 + $0x140] sm:$0xff]
        %v4559 = vld [vmem:[#allocation33 + $0x148] sm:$0xff]
        %v4560 = vld [vmem:[#allocation33 + $0x150] sm:$0xff]
        %v4561 = vld [vmem:[#allocation33 + $0x158] sm:$0xff]
        %v4562 = vld [vmem:[#allocation33 + $0x160] sm:$0xff]
        %v4563 = vld [vmem:[#allocation33 + $0x168] sm:$0xff]
        %v4564 = vld [vmem:[#allocation33 + $0x170] sm:$0xff]
        %v4565 = vld [vmem:[#allocation33 + $0x178] sm:$0xff]
        %v4566 = vld [vmem:[#allocation33 + $0x180] sm:$0xff]
        %v4567 = vld [vmem:[#allocation33 + $0x188] sm:$0xff]
        %v4568 = vld [vmem:[#allocation33 + $0x190] sm:$0xff]
        %v4569 = vld [vmem:[#allocation33 + $0x198] sm:$0xff]
        %v4570 = vld [vmem:[#allocation33 + $0x1a0] sm:$0xff]
        %v4571 = vld [vmem:[#allocation33 + $0x1a8] sm:$0xff]
        %v4572 = vld [vmem:[#allocation33 + $0x1b0] sm:$0xff]
        %v4573 = vld [vmem:[#allocation33 + $0x1b8] sm:$0xff]
        %v4574 = vld [vmem:[#allocation33 + $0x1c0] sm:$0xff]
        %v4575 = vld [vmem:[#allocation33 + $0x1c8] sm:$0xff]
        %v4576 = vld [vmem:[#allocation33 + $0x1d0] sm:$0xff]
        %v4577 = vld [vmem:[#allocation33 + $0x1d8] sm:$0xff]
        %v4578 = vld [vmem:[#allocation33 + $0x1e0] sm:$0xff]
        %v4579 = vld [vmem:[#allocation33 + $0x1e8] sm:$0xff]
        %v4580 = vld [vmem:[#allocation33 + $0x1f0] sm:$0xff]
        %v4581 = vld [vmem:[#allocation33 + $0x1f8] sm:$0xff]
        %v4582 = vld [vmem:[#allocation33 + $0x200] sm:$0xff]
        %v4583 = vld [vmem:[#allocation33 + $0x208] sm:$0xff]
        %v4584 = vld [vmem:[#allocation33 + $0x210] sm:$0xff]
        %v4585 = vld [vmem:[#allocation33 + $0x218] sm:$0xff]
        %v4586 = vld [vmem:[#allocation33 + $0x220] sm:$0xff]
        %v4587 = vld [vmem:[#allocation33 + $0x228] sm:$0xff]
        %v4588 = vld [vmem:[#allocation33 + $0x230] sm:$0xff]
        %v4589 = vld [vmem:[#allocation33 + $0x238] sm:$0xff]
        %v4590 = vld [vmem:[#allocation33 + $0x240] sm:$0xff]
        %v4591 = vld [vmem:[#allocation33 + $0x248] sm:$0xff]
        %v4592 = vld [vmem:[#allocation33 + $0x250] sm:$0xff]
        %v4593 = vld [vmem:[#allocation33 + $0x258] sm:$0xff]
        %v4594 = vld [vmem:[#allocation33 + $0x260] sm:$0xff]
        %v4595 = vld [vmem:[#allocation33 + $0x268] sm:$0xff]
        %v4596 = vld [vmem:[#allocation33 + $0x270] sm:$0xff]
        %v4597 = vld [vmem:[#allocation33 + $0x278] sm:$0xff]
        %v4598 = vld [vmem:[#allocation33 + $0x280] sm:$0xff]
        %v4599 = vld [vmem:[#allocation33 + $0x288] sm:$0xff]
        %v4600 = vld [vmem:[#allocation33 + $0x290] sm:$0xff]
        %v4601 = vld [vmem:[#allocation33 + $0x298] sm:$0xff]
        %v4602 = vld [vmem:[#allocation33 + $0x2a0] sm:$0xff]
        %v4603 = vld [vmem:[#allocation33 + $0x2a8] sm:$0xff]
        %v4604 = vld [vmem:[#allocation33 + $0x2b0] sm:$0xff]
        %v4605 = vld [vmem:[#allocation33 + $0x2b8] sm:$0xff]
        %v4606 = vld [vmem:[#allocation33 + $0x2c0] sm:$0xff]
        %v4607 = vld [vmem:[#allocation33 + $0x2c8] sm:$0xff]
        %v4608 = vld [vmem:[#allocation33 + $0x2d0] sm:$0xff]
        %v4609 = vld [vmem:[#allocation33 + $0x2d8] sm:$0xff]
        %v4610 = vld [vmem:[#allocation33 + $0x2e0] sm:$0xff]
        %v4611 = vld [vmem:[#allocation33 + $0x2e8] sm:$0xff]
        %v4612 = vld [vmem:[#allocation33 + $0x2f0] sm:$0xff]
        %v4613 = vld [vmem:[#allocation33 + $0x2f8] sm:$0xff]
        %v4614 = vld [vmem:[#allocation33 + $0x300] sm:$0xff]
        %v4615 = vld [vmem:[#allocation33 + $0x308] sm:$0xff]
        %v4616 = vld [vmem:[#allocation33 + $0x310] sm:$0xff]
        %v4617 = vld [vmem:[#allocation33 + $0x318] sm:$0xff]
        %v4618 = vld [vmem:[#allocation33 + $0x320] sm:$0xff]
        %v4619 = vld [vmem:[#allocation33 + $0x328] sm:$0xff]
        %v4620 = vld [vmem:[#allocation33 + $0x330] sm:$0xff]
        %v4621 = vld [vmem:[#allocation33 + $0x338] sm:$0xff]
        %v4622 = vld [vmem:[#allocation33 + $0x340] sm:$0xff]
        %v4623 = vld [vmem:[#allocation33 + $0x348] sm:$0xff]
        %v4624 = vld [vmem:[#allocation33 + $0x350] sm:$0xff]
        %v4625 = vld [vmem:[#allocation33 + $0x358] sm:$0xff]
        %v4626 = vld [vmem:[#allocation33 + $0x360] sm:$0xff]
        %v4627 = vld [vmem:[#allocation33 + $0x368] sm:$0xff]
        %v4628 = vld [vmem:[#allocation33 + $0x370] sm:$0xff]
        %v4629 = vld [vmem:[#allocation33 + $0x378] sm:$0xff]
        %v4630 = vld [vmem:[#allocation33 + $0x380] sm:$0xff]
        %v4631 = vld [vmem:[#allocation33 + $0x388] sm:$0xff]
        %v4632 = vld [vmem:[#allocation33 + $0x390] sm:$0xff]
        %v4633 = vld [vmem:[#allocation33 + $0x398] sm:$0xff]
        %v4634 = vld [vmem:[#allocation33 + $0x3a0] sm:$0xff]
        %v4635 = vld [vmem:[#allocation33 + $0x3a8] sm:$0xff]
        %v4636 = vld [vmem:[#allocation33 + $0x3b0] sm:$0xff]
        %v4637 = vld [vmem:[#allocation33 + $0x3b8] sm:$0xff]
        %v4638 = vld [vmem:[#allocation33 + $0x3c0] sm:$0xff]
        %v4639 = vld [vmem:[#allocation33 + $0x3c8] sm:$0xff]
        %v4640 = vld [vmem:[#allocation33 + $0x3d0] sm:$0xff]
        %v4641 = vld [vmem:[#allocation33 + $0x3d8] sm:$0xff]
        %v4642 = vld [vmem:[#allocation33 + $0x3e0] sm:$0xff]
        %v4643 = vld [vmem:[#allocation33 + $0x3e8] sm:$0xff]
        %v4644 = vld [vmem:[#allocation33 + $0x3f0] sm:$0xff]
        %v4645 = vld [vmem:[#allocation33 + $0x3f8] sm:$0xff]
        %v4646 = vld [vmem:[%s53] sm:$0x3]
        %v4648 = vperm.slane %v4646, 0
        %v4649 = vperm.slane %v4646, 1
        %4652 = vmatpush.msra.mxu0 %v4548
        %4653 = vmatpush.msra.mxu0 %v4546
        %4654 = vmatpush.msra.mxu0 %v4544
        %4655 = vmatpush.msra.mxu0 %v4542
        %4656 = vmatpush.msra.mxu0 %v4540
        %4657 = vmatpush.msra.mxu0 %v4538
        %4658 = vmatpush.msra.mxu0 %v4536
        %4659 = vmatpush.msra.mxu0 %v4534
        %4660 = vmatpush.msra.mxu0 %v4532
        %4661 = vmatpush.msra.mxu0 %v4530
        %4662 = vmatpush.msra.mxu0 %v4528
        %4663 = vmatpush.msra.mxu0 %v4526
        %4664 = vmatpush.msra.mxu0 %v4524
        %4665 = vmatpush.msra.mxu0 %v4522
        %4666 = vmatpush.msra.mxu0 %v4520
        %4667 = vmatpush.msra.mxu0 %v4518
        %4668 = vmatmul.f32.gmra.mxu0 %v4510
        %v4669 = vpop.f32.mrf.mxu0
        %v4670 = vadd.f32 %v4648, %v4669
        %4671 = vmatmul.f32.gmra.mxu0 %v4514
        %v4672 = vpop.f32.mrf.mxu0
        %v4673 = vadd.f32 %v4648, %v4672
        %4674 = vdwg.mxu0
        %4675 = vmatpush.msra.mxu0 %v4580
        %4676 = vmatpush.msra.mxu0 %v4578
        %4677 = vmatpush.msra.mxu0 %v4576
        %4678 = vmatpush.msra.mxu0 %v4574
        %4679 = vmatpush.msra.mxu0 %v4572
        %4680 = vmatpush.msra.mxu0 %v4570
        %4681 = vmatpush.msra.mxu0 %v4568
        %4682 = vmatpush.msra.mxu0 %v4566
        %4683 = vmatpush.msra.mxu0 %v4564
        %4684 = vmatpush.msra.mxu0 %v4562
        %4685 = vmatpush.msra.mxu0 %v4560
        %4686 = vmatpush.msra.mxu0 %v4558
        %4687 = vmatpush.msra.mxu0 %v4556
        %4688 = vmatpush.msra.mxu0 %v4554
        %4689 = vmatpush.msra.mxu0 %v4552
        %4690 = vmatpush.msra.mxu0 %v4550
        %4691 = vmatmul.f32.gmra.mxu0 %v4511
        %v4692 = vpop.f32.mrf.mxu0
        %v4693 = vadd.f32 %v4670, %v4692
        %4694 = vmatmul.f32.gmra.mxu0 %v4515
        %v4695 = vpop.f32.mrf.mxu0
        %v4696 = vadd.f32 %v4673, %v4695
        %4697 = vdwg.mxu0
        %4698 = vmatpush.msra.mxu0 %v4612
        %4699 = vmatpush.msra.mxu0 %v4610
        %4700 = vmatpush.msra.mxu0 %v4608
        %4701 = vmatpush.msra.mxu0 %v4606
        %4702 = vmatpush.msra.mxu0 %v4604
        %4703 = vmatpush.msra.mxu0 %v4602
        %4704 = vmatpush.msra.mxu0 %v4600
        %4705 = vmatpush.msra.mxu0 %v4598
        %4706 = vmatpush.msra.mxu0 %v4596
        %4707 = vmatpush.msra.mxu0 %v4594
        %4708 = vmatpush.msra.mxu0 %v4592
        %4709 = vmatpush.msra.mxu0 %v4590
        %4710 = vmatpush.msra.mxu0 %v4588
        %4711 = vmatpush.msra.mxu0 %v4586
        %4712 = vmatpush.msra.mxu0 %v4584
        %4713 = vmatpush.msra.mxu0 %v4582
        %4714 = vmatmul.f32.gmra.mxu0 %v4512
        %v4715 = vpop.f32.mrf.mxu0
        %v4716 = vadd.f32 %v4693, %v4715
        %4717 = vmatmul.f32.gmra.mxu0 %v4516
        %v4718 = vpop.f32.mrf.mxu0
        %v4719 = vadd.f32 %v4696, %v4718
        %4720 = vdwg.mxu0
        %4721 = vmatpush.msra.mxu0 %v4644
        %4722 = vmatpush.msra.mxu0 %v4642
        %4723 = vmatpush.msra.mxu0 %v4640
        %4724 = vmatpush.msra.mxu0 %v4638
        %4725 = vmatpush.msra.mxu0 %v4636
        %4726 = vmatpush.msra.mxu0 %v4634
        %4727 = vmatpush.msra.mxu0 %v4632
        %4728 = vmatpush.msra.mxu0 %v4630
        %4729 = vmatpush.msra.mxu0 %v4628
        %4730 = vmatpush.msra.mxu0 %v4626
        %4731 = vmatpush.msra.mxu0 %v4624
        %4732 = vmatpush.msra.mxu0 %v4622
        %4733 = vmatpush.msra.mxu0 %v4620
        %4734 = vmatpush.msra.mxu0 %v4618
        %4735 = vmatpush.msra.mxu0 %v4616
        %4736 = vmatpush.msra.mxu0 %v4614
        %4737 = vmatmul.f32.gmra.mxu0 %v4513
        %v4738 = vpop.f32.mrf.mxu0
        %v4739 = vadd.f32 %v4716, %v4738
        %4740 = vmatmul.f32.gmra.mxu0 %v4517
        %v4741 = vpop.f32.mrf.mxu0
        %v4742 = vadd.f32 %v4719, %v4741
        %4743 = vdwg.mxu0
        %4744 = vmatpush.msra.mxu0 %v4549
        %4745 = vmatpush.msra.mxu0 %v4547
        %4746 = vmatpush.msra.mxu0 %v4545
        %4747 = vmatpush.msra.mxu0 %v4543
        %4748 = vmatpush.msra.mxu0 %v4541
        %4749 = vmatpush.msra.mxu0 %v4539
        %4750 = vmatpush.msra.mxu0 %v4537
        %4751 = vmatpush.msra.mxu0 %v4535
        %4752 = vmatpush.msra.mxu0 %v4533
        %4753 = vmatpush.msra.mxu0 %v4531
        %4754 = vmatpush.msra.mxu0 %v4529
        %4755 = vmatpush.msra.mxu0 %v4527
        %4756 = vmatpush.msra.mxu0 %v4525
        %4757 = vmatpush.msra.mxu0 %v4523
        %4758 = vmatpush.msra.mxu0 %v4521
        %4759 = vmatpush.msra.mxu0 %v4519
        %4760 = vmatmul.f32.gmra.mxu0 %v4510
        %v4761 = vpop.f32.mrf.mxu0
        %v4762 = vadd.f32 %v4649, %v4761
        %4763 = vmatmul.f32.gmra.mxu0 %v4514
        %v4764 = vpop.f32.mrf.mxu0
        %v4765 = vadd.f32 %v4649, %v4764
        %4766 = vdwg.mxu0
        %4767 = vmatpush.msra.mxu0 %v4581
        %4768 = vmatpush.msra.mxu0 %v4579
        %4769 = vmatpush.msra.mxu0 %v4577
        %4770 = vmatpush.msra.mxu0 %v4575
        %4771 = vmatpush.msra.mxu0 %v4573
        %4772 = vmatpush.msra.mxu0 %v4571
        %4773 = vmatpush.msra.mxu0 %v4569
        %4774 = vmatpush.msra.mxu0 %v4567
        %4775 = vmatpush.msra.mxu0 %v4565
        %4776 = vmatpush.msra.mxu0 %v4563
        %4777 = vmatpush.msra.mxu0 %v4561
        %4778 = vmatpush.msra.mxu0 %v4559
        %4779 = vmatpush.msra.mxu0 %v4557
        %4780 = vmatpush.msra.mxu0 %v4555
        %4781 = vmatpush.msra.mxu0 %v4553
        %4782 = vmatpush.msra.mxu0 %v4551
        %4783 = vmatmul.f32.gmra.mxu0 %v4511
        %v4784 = vpop.f32.mrf.mxu0
        %v4785 = vadd.f32 %v4762, %v4784
        %4786 = vmatmul.f32.gmra.mxu0 %v4515
        %v4787 = vpop.f32.mrf.mxu0
        %v4788 = vadd.f32 %v4765, %v4787
        %4789 = vdwg.mxu0
        %4790 = vmatpush.msra.mxu0 %v4613
        %4791 = vmatpush.msra.mxu0 %v4611
        %4792 = vmatpush.msra.mxu0 %v4609
        %4793 = vmatpush.msra.mxu0 %v4607
        %4794 = vmatpush.msra.mxu0 %v4605
        %4795 = vmatpush.msra.mxu0 %v4603
        %4796 = vmatpush.msra.mxu0 %v4601
        %4797 = vmatpush.msra.mxu0 %v4599
        %4798 = vmatpush.msra.mxu0 %v4597
        %4799 = vmatpush.msra.mxu0 %v4595
        %4800 = vmatpush.msra.mxu0 %v4593
        %4801 = vmatpush.msra.mxu0 %v4591
        %4802 = vmatpush.msra.mxu0 %v4589
        %4803 = vmatpush.msra.mxu0 %v4587
        %4804 = vmatpush.msra.mxu0 %v4585
        %4805 = vmatpush.msra.mxu0 %v4583
        %4806 = vmatmul.f32.gmra.mxu0 %v4512
        %v4807 = vpop.f32.mrf.mxu0
        %v4808 = vadd.f32 %v4785, %v4807
        %4809 = vmatmul.f32.gmra.mxu0 %v4516
        %v4810 = vpop.f32.mrf.mxu0
        %v4811 = vadd.f32 %v4788, %v4810
        %4812 = vdwg.mxu0
        %4813 = vmatpush.msra.mxu0 %v4645
        %4814 = vmatpush.msra.mxu0 %v4643
        %4815 = vmatpush.msra.mxu0 %v4641
        %4816 = vmatpush.msra.mxu0 %v4639
        %4817 = vmatpush.msra.mxu0 %v4637
        %4818 = vmatpush.msra.mxu0 %v4635
        %4819 = vmatpush.msra.mxu0 %v4633
        %4820 = vmatpush.msra.mxu0 %v4631
        %4821 = vmatpush.msra.mxu0 %v4629
        %4822 = vmatpush.msra.mxu0 %v4627
        %4823 = vmatpush.msra.mxu0 %v4625
        %4824 = vmatpush.msra.mxu0 %v4623
        %4825 = vmatpush.msra.mxu0 %v4621
        %4826 = vmatpush.msra.mxu0 %v4619
        %4827 = vmatpush.msra.mxu0 %v4617
        %4828 = vmatpush.msra.mxu0 %v4615
        %4829 = vmatmul.f32.gmra.mxu0 %v4513
        %v4830 = vpop.f32.mrf.mxu0
        %v4831 = vadd.f32 %v4808, %v4830
        %4832 = vmatmul.f32.gmra.mxu0 %v4517
        %v4833 = vpop.f32.mrf.mxu0
        %v4834 = vadd.f32 %v4811, %v4833
        %4835 = vdwg.mxu0
        %v4836 = vadd.f32 %v4739, %v4184
        %v4837 = vadd.f32 %v4831, %v4185
        %v4838 = vadd.f32 %v4742, %v4186
        %v4839 = vadd.f32 %v4834, %v4187
        %v4840 = vadd.f32 %v4836, %v4837
        %4841 = vadd.xlane.f32.xlu0 %v4840
        %v4842 = vpop.xlane.xlu0 %4841
        %v4843 = vadd.f32 %v4838, %v4839
        %4844 = vadd.xlane.f32.xlu0 %v4843
        %v4845 = vpop.xlane.xlu0 %4844
        %v4846 = vmul.f32 %v4842, %v3156
        %v4847 = vmul.f32 %v4845, %v3156
        %v4848 = vsub.f32 %v4836, %v4846
        %v4849 = vsub.f32 %v4837, %v4846
        %v4850 = vsub.f32 %v4838, %v4847
        %v4851 = vsub.f32 %v4839, %v4847
        %v4852 = vmul.f32 %v4848, %v4848
        %v4853 = vmul.f32 %v4849, %v4849
        %v4854 = vmul.f32 %v4850, %v4850
        %v4855 = vmul.f32 %v4851, %v4851
        %v4856 = vadd.f32 %v4852, %v4853
        %4857 = vadd.xlane.f32.xlu0 %v4856
        %v4858 = vpop.xlane.xlu0 %4857
        %v4859 = vadd.f32 %v4854, %v4855
        %4860 = vadd.xlane.f32.xlu0 %v4859
        %v4861 = vpop.xlane.xlu0 %4860
        %v4862 = vmul.f32 %v4858, %v3156
        %v4863 = vmul.f32 %v4861, %v3156
        %v4864 = vadd.f32 %v4862, 1e-12
        %v4865 = vadd.f32 %v4863, 1e-12
        %v4866 = vrsqrt.pop %v4864
        %v4867 = vmul.f32 %v4866, %v4864
        %v4868 = vmul.f32 %v4867, %v4866
        %v4869 = vmul.f32 0.5, %v4868
        %v4870 = vsub.f32 1.5, %v4869
        %v4871 = vmul.f32 %v4866, %v4870
        %vm4872 = vweird.f32 %v4864
        %vm4873 = vweird.f32 %v4866
        %vm4874 = vmor %vm4872, %vm4873
        %v4875 = vsel %vm4874, %v4866, %v4871
        %v4876 = vrsqrt.pop %v4865
        %v4877 = vmul.f32 %v4876, %v4865
        %v4878 = vmul.f32 %v4877, %v4876
        %v4879 = vmul.f32 0.5, %v4878
        %v4880 = vsub.f32 1.5, %v4879
        %v4881 = vmul.f32 %v4876, %v4880
        %vm4882 = vweird.f32 %v4865
        %vm4883 = vweird.f32 %v4876
        %vm4884 = vmor %vm4882, %vm4883
        %v4885 = vsel %vm4884, %v4876, %v4881
        %v4886 = vmul.f32 %v4848, %v4875
        %v4887 = vmul.f32 %v4849, %v4875
        %v4888 = vmul.f32 %v4850, %v4885
        %v4889 = vmul.f32 %v4851, %v4885
        %v4890 = vld [vmem:[%s55] sm:$0x3]
        %v4892 = vperm.slane %v4890, 0
        %v4893 = vperm.slane %v4890, 1
        %v4896 = vmul.f32 %v4886, %v4892
        %v4897 = vmul.f32 %v4887, %v4893
        %v4898 = vmul.f32 %v4888, %v4892
        %v4899 = vmul.f32 %v4889, %v4893
        %v4900 = vld [vmem:[%s57] sm:$0x3]
        %v4902 = vperm.slane %v4900, 0
        %v4903 = vperm.slane %v4900, 1
        %v4906 = vadd.f32 %v4896, %v4902
        %v4907 = vadd.f32 %v4897, %v4903
        %v4908 = vadd.f32 %v4898, %v4902
        %v4909 = vadd.f32 %v4899, %v4903
        %4910 = vst [vmem:[%s1244] sm:$0xff] %v4906
        %4911 = vst [vmem:[%s1244 + $0x8] sm:$0xff] %v4907
        %4912 = vst [vmem:[%s1244 + $0x10] sm:$0xff] %v4908
        %4913 = vst [vmem:[%s1244 + $0x18] sm:$0xff] %v4909
        %s4914 = sand.u32 %s734, 1
        %s4915 = scalar_lea.sflag [#allocation9], %s4914
        %s4916 = sand.u32 %s734, 1
        %s4917 = smul.addr %s4916, 32
        %s4918 = scalar_lea.vmem [#allocation34], %s4917
        // Predicated region
        $region209: #{tpu_custom_call.1} parent=135 // pred_check
          %p4919 = pneg %p744
        $region210: #{tpu_custom_call.1} parent=135 // pred_check_branch
          %4921 = sbr.rel (%p4919) target = $region212
        $region211: #{tpu_custom_call.1} parent=135 // pred_region
          %s4922 = smul.u32 2, %s91
          %4924 = vsyncadd %s4915, 0
          %s4925 = smul.addr %s4922, 2
          %s4926 = smul.addr %s90, 8
          %s4927 = sadd.s32 %s4925, %s4926
          %s4928 = smul.addr %s4927, 8
          %s4929 = scalar_lea.hbm %s59, %s4928
          %s4930 = sshll.u32 %s4918, 4
          %s4931 = int_to_ptr.vmem [resolvable:$true] %s4930
          %s4932 = sshll.u32 %s4929, 4
          %s4933 = int_to_ptr.hbm [resolvable:$true] %s4932
          %4938 = dma.vmem_to_hbm [thread:$0]  %s4931, 512, %s4933, %s4915, 256, 256, 16
        $region212: #{tpu_custom_call.1} parent=135 // pred_fallthru
          _
      $region136: #{tpu_custom_call.1} parent=5 // pred_fallthru
        _
      %p4939 = scmp.le.s32.totalorder 2, %s81
      // Predicated region
      $region213: #{tpu_custom_call.1} parent=5 // pred_check
        %p4940 = pneg %p4939
      $region214: #{tpu_custom_call.1} parent=5 // pred_check_branch
        %4942 = sbr.rel (%p4940) target = $region216
      $region215: #{tpu_custom_call.1} parent=5 // pred_region
        %s4943 = ssub.s32 %s81, 2
        // Predicated region
        $region217: #{tpu_custom_call.1} parent=215 // pred_check
          %p4944 = pneg %p750
        $region218: #{tpu_custom_call.1} parent=215 // pred_check_branch
          %4946 = sbr.rel (%p4944) target = $region220
        $region219: #{tpu_custom_call.1} parent=215 // pred_region
          %s4947 = sand.u32 %s735, 1
          %s4948 = scalar_lea.sflag [#allocation9], %s4947
          %s4949 = sand.u32 %s735, 1
          %s4950 = smul.addr %s4949, 32
          %s4951 = scalar_lea.vmem [#allocation34], %s4950
          %4953 = dma.done %s4948, 512
        $region220: #{tpu_custom_call.1} parent=215 // pred_fallthru
          _
      $region216: #{tpu_custom_call.1} parent=5 // pred_fallthru
        _
    $region6: #{tpu_custom_call.1} parent=1 // loop_footer
      %s85 = sadd.s32 1, %s81
    $region7: #{tpu_custom_call.1} parent=1 // loop_footer_branch
      %80 = sbr.rel target = $region3
    $region8: #{tpu_custom_call.1} parent=1 // loop_exit
      _
    %4954 = vsyncpa [#allocation8], 1
    %s4955 = scalar_lea.sflag [#allocation8], 1
    %4956 = vsyncpa %s4955, 1
    %4957 = vsyncpa [#allocation11], 1
    %s4958 = scalar_lea.sflag [#allocation11], 1
    %4959 = vsyncpa %s4958, 1
    %4960 = vsyncpa [#allocation14], 1
    %4961 = vsyncpa [#allocation17], 1
    %4962 = vsyncpa [#allocation20], 1
    %4963 = vsyncpa [#allocation23], 1
    %4964 = vsyncpa [#allocation26], 1
    %4965 = vsyncpa [#allocation29], 1
    %4966 = vsyncpa [#allocation32], 1
    %4967 = vsyncpa [#allocation9], 1
    %s4968 = scalar_lea.sflag [#allocation9], 1
    %4969 = vsyncpa %s4968, 1

</llo_original>
